<compile_context>
chip_gen: v5e
topology: v5e:2x2
jax: 0.10.0
libtpu: 0.0.40
codegen_flags: <defaults>
</compile_context>

<pallas_src>
import jax
import jax.numpy as jnp
from jax.experimental import pallas as pl
from jax.experimental.pallas import tpu as pltpu

_LANE = 128                     # lane width: channel totals are padded to this
_MM_DTYPE = jnp.bfloat16        # matmul-operand / storage dtype (f32 accum)


def _round_up(x, m):
    return (x + m - 1) // m * m


# --------------------------------------------------------------------------
# Fused DenseBlock kernel (one grid step == one batch item, all layers)
# --------------------------------------------------------------------------
def _make_dense_block_kernel(depth, numio, H, W, CN, Kmax):
    """CN = round_up(numio, 128); Kmax = round_up(depth*numio, 128)."""
    HW = H * W

    def kernel(x_ref, w1_ref, w2_ref, sh1_ref, sh2_ref, o_ref,
               feats_ref, hp_ref):
        # feats_ref: (HW, Kmax) bf16 -- dense-packed concat [x, y0, y1, ...]
        # hp_ref   : (H+2, W+2, CN) f32 -- zero-bordered halo for the 3x3 conv

        # Zero the packed-feature scratch once per grid step.  Strictly only
        # never-yet-written pad columns need it (their w1 rows are zero), but
        # stale NaN/Inf VMEM times a zero weight would still poison the dot.
        feats_ref[...] = jnp.zeros_like(feats_ref)
        # Place the block input x into the first numio columns (lane-masked).
        feats_ref[:, :numio] = x_ref[0, :, :numio]

        # Zero only the 1-pixel border of the halo scratch; the interior is
        # fully overwritten every layer.  (No pl.when(program_id==0) guard:
        # each core has its own scratch under megacore grid sharding.)
        zrow = jnp.zeros((1, W + 2, CN), jnp.float32)
        zcol = jnp.zeros((H + 2, 1, CN), jnp.float32)
        hp_ref[0:1, :, :] = zrow
        hp_ref[H + 1:H + 2, :, :] = zrow
        hp_ref[:, 0:1, :] = zcol
        hp_ref[:, W + 1:W + 2, :] = zcol

        y = None
        for i in range(depth):
            k_real = (i + 1) * numio                 # real concat width
            k_pad = _round_up(k_real, _LANE)         # aligned matmul K

            # ---- 1x1 conv (+ folded BN/bias) + ReLU ------------------------
            xin = feats_ref[:, :k_pad]               # (HW, k_pad) bf16, aligned
            h = jnp.dot(xin, w1_ref[i, :k_pad, :],
                        preferred_element_type=jnp.float32)
            h = jnp.maximum(h + sh1_ref[i], 0.0)     # (HW, CN) f32

            # ---- 3x3 conv, padding=1: nine accumulating MXU dots -----------
            # Halo scratch stays f32: the offset-1 interior store below is a
            # plain masked 32-bit store (bf16 would need packed sublane RMW).
            hp_ref[1:H + 1, 1:W + 1, :] = h.reshape(H, W, CN)
            acc = jnp.zeros((HW, CN), jnp.float32)
            for kh in range(3):
                for kw in range(3):
                    patch = hp_ref[kh:kh + H, kw:kw + W, :]   # (H, W, CN) f32
                    acc = acc + jnp.dot(
                        patch.reshape(HW, CN).astype(_MM_DTYPE),
                        w2_ref[i, kh * 3 + kw],
                        preferred_element_type=jnp.float32)
            y = jnp.maximum(acc + sh2_ref[i], 0.0)            # (HW, CN) f32

            # ---- dense concat: torch.cat([x, layer(x)], 1) -----------------
            if i < depth - 1:
                feats_ref[:, k_real:k_real + numio] = (
                    y[:, :numio].astype(_MM_DTYPE))

        # The block returns only the LAST layer's output (bf16, lane-dense).
        o_ref[0, :, :] = y.astype(o_ref.dtype)

    return kernel


# --------------------------------------------------------------------------
# Parameter prep: fold BN + bias into weights, dense-pack + lane-pad, stack
# --------------------------------------------------------------------------
def _fold_and_pad_params(params, numio, CN, Kmax):
    depth = len(params)
    W1 = jnp.zeros((depth, Kmax, CN), jnp.float32)    # rows = packed concat ch.
    W2 = jnp.zeros((depth, 9, CN, CN), jnp.float32)   # (layer, kh*3+kw, ci, co)
    SH1 = jnp.zeros((depth, 1, CN), jnp.float32)
    SH2 = jnp.zeros((depth, 1, CN), jnp.float32)
    for i, p in enumerate(params):
        # s*(W x + b) + t  ==  (W*s) x + (b*s + t)
        w1 = p["w1"] * p["s1"]                        # (cin, numio)
        sh1 = p["b1"] * p["s1"] + p["t1"]             # (1, numio)
        w2 = p["w2"] * p["s2"][0]                     # (3, 3, numio, numio)
        sh2 = p["b2"] * p["s2"] + p["t2"]             # (1, numio)
        cin = numio * (i + 1)
        W1 = W1.at[i, :cin, :numio].set(w1)
        W2 = W2.at[i, :, :numio, :numio].set(w2.reshape(9, numio, numio))
        SH1 = SH1.at[i, 0, :numio].set(sh1[0])
        SH2 = SH2.at[i, 0, :numio].set(sh2[0])
    return W1.astype(_MM_DTYPE), W2.astype(_MM_DTYPE), SH1, SH2


# --------------------------------------------------------------------------
# Wrapper: NCHW in / NCHW out, one pallas_call for the whole DenseBlock
# --------------------------------------------------------------------------
def dense_block_forward(x_nchw, params):
    N, numio, H, W = x_nchw.shape
    depth = len(params)
    HW = H * W
    CN = _round_up(numio, _LANE)              # per-layer output slot (lanes)
    Kmax = _round_up(depth * numio, _LANE)    # packed concat width (lanes)
    W1, W2, SH1, SH2 = _fold_and_pad_params(params, numio, CN, Kmax)

    # NCHW -> (N, H*W, CN): real channels at the front of 128 lanes, bf16.
    x = jnp.transpose(x_nchw, (0, 2, 3, 1)).reshape(N, HW, numio)
    xp = jnp.zeros((N, HW, CN), jnp.float32).at[..., :numio].set(x)
    xp = xp.astype(_MM_DTYPE)

    kernel = _make_dense_block_kernel(depth, numio, H, W, CN, Kmax)
    io_spec = pl.BlockSpec((1, HW, CN), lambda b: (b, 0, 0))

    out = pl.pallas_call(
        kernel,
        out_shape=jax.ShapeDtypeStruct((N, HW, CN), _MM_DTYPE),
        grid=(N,),
        in_specs=[
            io_spec,
            # Stacked weights: constant index maps -> DMA'd once, not per step.
            pl.BlockSpec(W1.shape, lambda b: (0, 0, 0)),
            pl.BlockSpec(W2.shape, lambda b: (0, 0, 0, 0)),
            pl.BlockSpec(SH1.shape, lambda b: (0, 0, 0)),
            pl.BlockSpec(SH2.shape, lambda b: (0, 0, 0)),
        ],
        out_specs=io_spec,
        scratch_shapes=[
            pltpu.VMEM((HW, Kmax), _MM_DTYPE),              # packed features
            pltpu.VMEM((H + 2, W + 2, CN), jnp.float32),    # 3x3 halo buffer
        ],
        compiler_params=pltpu.CompilerParams(
            dimension_semantics=("parallel",),   # batch axis across v7x's TCs
            # Actual footprint here is ~2 MiB; make this a per-generation
            # constant (and add H-tiling) when scaling to production shapes.
            vmem_limit_bytes=32 * 1024 * 1024,
        ),
    )(xp, W1, W2, SH1, SH2)

    # Trim channel padding, back to f32, NHWC -> NCHW (like the PyTorch module).
    out = out[..., :numio].astype(jnp.float32).reshape(N, H, W, numio)
    return jnp.transpose(out, (0, 3, 1, 2))


# --------------------------------------------------------------------------
# Deterministic synthetic parameters (shapes match the PyTorch module)
# --------------------------------------------------------------------------
def init_params(key, depth, numio):
    eps = 1e-5
    params = []
    for i in range(depth):
        cin = numio * (i + 1)
        keys = jax.random.split(key, 11)
        key = keys[0]
        w1 = jax.random.normal(keys[1], (cin, numio), jnp.float32) / jnp.sqrt(cin)
        b1 = 0.01 * jax.random.normal(keys[2], (1, numio), jnp.float32)
        w2 = (jax.random.normal(keys[3], (3, 3, numio, numio), jnp.float32)
              / jnp.sqrt(9.0 * numio))
        b2 = 0.01 * jax.random.normal(keys[4], (1, numio), jnp.float32)
        # BatchNorm params / running stats (inference mode), pre-folded to s,t:
        g1 = 1.0 + 0.1 * jax.random.normal(keys[5], (1, numio), jnp.float32)
        be1 = 0.1 * jax.random.normal(keys[6], (1, numio), jnp.float32)
        m1 = 0.1 * jax.random.normal(keys[7], (1, numio), jnp.float32)
        v1 = 1.0 + 0.1 * jnp.abs(jax.random.normal(keys[8], (1, numio), jnp.float32))
        g2 = 1.0 + 0.1 * jax.random.normal(keys[9], (1, numio), jnp.float32)
        be2 = 0.1 * jax.random.normal(keys[10], (1, numio), jnp.float32)
        m2 = jnp.zeros((1, numio), jnp.float32)
        v2 = jnp.ones((1, numio), jnp.float32)
        s1 = g1 / jnp.sqrt(v1 + eps)
        t1 = be1 - m1 * s1
        s2 = g2 / jnp.sqrt(v2 + eps)
        t2 = be2 - m2 * s2
        params.append(dict(w1=w1, b1=b1, s1=s1, t1=t1,
                           w2=w2, b2=b2, s2=s2, t2=t2))
    return params


# ---- pure-JAX reference (independent of the folding / packing above) ------
def _ref_layer(x, p):  # x: NHWC
    h = jnp.einsum("nhwc,cd->nhwd", x, p["w1"]) + p["b1"][0]
    h = jnp.maximum(h * p["s1"][0] + p["t1"][0], 0.0)
    y = jax.lax.conv_general_dilated(
        h, p["w2"], window_strides=(1, 1), padding="SAME",
        dimension_numbers=("NHWC", "HWIO", "NHWC")) + p["b2"][0]
    return jnp.maximum(y * p["s2"][0] + p["t2"][0], 0.0)


def _ref_forward(x_nchw, params):
    x = jnp.transpose(x_nchw, (0, 2, 3, 1))
    for i, p in enumerate(params):
        y = _ref_layer(x, p)
        x = jnp.concatenate([x, y], axis=-1) if i < len(params) - 1 else y
    return jnp.transpose(x, (0, 3, 1, 2))


if __name__ == "__main__":
    depth, numio = 3, 4
    N, H, W = 2, 16, 16

    key = jax.random.PRNGKey(0)
    kx, kp = jax.random.split(key)
    x = jax.random.normal(kx, (N, numio, H, W), jnp.float32)   # NCHW (PyTorch)
    params = init_params(kp, depth, numio)

    fwd = jax.jit(dense_block_forward)
    out = jax.block_until_ready(fwd(x, params))
    ref = jax.block_until_ready(_ref_forward(x, params))

    assert out.shape == (N, numio, H, W), out.shape
    assert bool(jnp.all(jnp.isfinite(out)))
    # bf16 matmul operands / bf16 writeback (f32 accumulation) -> loose tol.
    max_err = float(jnp.max(jnp.abs(out - ref)))
    assert jnp.allclose(out, ref, rtol=5e-2, atol=5e-2), max_err

    print("KERNEL_OK")
</pallas_src>

<mosaic_0001>
module attributes {stable_mosaic.version = 11 : i64} {
  func.func @kernel(%arg0: i32, %arg1: memref<1x256x128xbf16, #tpu.memory_space<vmem>>, %arg2: memref<3x128x128xbf16, #tpu.memory_space<vmem>>, %arg3: memref<3x9x128x128xbf16, #tpu.memory_space<vmem>>, %arg4: memref<3x1x128xf32, #tpu.memory_space<vmem>>, %arg5: memref<3x1x128xf32, #tpu.memory_space<vmem>>, %arg6: memref<1x256x128xbf16, #tpu.memory_space<vmem>>, %arg7: memref<256x128xbf16, #tpu.memory_space<vmem>>, %arg8: memref<18x18x128xf32, #tpu.memory_space<vmem>>) attributes {dimension_semantics = [#tpu.dimension_semantics<parallel>], iteration_bounds = array<i64: 2>, scalar_prefetch = 0 : i64, scratch_operands = 2 : i64, tpu.core_type = #tpu.core_type<tc>, window_params = [{transform_indices = @transform_0, window_bounds = array<i64: 1, 256, 128>}, {pipeline_mode = #tpu.pipeline_mode<synchronous>, transform_indices = @transform_1, window_bounds = array<i64: 3, 128, 128>}, {pipeline_mode = #tpu.pipeline_mode<synchronous>, transform_indices = @transform_2, window_bounds = array<i64: 3, 9, 128, 128>}, {pipeline_mode = #tpu.pipeline_mode<synchronous>, transform_indices = @transform_3, window_bounds = array<i64: 3, 1, 128>}, {pipeline_mode = #tpu.pipeline_mode<synchronous>, transform_indices = @transform_4, window_bounds = array<i64: 3, 1, 128>}, {transform_indices = @transform_5, window_bounds = array<i64: 1, 256, 128>}]} {
    %cst = arith.constant 0.000000e+00 : bf16
    %0 = vector.broadcast %cst : bf16 to vector<256x128xbf16>
    %c0 = arith.constant 0 : index
    %c0_0 = arith.constant 0 : index
    %1 = vector.load %arg7[%c0, %c0_0] : memref<256x128xbf16, #tpu.memory_space<vmem>>, vector<256x128xbf16>
    tpu.vector_store %arg7[%c0, %c0_0], %0 {strides = array<i32>} : memref<256x128xbf16, #tpu.memory_space<vmem>>, vector<256x128xbf16>,
    %c0_1 = arith.constant 0 : index
    %c0_2 = arith.constant 0 : index
    %c0_3 = arith.constant 0 : index
    %2 = vector.load %arg1[%c0_1, %c0_2, %c0_3] : memref<1x256x128xbf16, #tpu.memory_space<vmem>>, vector<1x256x4xbf16>
    %3 = vector.shape_cast %2 : vector<1x256x4xbf16> to vector<256x4xbf16>
    %c0_4 = arith.constant 0 : index
    %c0_5 = arith.constant 0 : index
    %4 = vector.load %arg7[%c0_4, %c0_5] : memref<256x128xbf16, #tpu.memory_space<vmem>>, vector<256x4xbf16>
    tpu.vector_store %arg7[%c0_4, %c0_5], %3 {strides = array<i32>} : memref<256x128xbf16, #tpu.memory_space<vmem>>, vector<256x4xbf16>,
    %cst_6 = arith.constant 0.000000e+00 : f32
    %5 = vector.broadcast %cst_6 : f32 to vector<1x18x128xf32>
    %cst_7 = arith.constant 0.000000e+00 : f32
    %6 = vector.broadcast %cst_7 : f32 to vector<18x1x128xf32>
    %c0_8 = arith.constant 0 : index
    %c0_9 = arith.constant 0 : index
    %c0_10 = arith.constant 0 : index
    %7 = vector.load %arg8[%c0_8, %c0_9, %c0_10] : memref<18x18x128xf32, #tpu.memory_space<vmem>>, vector<1x18x128xf32>
    tpu.vector_store %arg8[%c0_8, %c0_9, %c0_10], %5 {strides = array<i32>} : memref<18x18x128xf32, #tpu.memory_space<vmem>>, vector<1x18x128xf32>,
    %c17 = arith.constant 17 : index
    %c0_11 = arith.constant 0 : index
    %c0_12 = arith.constant 0 : index
    %8 = vector.load %arg8[%c17, %c0_11, %c0_12] : memref<18x18x128xf32, #tpu.memory_space<vmem>>, vector<1x18x128xf32>
    tpu.vector_store %arg8[%c17, %c0_11, %c0_12], %5 {strides = array<i32>} : memref<18x18x128xf32, #tpu.memory_space<vmem>>, vector<1x18x128xf32>,
    %c0_13 = arith.constant 0 : index
    %c0_14 = arith.constant 0 : index
    %c0_15 = arith.constant 0 : index
    %9 = vector.load %arg8[%c0_13, %c0_14, %c0_15] : memref<18x18x128xf32, #tpu.memory_space<vmem>>, vector<18x1x128xf32>
    tpu.vector_store %arg8[%c0_13, %c0_14, %c0_15], %6 {strides = array<i32>} : memref<18x18x128xf32, #tpu.memory_space<vmem>>, vector<18x1x128xf32>,
    %c0_16 = arith.constant 0 : index
    %c17_17 = arith.constant 17 : index
    %c0_18 = arith.constant 0 : index
    %10 = vector.load %arg8[%c0_16, %c17_17, %c0_18] : memref<18x18x128xf32, #tpu.memory_space<vmem>>, vector<18x1x128xf32>
    tpu.vector_store %arg8[%c0_16, %c17_17, %c0_18], %6 {strides = array<i32>} : memref<18x18x128xf32, #tpu.memory_space<vmem>>, vector<18x1x128xf32>,
    %c0_19 = arith.constant 0 : index
    %c0_20 = arith.constant 0 : index
    %11 = vector.load %arg7[%c0_19, %c0_20] : memref<256x128xbf16, #tpu.memory_space<vmem>>, vector<256x128xbf16>
    %c0_21 = arith.constant 0 : index
    %c0_22 = arith.constant 0 : index
    %c0_23 = arith.constant 0 : index
    %12 = vector.load %arg2[%c0_21, %c0_22, %c0_23] : memref<3x128x128xbf16, #tpu.memory_space<vmem>>, vector<1x128x128xbf16>
    %13 = vector.shape_cast %12 : vector<1x128x128xbf16> to vector<128x128xbf16>
    %cst_24 = arith.constant dense<0.000000e+00> : vector<256x128xf32>
    %14 = tpu.matmul %11, %13, %cst_24 {dimension_numbers = #tpu.dot_dimension_numbers<[1], [0], [0], [1], [0, 0, 1, 1], [], []>} : vector<256x128xbf16>, vector<128x128xbf16>, vector<256x128xf32> -> vector<256x128xf32>
    %c0_25 = arith.constant 0 : index
    %c0_26 = arith.constant 0 : index
    %c0_27 = arith.constant 0 : index
    %15 = vector.load %arg4[%c0_25, %c0_26, %c0_27] : memref<3x1x128xf32, #tpu.memory_space<vmem>>, vector<1x1x128xf32>
    %16 = vector.shape_cast %15 : vector<1x1x128xf32> to vector<1x128xf32>
    %17 = vector.broadcast %16 : vector<1x128xf32> to vector<256x128xf32>
    %18 = arith.addf %14, %17 : vector<256x128xf32>
    %cst_28 = arith.constant 0.000000e+00 : f32
    %19 = vector.broadcast %cst_28 : f32 to vector<256x128xf32>
    %20 = arith.maximumf %18, %19 : vector<256x128xf32>
    %21 = vector.shape_cast %20 : vector<256x128xf32> to vector<16x16x128xf32>
    %c1 = arith.constant 1 : index
    %c1_29 = arith.constant 1 : index
    %c0_30 = arith.constant 0 : index
    %22 = vector.load %arg8[%c1, %c1_29, %c0_30] : memref<18x18x128xf32, #tpu.memory_space<vmem>>, vector<16x16x128xf32>
    tpu.vector_store %arg8[%c1, %c1_29, %c0_30], %21 {strides = array<i32>} : memref<18x18x128xf32, #tpu.memory_space<vmem>>, vector<16x16x128xf32>,
    %cst_31 = arith.constant 0.000000e+00 : f32
    %23 = vector.broadcast %cst_31 : f32 to vector<256x128xf32>
    %c0_32 = arith.constant 0 : index
    %c0_33 = arith.constant 0 : index
    %c0_34 = arith.constant 0 : index
    %24 = vector.load %arg8[%c0_32, %c0_33, %c0_34] : memref<18x18x128xf32, #tpu.memory_space<vmem>>, vector<16x16x128xf32>
    %25 = vector.shape_cast %24 : vector<16x16x128xf32> to vector<256x128xf32>
    %26 = arith.truncf %25 : vector<256x128xf32> to vector<256x128xbf16>
    %c0_35 = arith.constant 0 : index
    %c0_36 = arith.constant 0 : index
    %c0_37 = arith.constant 0 : index
    %c0_38 = arith.constant 0 : index
    %27 = vector.load %arg3[%c0_35, %c0_36, %c0_37, %c0_38] : memref<3x9x128x128xbf16, #tpu.memory_space<vmem>>, vector<1x1x128x128xbf16>
    %28 = vector.shape_cast %27 : vector<1x1x128x128xbf16> to vector<128x128xbf16>
    %cst_39 = arith.constant dense<0.000000e+00> : vector<256x128xf32>
    %29 = tpu.matmul %26, %28, %cst_39 {dimension_numbers = #tpu.dot_dimension_numbers<[1], [0], [0], [1], [0, 0, 1, 1], [], []>} : vector<256x128xbf16>, vector<128x128xbf16>, vector<256x128xf32> -> vector<256x128xf32>
    %30 = arith.addf %23, %29 : vector<256x128xf32>
    %c0_40 = arith.constant 0 : index
    %c1_41 = arith.constant 1 : index
    %c0_42 = arith.constant 0 : index
    %31 = vector.load %arg8[%c0_40, %c1_41, %c0_42] : memref<18x18x128xf32, #tpu.memory_space<vmem>>, vector<16x16x128xf32>
    %32 = vector.shape_cast %31 : vector<16x16x128xf32> to vector<256x128xf32>
    %33 = arith.truncf %32 : vector<256x128xf32> to vector<256x128xbf16>
    %c0_43 = arith.constant 0 : index
    %c1_44 = arith.constant 1 : index
    %c0_45 = arith.constant 0 : index
    %c0_46 = arith.constant 0 : index
    %34 = vector.load %arg3[%c0_43, %c1_44, %c0_45, %c0_46] : memref<3x9x128x128xbf16, #tpu.memory_space<vmem>>, vector<1x1x128x128xbf16>
    %35 = vector.shape_cast %34 : vector<1x1x128x128xbf16> to vector<128x128xbf16>
    %cst_47 = arith.constant dense<0.000000e+00> : vector<256x128xf32>
    %36 = tpu.matmul %33, %35, %cst_47 {dimension_numbers = #tpu.dot_dimension_numbers<[1], [0], [0], [1], [0, 0, 1, 1], [], []>} : vector<256x128xbf16>, vector<128x128xbf16>, vector<256x128xf32> -> vector<256x128xf32>
    %37 = arith.addf %30, %36 : vector<256x128xf32>
    %c0_48 = arith.constant 0 : index
    %c2 = arith.constant 2 : index
    %c0_49 = arith.constant 0 : index
    %38 = vector.load %arg8[%c0_48, %c2, %c0_49] : memref<18x18x128xf32, #tpu.memory_space<vmem>>, vector<16x16x128xf32>
    %39 = vector.shape_cast %38 : vector<16x16x128xf32> to vector<256x128xf32>
    %40 = arith.truncf %39 : vector<256x128xf32> to vector<256x128xbf16>
    %c0_50 = arith.constant 0 : index
    %c2_51 = arith.constant 2 : index
    %c0_52 = arith.constant 0 : index
    %c0_53 = arith.constant 0 : index
    %41 = vector.load %arg3[%c0_50, %c2_51, %c0_52, %c0_53] : memref<3x9x128x128xbf16, #tpu.memory_space<vmem>>, vector<1x1x128x128xbf16>
    %42 = vector.shape_cast %41 : vector<1x1x128x128xbf16> to vector<128x128xbf16>
    %cst_54 = arith.constant dense<0.000000e+00> : vector<256x128xf32>
    %43 = tpu.matmul %40, %42, %cst_54 {dimension_numbers = #tpu.dot_dimension_numbers<[1], [0], [0], [1], [0, 0, 1, 1], [], []>} : vector<256x128xbf16>, vector<128x128xbf16>, vector<256x128xf32> -> vector<256x128xf32>
    %44 = arith.addf %37, %43 : vector<256x128xf32>
    %c1_55 = arith.constant 1 : index
    %c0_56 = arith.constant 0 : index
    %c0_57 = arith.constant 0 : index
    %45 = vector.load %arg8[%c1_55, %c0_56, %c0_57] : memref<18x18x128xf32, #tpu.memory_space<vmem>>, vector<16x16x128xf32>
    %46 = vector.shape_cast %45 : vector<16x16x128xf32> to vector<256x128xf32>
    %47 = arith.truncf %46 : vector<256x128xf32> to vector<256x128xbf16>
    %c0_58 = arith.constant 0 : index
    %c3 = arith.constant 3 : index
    %c0_59 = arith.constant 0 : index
    %c0_60 = arith.constant 0 : index
    %48 = vector.load %arg3[%c0_58, %c3, %c0_59, %c0_60] : memref<3x9x128x128xbf16, #tpu.memory_space<vmem>>, vector<1x1x128x128xbf16>
    %49 = vector.shape_cast %48 : vector<1x1x128x128xbf16> to vector<128x128xbf16>
    %cst_61 = arith.constant dense<0.000000e+00> : vector<256x128xf32>
    %50 = tpu.matmul %47, %49, %cst_61 {dimension_numbers = #tpu.dot_dimension_numbers<[1], [0], [0], [1], [0, 0, 1, 1], [], []>} : vector<256x128xbf16>, vector<128x128xbf16>, vector<256x128xf32> -> vector<256x128xf32>
    %51 = arith.addf %44, %50 : vector<256x128xf32>
    %c1_62 = arith.constant 1 : index
    %c1_63 = arith.constant 1 : index
    %c0_64 = arith.constant 0 : index
    %52 = vector.load %arg8[%c1_62, %c1_63, %c0_64] : memref<18x18x128xf32, #tpu.memory_space<vmem>>, vector<16x16x128xf32>
    %53 = vector.shape_cast %52 : vector<16x16x128xf32> to vector<256x128xf32>
    %54 = arith.truncf %53 : vector<256x128xf32> to vector<256x128xbf16>
    %c0_65 = arith.constant 0 : index
    %c4 = arith.constant 4 : index
    %c0_66 = arith.constant 0 : index
    %c0_67 = arith.constant 0 : index
    %55 = vector.load %arg3[%c0_65, %c4, %c0_66, %c0_67] : memref<3x9x128x128xbf16, #tpu.memory_space<vmem>>, vector<1x1x128x128xbf16>
    %56 = vector.shape_cast %55 : vector<1x1x128x128xbf16> to vector<128x128xbf16>
    %cst_68 = arith.constant dense<0.000000e+00> : vector<256x128xf32>
    %57 = tpu.matmul %54, %56, %cst_68 {dimension_numbers = #tpu.dot_dimension_numbers<[1], [0], [0], [1], [0, 0, 1, 1], [], []>} : vector<256x128xbf16>, vector<128x128xbf16>, vector<256x128xf32> -> vector<256x128xf32>
    %58 = arith.addf %51, %57 : vector<256x128xf32>
    %c1_69 = arith.constant 1 : index
    %c2_70 = arith.constant 2 : index
    %c0_71 = arith.constant 0 : index
    %59 = vector.load %arg8[%c1_69, %c2_70, %c0_71] : memref<18x18x128xf32, #tpu.memory_space<vmem>>, vector<16x16x128xf32>
    %60 = vector.shape_cast %59 : vector<16x16x128xf32> to vector<256x128xf32>
    %61 = arith.truncf %60 : vector<256x128xf32> to vector<256x128xbf16>
    %c0_72 = arith.constant 0 : index
    %c5 = arith.constant 5 : index
    %c0_73 = arith.constant 0 : index
    %c0_74 = arith.constant 0 : index
    %62 = vector.load %arg3[%c0_72, %c5, %c0_73, %c0_74] : memref<3x9x128x128xbf16, #tpu.memory_space<vmem>>, vector<1x1x128x128xbf16>
    %63 = vector.shape_cast %62 : vector<1x1x128x128xbf16> to vector<128x128xbf16>
    %cst_75 = arith.constant dense<0.000000e+00> : vector<256x128xf32>
    %64 = tpu.matmul %61, %63, %cst_75 {dimension_numbers = #tpu.dot_dimension_numbers<[1], [0], [0], [1], [0, 0, 1, 1], [], []>} : vector<256x128xbf16>, vector<128x128xbf16>, vector<256x128xf32> -> vector<256x128xf32>
    %65 = arith.addf %58, %64 : vector<256x128xf32>
    %c2_76 = arith.constant 2 : index
    %c0_77 = arith.constant 0 : index
    %c0_78 = arith.constant 0 : index
    %66 = vector.load %arg8[%c2_76, %c0_77, %c0_78] : memref<18x18x128xf32, #tpu.memory_space<vmem>>, vector<16x16x128xf32>
    %67 = vector.shape_cast %66 : vector<16x16x128xf32> to vector<256x128xf32>
    %68 = arith.truncf %67 : vector<256x128xf32> to vector<256x128xbf16>
    %c0_79 = arith.constant 0 : index
    %c6 = arith.constant 6 : index
    %c0_80 = arith.constant 0 : index
    %c0_81 = arith.constant 0 : index
    %69 = vector.load %arg3[%c0_79, %c6, %c0_80, %c0_81] : memref<3x9x128x128xbf16, #tpu.memory_space<vmem>>, vector<1x1x128x128xbf16>
    %70 = vector.shape_cast %69 : vector<1x1x128x128xbf16> to vector<128x128xbf16>
    %cst_82 = arith.constant dense<0.000000e+00> : vector<256x128xf32>
    %71 = tpu.matmul %68, %70, %cst_82 {dimension_numbers = #tpu.dot_dimension_numbers<[1], [0], [0], [1], [0, 0, 1, 1], [], []>} : vector<256x128xbf16>, vector<128x128xbf16>, vector<256x128xf32> -> vector<256x128xf32>
    %72 = arith.addf %65, %71 : vector<256x128xf32>
    %c2_83 = arith.constant 2 : index
    %c1_84 = arith.constant 1 : index
    %c0_85 = arith.constant 0 : index
    %73 = vector.load %arg8[%c2_83, %c1_84, %c0_85] : memref<18x18x128xf32, #tpu.memory_space<vmem>>, vector<16x16x128xf32>
    %74 = vector.shape_cast %73 : vector<16x16x128xf32> to vector<256x128xf32>
    %75 = arith.truncf %74 : vector<256x128xf32> to vector<256x128xbf16>
    %c0_86 = arith.constant 0 : index
    %c7 = arith.constant 7 : index
    %c0_87 = arith.constant 0 : index
    %c0_88 = arith.constant 0 : index
    %76 = vector.load %arg3[%c0_86, %c7, %c0_87, %c0_88] : memref<3x9x128x128xbf16, #tpu.memory_space<vmem>>, vector<1x1x128x128xbf16>
    %77 = vector.shape_cast %76 : vector<1x1x128x128xbf16> to vector<128x128xbf16>
    %cst_89 = arith.constant dense<0.000000e+00> : vector<256x128xf32>
    %78 = tpu.matmul %75, %77, %cst_89 {dimension_numbers = #tpu.dot_dimension_numbers<[1], [0], [0], [1], [0, 0, 1, 1], [], []>} : vector<256x128xbf16>, vector<128x128xbf16>, vector<256x128xf32> -> vector<256x128xf32>
    %79 = arith.addf %72, %78 : vector<256x128xf32>
    %c2_90 = arith.constant 2 : index
    %c2_91 = arith.constant 2 : index
    %c0_92 = arith.constant 0 : index
    %80 = vector.load %arg8[%c2_90, %c2_91, %c0_92] : memref<18x18x128xf32, #tpu.memory_space<vmem>>, vector<16x16x128xf32>
    %81 = vector.shape_cast %80 : vector<16x16x128xf32> to vector<256x128xf32>
    %82 = arith.truncf %81 : vector<256x128xf32> to vector<256x128xbf16>
    %c0_93 = arith.constant 0 : index
    %c8 = arith.constant 8 : index
    %c0_94 = arith.constant 0 : index
    %c0_95 = arith.constant 0 : index
    %83 = vector.load %arg3[%c0_93, %c8, %c0_94, %c0_95] : memref<3x9x128x128xbf16, #tpu.memory_space<vmem>>, vector<1x1x128x128xbf16>
    %84 = vector.shape_cast %83 : vector<1x1x128x128xbf16> to vector<128x128xbf16>
    %cst_96 = arith.constant dense<0.000000e+00> : vector<256x128xf32>
    %85 = tpu.matmul %82, %84, %cst_96 {dimension_numbers = #tpu.dot_dimension_numbers<[1], [0], [0], [1], [0, 0, 1, 1], [], []>} : vector<256x128xbf16>, vector<128x128xbf16>, vector<256x128xf32> -> vector<256x128xf32>
    %86 = arith.addf %79, %85 : vector<256x128xf32>
    %c0_97 = arith.constant 0 : index
    %c0_98 = arith.constant 0 : index
    %c0_99 = arith.constant 0 : index
    %87 = vector.load %arg5[%c0_97, %c0_98, %c0_99] : memref<3x1x128xf32, #tpu.memory_space<vmem>>, vector<1x1x128xf32>
    %88 = vector.shape_cast %87 : vector<1x1x128xf32> to vector<1x128xf32>
    %89 = vector.broadcast %88 : vector<1x128xf32> to vector<256x128xf32>
    %90 = arith.addf %86, %89 : vector<256x128xf32>
    %cst_100 = arith.constant 0.000000e+00 : f32
    %91 = vector.broadcast %cst_100 : f32 to vector<256x128xf32>
    %92 = arith.maximumf %90, %91 : vector<256x128xf32>
    %93 = vector.extract_strided_slice %92 {offsets = [0, 0], sizes = [256, 4], strides = [1, 1]} : vector<256x128xf32> to vector<256x4xf32>
    %94 = arith.truncf %93 : vector<256x4xf32> to vector<256x4xbf16>
    %c0_101 = arith.constant 0 : index
    %c4_102 = arith.constant 4 : index
    %95 = vector.load %arg7[%c0_101, %c4_102] : memref<256x128xbf16, #tpu.memory_space<vmem>>, vector<256x4xbf16>
    tpu.vector_store %arg7[%c0_101, %c4_102], %94 {strides = array<i32>} : memref<256x128xbf16, #tpu.memory_space<vmem>>, vector<256x4xbf16>,
    %c0_103 = arith.constant 0 : index
    %c0_104 = arith.constant 0 : index
    %96 = vector.load %arg7[%c0_103, %c0_104] : memref<256x128xbf16, #tpu.memory_space<vmem>>, vector<256x128xbf16>
    %c1_105 = arith.constant 1 : index
    %c0_106 = arith.constant 0 : index
    %c0_107 = arith.constant 0 : index
    %97 = vector.load %arg2[%c1_105, %c0_106, %c0_107] : memref<3x128x128xbf16, #tpu.memory_space<vmem>>, vector<1x128x128xbf16>
    %98 = vector.shape_cast %97 : vector<1x128x128xbf16> to vector<128x128xbf16>
    %cst_108 = arith.constant dense<0.000000e+00> : vector<256x128xf32>
    %99 = tpu.matmul %96, %98, %cst_108 {dimension_numbers = #tpu.dot_dimension_numbers<[1], [0], [0], [1], [0, 0, 1, 1], [], []>} : vector<256x128xbf16>, vector<128x128xbf16>, vector<256x128xf32> -> vector<256x128xf32>
    %c1_109 = arith.constant 1 : index
    %c0_110 = arith.constant 0 : index
    %c0_111 = arith.constant 0 : index
    %100 = vector.load %arg4[%c1_109, %c0_110, %c0_111] : memref<3x1x128xf32, #tpu.memory_space<vmem>>, vector<1x1x128xf32>
    %101 = vector.shape_cast %100 : vector<1x1x128xf32> to vector<1x128xf32>
    %102 = vector.broadcast %101 : vector<1x128xf32> to vector<256x128xf32>
    %103 = arith.addf %99, %102 : vector<256x128xf32>
    %cst_112 = arith.constant 0.000000e+00 : f32
    %104 = vector.broadcast %cst_112 : f32 to vector<256x128xf32>
    %105 = arith.maximumf %103, %104 : vector<256x128xf32>
    %106 = vector.shape_cast %105 : vector<256x128xf32> to vector<16x16x128xf32>
    %c1_113 = arith.constant 1 : index
    %c1_114 = arith.constant 1 : index
    %c0_115 = arith.constant 0 : index
    %107 = vector.load %arg8[%c1_113, %c1_114, %c0_115] : memref<18x18x128xf32, #tpu.memory_space<vmem>>, vector<16x16x128xf32>
    tpu.vector_store %arg8[%c1_113, %c1_114, %c0_115], %106 {strides = array<i32>} : memref<18x18x128xf32, #tpu.memory_space<vmem>>, vector<16x16x128xf32>,
    %cst_116 = arith.constant 0.000000e+00 : f32
    %108 = vector.broadcast %cst_116 : f32 to vector<256x128xf32>
    %c0_117 = arith.constant 0 : index
    %c0_118 = arith.constant 0 : index
    %c0_119 = arith.constant 0 : index
    %109 = vector.load %arg8[%c0_117, %c0_118, %c0_119] : memref<18x18x128xf32, #tpu.memory_space<vmem>>, vector<16x16x128xf32>
    %110 = vector.shape_cast %109 : vector<16x16x128xf32> to vector<256x128xf32>
    %111 = arith.truncf %110 : vector<256x128xf32> to vector<256x128xbf16>
    %c1_120 = arith.constant 1 : index
    %c0_121 = arith.constant 0 : index
    %c0_122 = arith.constant 0 : index
    %c0_123 = arith.constant 0 : index
    %112 = vector.load %arg3[%c1_120, %c0_121, %c0_122, %c0_123] : memref<3x9x128x128xbf16, #tpu.memory_space<vmem>>, vector<1x1x128x128xbf16>
    %113 = vector.shape_cast %112 : vector<1x1x128x128xbf16> to vector<128x128xbf16>
    %cst_124 = arith.constant dense<0.000000e+00> : vector<256x128xf32>
    %114 = tpu.matmul %111, %113, %cst_124 {dimension_numbers = #tpu.dot_dimension_numbers<[1], [0], [0], [1], [0, 0, 1, 1], [], []>} : vector<256x128xbf16>, vector<128x128xbf16>, vector<256x128xf32> -> vector<256x128xf32>
    %115 = arith.addf %108, %114 : vector<256x128xf32>
    %c0_125 = arith.constant 0 : index
    %c1_126 = arith.constant 1 : index
    %c0_127 = arith.constant 0 : index
    %116 = vector.load %arg8[%c0_125, %c1_126, %c0_127] : memref<18x18x128xf32, #tpu.memory_space<vmem>>, vector<16x16x128xf32>
    %117 = vector.shape_cast %116 : vector<16x16x128xf32> to vector<256x128xf32>
    %118 = arith.truncf %117 : vector<256x128xf32> to vector<256x128xbf16>
    %c1_128 = arith.constant 1 : index
    %c1_129 = arith.constant 1 : index
    %c0_130 = arith.constant 0 : index
    %c0_131 = arith.constant 0 : index
    %119 = vector.load %arg3[%c1_128, %c1_129, %c0_130, %c0_131] : memref<3x9x128x128xbf16, #tpu.memory_space<vmem>>, vector<1x1x128x128xbf16>
    %120 = vector.shape_cast %119 : vector<1x1x128x128xbf16> to vector<128x128xbf16>
    %cst_132 = arith.constant dense<0.000000e+00> : vector<256x128xf32>
    %121 = tpu.matmul %118, %120, %cst_132 {dimension_numbers = #tpu.dot_dimension_numbers<[1], [0], [0], [1], [0, 0, 1, 1], [], []>} : vector<256x128xbf16>, vector<128x128xbf16>, vector<256x128xf32> -> vector<256x128xf32>
    %122 = arith.addf %115, %121 : vector<256x128xf32>
    %c0_133 = arith.constant 0 : index
    %c2_134 = arith.constant 2 : index
    %c0_135 = arith.constant 0 : index
    %123 = vector.load %arg8[%c0_133, %c2_134, %c0_135] : memref<18x18x128xf32, #tpu.memory_space<vmem>>, vector<16x16x128xf32>
    %124 = vector.shape_cast %123 : vector<16x16x128xf32> to vector<256x128xf32>
    %125 = arith.truncf %124 : vector<256x128xf32> to vector<256x128xbf16>
    %c1_136 = arith.constant 1 : index
    %c2_137 = arith.constant 2 : index
    %c0_138 = arith.constant 0 : index
    %c0_139 = arith.constant 0 : index
    %126 = vector.load %arg3[%c1_136, %c2_137, %c0_138, %c0_139] : memref<3x9x128x128xbf16, #tpu.memory_space<vmem>>, vector<1x1x128x128xbf16>
    %127 = vector.shape_cast %126 : vector<1x1x128x128xbf16> to vector<128x128xbf16>
    %cst_140 = arith.constant dense<0.000000e+00> : vector<256x128xf32>
    %128 = tpu.matmul %125, %127, %cst_140 {dimension_numbers = #tpu.dot_dimension_numbers<[1], [0], [0], [1], [0, 0, 1, 1], [], []>} : vector<256x128xbf16>, vector<128x128xbf16>, vector<256x128xf32> -> vector<256x128xf32>
    %129 = arith.addf %122, %128 : vector<256x128xf32>
    %c1_141 = arith.constant 1 : index
    %c0_142 = arith.constant 0 : index
    %c0_143 = arith.constant 0 : index
    %130 = vector.load %arg8[%c1_141, %c0_142, %c0_143] : memref<18x18x128xf32, #tpu.memory_space<vmem>>, vector<16x16x128xf32>
    %131 = vector.shape_cast %130 : vector<16x16x128xf32> to vector<256x128xf32>
    %132 = arith.truncf %131 : vector<256x128xf32> to vector<256x128xbf16>
    %c1_144 = arith.constant 1 : index
    %c3_145 = arith.constant 3 : index
    %c0_146 = arith.constant 0 : index
    %c0_147 = arith.constant 0 : index
    %133 = vector.load %arg3[%c1_144, %c3_145, %c0_146, %c0_147] : memref<3x9x128x128xbf16, #tpu.memory_space<vmem>>, vector<1x1x128x128xbf16>
    %134 = vector.shape_cast %133 : vector<1x1x128x128xbf16> to vector<128x128xbf16>
    %cst_148 = arith.constant dense<0.000000e+00> : vector<256x128xf32>
    %135 = tpu.matmul %132, %134, %cst_148 {dimension_numbers = #tpu.dot_dimension_numbers<[1], [0], [0], [1], [0, 0, 1, 1], [], []>} : vector<256x128xbf16>, vector<128x128xbf16>, vector<256x128xf32> -> vector<256x128xf32>
    %136 = arith.addf %129, %135 : vector<256x128xf32>
    %c1_149 = arith.constant 1 : index
    %c1_150 = arith.constant 1 : index
    %c0_151 = arith.constant 0 : index
    %137 = vector.load %arg8[%c1_149, %c1_150, %c0_151] : memref<18x18x128xf32, #tpu.memory_space<vmem>>, vector<16x16x128xf32>
    %138 = vector.shape_cast %137 : vector<16x16x128xf32> to vector<256x128xf32>
    %139 = arith.truncf %138 : vector<256x128xf32> to vector<256x128xbf16>
    %c1_152 = arith.constant 1 : index
    %c4_153 = arith.constant 4 : index
    %c0_154 = arith.constant 0 : index
    %c0_155 = arith.constant 0 : index
    %140 = vector.load %arg3[%c1_152, %c4_153, %c0_154, %c0_155] : memref<3x9x128x128xbf16, #tpu.memory_space<vmem>>, vector<1x1x128x128xbf16>
    %141 = vector.shape_cast %140 : vector<1x1x128x128xbf16> to vector<128x128xbf16>
    %cst_156 = arith.constant dense<0.000000e+00> : vector<256x128xf32>
    %142 = tpu.matmul %139, %141, %cst_156 {dimension_numbers = #tpu.dot_dimension_numbers<[1], [0], [0], [1], [0, 0, 1, 1], [], []>} : vector<256x128xbf16>, vector<128x128xbf16>, vector<256x128xf32> -> vector<256x128xf32>
    %143 = arith.addf %136, %142 : vector<256x128xf32>
    %c1_157 = arith.constant 1 : index
    %c2_158 = arith.constant 2 : index
    %c0_159 = arith.constant 0 : index
    %144 = vector.load %arg8[%c1_157, %c2_158, %c0_159] : memref<18x18x128xf32, #tpu.memory_space<vmem>>, vector<16x16x128xf32>
    %145 = vector.shape_cast %144 : vector<16x16x128xf32> to vector<256x128xf32>
    %146 = arith.truncf %145 : vector<256x128xf32> to vector<256x128xbf16>
    %c1_160 = arith.constant 1 : index
    %c5_161 = arith.constant 5 : index
    %c0_162 = arith.constant 0 : index
    %c0_163 = arith.constant 0 : index
    %147 = vector.load %arg3[%c1_160, %c5_161, %c0_162, %c0_163] : memref<3x9x128x128xbf16, #tpu.memory_space<vmem>>, vector<1x1x128x128xbf16>
    %148 = vector.shape_cast %147 : vector<1x1x128x128xbf16> to vector<128x128xbf16>
    %cst_164 = arith.constant dense<0.000000e+00> : vector<256x128xf32>
    %149 = tpu.matmul %146, %148, %cst_164 {dimension_numbers = #tpu.dot_dimension_numbers<[1], [0], [0], [1], [0, 0, 1, 1], [], []>} : vector<256x128xbf16>, vector<128x128xbf16>, vector<256x128xf32> -> vector<256x128xf32>
    %150 = arith.addf %143, %149 : vector<256x128xf32>
    %c2_165 = arith.constant 2 : index
    %c0_166 = arith.constant 0 : index
    %c0_167 = arith.constant 0 : index
    %151 = vector.load %arg8[%c2_165, %c0_166, %c0_167] : memref<18x18x128xf32, #tpu.memory_space<vmem>>, vector<16x16x128xf32>
    %152 = vector.shape_cast %151 : vector<16x16x128xf32> to vector<256x128xf32>
    %153 = arith.truncf %152 : vector<256x128xf32> to vector<256x128xbf16>
    %c1_168 = arith.constant 1 : index
    %c6_169 = arith.constant 6 : index
    %c0_170 = arith.constant 0 : index
    %c0_171 = arith.constant 0 : index
    %154 = vector.load %arg3[%c1_168, %c6_169, %c0_170, %c0_171] : memref<3x9x128x128xbf16, #tpu.memory_space<vmem>>, vector<1x1x128x128xbf16>
    %155 = vector.shape_cast %154 : vector<1x1x128x128xbf16> to vector<128x128xbf16>
    %cst_172 = arith.constant dense<0.000000e+00> : vector<256x128xf32>
    %156 = tpu.matmul %153, %155, %cst_172 {dimension_numbers = #tpu.dot_dimension_numbers<[1], [0], [0], [1], [0, 0, 1, 1], [], []>} : vector<256x128xbf16>, vector<128x128xbf16>, vector<256x128xf32> -> vector<256x128xf32>
    %157 = arith.addf %150, %156 : vector<256x128xf32>
    %c2_173 = arith.constant 2 : index
    %c1_174 = arith.constant 1 : index
    %c0_175 = arith.constant 0 : index
    %158 = vector.load %arg8[%c2_173, %c1_174, %c0_175] : memref<18x18x128xf32, #tpu.memory_space<vmem>>, vector<16x16x128xf32>
    %159 = vector.shape_cast %158 : vector<16x16x128xf32> to vector<256x128xf32>
    %160 = arith.truncf %159 : vector<256x128xf32> to vector<256x128xbf16>
    %c1_176 = arith.constant 1 : index
    %c7_177 = arith.constant 7 : index
    %c0_178 = arith.constant 0 : index
    %c0_179 = arith.constant 0 : index
    %161 = vector.load %arg3[%c1_176, %c7_177, %c0_178, %c0_179] : memref<3x9x128x128xbf16, #tpu.memory_space<vmem>>, vector<1x1x128x128xbf16>
    %162 = vector.shape_cast %161 : vector<1x1x128x128xbf16> to vector<128x128xbf16>
    %cst_180 = arith.constant dense<0.000000e+00> : vector<256x128xf32>
    %163 = tpu.matmul %160, %162, %cst_180 {dimension_numbers = #tpu.dot_dimension_numbers<[1], [0], [0], [1], [0, 0, 1, 1], [], []>} : vector<256x128xbf16>, vector<128x128xbf16>, vector<256x128xf32> -> vector<256x128xf32>
    %164 = arith.addf %157, %163 : vector<256x128xf32>
    %c2_181 = arith.constant 2 : index
    %c2_182 = arith.constant 2 : index
    %c0_183 = arith.constant 0 : index
    %165 = vector.load %arg8[%c2_181, %c2_182, %c0_183] : memref<18x18x128xf32, #tpu.memory_space<vmem>>, vector<16x16x128xf32>
    %166 = vector.shape_cast %165 : vector<16x16x128xf32> to vector<256x128xf32>
    %167 = arith.truncf %166 : vector<256x128xf32> to vector<256x128xbf16>
    %c1_184 = arith.constant 1 : index
    %c8_185 = arith.constant 8 : index
    %c0_186 = arith.constant 0 : index
    %c0_187 = arith.constant 0 : index
    %168 = vector.load %arg3[%c1_184, %c8_185, %c0_186, %c0_187] : memref<3x9x128x128xbf16, #tpu.memory_space<vmem>>, vector<1x1x128x128xbf16>
    %169 = vector.shape_cast %168 : vector<1x1x128x128xbf16> to vector<128x128xbf16>
    %cst_188 = arith.constant dense<0.000000e+00> : vector<256x128xf32>
    %170 = tpu.matmul %167, %169, %cst_188 {dimension_numbers = #tpu.dot_dimension_numbers<[1], [0], [0], [1], [0, 0, 1, 1], [], []>} : vector<256x128xbf16>, vector<128x128xbf16>, vector<256x128xf32> -> vector<256x128xf32>
    %171 = arith.addf %164, %170 : vector<256x128xf32>
    %c1_189 = arith.constant 1 : index
    %c0_190 = arith.constant 0 : index
    %c0_191 = arith.constant 0 : index
    %172 = vector.load %arg5[%c1_189, %c0_190, %c0_191] : memref<3x1x128xf32, #tpu.memory_space<vmem>>, vector<1x1x128xf32>
    %173 = vector.shape_cast %172 : vector<1x1x128xf32> to vector<1x128xf32>
    %174 = vector.broadcast %173 : vector<1x128xf32> to vector<256x128xf32>
    %175 = arith.addf %171, %174 : vector<256x128xf32>
    %cst_192 = arith.constant 0.000000e+00 : f32
    %176 = vector.broadcast %cst_192 : f32 to vector<256x128xf32>
    %177 = arith.maximumf %175, %176 : vector<256x128xf32>
    %178 = vector.extract_strided_slice %177 {offsets = [0, 0], sizes = [256, 4], strides = [1, 1]} : vector<256x128xf32> to vector<256x4xf32>
    %179 = arith.truncf %178 : vector<256x4xf32> to vector<256x4xbf16>
    %c0_193 = arith.constant 0 : index
    %c8_194 = arith.constant 8 : index
    %180 = vector.load %arg7[%c0_193, %c8_194] : memref<256x128xbf16, #tpu.memory_space<vmem>>, vector<256x4xbf16>
    tpu.vector_store %arg7[%c0_193, %c8_194], %179 {strides = array<i32>} : memref<256x128xbf16, #tpu.memory_space<vmem>>, vector<256x4xbf16>,
    %c0_195 = arith.constant 0 : index
    %c0_196 = arith.constant 0 : index
    %181 = vector.load %arg7[%c0_195, %c0_196] : memref<256x128xbf16, #tpu.memory_space<vmem>>, vector<256x128xbf16>
    %c2_197 = arith.constant 2 : index
    %c0_198 = arith.constant 0 : index
    %c0_199 = arith.constant 0 : index
    %182 = vector.load %arg2[%c2_197, %c0_198, %c0_199] : memref<3x128x128xbf16, #tpu.memory_space<vmem>>, vector<1x128x128xbf16>
    %183 = vector.shape_cast %182 : vector<1x128x128xbf16> to vector<128x128xbf16>
    %cst_200 = arith.constant dense<0.000000e+00> : vector<256x128xf32>
    %184 = tpu.matmul %181, %183, %cst_200 {dimension_numbers = #tpu.dot_dimension_numbers<[1], [0], [0], [1], [0, 0, 1, 1], [], []>} : vector<256x128xbf16>, vector<128x128xbf16>, vector<256x128xf32> -> vector<256x128xf32>
    %c2_201 = arith.constant 2 : index
    %c0_202 = arith.constant 0 : index
    %c0_203 = arith.constant 0 : index
    %185 = vector.load %arg4[%c2_201, %c0_202, %c0_203] : memref<3x1x128xf32, #tpu.memory_space<vmem>>, vector<1x1x128xf32>
    %186 = vector.shape_cast %185 : vector<1x1x128xf32> to vector<1x128xf32>
    %187 = vector.broadcast %186 : vector<1x128xf32> to vector<256x128xf32>
    %188 = arith.addf %184, %187 : vector<256x128xf32>
    %cst_204 = arith.constant 0.000000e+00 : f32
    %189 = vector.broadcast %cst_204 : f32 to vector<256x128xf32>
    %190 = arith.maximumf %188, %189 : vector<256x128xf32>
    %191 = vector.shape_cast %190 : vector<256x128xf32> to vector<16x16x128xf32>
    %c1_205 = arith.constant 1 : index
    %c1_206 = arith.constant 1 : index
    %c0_207 = arith.constant 0 : index
    %192 = vector.load %arg8[%c1_205, %c1_206, %c0_207] : memref<18x18x128xf32, #tpu.memory_space<vmem>>, vector<16x16x128xf32>
    tpu.vector_store %arg8[%c1_205, %c1_206, %c0_207], %191 {strides = array<i32>} : memref<18x18x128xf32, #tpu.memory_space<vmem>>, vector<16x16x128xf32>,
    %cst_208 = arith.constant 0.000000e+00 : f32
    %193 = vector.broadcast %cst_208 : f32 to vector<256x128xf32>
    %c0_209 = arith.constant 0 : index
    %c0_210 = arith.constant 0 : index
    %c0_211 = arith.constant 0 : index
    %194 = vector.load %arg8[%c0_209, %c0_210, %c0_211] : memref<18x18x128xf32, #tpu.memory_space<vmem>>, vector<16x16x128xf32>
    %195 = vector.shape_cast %194 : vector<16x16x128xf32> to vector<256x128xf32>
    %196 = arith.truncf %195 : vector<256x128xf32> to vector<256x128xbf16>
    %c2_212 = arith.constant 2 : index
    %c0_213 = arith.constant 0 : index
    %c0_214 = arith.constant 0 : index
    %c0_215 = arith.constant 0 : index
    %197 = vector.load %arg3[%c2_212, %c0_213, %c0_214, %c0_215] : memref<3x9x128x128xbf16, #tpu.memory_space<vmem>>, vector<1x1x128x128xbf16>
    %198 = vector.shape_cast %197 : vector<1x1x128x128xbf16> to vector<128x128xbf16>
    %cst_216 = arith.constant dense<0.000000e+00> : vector<256x128xf32>
    %199 = tpu.matmul %196, %198, %cst_216 {dimension_numbers = #tpu.dot_dimension_numbers<[1], [0], [0], [1], [0, 0, 1, 1], [], []>} : vector<256x128xbf16>, vector<128x128xbf16>, vector<256x128xf32> -> vector<256x128xf32>
    %200 = arith.addf %193, %199 : vector<256x128xf32>
    %c0_217 = arith.constant 0 : index
    %c1_218 = arith.constant 1 : index
    %c0_219 = arith.constant 0 : index
    %201 = vector.load %arg8[%c0_217, %c1_218, %c0_219] : memref<18x18x128xf32, #tpu.memory_space<vmem>>, vector<16x16x128xf32>
    %202 = vector.shape_cast %201 : vector<16x16x128xf32> to vector<256x128xf32>
    %203 = arith.truncf %202 : vector<256x128xf32> to vector<256x128xbf16>
    %c2_220 = arith.constant 2 : index
    %c1_221 = arith.constant 1 : index
    %c0_222 = arith.constant 0 : index
    %c0_223 = arith.constant 0 : index
    %204 = vector.load %arg3[%c2_220, %c1_221, %c0_222, %c0_223] : memref<3x9x128x128xbf16, #tpu.memory_space<vmem>>, vector<1x1x128x128xbf16>
    %205 = vector.shape_cast %204 : vector<1x1x128x128xbf16> to vector<128x128xbf16>
    %cst_224 = arith.constant dense<0.000000e+00> : vector<256x128xf32>
    %206 = tpu.matmul %203, %205, %cst_224 {dimension_numbers = #tpu.dot_dimension_numbers<[1], [0], [0], [1], [0, 0, 1, 1], [], []>} : vector<256x128xbf16>, vector<128x128xbf16>, vector<256x128xf32> -> vector<256x128xf32>
    %207 = arith.addf %200, %206 : vector<256x128xf32>
    %c0_225 = arith.constant 0 : index
    %c2_226 = arith.constant 2 : index
    %c0_227 = arith.constant 0 : index
    %208 = vector.load %arg8[%c0_225, %c2_226, %c0_227] : memref<18x18x128xf32, #tpu.memory_space<vmem>>, vector<16x16x128xf32>
    %209 = vector.shape_cast %208 : vector<16x16x128xf32> to vector<256x128xf32>
    %210 = arith.truncf %209 : vector<256x128xf32> to vector<256x128xbf16>
    %c2_228 = arith.constant 2 : index
    %c2_229 = arith.constant 2 : index
    %c0_230 = arith.constant 0 : index
    %c0_231 = arith.constant 0 : index
    %211 = vector.load %arg3[%c2_228, %c2_229, %c0_230, %c0_231] : memref<3x9x128x128xbf16, #tpu.memory_space<vmem>>, vector<1x1x128x128xbf16>
    %212 = vector.shape_cast %211 : vector<1x1x128x128xbf16> to vector<128x128xbf16>
    %cst_232 = arith.constant dense<0.000000e+00> : vector<256x128xf32>
    %213 = tpu.matmul %210, %212, %cst_232 {dimension_numbers = #tpu.dot_dimension_numbers<[1], [0], [0], [1], [0, 0, 1, 1], [], []>} : vector<256x128xbf16>, vector<128x128xbf16>, vector<256x128xf32> -> vector<256x128xf32>
    %214 = arith.addf %207, %213 : vector<256x128xf32>
    %c1_233 = arith.constant 1 : index
    %c0_234 = arith.constant 0 : index
    %c0_235 = arith.constant 0 : index
    %215 = vector.load %arg8[%c1_233, %c0_234, %c0_235] : memref<18x18x128xf32, #tpu.memory_space<vmem>>, vector<16x16x128xf32>
    %216 = vector.shape_cast %215 : vector<16x16x128xf32> to vector<256x128xf32>
    %217 = arith.truncf %216 : vector<256x128xf32> to vector<256x128xbf16>
    %c2_236 = arith.constant 2 : index
    %c3_237 = arith.constant 3 : index
    %c0_238 = arith.constant 0 : index
    %c0_239 = arith.constant 0 : index
    %218 = vector.load %arg3[%c2_236, %c3_237, %c0_238, %c0_239] : memref<3x9x128x128xbf16, #tpu.memory_space<vmem>>, vector<1x1x128x128xbf16>
    %219 = vector.shape_cast %218 : vector<1x1x128x128xbf16> to vector<128x128xbf16>
    %cst_240 = arith.constant dense<0.000000e+00> : vector<256x128xf32>
    %220 = tpu.matmul %217, %219, %cst_240 {dimension_numbers = #tpu.dot_dimension_numbers<[1], [0], [0], [1], [0, 0, 1, 1], [], []>} : vector<256x128xbf16>, vector<128x128xbf16>, vector<256x128xf32> -> vector<256x128xf32>
    %221 = arith.addf %214, %220 : vector<256x128xf32>
    %c1_241 = arith.constant 1 : index
    %c1_242 = arith.constant 1 : index
    %c0_243 = arith.constant 0 : index
    %222 = vector.load %arg8[%c1_241, %c1_242, %c0_243] : memref<18x18x128xf32, #tpu.memory_space<vmem>>, vector<16x16x128xf32>
    %223 = vector.shape_cast %222 : vector<16x16x128xf32> to vector<256x128xf32>
    %224 = arith.truncf %223 : vector<256x128xf32> to vector<256x128xbf16>
    %c2_244 = arith.constant 2 : index
    %c4_245 = arith.constant 4 : index
    %c0_246 = arith.constant 0 : index
    %c0_247 = arith.constant 0 : index
    %225 = vector.load %arg3[%c2_244, %c4_245, %c0_246, %c0_247] : memref<3x9x128x128xbf16, #tpu.memory_space<vmem>>, vector<1x1x128x128xbf16>
    %226 = vector.shape_cast %225 : vector<1x1x128x128xbf16> to vector<128x128xbf16>
    %cst_248 = arith.constant dense<0.000000e+00> : vector<256x128xf32>
    %227 = tpu.matmul %224, %226, %cst_248 {dimension_numbers = #tpu.dot_dimension_numbers<[1], [0], [0], [1], [0, 0, 1, 1], [], []>} : vector<256x128xbf16>, vector<128x128xbf16>, vector<256x128xf32> -> vector<256x128xf32>
    %228 = arith.addf %221, %227 : vector<256x128xf32>
    %c1_249 = arith.constant 1 : index
    %c2_250 = arith.constant 2 : index
    %c0_251 = arith.constant 0 : index
    %229 = vector.load %arg8[%c1_249, %c2_250, %c0_251] : memref<18x18x128xf32, #tpu.memory_space<vmem>>, vector<16x16x128xf32>
    %230 = vector.shape_cast %229 : vector<16x16x128xf32> to vector<256x128xf32>
    %231 = arith.truncf %230 : vector<256x128xf32> to vector<256x128xbf16>
    %c2_252 = arith.constant 2 : index
    %c5_253 = arith.constant 5 : index
    %c0_254 = arith.constant 0 : index
    %c0_255 = arith.constant 0 : index
    %232 = vector.load %arg3[%c2_252, %c5_253, %c0_254, %c0_255] : memref<3x9x128x128xbf16, #tpu.memory_space<vmem>>, vector<1x1x128x128xbf16>
    %233 = vector.shape_cast %232 : vector<1x1x128x128xbf16> to vector<128x128xbf16>
    %cst_256 = arith.constant dense<0.000000e+00> : vector<256x128xf32>
    %234 = tpu.matmul %231, %233, %cst_256 {dimension_numbers = #tpu.dot_dimension_numbers<[1], [0], [0], [1], [0, 0, 1, 1], [], []>} : vector<256x128xbf16>, vector<128x128xbf16>, vector<256x128xf32> -> vector<256x128xf32>
    %235 = arith.addf %228, %234 : vector<256x128xf32>
    %c2_257 = arith.constant 2 : index
    %c0_258 = arith.constant 0 : index
    %c0_259 = arith.constant 0 : index
    %236 = vector.load %arg8[%c2_257, %c0_258, %c0_259] : memref<18x18x128xf32, #tpu.memory_space<vmem>>, vector<16x16x128xf32>
    %237 = vector.shape_cast %236 : vector<16x16x128xf32> to vector<256x128xf32>
    %238 = arith.truncf %237 : vector<256x128xf32> to vector<256x128xbf16>
    %c2_260 = arith.constant 2 : index
    %c6_261 = arith.constant 6 : index
    %c0_262 = arith.constant 0 : index
    %c0_263 = arith.constant 0 : index
    %239 = vector.load %arg3[%c2_260, %c6_261, %c0_262, %c0_263] : memref<3x9x128x128xbf16, #tpu.memory_space<vmem>>, vector<1x1x128x128xbf16>
    %240 = vector.shape_cast %239 : vector<1x1x128x128xbf16> to vector<128x128xbf16>
    %cst_264 = arith.constant dense<0.000000e+00> : vector<256x128xf32>
    %241 = tpu.matmul %238, %240, %cst_264 {dimension_numbers = #tpu.dot_dimension_numbers<[1], [0], [0], [1], [0, 0, 1, 1], [], []>} : vector<256x128xbf16>, vector<128x128xbf16>, vector<256x128xf32> -> vector<256x128xf32>
    %242 = arith.addf %235, %241 : vector<256x128xf32>
    %c2_265 = arith.constant 2 : index
    %c1_266 = arith.constant 1 : index
    %c0_267 = arith.constant 0 : index
    %243 = vector.load %arg8[%c2_265, %c1_266, %c0_267] : memref<18x18x128xf32, #tpu.memory_space<vmem>>, vector<16x16x128xf32>
    %244 = vector.shape_cast %243 : vector<16x16x128xf32> to vector<256x128xf32>
    %245 = arith.truncf %244 : vector<256x128xf32> to vector<256x128xbf16>
    %c2_268 = arith.constant 2 : index
    %c7_269 = arith.constant 7 : index
    %c0_270 = arith.constant 0 : index
    %c0_271 = arith.constant 0 : index
    %246 = vector.load %arg3[%c2_268, %c7_269, %c0_270, %c0_271] : memref<3x9x128x128xbf16, #tpu.memory_space<vmem>>, vector<1x1x128x128xbf16>
    %247 = vector.shape_cast %246 : vector<1x1x128x128xbf16> to vector<128x128xbf16>
    %cst_272 = arith.constant dense<0.000000e+00> : vector<256x128xf32>
    %248 = tpu.matmul %245, %247, %cst_272 {dimension_numbers = #tpu.dot_dimension_numbers<[1], [0], [0], [1], [0, 0, 1, 1], [], []>} : vector<256x128xbf16>, vector<128x128xbf16>, vector<256x128xf32> -> vector<256x128xf32>
    %249 = arith.addf %242, %248 : vector<256x128xf32>
    %c2_273 = arith.constant 2 : index
    %c2_274 = arith.constant 2 : index
    %c0_275 = arith.constant 0 : index
    %250 = vector.load %arg8[%c2_273, %c2_274, %c0_275] : memref<18x18x128xf32, #tpu.memory_space<vmem>>, vector<16x16x128xf32>
    %251 = vector.shape_cast %250 : vector<16x16x128xf32> to vector<256x128xf32>
    %252 = arith.truncf %251 : vector<256x128xf32> to vector<256x128xbf16>
    %c2_276 = arith.constant 2 : index
    %c8_277 = arith.constant 8 : index
    %c0_278 = arith.constant 0 : index
    %c0_279 = arith.constant 0 : index
    %253 = vector.load %arg3[%c2_276, %c8_277, %c0_278, %c0_279] : memref<3x9x128x128xbf16, #tpu.memory_space<vmem>>, vector<1x1x128x128xbf16>
    %254 = vector.shape_cast %253 : vector<1x1x128x128xbf16> to vector<128x128xbf16>
    %cst_280 = arith.constant dense<0.000000e+00> : vector<256x128xf32>
    %255 = tpu.matmul %252, %254, %cst_280 {dimension_numbers = #tpu.dot_dimension_numbers<[1], [0], [0], [1], [0, 0, 1, 1], [], []>} : vector<256x128xbf16>, vector<128x128xbf16>, vector<256x128xf32> -> vector<256x128xf32>
    %256 = arith.addf %249, %255 : vector<256x128xf32>
    %c2_281 = arith.constant 2 : index
    %c0_282 = arith.constant 0 : index
    %c0_283 = arith.constant 0 : index
    %257 = vector.load %arg5[%c2_281, %c0_282, %c0_283] : memref<3x1x128xf32, #tpu.memory_space<vmem>>, vector<1x1x128xf32>
    %258 = vector.shape_cast %257 : vector<1x1x128xf32> to vector<1x128xf32>
    %259 = vector.broadcast %258 : vector<1x128xf32> to vector<256x128xf32>
    %260 = arith.addf %256, %259 : vector<256x128xf32>
    %cst_284 = arith.constant 0.000000e+00 : f32
    %261 = vector.broadcast %cst_284 : f32 to vector<256x128xf32>
    %262 = arith.maximumf %260, %261 : vector<256x128xf32>
    %263 = arith.truncf %262 : vector<256x128xf32> to vector<256x128xbf16>
    %c0_285 = arith.constant 0 : index
    %c0_286 = arith.constant 0 : index
    %c0_287 = arith.constant 0 : index
    %264 = vector.load %arg6[%c0_285, %c0_286, %c0_287] : memref<1x256x128xbf16, #tpu.memory_space<vmem>>, vector<1x256x128xbf16>
    %265 = vector.shape_cast %264 : vector<1x256x128xbf16> to vector<256x128xbf16>
    %266 = vector.shape_cast %263 : vector<256x128xbf16> to vector<1x256x128xbf16>
    tpu.vector_store %arg6[%c0_285, %c0_286, %c0_287], %266 {strides = array<i32>} : memref<1x256x128xbf16, #tpu.memory_space<vmem>>, vector<1x256x128xbf16>,
    return
  }
  func.func @transform_0(%arg0: i32) -> (i32, i32, i32) {
    %c0_i32 = arith.constant 0 : i32
    %c0_i32_0 = arith.constant 0 : i32
    %c0_i32_1 = arith.constant 0 : i32
    return %arg0, %c0_i32, %c0_i32_0 : i32, i32, i32
  }
  func.func @transform_1(%arg0: i32) -> (i32, i32, i32) {
    %c0_i32 = arith.constant 0 : i32
    %c0_i32_0 = arith.constant 0 : i32
    %c0_i32_1 = arith.constant 0 : i32
    %c0_i32_2 = arith.constant 0 : i32
    return %c0_i32, %c0_i32_0, %c0_i32_1 : i32, i32, i32
  }
  func.func @transform_2(%arg0: i32) -> (i32, i32, i32, i32) {
    %c0_i32 = arith.constant 0 : i32
    %c0_i32_0 = arith.constant 0 : i32
    %c0_i32_1 = arith.constant 0 : i32
    %c0_i32_2 = arith.constant 0 : i32
    %c0_i32_3 = arith.constant 0 : i32
    return %c0_i32, %c0_i32_0, %c0_i32_1, %c0_i32_2 : i32, i32, i32, i32
  }
  func.func @transform_3(%arg0: i32) -> (i32, i32, i32) {
    %c0_i32 = arith.constant 0 : i32
    %c0_i32_0 = arith.constant 0 : i32
    %c0_i32_1 = arith.constant 0 : i32
    %c0_i32_2 = arith.constant 0 : i32
    return %c0_i32, %c0_i32_0, %c0_i32_1 : i32, i32, i32
  }
  func.func @transform_4(%arg0: i32) -> (i32, i32, i32) {
    %c0_i32 = arith.constant 0 : i32
    %c0_i32_0 = arith.constant 0 : i32
    %c0_i32_1 = arith.constant 0 : i32
    %c0_i32_2 = arith.constant 0 : i32
    return %c0_i32, %c0_i32_0, %c0_i32_1 : i32, i32, i32
  }
  func.func @transform_5(%arg0: i32) -> (i32, i32, i32) {
    %c0_i32 = arith.constant 0 : i32
    %c0_i32_0 = arith.constant 0 : i32
    %c0_i32_1 = arith.constant 0 : i32
    return %arg0, %c0_i32, %c0_i32_0 : i32, i32, i32
  }
}

</mosaic_0001>

<llo_original>
// kernel: dense_block_forward.1
$region0: #{dense_block_forward.1}
  #allocation0 [shape = 'u32[]', space=smem, size = 0x4, offset = 0x4, fixed_abs, tag = 'smem constant byte address 0x4 - core index']
  #allocation1 [shape = 'u32[72,128]{1,0:T(1,128)}', space=vmem, size = 0x9000, scoped, tag = 'internal scratch']
  #allocation2 [shape = 'bf16[256,128]{1,0:T(8,128)(2,1)}', space=vmem, size = 0x10000, scoped, tag = 'scratch operand']
  #allocation3 [shape = 'f32[18,18,128]{2,1,0:T(8,128)}', space=vmem, size = 0x36000, scoped, tag = 'scratch operand']
  %s0 = inlined_call_operand.vmem [shape: bf16[2,256,128], index: 0, kind: input, shape index: {}]
  %s1 = inlined_call_operand.vmem [shape: bf16[3,128,128], index: 1, kind: input, shape index: {}]
  %s2 = inlined_call_operand.vmem [shape: bf16[3,9,128,128], index: 2, kind: input, shape index: {}]
  %s3 = inlined_call_operand.vmem [shape: f32[3,1,128], index: 3, kind: input, shape index: {}]
  %s4 = inlined_call_operand.vmem [shape: f32[3,1,128], index: 4, kind: input, shape index: {}]
  %s5 = inlined_call_operand.vmem [shape: bf16[2,256,128], index: 5, kind: output, shape index: {}]
  %s6 = sld [smem:[#allocation0]]
  $region53: #{dense_block_forward.1} parent=0
    _
  %s8 = ssub.s32 1, %s6
  %s9 = scalar_select 0, %s8, %s6
  loop: start=0, step=1, limit=4
  $region2: #{dense_block_forward.1} parent=0 // loop_pre_header
    _
  $region3: #{dense_block_forward.1} parent=0 // loop_header
    %s11 = sphi 0, %s15
    %p12 = scmp.ge.s32.totalorder %s11, 4
    %s21 = sphi 0, %s23
    %s24 = sphi 0, %s21
    %s25 = sphi 0, %s24
    %s41 = sphi 0, %s25
    %s45 = sphi 0, %s45
    %s47 = sphi 0, %s45
    %s48 = sphi 0, %s47
    %s62 = sphi 0, %s48
    %s66 = sphi 0, %s66
    %s68 = sphi 0, %s66
    %s69 = sphi 0, %s68
    %s83 = sphi 0, %s69
    %s87 = sphi 0, %s87
    %s89 = sphi 0, %s87
    %s90 = sphi 0, %s89
    %s104 = sphi 0, %s90
    %s108 = sphi 0, %s108
    %s110 = sphi 0, %s108
    %s111 = sphi 0, %s110
    %s125 = sphi 0, %s111
    %s131 = sphi 0, %s133
    %s134 = sphi 0, %s131
    %s135 = sphi 0, %s134
    %s151 = sphi 0, %s135
  $region4: #{dense_block_forward.1} parent=0 // loop_header_branch
    %14 = sbr.rel (%p12) target = $region8
  $region5: #{dense_block_forward.1} parent=0 // loop_body
    %s16 = ssub.s32 %s11, 1
    %s17 = ssub.s32 %s11, 2
    %s18 = sadd.s32 %s11, 1
    %s19 = ssub.s32 %s11, %s18
    %p20 = scmp.eq.s32.totalorder %s19, 0
    %s22 = sadd.s32 %s21, 1
    %s23 = scalar_select %p20, %s21, %s22
    %p26 = pneg %p20
    %p27 = scmp.eq.s32.totalorder %s11, 1
    %p28 = por %p26, %p27
    %p29 = scmp.ne.s32.totalorder %s21, %s24
    %p30 = scmp.eq.s32.totalorder %s11, 0
    %p31 = por %p29, %p30
    %p32 = scmp.ne.s32.totalorder %s21, %s24
    %p33 = scmp.eq.s32.totalorder %s16, 1
    %p34 = por %p32, %p33
    %p35 = scmp.ne.s32.totalorder %s24, %s25
    %p36 = scmp.eq.s32.totalorder %s16, 0
    %p37 = por %p35, %p36
    %p38 = scmp.ne.s32.totalorder %s24, %s25
    %p39 = scmp.eq.s32.totalorder %s17, 1
    %p40 = por %p38, %p39
    %p42 = scmp.ne.s32.totalorder %s25, %s41
    %p43 = scmp.eq.s32.totalorder %s17, 0
    %p44 = por %p42, %p43
    %s46 = sadd.s32 %s45, 1
    %p49 = scmp.eq.s32.totalorder %s11, 1
    %p50 = scmp.ne.s32.totalorder %s45, %s47
    %p51 = scmp.eq.s32.totalorder %s11, 0
    %p52 = por %p50, %p51
    %p53 = scmp.ne.s32.totalorder %s45, %s47
    %p54 = scmp.eq.s32.totalorder %s16, 1
    %p55 = por %p53, %p54
    %p56 = scmp.ne.s32.totalorder %s47, %s48
    %p57 = scmp.eq.s32.totalorder %s16, 0
    %p58 = por %p56, %p57
    %p59 = scmp.ne.s32.totalorder %s47, %s48
    %p60 = scmp.eq.s32.totalorder %s17, 1
    %p61 = por %p59, %p60
    %p63 = scmp.ne.s32.totalorder %s48, %s62
    %p64 = scmp.eq.s32.totalorder %s17, 0
    %p65 = por %p63, %p64
    %s67 = sadd.s32 %s66, 1
    %p70 = scmp.eq.s32.totalorder %s11, 1
    %p71 = scmp.ne.s32.totalorder %s66, %s68
    %p72 = scmp.eq.s32.totalorder %s11, 0
    %p73 = por %p71, %p72
    %p74 = scmp.ne.s32.totalorder %s66, %s68
    %p75 = scmp.eq.s32.totalorder %s16, 1
    %p76 = por %p74, %p75
    %p77 = scmp.ne.s32.totalorder %s68, %s69
    %p78 = scmp.eq.s32.totalorder %s16, 0
    %p79 = por %p77, %p78
    %p80 = scmp.ne.s32.totalorder %s68, %s69
    %p81 = scmp.eq.s32.totalorder %s17, 1
    %p82 = por %p80, %p81
    %p84 = scmp.ne.s32.totalorder %s69, %s83
    %p85 = scmp.eq.s32.totalorder %s17, 0
    %p86 = por %p84, %p85
    %s88 = sadd.s32 %s87, 1
    %p91 = scmp.eq.s32.totalorder %s11, 1
    %p92 = scmp.ne.s32.totalorder %s87, %s89
    %p93 = scmp.eq.s32.totalorder %s11, 0
    %p94 = por %p92, %p93
    %p95 = scmp.ne.s32.totalorder %s87, %s89
    %p96 = scmp.eq.s32.totalorder %s16, 1
    %p97 = por %p95, %p96
    %p98 = scmp.ne.s32.totalorder %s89, %s90
    %p99 = scmp.eq.s32.totalorder %s16, 0
    %p100 = por %p98, %p99
    %p101 = scmp.ne.s32.totalorder %s89, %s90
    %p102 = scmp.eq.s32.totalorder %s17, 1
    %p103 = por %p101, %p102
    %p105 = scmp.ne.s32.totalorder %s90, %s104
    %p106 = scmp.eq.s32.totalorder %s17, 0
    %p107 = por %p105, %p106
    %s109 = sadd.s32 %s108, 1
    %p112 = scmp.eq.s32.totalorder %s11, 1
    %p113 = scmp.ne.s32.totalorder %s108, %s110
    %p114 = scmp.eq.s32.totalorder %s11, 0
    %p115 = por %p113, %p114
    %p116 = scmp.ne.s32.totalorder %s108, %s110
    %p117 = scmp.eq.s32.totalorder %s16, 1
    %p118 = por %p116, %p117
    %p119 = scmp.ne.s32.totalorder %s110, %s111
    %p120 = scmp.eq.s32.totalorder %s16, 0
    %p121 = por %p119, %p120
    %p122 = scmp.ne.s32.totalorder %s110, %s111
    %p123 = scmp.eq.s32.totalorder %s17, 1
    %p124 = por %p122, %p123
    %p126 = scmp.ne.s32.totalorder %s111, %s125
    %p127 = scmp.eq.s32.totalorder %s17, 0
    %p128 = por %p126, %p127
    %s129 = ssub.s32 %s11, %s18
    %p130 = scmp.eq.s32.totalorder %s129, 0
    %s132 = sadd.s32 %s131, 1
    %s133 = scalar_select %p130, %s131, %s132
    %p136 = pneg %p130
    %p137 = scmp.eq.s32.totalorder %s11, 1
    %p138 = por %p136, %p137
    %p139 = scmp.ne.s32.totalorder %s131, %s134
    %p140 = scmp.eq.s32.totalorder %s11, 0
    %p141 = por %p139, %p140
    %p142 = scmp.ne.s32.totalorder %s131, %s134
    %p143 = scmp.eq.s32.totalorder %s16, 1
    %p144 = por %p142, %p143
    %p145 = scmp.ne.s32.totalorder %s134, %s135
    %p146 = scmp.eq.s32.totalorder %s16, 0
    %p147 = por %p145, %p146
    %p148 = scmp.ne.s32.totalorder %s134, %s135
    %p149 = scmp.eq.s32.totalorder %s17, 1
    %p150 = por %p148, %p149
    %p152 = scmp.ne.s32.totalorder %s135, %s151
    %p153 = scmp.eq.s32.totalorder %s17, 0
    %p154 = por %p152, %p153
    %p155 = scmp.le.s32.totalorder 1, %s11
    %p156 = scmp.lt.s32.totalorder %s11, 3
    %p157 = pnand %p155, %p156
    %p158 = pneg %p157
    // Predicated region
    $region9: #{dense_block_forward.1} parent=5 // pred_check
      _
    $region10: #{dense_block_forward.1} parent=5 // pred_check_branch
      %160 = sbr.rel (%p157) target = $region12
    $region11: #{dense_block_forward.1} parent=5 // pred_region
      %s161 = ssub.s32 %s11, 1
      // Predicated region
      $region13: #{dense_block_forward.1} parent=11 // pred_check
        %p162 = pneg %p58
      $region14: #{dense_block_forward.1} parent=11 // pred_check_branch
        %164 = sbr.rel (%p162) target = $region16
      $region15: #{dense_block_forward.1} parent=11 // pred_region
        _
      $region16: #{dense_block_forward.1} parent=11 // pred_fallthru
        _
      // Predicated region
      $region17: #{dense_block_forward.1} parent=11 // pred_check
        %p165 = pneg %p79
      $region18: #{dense_block_forward.1} parent=11 // pred_check_branch
        %167 = sbr.rel (%p165) target = $region20
      $region19: #{dense_block_forward.1} parent=11 // pred_region
        _
      $region20: #{dense_block_forward.1} parent=11 // pred_fallthru
        _
      // Predicated region
      $region21: #{dense_block_forward.1} parent=11 // pred_check
        %p168 = pneg %p100
      $region22: #{dense_block_forward.1} parent=11 // pred_check_branch
        %170 = sbr.rel (%p168) target = $region24
      $region23: #{dense_block_forward.1} parent=11 // pred_region
        _
      $region24: #{dense_block_forward.1} parent=11 // pred_fallthru
        _
      // Predicated region
      $region25: #{dense_block_forward.1} parent=11 // pred_check
        %p171 = pneg %p121
      $region26: #{dense_block_forward.1} parent=11 // pred_check_branch
        %173 = sbr.rel (%p171) target = $region28
      $region27: #{dense_block_forward.1} parent=11 // pred_region
        _
      $region28: #{dense_block_forward.1} parent=11 // pred_fallthru
        _
    $region12: #{dense_block_forward.1} parent=5 // pred_fallthru
      _
    %p174 = scmp.lt.s32.totalorder %s11, 2
    // Predicated region
    $region29: #{dense_block_forward.1} parent=5 // pred_check
      %p175 = pneg %p174
    $region30: #{dense_block_forward.1} parent=5 // pred_check_branch
      %177 = sbr.rel (%p175) target = $region32
    $region31: #{dense_block_forward.1} parent=5 // pred_region
      // Predicated region
      $region33: #{dense_block_forward.1} parent=31 // pred_check
        %p178 = pneg %p31
      $region34: #{dense_block_forward.1} parent=31 // pred_check_branch
        %180 = sbr.rel (%p178) target = $region36
      $region35: #{dense_block_forward.1} parent=31 // pred_region
        %p181 = scmp.lt.s32.totalorder %s11, 1
        %s182 = scalar_select %p181, %s11, 1
        %s183 = smul.addr %s182, 32
        %s184 = smul.addr %s183, 4
        %s185 = scalar_lea.vmem %s0, %s184
      $region36: #{dense_block_forward.1} parent=31 // pred_fallthru
        _
    $region32: #{dense_block_forward.1} parent=5 // pred_fallthru
      _
    %p186 = scmp.le.s32.totalorder 1, %s11
    %p187 = scmp.lt.s32.totalorder %s11, 3
    %p188 = pnand %p186, %p187
    %p189 = pneg %p188
    // Predicated region
    $region37: #{dense_block_forward.1} parent=5 // pred_check
      _
    $region38: #{dense_block_forward.1} parent=5 // pred_check_branch
      %191 = sbr.rel (%p188) target = $region40
    $region39: #{dense_block_forward.1} parent=5 // pred_region
      %s192 = ssub.s32 %s11, 1
      %p193 = scmp.lt.s32.totalorder %s16, 1
      %s194 = scalar_select %p193, %s16, 1
      %s195 = smul.addr %s194, 32
      %s196 = smul.addr %s195, 4
      %s197 = scalar_lea.vmem %s0, %s196
      %p198 = pneg %p37
      %p199 = pneg %p34
      %p200 = pneg %p58
      %p201 = pneg %p55
      %p202 = pneg %p79
      %p203 = pneg %p76
      %p204 = pneg %p100
      %p205 = pneg %p97
      %p206 = pneg %p121
      %p207 = pneg %p118
      %p208 = pneg %p147
      %p209 = pneg %p144
      %p210 = scmp.lt.s32.totalorder %s16, 1
      %s211 = scalar_select %p210, %s16, 1
      %s212 = smul.addr %s211, 32
      %s213 = smul.addr %s212, 4
      %s214 = scalar_lea.vmem %s5, %s213
      %p215 = scmp.lt.s32.totalorder %s16, 1
      %s216 = scalar_select %p215, %s16, 1
      %s217 = smul.addr %s216, 32
      %s218 = smul.addr %s217, 4
      %s219 = scalar_lea.vmem %s0, %s218
      %p220 = scmp.lt.s32.totalorder %s16, 1
      %s221 = scalar_select %p220, %s16, 1
      %s222 = smul.addr %s221, 32
      %s223 = smul.addr %s222, 4
      %s224 = scalar_lea.vmem %s5, %s223
      %226 = vst [vmem:[#allocation2] sm:$0xf] 0
      %227 = vst [vmem:[#allocation2 + $0x4] sm:$0xf] 0
      %228 = vst [vmem:[#allocation2 + $0x8] sm:$0xf] 0
      %229 = vst [vmem:[#allocation2 + $0xc] sm:$0xf] 0
      %230 = vst [vmem:[#allocation2 + $0x10] sm:$0xf] 0
      %231 = vst [vmem:[#allocation2 + $0x14] sm:$0xf] 0
      %232 = vst [vmem:[#allocation2 + $0x18] sm:$0xf] 0
      %233 = vst [vmem:[#allocation2 + $0x1c] sm:$0xf] 0
      %234 = vst [vmem:[#allocation2 + $0x20] sm:$0xf] 0
      %235 = vst [vmem:[#allocation2 + $0x24] sm:$0xf] 0
      %236 = vst [vmem:[#allocation2 + $0x28] sm:$0xf] 0
      %237 = vst [vmem:[#allocation2 + $0x2c] sm:$0xf] 0
      %238 = vst [vmem:[#allocation2 + $0x30] sm:$0xf] 0
      %239 = vst [vmem:[#allocation2 + $0x34] sm:$0xf] 0
      %240 = vst [vmem:[#allocation2 + $0x38] sm:$0xf] 0
      %241 = vst [vmem:[#allocation2 + $0x3c] sm:$0xf] 0
      %242 = vst [vmem:[#allocation2 + $0x40] sm:$0xf] 0
      %243 = vst [vmem:[#allocation2 + $0x44] sm:$0xf] 0
      %244 = vst [vmem:[#allocation2 + $0x48] sm:$0xf] 0
      %245 = vst [vmem:[#allocation2 + $0x4c] sm:$0xf] 0
      %246 = vst [vmem:[#allocation2 + $0x50] sm:$0xf] 0
      %247 = vst [vmem:[#allocation2 + $0x54] sm:$0xf] 0
      %248 = vst [vmem:[#allocation2 + $0x58] sm:$0xf] 0
      %249 = vst [vmem:[#allocation2 + $0x5c] sm:$0xf] 0
      %250 = vst [vmem:[#allocation2 + $0x60] sm:$0xf] 0
      %251 = vst [vmem:[#allocation2 + $0x64] sm:$0xf] 0
      %252 = vst [vmem:[#allocation2 + $0x68] sm:$0xf] 0
      %253 = vst [vmem:[#allocation2 + $0x6c] sm:$0xf] 0
      %254 = vst [vmem:[#allocation2 + $0x70] sm:$0xf] 0
      %255 = vst [vmem:[#allocation2 + $0x74] sm:$0xf] 0
      %256 = vst [vmem:[#allocation2 + $0x78] sm:$0xf] 0
      %257 = vst [vmem:[#allocation2 + $0x7c] sm:$0xf] 0
      %v258 = vld [vmem:[%s219] sm:$0xf]
      %v259 = vld [vmem:[%s219 + $0x4] sm:$0xf]
      %v260 = vld [vmem:[%s219 + $0x8] sm:$0xf]
      %v261 = vld [vmem:[%s219 + $0xc] sm:$0xf]
      %v262 = vld [vmem:[%s219 + $0x10] sm:$0xf]
      %v263 = vld [vmem:[%s219 + $0x14] sm:$0xf]
      %v264 = vld [vmem:[%s219 + $0x18] sm:$0xf]
      %v265 = vld [vmem:[%s219 + $0x1c] sm:$0xf]
      %v266 = vld [vmem:[%s219 + $0x20] sm:$0xf]
      %v267 = vld [vmem:[%s219 + $0x24] sm:$0xf]
      %v268 = vld [vmem:[%s219 + $0x28] sm:$0xf]
      %v269 = vld [vmem:[%s219 + $0x2c] sm:$0xf]
      %v270 = vld [vmem:[%s219 + $0x30] sm:$0xf]
      %v271 = vld [vmem:[%s219 + $0x34] sm:$0xf]
      %v272 = vld [vmem:[%s219 + $0x38] sm:$0xf]
      %v273 = vld [vmem:[%s219 + $0x3c] sm:$0xf]
      %v274 = vld [vmem:[%s219 + $0x40] sm:$0xf]
      %v275 = vld [vmem:[%s219 + $0x44] sm:$0xf]
      %v276 = vld [vmem:[%s219 + $0x48] sm:$0xf]
      %v277 = vld [vmem:[%s219 + $0x4c] sm:$0xf]
      %v278 = vld [vmem:[%s219 + $0x50] sm:$0xf]
      %v279 = vld [vmem:[%s219 + $0x54] sm:$0xf]
      %v280 = vld [vmem:[%s219 + $0x58] sm:$0xf]
      %v281 = vld [vmem:[%s219 + $0x5c] sm:$0xf]
      %v282 = vld [vmem:[%s219 + $0x60] sm:$0xf]
      %v283 = vld [vmem:[%s219 + $0x64] sm:$0xf]
      %v284 = vld [vmem:[%s219 + $0x68] sm:$0xf]
      %v285 = vld [vmem:[%s219 + $0x6c] sm:$0xf]
      %v286 = vld [vmem:[%s219 + $0x70] sm:$0xf]
      %v287 = vld [vmem:[%s219 + $0x74] sm:$0xf]
      %v288 = vld [vmem:[%s219 + $0x78] sm:$0xf]
      %v289 = vld [vmem:[%s219 + $0x7c] sm:$0xf]
      %vm290 = vcmask 27648
      %291 = vst.msk [vmem:[#allocation2] sm:$0xf] %vm290, %v258
      %292 = vst.msk [vmem:[#allocation2 + $0x4] sm:$0xf] %vm290, %v259
      %293 = vst.msk [vmem:[#allocation2 + $0x8] sm:$0xf] %vm290, %v260
      %294 = vst.msk [vmem:[#allocation2 + $0xc] sm:$0xf] %vm290, %v261
      %295 = vst.msk [vmem:[#allocation2 + $0x10] sm:$0xf] %vm290, %v262
      %296 = vst.msk [vmem:[#allocation2 + $0x14] sm:$0xf] %vm290, %v263
      %297 = vst.msk [vmem:[#allocation2 + $0x18] sm:$0xf] %vm290, %v264
      %298 = vst.msk [vmem:[#allocation2 + $0x1c] sm:$0xf] %vm290, %v265
      %299 = vst.msk [vmem:[#allocation2 + $0x20] sm:$0xf] %vm290, %v266
      %300 = vst.msk [vmem:[#allocation2 + $0x24] sm:$0xf] %vm290, %v267
      %301 = vst.msk [vmem:[#allocation2 + $0x28] sm:$0xf] %vm290, %v268
      %302 = vst.msk [vmem:[#allocation2 + $0x2c] sm:$0xf] %vm290, %v269
      %303 = vst.msk [vmem:[#allocation2 + $0x30] sm:$0xf] %vm290, %v270
      %304 = vst.msk [vmem:[#allocation2 + $0x34] sm:$0xf] %vm290, %v271
      %305 = vst.msk [vmem:[#allocation2 + $0x38] sm:$0xf] %vm290, %v272
      %306 = vst.msk [vmem:[#allocation2 + $0x3c] sm:$0xf] %vm290, %v273
      %307 = vst.msk [vmem:[#allocation2 + $0x40] sm:$0xf] %vm290, %v274
      %308 = vst.msk [vmem:[#allocation2 + $0x44] sm:$0xf] %vm290, %v275
      %309 = vst.msk [vmem:[#allocation2 + $0x48] sm:$0xf] %vm290, %v276
      %310 = vst.msk [vmem:[#allocation2 + $0x4c] sm:$0xf] %vm290, %v277
      %311 = vst.msk [vmem:[#allocation2 + $0x50] sm:$0xf] %vm290, %v278
      %312 = vst.msk [vmem:[#allocation2 + $0x54] sm:$0xf] %vm290, %v279
      %313 = vst.msk [vmem:[#allocation2 + $0x58] sm:$0xf] %vm290, %v280
      %314 = vst.msk [vmem:[#allocation2 + $0x5c] sm:$0xf] %vm290, %v281
      %315 = vst.msk [vmem:[#allocation2 + $0x60] sm:$0xf] %vm290, %v282
      %316 = vst.msk [vmem:[#allocation2 + $0x64] sm:$0xf] %vm290, %v283
      %317 = vst.msk [vmem:[#allocation2 + $0x68] sm:$0xf] %vm290, %v284
      %318 = vst.msk [vmem:[#allocation2 + $0x6c] sm:$0xf] %vm290, %v285
      %319 = vst.msk [vmem:[#allocation2 + $0x70] sm:$0xf] %vm290, %v286
      %320 = vst.msk [vmem:[#allocation2 + $0x74] sm:$0xf] %vm290, %v287
      %321 = vst.msk [vmem:[#allocation2 + $0x78] sm:$0xf] %vm290, %v288
      %322 = vst.msk [vmem:[#allocation2 + $0x7c] sm:$0xf] %vm290, %v289
      %323 = vst [vmem:[#allocation3] sm:$0xff] 0.0
      %324 = vst [vmem:[#allocation3 + $0x8] sm:$0xff] 0.0
      %325 = vst [vmem:[#allocation3 + $0x10] sm:$0x3] 0.0
      %s326 = scalar_lea.vmem [#allocation3], 408
      %327 = vst [vmem:[%s326] sm:$0xff] 0.0
      %328 = vst [vmem:[%s326 + $0x8] sm:$0xff] 0.0
      %329 = vst [vmem:[%s326 + $0x10] sm:$0x3] 0.0
      %330 = vst [vmem:[#allocation3] sm:$0x1] 0.0
      %331 = vst [vmem:[#allocation3 + $0x18] sm:$0x1] 0.0
      %332 = vst [vmem:[#allocation3 + $0x30] sm:$0x1] 0.0
      %333 = vst [vmem:[#allocation3 + $0x48] sm:$0x1] 0.0
      %334 = vst [vmem:[#allocation3 + $0x60] sm:$0x1] 0.0
      %335 = vst [vmem:[#allocation3 + $0x78] sm:$0x1] 0.0
      %336 = vst [vmem:[#allocation3 + $0x90] sm:$0x1] 0.0
      %337 = vst [vmem:[#allocation3 + $0xa8] sm:$0x1] 0.0
      %338 = vst [vmem:[#allocation3 + $0xc0] sm:$0x1] 0.0
      %339 = vst [vmem:[#allocation3 + $0xd8] sm:$0x1] 0.0
      %340 = vst [vmem:[#allocation3 + $0xf0] sm:$0x1] 0.0
      %341 = vst [vmem:[#allocation3 + $0x108] sm:$0x1] 0.0
      %342 = vst [vmem:[#allocation3 + $0x120] sm:$0x1] 0.0
      %343 = vst [vmem:[#allocation3 + $0x138] sm:$0x1] 0.0
      %344 = vst [vmem:[#allocation3 + $0x150] sm:$0x1] 0.0
      %345 = vst [vmem:[#allocation3 + $0x168] sm:$0x1] 0.0
      %346 = vst [vmem:[#allocation3 + $0x180] sm:$0x1] 0.0
      %347 = vst [vmem:[#allocation3 + $0x198] sm:$0x1] 0.0
      %348 = vst [vmem:[#allocation3 + $0x11] sm:$0x1] 0.0
      %349 = vst [vmem:[#allocation3 + $0x29] sm:$0x1] 0.0
      %350 = vst [vmem:[#allocation3 + $0x41] sm:$0x1] 0.0
      %351 = vst [vmem:[#allocation3 + $0x59] sm:$0x1] 0.0
      %352 = vst [vmem:[#allocation3 + $0x71] sm:$0x1] 0.0
      %353 = vst [vmem:[#allocation3 + $0x89] sm:$0x1] 0.0
      %354 = vst [vmem:[#allocation3 + $0xa1] sm:$0x1] 0.0
      %355 = vst [vmem:[#allocation3 + $0xb9] sm:$0x1] 0.0
      %356 = vst [vmem:[#allocation3 + $0xd1] sm:$0x1] 0.0
      %357 = vst [vmem:[#allocation3 + $0xe9] sm:$0x1] 0.0
      %358 = vst [vmem:[#allocation3 + $0x101] sm:$0x1] 0.0
      %359 = vst [vmem:[#allocation3 + $0x119] sm:$0x1] 0.0
      %360 = vst [vmem:[#allocation3 + $0x131] sm:$0x1] 0.0
      %361 = vst [vmem:[#allocation3 + $0x149] sm:$0x1] 0.0
      %362 = vst [vmem:[#allocation3 + $0x161] sm:$0x1] 0.0
      %363 = vst [vmem:[#allocation3 + $0x179] sm:$0x1] 0.0
      %364 = vst [vmem:[#allocation3 + $0x191] sm:$0x1] 0.0
      %365 = vst [vmem:[#allocation3 + $0x1a9] sm:$0x1] 0.0
      %v366 = vld [vmem:[#allocation2] sm:$0xf]
      %v367 = vld [vmem:[#allocation2 + $0x4] sm:$0xf]
      %v368 = vld [vmem:[#allocation2 + $0x8] sm:$0xf]
      %v369 = vld [vmem:[#allocation2 + $0xc] sm:$0xf]
      %v370 = vld [vmem:[#allocation2 + $0x10] sm:$0xf]
      %v371 = vld [vmem:[#allocation2 + $0x14] sm:$0xf]
      %v372 = vld [vmem:[#allocation2 + $0x18] sm:$0xf]
      %v373 = vld [vmem:[#allocation2 + $0x1c] sm:$0xf]
      %v374 = vld [vmem:[#allocation2 + $0x20] sm:$0xf]
      %v375 = vld [vmem:[#allocation2 + $0x24] sm:$0xf]
      %v376 = vld [vmem:[#allocation2 + $0x28] sm:$0xf]
      %v377 = vld [vmem:[#allocation2 + $0x2c] sm:$0xf]
      %v378 = vld [vmem:[#allocation2 + $0x30] sm:$0xf]
      %v379 = vld [vmem:[#allocation2 + $0x34] sm:$0xf]
      %v380 = vld [vmem:[#allocation2 + $0x38] sm:$0xf]
      %v381 = vld [vmem:[#allocation2 + $0x3c] sm:$0xf]
      %v382 = vld [vmem:[#allocation2 + $0x40] sm:$0xf]
      %v383 = vld [vmem:[#allocation2 + $0x44] sm:$0xf]
      %v384 = vld [vmem:[#allocation2 + $0x48] sm:$0xf]
      %v385 = vld [vmem:[#allocation2 + $0x4c] sm:$0xf]
      %v386 = vld [vmem:[#allocation2 + $0x50] sm:$0xf]
      %v387 = vld [vmem:[#allocation2 + $0x54] sm:$0xf]
      %v388 = vld [vmem:[#allocation2 + $0x58] sm:$0xf]
      %v389 = vld [vmem:[#allocation2 + $0x5c] sm:$0xf]
      %v390 = vld [vmem:[#allocation2 + $0x60] sm:$0xf]
      %v391 = vld [vmem:[#allocation2 + $0x64] sm:$0xf]
      %v392 = vld [vmem:[#allocation2 + $0x68] sm:$0xf]
      %v393 = vld [vmem:[#allocation2 + $0x6c] sm:$0xf]
      %v394 = vld [vmem:[#allocation2 + $0x70] sm:$0xf]
      %v395 = vld [vmem:[#allocation2 + $0x74] sm:$0xf]
      %v396 = vld [vmem:[#allocation2 + $0x78] sm:$0xf]
      %v397 = vld [vmem:[#allocation2 + $0x7c] sm:$0xf]
      %v398 = vld [vmem:[%s1] sm:$0xf]
      %v399 = vld [vmem:[%s1 + $0x4] sm:$0xf]
      %v400 = vld [vmem:[%s1 + $0x8] sm:$0xf]
      %v401 = vld [vmem:[%s1 + $0xc] sm:$0xf]
      %v402 = vld [vmem:[%s1 + $0x10] sm:$0xf]
      %v403 = vld [vmem:[%s1 + $0x14] sm:$0xf]
      %v404 = vld [vmem:[%s1 + $0x18] sm:$0xf]
      %v405 = vld [vmem:[%s1 + $0x1c] sm:$0xf]
      %v406 = vld [vmem:[%s1 + $0x20] sm:$0xf]
      %v407 = vld [vmem:[%s1 + $0x24] sm:$0xf]
      %v408 = vld [vmem:[%s1 + $0x28] sm:$0xf]
      %v409 = vld [vmem:[%s1 + $0x2c] sm:$0xf]
      %v410 = vld [vmem:[%s1 + $0x30] sm:$0xf]
      %v411 = vld [vmem:[%s1 + $0x34] sm:$0xf]
      %v412 = vld [vmem:[%s1 + $0x38] sm:$0xf]
      %v413 = vld [vmem:[%s1 + $0x3c] sm:$0xf]
      %v414 = vld [vmem:[%s3] sm:$0x1]
      %v416 = vperm.slane %v414, 0
      %v450 = vunpack.c.l.b16 %v366
      %v451 = vunpack.c.l.b16 %v367
      %v452 = vunpack.c.l.b16 %v368
      %v453 = vunpack.c.l.b16 %v369
      %v454 = vunpack.c.l.b16 %v370
      %v455 = vunpack.c.l.b16 %v371
      %v456 = vunpack.c.l.b16 %v372
      %v457 = vunpack.c.l.b16 %v373
      %v458 = vunpack.c.l.b16 %v374
      %v459 = vunpack.c.l.b16 %v375
      %v460 = vunpack.c.l.b16 %v376
      %v461 = vunpack.c.l.b16 %v377
      %v462 = vunpack.c.l.b16 %v378
      %v463 = vunpack.c.l.b16 %v379
      %v464 = vunpack.c.l.b16 %v380
      %v465 = vunpack.c.l.b16 %v381
      %v466 = vunpack.c.l.b16 %v382
      %v467 = vunpack.c.l.b16 %v383
      %v468 = vunpack.c.l.b16 %v384
      %v469 = vunpack.c.l.b16 %v385
      %v470 = vunpack.c.l.b16 %v386
      %v471 = vunpack.c.l.b16 %v387
      %v472 = vunpack.c.l.b16 %v388
      %v473 = vunpack.c.l.b16 %v389
      %v474 = vunpack.c.l.b16 %v390
      %v475 = vunpack.c.l.b16 %v391
      %v476 = vunpack.c.l.b16 %v392
      %v477 = vunpack.c.l.b16 %v393
      %v478 = vunpack.c.l.b16 %v394
      %v479 = vunpack.c.l.b16 %v395
      %v480 = vunpack.c.l.b16 %v396
      %v481 = vunpack.c.l.b16 %v397
      %v482 = vpack.c.b16 %v451, %v450
      %v483 = vpack.c.b16 %v453, %v452
      %v484 = vpack.c.b16 %v455, %v454
      %v485 = vpack.c.b16 %v457, %v456
      %v486 = vpack.c.b16 %v459, %v458
      %v487 = vpack.c.b16 %v461, %v460
      %v488 = vpack.c.b16 %v463, %v462
      %v489 = vpack.c.b16 %v465, %v464
      %v490 = vpack.c.b16 %v467, %v466
      %v491 = vpack.c.b16 %v469, %v468
      %v492 = vpack.c.b16 %v471, %v470
      %v493 = vpack.c.b16 %v473, %v472
      %v494 = vpack.c.b16 %v475, %v474
      %v495 = vpack.c.b16 %v477, %v476
      %v496 = vpack.c.b16 %v479, %v478
      %v497 = vpack.c.b16 %v481, %v480
      %v530 = vunpack.c.l.b16 %v398
      %v531 = vunpack.c.l.b16 %v399
      %v532 = vunpack.c.l.b16 %v400
      %v533 = vunpack.c.l.b16 %v401
      %v534 = vunpack.c.l.b16 %v402
      %v535 = vunpack.c.l.b16 %v403
      %v536 = vunpack.c.l.b16 %v404
      %v537 = vunpack.c.l.b16 %v405
      %v538 = vunpack.c.l.b16 %v406
      %v539 = vunpack.c.l.b16 %v407
      %v540 = vunpack.c.l.b16 %v408
      %v541 = vunpack.c.l.b16 %v409
      %v542 = vunpack.c.l.b16 %v410
      %v543 = vunpack.c.l.b16 %v411
      %v544 = vunpack.c.l.b16 %v412
      %v545 = vunpack.c.l.b16 %v413
      %v546 = vpack.c.b16 %v531, %v530
      %v547 = vpack.c.b16 %v533, %v532
      %v548 = vpack.c.b16 %v535, %v534
      %v549 = vpack.c.b16 %v537, %v536
      %v550 = vpack.c.b16 %v539, %v538
      %v551 = vpack.c.b16 %v541, %v540
      %v552 = vpack.c.b16 %v543, %v542
      %v553 = vpack.c.b16 %v545, %v544
      %562 = vmatpush.bf16.msra.mxu0 %v553
      %563 = vmatpush.bf16.msra.mxu0 %v552
      %564 = vmatpush.bf16.msra.mxu0 %v551
      %565 = vmatpush.bf16.msra.mxu0 %v550
      %566 = vmatpush.bf16.msra.mxu0 %v549
      %567 = vmatpush.bf16.msra.mxu0 %v548
      %568 = vmatpush.bf16.msra.mxu0 %v547
      %569 = vmatpush.bf16.msra.mxu0 %v546
      %570 = vmatmul.bf16.gmra.mxu0 %v482
      %v571 = vpop.f32.mrf.mxu0
      %v572 = vadd.f32 %v416, %v571
      %v573 = vpop.f32.mrf.mxu0
      %v574 = vadd.f32 %v416, %v573
      %575 = vmatmul.bf16.gmra.mxu0 %v483
      %v576 = vpop.f32.mrf.mxu0
      %v577 = vadd.f32 %v416, %v576
      %v578 = vpop.f32.mrf.mxu0
      %v579 = vadd.f32 %v416, %v578
      %580 = vmatmul.bf16.gmra.mxu0 %v484
      %v581 = vpop.f32.mrf.mxu0
      %v582 = vadd.f32 %v416, %v581
      %v583 = vpop.f32.mrf.mxu0
      %v584 = vadd.f32 %v416, %v583
      %585 = vmatmul.bf16.gmra.mxu0 %v485
      %v586 = vpop.f32.mrf.mxu0
      %v587 = vadd.f32 %v416, %v586
      %v588 = vpop.f32.mrf.mxu0
      %v589 = vadd.f32 %v416, %v588
      %590 = vmatmul.bf16.gmra.mxu0 %v486
      %v591 = vpop.f32.mrf.mxu0
      %v592 = vadd.f32 %v416, %v591
      %v593 = vpop.f32.mrf.mxu0
      %v594 = vadd.f32 %v416, %v593
      %595 = vmatmul.bf16.gmra.mxu0 %v487
      %v596 = vpop.f32.mrf.mxu0
      %v597 = vadd.f32 %v416, %v596
      %v598 = vpop.f32.mrf.mxu0
      %v599 = vadd.f32 %v416, %v598
      %600 = vmatmul.bf16.gmra.mxu0 %v488
      %v601 = vpop.f32.mrf.mxu0
      %v602 = vadd.f32 %v416, %v601
      %v603 = vpop.f32.mrf.mxu0
      %v604 = vadd.f32 %v416, %v603
      %605 = vmatmul.bf16.gmra.mxu0 %v489
      %v606 = vpop.f32.mrf.mxu0
      %v607 = vadd.f32 %v416, %v606
      %v608 = vpop.f32.mrf.mxu0
      %v609 = vadd.f32 %v416, %v608
      %610 = vmatmul.bf16.gmra.mxu0 %v490
      %v611 = vpop.f32.mrf.mxu0
      %v612 = vadd.f32 %v416, %v611
      %v613 = vpop.f32.mrf.mxu0
      %v614 = vadd.f32 %v416, %v613
      %615 = vmatmul.bf16.gmra.mxu0 %v491
      %v616 = vpop.f32.mrf.mxu0
      %v617 = vadd.f32 %v416, %v616
      %v618 = vpop.f32.mrf.mxu0
      %v619 = vadd.f32 %v416, %v618
      %620 = vmatmul.bf16.gmra.mxu0 %v492
      %v621 = vpop.f32.mrf.mxu0
      %v622 = vadd.f32 %v416, %v621
      %v623 = vpop.f32.mrf.mxu0
      %v624 = vadd.f32 %v416, %v623
      %625 = vmatmul.bf16.gmra.mxu0 %v493
      %v626 = vpop.f32.mrf.mxu0
      %v627 = vadd.f32 %v416, %v626
      %v628 = vpop.f32.mrf.mxu0
      %v629 = vadd.f32 %v416, %v628
      %630 = vmatmul.bf16.gmra.mxu0 %v494
      %v631 = vpop.f32.mrf.mxu0
      %v632 = vadd.f32 %v416, %v631
      %v633 = vpop.f32.mrf.mxu0
      %v634 = vadd.f32 %v416, %v633
      %635 = vmatmul.bf16.gmra.mxu0 %v495
      %v636 = vpop.f32.mrf.mxu0
      %v637 = vadd.f32 %v416, %v636
      %v638 = vpop.f32.mrf.mxu0
      %v639 = vadd.f32 %v416, %v638
      %640 = vmatmul.bf16.gmra.mxu0 %v496
      %v641 = vpop.f32.mrf.mxu0
      %v642 = vadd.f32 %v416, %v641
      %v643 = vpop.f32.mrf.mxu0
      %v644 = vadd.f32 %v416, %v643
      %645 = vmatmul.bf16.gmra.mxu0 %v497
      %v646 = vpop.f32.mrf.mxu0
      %v647 = vadd.f32 %v416, %v646
      %v648 = vpop.f32.mrf.mxu0
      %v649 = vadd.f32 %v416, %v648
      %650 = vdwg.mxu0
      %v651 = vmax.f32 %v572, 0.0
      %v652 = vmax.f32 %v574, 0.0
      %v653 = vmax.f32 %v577, 0.0
      %v654 = vmax.f32 %v579, 0.0
      %v655 = vmax.f32 %v582, 0.0
      %v656 = vmax.f32 %v584, 0.0
      %v657 = vmax.f32 %v587, 0.0
      %v658 = vmax.f32 %v589, 0.0
      %v659 = vmax.f32 %v592, 0.0
      %v660 = vmax.f32 %v594, 0.0
      %v661 = vmax.f32 %v597, 0.0
      %v662 = vmax.f32 %v599, 0.0
      %v663 = vmax.f32 %v602, 0.0
      %v664 = vmax.f32 %v604, 0.0
      %v665 = vmax.f32 %v607, 0.0
      %v666 = vmax.f32 %v609, 0.0
      %v667 = vmax.f32 %v612, 0.0
      %v668 = vmax.f32 %v614, 0.0
      %v669 = vmax.f32 %v617, 0.0
      %v670 = vmax.f32 %v619, 0.0
      %v671 = vmax.f32 %v622, 0.0
      %v672 = vmax.f32 %v624, 0.0
      %v673 = vmax.f32 %v627, 0.0
      %v674 = vmax.f32 %v629, 0.0
      %v675 = vmax.f32 %v632, 0.0
      %v676 = vmax.f32 %v634, 0.0
      %v677 = vmax.f32 %v637, 0.0
      %v678 = vmax.f32 %v639, 0.0
      %v679 = vmax.f32 %v642, 0.0
      %v680 = vmax.f32 %v644, 0.0
      %v681 = vmax.f32 %v647, 0.0
      %v682 = vmax.f32 %v649, 0.0
      %s683 = scalar_lea.vmem [#allocation3], 24
      %684 = vst [vmem:[%s683 + $0x1] sm:$0xff] %v651
      %685 = vst [vmem:[%s683 + $0x9] sm:$0xff] %v652
      %686 = vst [vmem:[%s683 + $0x19] sm:$0xff] %v653
      %687 = vst [vmem:[%s683 + $0x21] sm:$0xff] %v654
      %688 = vst [vmem:[%s683 + $0x31] sm:$0xff] %v655
      %689 = vst [vmem:[%s683 + $0x39] sm:$0xff] %v656
      %690 = vst [vmem:[%s683 + $0x49] sm:$0xff] %v657
      %691 = vst [vmem:[%s683 + $0x51] sm:$0xff] %v658
      %692 = vst [vmem:[%s683 + $0x61] sm:$0xff] %v659
      %693 = vst [vmem:[%s683 + $0x69] sm:$0xff] %v660
      %694 = vst [vmem:[%s683 + $0x79] sm:$0xff] %v661
      %695 = vst [vmem:[%s683 + $0x81] sm:$0xff] %v662
      %696 = vst [vmem:[%s683 + $0x91] sm:$0xff] %v663
      %697 = vst [vmem:[%s683 + $0x99] sm:$0xff] %v664
      %698 = vst [vmem:[%s683 + $0xa9] sm:$0xff] %v665
      %699 = vst [vmem:[%s683 + $0xb1] sm:$0xff] %v666
      %700 = vst [vmem:[%s683 + $0xc1] sm:$0xff] %v667
      %701 = vst [vmem:[%s683 + $0xc9] sm:$0xff] %v668
      %702 = vst [vmem:[%s683 + $0xd9] sm:$0xff] %v669
      %703 = vst [vmem:[%s683 + $0xe1] sm:$0xff] %v670
      %704 = vst [vmem:[%s683 + $0xf1] sm:$0xff] %v671
      %705 = vst [vmem:[%s683 + $0xf9] sm:$0xff] %v672
      %706 = vst [vmem:[%s683 + $0x109] sm:$0xff] %v673
      %707 = vst [vmem:[%s683 + $0x111] sm:$0xff] %v674
      %708 = vst [vmem:[%s683 + $0x121] sm:$0xff] %v675
      %709 = vst [vmem:[%s683 + $0x129] sm:$0xff] %v676
      %710 = vst [vmem:[%s683 + $0x139] sm:$0xff] %v677
      %711 = vst [vmem:[%s683 + $0x141] sm:$0xff] %v678
      %712 = vst [vmem:[%s683 + $0x151] sm:$0xff] %v679
      %713 = vst [vmem:[%s683 + $0x159] sm:$0xff] %v680
      %714 = vst [vmem:[%s683 + $0x169] sm:$0xff] %v681
      %715 = vst [vmem:[%s683 + $0x171] sm:$0xff] %v682
      %v716 = vld [vmem:[#allocation3] sm:$0xff]
      %v717 = vld [vmem:[#allocation3 + $0x8] sm:$0xff]
      %v718 = vld [vmem:[#allocation3 + $0x18] sm:$0xff]
      %v719 = vld [vmem:[#allocation3 + $0x20] sm:$0xff]
      %v720 = vld [vmem:[#allocation3 + $0x30] sm:$0xff]
      %v721 = vld [vmem:[#allocation3 + $0x38] sm:$0xff]
      %v722 = vld [vmem:[#allocation3 + $0x48] sm:$0xff]
      %v723 = vld [vmem:[#allocation3 + $0x50] sm:$0xff]
      %v724 = vld [vmem:[#allocation3 + $0x60] sm:$0xff]
      %v725 = vld [vmem:[#allocation3 + $0x68] sm:$0xff]
      %v726 = vld [vmem:[#allocation3 + $0x78] sm:$0xff]
      %v727 = vld [vmem:[#allocation3 + $0x80] sm:$0xff]
      %v728 = vld [vmem:[#allocation3 + $0x90] sm:$0xff]
      %v729 = vld [vmem:[#allocation3 + $0x98] sm:$0xff]
      %v730 = vld [vmem:[#allocation3 + $0xa8] sm:$0xff]
      %v731 = vld [vmem:[#allocation3 + $0xb0] sm:$0xff]
      %v732 = vld [vmem:[#allocation3 + $0xc0] sm:$0xff]
      %v733 = vld [vmem:[#allocation3 + $0xc8] sm:$0xff]
      %v734 = vld [vmem:[#allocation3 + $0xd8] sm:$0xff]
      %v735 = vld [vmem:[#allocation3 + $0xe0] sm:$0xff]
      %v736 = vld [vmem:[#allocation3 + $0xf0] sm:$0xff]
      %v737 = vld [vmem:[#allocation3 + $0xf8] sm:$0xff]
      %v738 = vld [vmem:[#allocation3 + $0x108] sm:$0xff]
      %v739 = vld [vmem:[#allocation3 + $0x110] sm:$0xff]
      %v740 = vld [vmem:[#allocation3 + $0x120] sm:$0xff]
      %v741 = vld [vmem:[#allocation3 + $0x128] sm:$0xff]
      %v742 = vld [vmem:[#allocation3 + $0x138] sm:$0xff]
      %v743 = vld [vmem:[#allocation3 + $0x140] sm:$0xff]
      %v744 = vld [vmem:[#allocation3 + $0x150] sm:$0xff]
      %v745 = vld [vmem:[#allocation3 + $0x158] sm:$0xff]
      %v746 = vld [vmem:[#allocation3 + $0x168] sm:$0xff]
      %v747 = vld [vmem:[#allocation3 + $0x170] sm:$0xff]
      %v748 = vpack.c.bf16 %v717, %v716
      %v749 = vpack.c.bf16 %v719, %v718
      %v750 = vpack.c.bf16 %v721, %v720
      %v751 = vpack.c.bf16 %v723, %v722
      %v752 = vpack.c.bf16 %v725, %v724
      %v753 = vpack.c.bf16 %v727, %v726
      %v754 = vpack.c.bf16 %v729, %v728
      %v755 = vpack.c.bf16 %v731, %v730
      %v756 = vpack.c.bf16 %v733, %v732
      %v757 = vpack.c.bf16 %v735, %v734
      %v758 = vpack.c.bf16 %v737, %v736
      %v759 = vpack.c.bf16 %v739, %v738
      %v760 = vpack.c.bf16 %v741, %v740
      %v761 = vpack.c.bf16 %v743, %v742
      %v762 = vpack.c.bf16 %v745, %v744
      %v763 = vpack.c.bf16 %v747, %v746
      %v764 = vld [vmem:[%s2] sm:$0xf]
      %v765 = vld [vmem:[%s2 + $0x4] sm:$0xf]
      %v766 = vld [vmem:[%s2 + $0x8] sm:$0xf]
      %v767 = vld [vmem:[%s2 + $0xc] sm:$0xf]
      %v768 = vld [vmem:[%s2 + $0x10] sm:$0xf]
      %v769 = vld [vmem:[%s2 + $0x14] sm:$0xf]
      %v770 = vld [vmem:[%s2 + $0x18] sm:$0xf]
      %v771 = vld [vmem:[%s2 + $0x1c] sm:$0xf]
      %v772 = vld [vmem:[%s2 + $0x20] sm:$0xf]
      %v773 = vld [vmem:[%s2 + $0x24] sm:$0xf]
      %v774 = vld [vmem:[%s2 + $0x28] sm:$0xf]
      %v775 = vld [vmem:[%s2 + $0x2c] sm:$0xf]
      %v776 = vld [vmem:[%s2 + $0x30] sm:$0xf]
      %v777 = vld [vmem:[%s2 + $0x34] sm:$0xf]
      %v778 = vld [vmem:[%s2 + $0x38] sm:$0xf]
      %v779 = vld [vmem:[%s2 + $0x3c] sm:$0xf]
      %v780 = vld [vmem:[#allocation3 + $0x1] sm:$0xff]
      %v781 = vld [vmem:[#allocation3 + $0x9] sm:$0xff]
      %v782 = vld [vmem:[#allocation3 + $0x19] sm:$0xff]
      %v783 = vld [vmem:[#allocation3 + $0x21] sm:$0xff]
      %v784 = vld [vmem:[#allocation3 + $0x31] sm:$0xff]
      %v785 = vld [vmem:[#allocation3 + $0x39] sm:$0xff]
      %v786 = vld [vmem:[#allocation3 + $0x49] sm:$0xff]
      %v787 = vld [vmem:[#allocation3 + $0x51] sm:$0xff]
      %v788 = vld [vmem:[#allocation3 + $0x61] sm:$0xff]
      %v789 = vld [vmem:[#allocation3 + $0x69] sm:$0xff]
      %v790 = vld [vmem:[#allocation3 + $0x79] sm:$0xff]
      %v791 = vld [vmem:[#allocation3 + $0x81] sm:$0xff]
      %v792 = vld [vmem:[#allocation3 + $0x91] sm:$0xff]
      %v793 = vld [vmem:[#allocation3 + $0x99] sm:$0xff]
      %v794 = vld [vmem:[#allocation3 + $0xa9] sm:$0xff]
      %v795 = vld [vmem:[#allocation3 + $0xb1] sm:$0xff]
      %v796 = vld [vmem:[#allocation3 + $0xc1] sm:$0xff]
      %v797 = vld [vmem:[#allocation3 + $0xc9] sm:$0xff]
      %v798 = vld [vmem:[#allocation3 + $0xd9] sm:$0xff]
      %v799 = vld [vmem:[#allocation3 + $0xe1] sm:$0xff]
      %v800 = vld [vmem:[#allocation3 + $0xf1] sm:$0xff]
      %v801 = vld [vmem:[#allocation3 + $0xf9] sm:$0xff]
      %v802 = vld [vmem:[#allocation3 + $0x109] sm:$0xff]
      %v803 = vld [vmem:[#allocation3 + $0x111] sm:$0xff]
      %v804 = vld [vmem:[#allocation3 + $0x121] sm:$0xff]
      %v805 = vld [vmem:[#allocation3 + $0x129] sm:$0xff]
      %v806 = vld [vmem:[#allocation3 + $0x139] sm:$0xff]
      %v807 = vld [vmem:[#allocation3 + $0x141] sm:$0xff]
      %v808 = vld [vmem:[#allocation3 + $0x151] sm:$0xff]
      %v809 = vld [vmem:[#allocation3 + $0x159] sm:$0xff]
      %v810 = vld [vmem:[#allocation3 + $0x169] sm:$0xff]
      %v811 = vld [vmem:[#allocation3 + $0x171] sm:$0xff]
      %v812 = vpack.c.bf16 %v781, %v780
      %v813 = vpack.c.bf16 %v783, %v782
      %v814 = vpack.c.bf16 %v785, %v784
      %v815 = vpack.c.bf16 %v787, %v786
      %v816 = vpack.c.bf16 %v789, %v788
      %v817 = vpack.c.bf16 %v791, %v790
      %v818 = vpack.c.bf16 %v793, %v792
      %v819 = vpack.c.bf16 %v795, %v794
      %v820 = vpack.c.bf16 %v797, %v796
      %v821 = vpack.c.bf16 %v799, %v798
      %v822 = vpack.c.bf16 %v801, %v800
      %v823 = vpack.c.bf16 %v803, %v802
      %v824 = vpack.c.bf16 %v805, %v804
      %v825 = vpack.c.bf16 %v807, %v806
      %v826 = vpack.c.bf16 %v809, %v808
      %v827 = vpack.c.bf16 %v811, %v810
      %s828 = scalar_lea.vmem %s2, 64
      %v829 = vld [vmem:[%s828] sm:$0xf]
      %v830 = vld [vmem:[%s828 + $0x4] sm:$0xf]
      %v831 = vld [vmem:[%s828 + $0x8] sm:$0xf]
      %v832 = vld [vmem:[%s828 + $0xc] sm:$0xf]
      %v833 = vld [vmem:[%s828 + $0x10] sm:$0xf]
      %v834 = vld [vmem:[%s828 + $0x14] sm:$0xf]
      %v835 = vld [vmem:[%s828 + $0x18] sm:$0xf]
      %v836 = vld [vmem:[%s828 + $0x1c] sm:$0xf]
      %v837 = vld [vmem:[%s828 + $0x20] sm:$0xf]
      %v838 = vld [vmem:[%s828 + $0x24] sm:$0xf]
      %v839 = vld [vmem:[%s828 + $0x28] sm:$0xf]
      %v840 = vld [vmem:[%s828 + $0x2c] sm:$0xf]
      %v841 = vld [vmem:[%s828 + $0x30] sm:$0xf]
      %v842 = vld [vmem:[%s828 + $0x34] sm:$0xf]
      %v843 = vld [vmem:[%s828 + $0x38] sm:$0xf]
      %v844 = vld [vmem:[%s828 + $0x3c] sm:$0xf]
      %v861 = vunpack.c.l.b16 %v829
      %v862 = vunpack.c.l.b16 %v830
      %v863 = vunpack.c.l.b16 %v831
      %v864 = vunpack.c.l.b16 %v832
      %v865 = vunpack.c.l.b16 %v833
      %v866 = vunpack.c.l.b16 %v834
      %v867 = vunpack.c.l.b16 %v835
      %v868 = vunpack.c.l.b16 %v836
      %v869 = vunpack.c.l.b16 %v837
      %v870 = vunpack.c.l.b16 %v838
      %v871 = vunpack.c.l.b16 %v839
      %v872 = vunpack.c.l.b16 %v840
      %v873 = vunpack.c.l.b16 %v841
      %v874 = vunpack.c.l.b16 %v842
      %v875 = vunpack.c.l.b16 %v843
      %v876 = vunpack.c.l.b16 %v844
      %v877 = vpack.c.b16 %v862, %v861
      %v878 = vpack.c.b16 %v864, %v863
      %v879 = vpack.c.b16 %v866, %v865
      %v880 = vpack.c.b16 %v868, %v867
      %v881 = vpack.c.b16 %v870, %v869
      %v882 = vpack.c.b16 %v872, %v871
      %v883 = vpack.c.b16 %v874, %v873
      %v884 = vpack.c.b16 %v876, %v875
      %893 = vmatpush.bf16.msra.mxu0 %v884
      %894 = vmatpush.bf16.msra.mxu0 %v883
      %895 = vmatpush.bf16.msra.mxu0 %v882
      %896 = vmatpush.bf16.msra.mxu0 %v881
      %897 = vmatpush.bf16.msra.mxu0 %v880
      %898 = vmatpush.bf16.msra.mxu0 %v879
      %899 = vmatpush.bf16.msra.mxu0 %v878
      %900 = vmatpush.bf16.msra.mxu0 %v877
      %901 = vmatmul.bf16.gmra.mxu0 %v812
      %v902 = vpop.f32.mrf.mxu0
      %v903 = vadd.f32 0.0, %v902
      %v904 = vpop.f32.mrf.mxu0
      %v905 = vadd.f32 0.0, %v904
      %906 = vmatmul.bf16.gmra.mxu0 %v813
      %v907 = vpop.f32.mrf.mxu0
      %v908 = vadd.f32 0.0, %v907
      %v909 = vpop.f32.mrf.mxu0
      %v910 = vadd.f32 0.0, %v909
      %911 = vmatmul.bf16.gmra.mxu0 %v814
      %v912 = vpop.f32.mrf.mxu0
      %v913 = vadd.f32 0.0, %v912
      %v914 = vpop.f32.mrf.mxu0
      %v915 = vadd.f32 0.0, %v914
      %916 = vmatmul.bf16.gmra.mxu0 %v815
      %v917 = vpop.f32.mrf.mxu0
      %v918 = vadd.f32 0.0, %v917
      %v919 = vpop.f32.mrf.mxu0
      %v920 = vadd.f32 0.0, %v919
      %921 = vmatmul.bf16.gmra.mxu0 %v816
      %v922 = vpop.f32.mrf.mxu0
      %v923 = vadd.f32 0.0, %v922
      %v924 = vpop.f32.mrf.mxu0
      %v925 = vadd.f32 0.0, %v924
      %926 = vmatmul.bf16.gmra.mxu0 %v817
      %v927 = vpop.f32.mrf.mxu0
      %v928 = vadd.f32 0.0, %v927
      %v929 = vpop.f32.mrf.mxu0
      %v930 = vadd.f32 0.0, %v929
      %931 = vmatmul.bf16.gmra.mxu0 %v818
      %v932 = vpop.f32.mrf.mxu0
      %v933 = vadd.f32 0.0, %v932
      %v934 = vpop.f32.mrf.mxu0
      %v935 = vadd.f32 0.0, %v934
      %936 = vmatmul.bf16.gmra.mxu0 %v819
      %v937 = vpop.f32.mrf.mxu0
      %v938 = vadd.f32 0.0, %v937
      %v939 = vpop.f32.mrf.mxu0
      %v940 = vadd.f32 0.0, %v939
      %941 = vmatmul.bf16.gmra.mxu0 %v820
      %v942 = vpop.f32.mrf.mxu0
      %v943 = vadd.f32 0.0, %v942
      %v944 = vpop.f32.mrf.mxu0
      %v945 = vadd.f32 0.0, %v944
      %946 = vmatmul.bf16.gmra.mxu0 %v821
      %v947 = vpop.f32.mrf.mxu0
      %v948 = vadd.f32 0.0, %v947
      %v949 = vpop.f32.mrf.mxu0
      %v950 = vadd.f32 0.0, %v949
      %951 = vmatmul.bf16.gmra.mxu0 %v822
      %v952 = vpop.f32.mrf.mxu0
      %v953 = vadd.f32 0.0, %v952
      %v954 = vpop.f32.mrf.mxu0
      %v955 = vadd.f32 0.0, %v954
      %956 = vmatmul.bf16.gmra.mxu0 %v823
      %v957 = vpop.f32.mrf.mxu0
      %v958 = vadd.f32 0.0, %v957
      %v959 = vpop.f32.mrf.mxu0
      %v960 = vadd.f32 0.0, %v959
      %961 = vmatmul.bf16.gmra.mxu0 %v824
      %v962 = vpop.f32.mrf.mxu0
      %v963 = vadd.f32 0.0, %v962
      %v964 = vpop.f32.mrf.mxu0
      %v965 = vadd.f32 0.0, %v964
      %966 = vmatmul.bf16.gmra.mxu0 %v825
      %v967 = vpop.f32.mrf.mxu0
      %v968 = vadd.f32 0.0, %v967
      %v969 = vpop.f32.mrf.mxu0
      %v970 = vadd.f32 0.0, %v969
      %971 = vmatmul.bf16.gmra.mxu0 %v826
      %v972 = vpop.f32.mrf.mxu0
      %v973 = vadd.f32 0.0, %v972
      %v974 = vpop.f32.mrf.mxu0
      %v975 = vadd.f32 0.0, %v974
      %976 = vmatmul.bf16.gmra.mxu0 %v827
      %v977 = vpop.f32.mrf.mxu0
      %v978 = vadd.f32 0.0, %v977
      %v979 = vpop.f32.mrf.mxu0
      %v980 = vadd.f32 0.0, %v979
      %981 = vdwg.mxu0
      %v998 = vunpack.c.l.b16 %v764
      %v999 = vunpack.c.l.b16 %v765
      %v1000 = vunpack.c.l.b16 %v766
      %v1001 = vunpack.c.l.b16 %v767
      %v1002 = vunpack.c.l.b16 %v768
      %v1003 = vunpack.c.l.b16 %v769
      %v1004 = vunpack.c.l.b16 %v770
      %v1005 = vunpack.c.l.b16 %v771
      %v1006 = vunpack.c.l.b16 %v772
      %v1007 = vunpack.c.l.b16 %v773
      %v1008 = vunpack.c.l.b16 %v774
      %v1009 = vunpack.c.l.b16 %v775
      %v1010 = vunpack.c.l.b16 %v776
      %v1011 = vunpack.c.l.b16 %v777
      %v1012 = vunpack.c.l.b16 %v778
      %v1013 = vunpack.c.l.b16 %v779
      %v1014 = vpack.c.b16 %v999, %v998
      %v1015 = vpack.c.b16 %v1001, %v1000
      %v1016 = vpack.c.b16 %v1003, %v1002
      %v1017 = vpack.c.b16 %v1005, %v1004
      %v1018 = vpack.c.b16 %v1007, %v1006
      %v1019 = vpack.c.b16 %v1009, %v1008
      %v1020 = vpack.c.b16 %v1011, %v1010
      %v1021 = vpack.c.b16 %v1013, %v1012
      %1030 = vmatpush.bf16.msra.mxu0 %v1021
      %1031 = vmatpush.bf16.msra.mxu0 %v1020
      %1032 = vmatpush.bf16.msra.mxu0 %v1019
      %1033 = vmatpush.bf16.msra.mxu0 %v1018
      %1034 = vmatpush.bf16.msra.mxu0 %v1017
      %1035 = vmatpush.bf16.msra.mxu0 %v1016
      %1036 = vmatpush.bf16.msra.mxu0 %v1015
      %1037 = vmatpush.bf16.msra.mxu0 %v1014
      %1038 = vmatmul.bf16.gmra.mxu0 %v748
      %v1039 = vpop.f32.mrf.mxu0
      %v1040 = vadd.f32 %v903, %v1039
      %v1041 = vpop.f32.mrf.mxu0
      %v1042 = vadd.f32 %v905, %v1041
      %1043 = vmatmul.bf16.gmra.mxu0 %v749
      %v1044 = vpop.f32.mrf.mxu0
      %v1045 = vadd.f32 %v908, %v1044
      %v1046 = vpop.f32.mrf.mxu0
      %v1047 = vadd.f32 %v910, %v1046
      %1048 = vmatmul.bf16.gmra.mxu0 %v750
      %v1049 = vpop.f32.mrf.mxu0
      %v1050 = vadd.f32 %v913, %v1049
      %v1051 = vpop.f32.mrf.mxu0
      %v1052 = vadd.f32 %v915, %v1051
      %1053 = vmatmul.bf16.gmra.mxu0 %v751
      %v1054 = vpop.f32.mrf.mxu0
      %v1055 = vadd.f32 %v918, %v1054
      %v1056 = vpop.f32.mrf.mxu0
      %v1057 = vadd.f32 %v920, %v1056
      %1058 = vmatmul.bf16.gmra.mxu0 %v752
      %v1059 = vpop.f32.mrf.mxu0
      %v1060 = vadd.f32 %v923, %v1059
      %v1061 = vpop.f32.mrf.mxu0
      %v1062 = vadd.f32 %v925, %v1061
      %1063 = vmatmul.bf16.gmra.mxu0 %v753
      %v1064 = vpop.f32.mrf.mxu0
      %v1065 = vadd.f32 %v928, %v1064
      %v1066 = vpop.f32.mrf.mxu0
      %v1067 = vadd.f32 %v930, %v1066
      %1068 = vmatmul.bf16.gmra.mxu0 %v754
      %v1069 = vpop.f32.mrf.mxu0
      %v1070 = vadd.f32 %v933, %v1069
      %v1071 = vpop.f32.mrf.mxu0
      %v1072 = vadd.f32 %v935, %v1071
      %1073 = vmatmul.bf16.gmra.mxu0 %v755
      %v1074 = vpop.f32.mrf.mxu0
      %v1075 = vadd.f32 %v938, %v1074
      %v1076 = vpop.f32.mrf.mxu0
      %v1077 = vadd.f32 %v940, %v1076
      %1078 = vmatmul.bf16.gmra.mxu0 %v756
      %v1079 = vpop.f32.mrf.mxu0
      %v1080 = vadd.f32 %v943, %v1079
      %v1081 = vpop.f32.mrf.mxu0
      %v1082 = vadd.f32 %v945, %v1081
      %1083 = vmatmul.bf16.gmra.mxu0 %v757
      %v1084 = vpop.f32.mrf.mxu0
      %v1085 = vadd.f32 %v948, %v1084
      %v1086 = vpop.f32.mrf.mxu0
      %v1087 = vadd.f32 %v950, %v1086
      %1088 = vmatmul.bf16.gmra.mxu0 %v758
      %v1089 = vpop.f32.mrf.mxu0
      %v1090 = vadd.f32 %v953, %v1089
      %v1091 = vpop.f32.mrf.mxu0
      %v1092 = vadd.f32 %v955, %v1091
      %1093 = vmatmul.bf16.gmra.mxu0 %v759
      %v1094 = vpop.f32.mrf.mxu0
      %v1095 = vadd.f32 %v958, %v1094
      %v1096 = vpop.f32.mrf.mxu0
      %v1097 = vadd.f32 %v960, %v1096
      %1098 = vmatmul.bf16.gmra.mxu0 %v760
      %v1099 = vpop.f32.mrf.mxu0
      %v1100 = vadd.f32 %v963, %v1099
      %v1101 = vpop.f32.mrf.mxu0
      %v1102 = vadd.f32 %v965, %v1101
      %1103 = vmatmul.bf16.gmra.mxu0 %v761
      %v1104 = vpop.f32.mrf.mxu0
      %v1105 = vadd.f32 %v968, %v1104
      %v1106 = vpop.f32.mrf.mxu0
      %v1107 = vadd.f32 %v970, %v1106
      %1108 = vmatmul.bf16.gmra.mxu0 %v762
      %v1109 = vpop.f32.mrf.mxu0
      %v1110 = vadd.f32 %v973, %v1109
      %v1111 = vpop.f32.mrf.mxu0
      %v1112 = vadd.f32 %v975, %v1111
      %1113 = vmatmul.bf16.gmra.mxu0 %v763
      %v1114 = vpop.f32.mrf.mxu0
      %v1115 = vadd.f32 %v978, %v1114
      %v1116 = vpop.f32.mrf.mxu0
      %v1117 = vadd.f32 %v980, %v1116
      %1118 = vdwg.mxu0
      %v1119 = vld [vmem:[#allocation3 + $0x2] sm:$0xff]
      %v1120 = vld [vmem:[#allocation3 + $0xa] sm:$0xff]
      %v1121 = vld [vmem:[#allocation3 + $0x1a] sm:$0xff]
      %v1122 = vld [vmem:[#allocation3 + $0x22] sm:$0xff]
      %v1123 = vld [vmem:[#allocation3 + $0x32] sm:$0xff]
      %v1124 = vld [vmem:[#allocation3 + $0x3a] sm:$0xff]
      %v1125 = vld [vmem:[#allocation3 + $0x4a] sm:$0xff]
      %v1126 = vld [vmem:[#allocation3 + $0x52] sm:$0xff]
      %v1127 = vld [vmem:[#allocation3 + $0x62] sm:$0xff]
      %v1128 = vld [vmem:[#allocation3 + $0x6a] sm:$0xff]
      %v1129 = vld [vmem:[#allocation3 + $0x7a] sm:$0xff]
      %v1130 = vld [vmem:[#allocation3 + $0x82] sm:$0xff]
      %v1131 = vld [vmem:[#allocation3 + $0x92] sm:$0xff]
      %v1132 = vld [vmem:[#allocation3 + $0x9a] sm:$0xff]
      %v1133 = vld [vmem:[#allocation3 + $0xaa] sm:$0xff]
      %v1134 = vld [vmem:[#allocation3 + $0xb2] sm:$0xff]
      %v1135 = vld [vmem:[#allocation3 + $0xc2] sm:$0xff]
      %v1136 = vld [vmem:[#allocation3 + $0xca] sm:$0xff]
      %v1137 = vld [vmem:[#allocation3 + $0xda] sm:$0xff]
      %v1138 = vld [vmem:[#allocation3 + $0xe2] sm:$0xff]
      %v1139 = vld [vmem:[#allocation3 + $0xf2] sm:$0xff]
      %v1140 = vld [vmem:[#allocation3 + $0xfa] sm:$0xff]
      %v1141 = vld [vmem:[#allocation3 + $0x10a] sm:$0xff]
      %v1142 = vld [vmem:[#allocation3 + $0x112] sm:$0xff]
      %v1143 = vld [vmem:[#allocation3 + $0x122] sm:$0xff]
      %v1144 = vld [vmem:[#allocation3 + $0x12a] sm:$0xff]
      %v1145 = vld [vmem:[#allocation3 + $0x13a] sm:$0xff]
      %v1146 = vld [vmem:[#allocation3 + $0x142] sm:$0xff]
      %v1147 = vld [vmem:[#allocation3 + $0x152] sm:$0xff]
      %v1148 = vld [vmem:[#allocation3 + $0x15a] sm:$0xff]
      %v1149 = vld [vmem:[#allocation3 + $0x16a] sm:$0xff]
      %v1150 = vld [vmem:[#allocation3 + $0x172] sm:$0xff]
      %v1151 = vpack.c.bf16 %v1120, %v1119
      %v1152 = vpack.c.bf16 %v1122, %v1121
      %v1153 = vpack.c.bf16 %v1124, %v1123
      %v1154 = vpack.c.bf16 %v1126, %v1125
      %v1155 = vpack.c.bf16 %v1128, %v1127
      %v1156 = vpack.c.bf16 %v1130, %v1129
      %v1157 = vpack.c.bf16 %v1132, %v1131
      %v1158 = vpack.c.bf16 %v1134, %v1133
      %v1159 = vpack.c.bf16 %v1136, %v1135
      %v1160 = vpack.c.bf16 %v1138, %v1137
      %v1161 = vpack.c.bf16 %v1140, %v1139
      %v1162 = vpack.c.bf16 %v1142, %v1141
      %v1163 = vpack.c.bf16 %v1144, %v1143
      %v1164 = vpack.c.bf16 %v1146, %v1145
      %v1165 = vpack.c.bf16 %v1148, %v1147
      %v1166 = vpack.c.bf16 %v1150, %v1149
      %s1167 = scalar_lea.vmem %s2, 128
      %v1168 = vld [vmem:[%s1167] sm:$0xf]
      %v1169 = vld [vmem:[%s1167 + $0x4] sm:$0xf]
      %v1170 = vld [vmem:[%s1167 + $0x8] sm:$0xf]
      %v1171 = vld [vmem:[%s1167 + $0xc] sm:$0xf]
      %v1172 = vld [vmem:[%s1167 + $0x10] sm:$0xf]
      %v1173 = vld [vmem:[%s1167 + $0x14] sm:$0xf]
      %v1174 = vld [vmem:[%s1167 + $0x18] sm:$0xf]
      %v1175 = vld [vmem:[%s1167 + $0x1c] sm:$0xf]
      %v1176 = vld [vmem:[%s1167 + $0x20] sm:$0xf]
      %v1177 = vld [vmem:[%s1167 + $0x24] sm:$0xf]
      %v1178 = vld [vmem:[%s1167 + $0x28] sm:$0xf]
      %v1179 = vld [vmem:[%s1167 + $0x2c] sm:$0xf]
      %v1180 = vld [vmem:[%s1167 + $0x30] sm:$0xf]
      %v1181 = vld [vmem:[%s1167 + $0x34] sm:$0xf]
      %v1182 = vld [vmem:[%s1167 + $0x38] sm:$0xf]
      %v1183 = vld [vmem:[%s1167 + $0x3c] sm:$0xf]
      %v1200 = vunpack.c.l.b16 %v1168
      %v1201 = vunpack.c.l.b16 %v1169
      %v1202 = vunpack.c.l.b16 %v1170
      %v1203 = vunpack.c.l.b16 %v1171
      %v1204 = vunpack.c.l.b16 %v1172
      %v1205 = vunpack.c.l.b16 %v1173
      %v1206 = vunpack.c.l.b16 %v1174
      %v1207 = vunpack.c.l.b16 %v1175
      %v1208 = vunpack.c.l.b16 %v1176
      %v1209 = vunpack.c.l.b16 %v1177
      %v1210 = vunpack.c.l.b16 %v1178
      %v1211 = vunpack.c.l.b16 %v1179
      %v1212 = vunpack.c.l.b16 %v1180
      %v1213 = vunpack.c.l.b16 %v1181
      %v1214 = vunpack.c.l.b16 %v1182
      %v1215 = vunpack.c.l.b16 %v1183
      %v1216 = vpack.c.b16 %v1201, %v1200
      %v1217 = vpack.c.b16 %v1203, %v1202
      %v1218 = vpack.c.b16 %v1205, %v1204
      %v1219 = vpack.c.b16 %v1207, %v1206
      %v1220 = vpack.c.b16 %v1209, %v1208
      %v1221 = vpack.c.b16 %v1211, %v1210
      %v1222 = vpack.c.b16 %v1213, %v1212
      %v1223 = vpack.c.b16 %v1215, %v1214
      %1232 = vmatpush.bf16.msra.mxu0 %v1223
      %1233 = vmatpush.bf16.msra.mxu0 %v1222
      %1234 = vmatpush.bf16.msra.mxu0 %v1221
      %1235 = vmatpush.bf16.msra.mxu0 %v1220
      %1236 = vmatpush.bf16.msra.mxu0 %v1219
      %1237 = vmatpush.bf16.msra.mxu0 %v1218
      %1238 = vmatpush.bf16.msra.mxu0 %v1217
      %1239 = vmatpush.bf16.msra.mxu0 %v1216
      %1240 = vmatmul.bf16.gmra.mxu0 %v1151
      %v1241 = vpop.f32.mrf.mxu0
      %v1242 = vadd.f32 0.0, %v1241
      %v1243 = vpop.f32.mrf.mxu0
      %v1244 = vadd.f32 0.0, %v1243
      %1245 = vmatmul.bf16.gmra.mxu0 %v1152
      %v1246 = vpop.f32.mrf.mxu0
      %v1247 = vadd.f32 0.0, %v1246
      %v1248 = vpop.f32.mrf.mxu0
      %v1249 = vadd.f32 0.0, %v1248
      %1250 = vmatmul.bf16.gmra.mxu0 %v1153
      %v1251 = vpop.f32.mrf.mxu0
      %v1252 = vadd.f32 0.0, %v1251
      %v1253 = vpop.f32.mrf.mxu0
      %v1254 = vadd.f32 0.0, %v1253
      %1255 = vmatmul.bf16.gmra.mxu0 %v1154
      %v1256 = vpop.f32.mrf.mxu0
      %v1257 = vadd.f32 0.0, %v1256
      %v1258 = vpop.f32.mrf.mxu0
      %v1259 = vadd.f32 0.0, %v1258
      %1260 = vmatmul.bf16.gmra.mxu0 %v1155
      %v1261 = vpop.f32.mrf.mxu0
      %v1262 = vadd.f32 0.0, %v1261
      %v1263 = vpop.f32.mrf.mxu0
      %v1264 = vadd.f32 0.0, %v1263
      %1265 = vmatmul.bf16.gmra.mxu0 %v1156
      %v1266 = vpop.f32.mrf.mxu0
      %v1267 = vadd.f32 0.0, %v1266
      %v1268 = vpop.f32.mrf.mxu0
      %v1269 = vadd.f32 0.0, %v1268
      %1270 = vmatmul.bf16.gmra.mxu0 %v1157
      %v1271 = vpop.f32.mrf.mxu0
      %v1272 = vadd.f32 0.0, %v1271
      %v1273 = vpop.f32.mrf.mxu0
      %v1274 = vadd.f32 0.0, %v1273
      %1275 = vmatmul.bf16.gmra.mxu0 %v1158
      %v1276 = vpop.f32.mrf.mxu0
      %v1277 = vadd.f32 0.0, %v1276
      %v1278 = vpop.f32.mrf.mxu0
      %v1279 = vadd.f32 0.0, %v1278
      %1280 = vmatmul.bf16.gmra.mxu0 %v1159
      %v1281 = vpop.f32.mrf.mxu0
      %v1282 = vadd.f32 0.0, %v1281
      %v1283 = vpop.f32.mrf.mxu0
      %v1284 = vadd.f32 0.0, %v1283
      %1285 = vmatmul.bf16.gmra.mxu0 %v1160
      %v1286 = vpop.f32.mrf.mxu0
      %v1287 = vadd.f32 0.0, %v1286
      %v1288 = vpop.f32.mrf.mxu0
      %v1289 = vadd.f32 0.0, %v1288
      %1290 = vmatmul.bf16.gmra.mxu0 %v1161
      %v1291 = vpop.f32.mrf.mxu0
      %v1292 = vadd.f32 0.0, %v1291
      %v1293 = vpop.f32.mrf.mxu0
      %v1294 = vadd.f32 0.0, %v1293
      %1295 = vmatmul.bf16.gmra.mxu0 %v1162
      %v1296 = vpop.f32.mrf.mxu0
      %v1297 = vadd.f32 0.0, %v1296
      %v1298 = vpop.f32.mrf.mxu0
      %v1299 = vadd.f32 0.0, %v1298
      %1300 = vmatmul.bf16.gmra.mxu0 %v1163
      %v1301 = vpop.f32.mrf.mxu0
      %v1302 = vadd.f32 0.0, %v1301
      %v1303 = vpop.f32.mrf.mxu0
      %v1304 = vadd.f32 0.0, %v1303
      %1305 = vmatmul.bf16.gmra.mxu0 %v1164
      %v1306 = vpop.f32.mrf.mxu0
      %v1307 = vadd.f32 0.0, %v1306
      %v1308 = vpop.f32.mrf.mxu0
      %v1309 = vadd.f32 0.0, %v1308
      %1310 = vmatmul.bf16.gmra.mxu0 %v1165
      %v1311 = vpop.f32.mrf.mxu0
      %v1312 = vadd.f32 0.0, %v1311
      %v1313 = vpop.f32.mrf.mxu0
      %v1314 = vadd.f32 0.0, %v1313
      %1315 = vmatmul.bf16.gmra.mxu0 %v1166
      %v1316 = vpop.f32.mrf.mxu0
      %v1317 = vadd.f32 0.0, %v1316
      %v1318 = vpop.f32.mrf.mxu0
      %v1319 = vadd.f32 0.0, %v1318
      %1320 = vdwg.mxu0
      %v1321 = vadd.f32 %v1040, %v1242
      %v1322 = vadd.f32 %v1042, %v1244
      %v1323 = vadd.f32 %v1045, %v1247
      %v1324 = vadd.f32 %v1047, %v1249
      %v1325 = vadd.f32 %v1050, %v1252
      %v1326 = vadd.f32 %v1052, %v1254
      %v1327 = vadd.f32 %v1055, %v1257
      %v1328 = vadd.f32 %v1057, %v1259
      %v1329 = vadd.f32 %v1060, %v1262
      %v1330 = vadd.f32 %v1062, %v1264
      %v1331 = vadd.f32 %v1065, %v1267
      %v1332 = vadd.f32 %v1067, %v1269
      %v1333 = vadd.f32 %v1070, %v1272
      %v1334 = vadd.f32 %v1072, %v1274
      %v1335 = vadd.f32 %v1075, %v1277
      %v1336 = vadd.f32 %v1077, %v1279
      %v1337 = vadd.f32 %v1080, %v1282
      %v1338 = vadd.f32 %v1082, %v1284
      %v1339 = vadd.f32 %v1085, %v1287
      %v1340 = vadd.f32 %v1087, %v1289
      %v1341 = vadd.f32 %v1090, %v1292
      %v1342 = vadd.f32 %v1092, %v1294
      %v1343 = vadd.f32 %v1095, %v1297
      %v1344 = vadd.f32 %v1097, %v1299
      %v1345 = vadd.f32 %v1100, %v1302
      %v1346 = vadd.f32 %v1102, %v1304
      %v1347 = vadd.f32 %v1105, %v1307
      %v1348 = vadd.f32 %v1107, %v1309
      %v1349 = vadd.f32 %v1110, %v1312
      %v1350 = vadd.f32 %v1112, %v1314
      %v1351 = vadd.f32 %v1115, %v1317
      %v1352 = vadd.f32 %v1117, %v1319
      %v1353 = vld [vmem:[%s683] sm:$0xff]
      %v1354 = vld [vmem:[%s683 + $0x8] sm:$0xff]
      %v1355 = vld [vmem:[%s683 + $0x18] sm:$0xff]
      %v1356 = vld [vmem:[%s683 + $0x20] sm:$0xff]
      %v1357 = vld [vmem:[%s683 + $0x30] sm:$0xff]
      %v1358 = vld [vmem:[%s683 + $0x38] sm:$0xff]
      %v1359 = vld [vmem:[%s683 + $0x48] sm:$0xff]
      %v1360 = vld [vmem:[%s683 + $0x50] sm:$0xff]
      %v1361 = vld [vmem:[%s683 + $0x60] sm:$0xff]
      %v1362 = vld [vmem:[%s683 + $0x68] sm:$0xff]
      %v1363 = vld [vmem:[%s683 + $0x78] sm:$0xff]
      %v1364 = vld [vmem:[%s683 + $0x80] sm:$0xff]
      %v1365 = vld [vmem:[%s683 + $0x90] sm:$0xff]
      %v1366 = vld [vmem:[%s683 + $0x98] sm:$0xff]
      %v1367 = vld [vmem:[%s683 + $0xa8] sm:$0xff]
      %v1368 = vld [vmem:[%s683 + $0xb0] sm:$0xff]
      %v1369 = vld [vmem:[%s683 + $0xc0] sm:$0xff]
      %v1370 = vld [vmem:[%s683 + $0xc8] sm:$0xff]
      %v1371 = vld [vmem:[%s683 + $0xd8] sm:$0xff]
      %v1372 = vld [vmem:[%s683 + $0xe0] sm:$0xff]
      %v1373 = vld [vmem:[%s683 + $0xf0] sm:$0xff]
      %v1374 = vld [vmem:[%s683 + $0xf8] sm:$0xff]
      %v1375 = vld [vmem:[%s683 + $0x108] sm:$0xff]
      %v1376 = vld [vmem:[%s683 + $0x110] sm:$0xff]
      %v1377 = vld [vmem:[%s683 + $0x120] sm:$0xff]
      %v1378 = vld [vmem:[%s683 + $0x128] sm:$0xff]
      %v1379 = vld [vmem:[%s683 + $0x138] sm:$0xff]
      %v1380 = vld [vmem:[%s683 + $0x140] sm:$0xff]
      %v1381 = vld [vmem:[%s683 + $0x150] sm:$0xff]
      %v1382 = vld [vmem:[%s683 + $0x158] sm:$0xff]
      %v1383 = vld [vmem:[%s683 + $0x168] sm:$0xff]
      %v1384 = vld [vmem:[%s683 + $0x170] sm:$0xff]
      %v1385 = vpack.c.bf16 %v1354, %v1353
      %v1386 = vpack.c.bf16 %v1356, %v1355
      %v1387 = vpack.c.bf16 %v1358, %v1357
      %v1388 = vpack.c.bf16 %v1360, %v1359
      %v1389 = vpack.c.bf16 %v1362, %v1361
      %v1390 = vpack.c.bf16 %v1364, %v1363
      %v1391 = vpack.c.bf16 %v1366, %v1365
      %v1392 = vpack.c.bf16 %v1368, %v1367
      %v1393 = vpack.c.bf16 %v1370, %v1369
      %v1394 = vpack.c.bf16 %v1372, %v1371
      %v1395 = vpack.c.bf16 %v1374, %v1373
      %v1396 = vpack.c.bf16 %v1376, %v1375
      %v1397 = vpack.c.bf16 %v1378, %v1377
      %v1398 = vpack.c.bf16 %v1380, %v1379
      %v1399 = vpack.c.bf16 %v1382, %v1381
      %v1400 = vpack.c.bf16 %v1384, %v1383
      %s1401 = scalar_lea.vmem %s2, 192
      %v1402 = vld [vmem:[%s1401] sm:$0xf]
      %v1403 = vld [vmem:[%s1401 + $0x4] sm:$0xf]
      %v1404 = vld [vmem:[%s1401 + $0x8] sm:$0xf]
      %v1405 = vld [vmem:[%s1401 + $0xc] sm:$0xf]
      %v1406 = vld [vmem:[%s1401 + $0x10] sm:$0xf]
      %v1407 = vld [vmem:[%s1401 + $0x14] sm:$0xf]
      %v1408 = vld [vmem:[%s1401 + $0x18] sm:$0xf]
      %v1409 = vld [vmem:[%s1401 + $0x1c] sm:$0xf]
      %v1410 = vld [vmem:[%s1401 + $0x20] sm:$0xf]
      %v1411 = vld [vmem:[%s1401 + $0x24] sm:$0xf]
      %v1412 = vld [vmem:[%s1401 + $0x28] sm:$0xf]
      %v1413 = vld [vmem:[%s1401 + $0x2c] sm:$0xf]
      %v1414 = vld [vmem:[%s1401 + $0x30] sm:$0xf]
      %v1415 = vld [vmem:[%s1401 + $0x34] sm:$0xf]
      %v1416 = vld [vmem:[%s1401 + $0x38] sm:$0xf]
      %v1417 = vld [vmem:[%s1401 + $0x3c] sm:$0xf]
      %v1434 = vunpack.c.l.b16 %v1402
      %v1435 = vunpack.c.l.b16 %v1403
      %v1436 = vunpack.c.l.b16 %v1404
      %v1437 = vunpack.c.l.b16 %v1405
      %v1438 = vunpack.c.l.b16 %v1406
      %v1439 = vunpack.c.l.b16 %v1407
      %v1440 = vunpack.c.l.b16 %v1408
      %v1441 = vunpack.c.l.b16 %v1409
      %v1442 = vunpack.c.l.b16 %v1410
      %v1443 = vunpack.c.l.b16 %v1411
      %v1444 = vunpack.c.l.b16 %v1412
      %v1445 = vunpack.c.l.b16 %v1413
      %v1446 = vunpack.c.l.b16 %v1414
      %v1447 = vunpack.c.l.b16 %v1415
      %v1448 = vunpack.c.l.b16 %v1416
      %v1449 = vunpack.c.l.b16 %v1417
      %v1450 = vpack.c.b16 %v1435, %v1434
      %v1451 = vpack.c.b16 %v1437, %v1436
      %v1452 = vpack.c.b16 %v1439, %v1438
      %v1453 = vpack.c.b16 %v1441, %v1440
      %v1454 = vpack.c.b16 %v1443, %v1442
      %v1455 = vpack.c.b16 %v1445, %v1444
      %v1456 = vpack.c.b16 %v1447, %v1446
      %v1457 = vpack.c.b16 %v1449, %v1448
      %1466 = vmatpush.bf16.msra.mxu0 %v1457
      %1467 = vmatpush.bf16.msra.mxu0 %v1456
      %1468 = vmatpush.bf16.msra.mxu0 %v1455
      %1469 = vmatpush.bf16.msra.mxu0 %v1454
      %1470 = vmatpush.bf16.msra.mxu0 %v1453
      %1471 = vmatpush.bf16.msra.mxu0 %v1452
      %1472 = vmatpush.bf16.msra.mxu0 %v1451
      %1473 = vmatpush.bf16.msra.mxu0 %v1450
      %1474 = vmatmul.bf16.gmra.mxu0 %v1385
      %v1475 = vpop.f32.mrf.mxu0
      %v1476 = vadd.f32 0.0, %v1475
      %v1477 = vpop.f32.mrf.mxu0
      %v1478 = vadd.f32 0.0, %v1477
      %1479 = vmatmul.bf16.gmra.mxu0 %v1386
      %v1480 = vpop.f32.mrf.mxu0
      %v1481 = vadd.f32 0.0, %v1480
      %v1482 = vpop.f32.mrf.mxu0
      %v1483 = vadd.f32 0.0, %v1482
      %1484 = vmatmul.bf16.gmra.mxu0 %v1387
      %v1485 = vpop.f32.mrf.mxu0
      %v1486 = vadd.f32 0.0, %v1485
      %v1487 = vpop.f32.mrf.mxu0
      %v1488 = vadd.f32 0.0, %v1487
      %1489 = vmatmul.bf16.gmra.mxu0 %v1388
      %v1490 = vpop.f32.mrf.mxu0
      %v1491 = vadd.f32 0.0, %v1490
      %v1492 = vpop.f32.mrf.mxu0
      %v1493 = vadd.f32 0.0, %v1492
      %1494 = vmatmul.bf16.gmra.mxu0 %v1389
      %v1495 = vpop.f32.mrf.mxu0
      %v1496 = vadd.f32 0.0, %v1495
      %v1497 = vpop.f32.mrf.mxu0
      %v1498 = vadd.f32 0.0, %v1497
      %1499 = vmatmul.bf16.gmra.mxu0 %v1390
      %v1500 = vpop.f32.mrf.mxu0
      %v1501 = vadd.f32 0.0, %v1500
      %v1502 = vpop.f32.mrf.mxu0
      %v1503 = vadd.f32 0.0, %v1502
      %1504 = vmatmul.bf16.gmra.mxu0 %v1391
      %v1505 = vpop.f32.mrf.mxu0
      %v1506 = vadd.f32 0.0, %v1505
      %v1507 = vpop.f32.mrf.mxu0
      %v1508 = vadd.f32 0.0, %v1507
      %1509 = vmatmul.bf16.gmra.mxu0 %v1392
      %v1510 = vpop.f32.mrf.mxu0
      %v1511 = vadd.f32 0.0, %v1510
      %v1512 = vpop.f32.mrf.mxu0
      %v1513 = vadd.f32 0.0, %v1512
      %1514 = vmatmul.bf16.gmra.mxu0 %v1393
      %v1515 = vpop.f32.mrf.mxu0
      %v1516 = vadd.f32 0.0, %v1515
      %v1517 = vpop.f32.mrf.mxu0
      %v1518 = vadd.f32 0.0, %v1517
      %1519 = vmatmul.bf16.gmra.mxu0 %v1394
      %v1520 = vpop.f32.mrf.mxu0
      %v1521 = vadd.f32 0.0, %v1520
      %v1522 = vpop.f32.mrf.mxu0
      %v1523 = vadd.f32 0.0, %v1522
      %1524 = vmatmul.bf16.gmra.mxu0 %v1395
      %v1525 = vpop.f32.mrf.mxu0
      %v1526 = vadd.f32 0.0, %v1525
      %v1527 = vpop.f32.mrf.mxu0
      %v1528 = vadd.f32 0.0, %v1527
      %1529 = vmatmul.bf16.gmra.mxu0 %v1396
      %v1530 = vpop.f32.mrf.mxu0
      %v1531 = vadd.f32 0.0, %v1530
      %v1532 = vpop.f32.mrf.mxu0
      %v1533 = vadd.f32 0.0, %v1532
      %1534 = vmatmul.bf16.gmra.mxu0 %v1397
      %v1535 = vpop.f32.mrf.mxu0
      %v1536 = vadd.f32 0.0, %v1535
      %v1537 = vpop.f32.mrf.mxu0
      %v1538 = vadd.f32 0.0, %v1537
      %1539 = vmatmul.bf16.gmra.mxu0 %v1398
      %v1540 = vpop.f32.mrf.mxu0
      %v1541 = vadd.f32 0.0, %v1540
      %v1542 = vpop.f32.mrf.mxu0
      %v1543 = vadd.f32 0.0, %v1542
      %1544 = vmatmul.bf16.gmra.mxu0 %v1399
      %v1545 = vpop.f32.mrf.mxu0
      %v1546 = vadd.f32 0.0, %v1545
      %v1547 = vpop.f32.mrf.mxu0
      %v1548 = vadd.f32 0.0, %v1547
      %1549 = vmatmul.bf16.gmra.mxu0 %v1400
      %v1550 = vpop.f32.mrf.mxu0
      %v1551 = vadd.f32 0.0, %v1550
      %v1552 = vpop.f32.mrf.mxu0
      %v1553 = vadd.f32 0.0, %v1552
      %1554 = vdwg.mxu0
      %v1555 = vadd.f32 %v1321, %v1476
      %v1556 = vadd.f32 %v1322, %v1478
      %v1557 = vadd.f32 %v1323, %v1481
      %v1558 = vadd.f32 %v1324, %v1483
      %v1559 = vadd.f32 %v1325, %v1486
      %v1560 = vadd.f32 %v1326, %v1488
      %v1561 = vadd.f32 %v1327, %v1491
      %v1562 = vadd.f32 %v1328, %v1493
      %v1563 = vadd.f32 %v1329, %v1496
      %v1564 = vadd.f32 %v1330, %v1498
      %v1565 = vadd.f32 %v1331, %v1501
      %v1566 = vadd.f32 %v1332, %v1503
      %v1567 = vadd.f32 %v1333, %v1506
      %v1568 = vadd.f32 %v1334, %v1508
      %v1569 = vadd.f32 %v1335, %v1511
      %v1570 = vadd.f32 %v1336, %v1513
      %v1571 = vadd.f32 %v1337, %v1516
      %v1572 = vadd.f32 %v1338, %v1518
      %v1573 = vadd.f32 %v1339, %v1521
      %v1574 = vadd.f32 %v1340, %v1523
      %v1575 = vadd.f32 %v1341, %v1526
      %v1576 = vadd.f32 %v1342, %v1528
      %v1577 = vadd.f32 %v1343, %v1531
      %v1578 = vadd.f32 %v1344, %v1533
      %v1579 = vadd.f32 %v1345, %v1536
      %v1580 = vadd.f32 %v1346, %v1538
      %v1581 = vadd.f32 %v1347, %v1541
      %v1582 = vadd.f32 %v1348, %v1543
      %v1583 = vadd.f32 %v1349, %v1546
      %v1584 = vadd.f32 %v1350, %v1548
      %v1585 = vadd.f32 %v1351, %v1551
      %v1586 = vadd.f32 %v1352, %v1553
      %v1587 = vld [vmem:[%s683 + $0x1] sm:$0xff]
      %v1588 = vld [vmem:[%s683 + $0x9] sm:$0xff]
      %v1589 = vld [vmem:[%s683 + $0x19] sm:$0xff]
      %v1590 = vld [vmem:[%s683 + $0x21] sm:$0xff]
      %v1591 = vld [vmem:[%s683 + $0x31] sm:$0xff]
      %v1592 = vld [vmem:[%s683 + $0x39] sm:$0xff]
      %v1593 = vld [vmem:[%s683 + $0x49] sm:$0xff]
      %v1594 = vld [vmem:[%s683 + $0x51] sm:$0xff]
      %v1595 = vld [vmem:[%s683 + $0x61] sm:$0xff]
      %v1596 = vld [vmem:[%s683 + $0x69] sm:$0xff]
      %v1597 = vld [vmem:[%s683 + $0x79] sm:$0xff]
      %v1598 = vld [vmem:[%s683 + $0x81] sm:$0xff]
      %v1599 = vld [vmem:[%s683 + $0x91] sm:$0xff]
      %v1600 = vld [vmem:[%s683 + $0x99] sm:$0xff]
      %v1601 = vld [vmem:[%s683 + $0xa9] sm:$0xff]
      %v1602 = vld [vmem:[%s683 + $0xb1] sm:$0xff]
      %v1603 = vld [vmem:[%s683 + $0xc1] sm:$0xff]
      %v1604 = vld [vmem:[%s683 + $0xc9] sm:$0xff]
      %v1605 = vld [vmem:[%s683 + $0xd9] sm:$0xff]
      %v1606 = vld [vmem:[%s683 + $0xe1] sm:$0xff]
      %v1607 = vld [vmem:[%s683 + $0xf1] sm:$0xff]
      %v1608 = vld [vmem:[%s683 + $0xf9] sm:$0xff]
      %v1609 = vld [vmem:[%s683 + $0x109] sm:$0xff]
      %v1610 = vld [vmem:[%s683 + $0x111] sm:$0xff]
      %v1611 = vld [vmem:[%s683 + $0x121] sm:$0xff]
      %v1612 = vld [vmem:[%s683 + $0x129] sm:$0xff]
      %v1613 = vld [vmem:[%s683 + $0x139] sm:$0xff]
      %v1614 = vld [vmem:[%s683 + $0x141] sm:$0xff]
      %v1615 = vld [vmem:[%s683 + $0x151] sm:$0xff]
      %v1616 = vld [vmem:[%s683 + $0x159] sm:$0xff]
      %v1617 = vld [vmem:[%s683 + $0x169] sm:$0xff]
      %v1618 = vld [vmem:[%s683 + $0x171] sm:$0xff]
      %v1619 = vpack.c.bf16 %v1588, %v1587
      %v1620 = vpack.c.bf16 %v1590, %v1589
      %v1621 = vpack.c.bf16 %v1592, %v1591
      %v1622 = vpack.c.bf16 %v1594, %v1593
      %v1623 = vpack.c.bf16 %v1596, %v1595
      %v1624 = vpack.c.bf16 %v1598, %v1597
      %v1625 = vpack.c.bf16 %v1600, %v1599
      %v1626 = vpack.c.bf16 %v1602, %v1601
      %v1627 = vpack.c.bf16 %v1604, %v1603
      %v1628 = vpack.c.bf16 %v1606, %v1605
      %v1629 = vpack.c.bf16 %v1608, %v1607
      %v1630 = vpack.c.bf16 %v1610, %v1609
      %v1631 = vpack.c.bf16 %v1612, %v1611
      %v1632 = vpack.c.bf16 %v1614, %v1613
      %v1633 = vpack.c.bf16 %v1616, %v1615
      %v1634 = vpack.c.bf16 %v1618, %v1617
      %s1635 = scalar_lea.vmem %s2, 256
      %v1636 = vld [vmem:[%s1635] sm:$0xf]
      %v1637 = vld [vmem:[%s1635 + $0x4] sm:$0xf]
      %v1638 = vld [vmem:[%s1635 + $0x8] sm:$0xf]
      %v1639 = vld [vmem:[%s1635 + $0xc] sm:$0xf]
      %v1640 = vld [vmem:[%s1635 + $0x10] sm:$0xf]
      %v1641 = vld [vmem:[%s1635 + $0x14] sm:$0xf]
      %v1642 = vld [vmem:[%s1635 + $0x18] sm:$0xf]
      %v1643 = vld [vmem:[%s1635 + $0x1c] sm:$0xf]
      %v1644 = vld [vmem:[%s1635 + $0x20] sm:$0xf]
      %v1645 = vld [vmem:[%s1635 + $0x24] sm:$0xf]
      %v1646 = vld [vmem:[%s1635 + $0x28] sm:$0xf]
      %v1647 = vld [vmem:[%s1635 + $0x2c] sm:$0xf]
      %v1648 = vld [vmem:[%s1635 + $0x30] sm:$0xf]
      %v1649 = vld [vmem:[%s1635 + $0x34] sm:$0xf]
      %v1650 = vld [vmem:[%s1635 + $0x38] sm:$0xf]
      %v1651 = vld [vmem:[%s1635 + $0x3c] sm:$0xf]
      %v1668 = vunpack.c.l.b16 %v1636
      %v1669 = vunpack.c.l.b16 %v1637
      %v1670 = vunpack.c.l.b16 %v1638
      %v1671 = vunpack.c.l.b16 %v1639
      %v1672 = vunpack.c.l.b16 %v1640
      %v1673 = vunpack.c.l.b16 %v1641
      %v1674 = vunpack.c.l.b16 %v1642
      %v1675 = vunpack.c.l.b16 %v1643
      %v1676 = vunpack.c.l.b16 %v1644
      %v1677 = vunpack.c.l.b16 %v1645
      %v1678 = vunpack.c.l.b16 %v1646
      %v1679 = vunpack.c.l.b16 %v1647
      %v1680 = vunpack.c.l.b16 %v1648
      %v1681 = vunpack.c.l.b16 %v1649
      %v1682 = vunpack.c.l.b16 %v1650
      %v1683 = vunpack.c.l.b16 %v1651
      %v1684 = vpack.c.b16 %v1669, %v1668
      %v1685 = vpack.c.b16 %v1671, %v1670
      %v1686 = vpack.c.b16 %v1673, %v1672
      %v1687 = vpack.c.b16 %v1675, %v1674
      %v1688 = vpack.c.b16 %v1677, %v1676
      %v1689 = vpack.c.b16 %v1679, %v1678
      %v1690 = vpack.c.b16 %v1681, %v1680
      %v1691 = vpack.c.b16 %v1683, %v1682
      %1700 = vmatpush.bf16.msra.mxu0 %v1691
      %1701 = vmatpush.bf16.msra.mxu0 %v1690
      %1702 = vmatpush.bf16.msra.mxu0 %v1689
      %1703 = vmatpush.bf16.msra.mxu0 %v1688
      %1704 = vmatpush.bf16.msra.mxu0 %v1687
      %1705 = vmatpush.bf16.msra.mxu0 %v1686
      %1706 = vmatpush.bf16.msra.mxu0 %v1685
      %1707 = vmatpush.bf16.msra.mxu0 %v1684
      %1708 = vmatmul.bf16.gmra.mxu0 %v1619
      %v1709 = vpop.f32.mrf.mxu0
      %v1710 = vadd.f32 0.0, %v1709
      %v1711 = vpop.f32.mrf.mxu0
      %v1712 = vadd.f32 0.0, %v1711
      %1713 = vmatmul.bf16.gmra.mxu0 %v1620
      %v1714 = vpop.f32.mrf.mxu0
      %v1715 = vadd.f32 0.0, %v1714
      %v1716 = vpop.f32.mrf.mxu0
      %v1717 = vadd.f32 0.0, %v1716
      %1718 = vmatmul.bf16.gmra.mxu0 %v1621
      %v1719 = vpop.f32.mrf.mxu0
      %v1720 = vadd.f32 0.0, %v1719
      %v1721 = vpop.f32.mrf.mxu0
      %v1722 = vadd.f32 0.0, %v1721
      %1723 = vmatmul.bf16.gmra.mxu0 %v1622
      %v1724 = vpop.f32.mrf.mxu0
      %v1725 = vadd.f32 0.0, %v1724
      %v1726 = vpop.f32.mrf.mxu0
      %v1727 = vadd.f32 0.0, %v1726
      %1728 = vmatmul.bf16.gmra.mxu0 %v1623
      %v1729 = vpop.f32.mrf.mxu0
      %v1730 = vadd.f32 0.0, %v1729
      %v1731 = vpop.f32.mrf.mxu0
      %v1732 = vadd.f32 0.0, %v1731
      %1733 = vmatmul.bf16.gmra.mxu0 %v1624
      %v1734 = vpop.f32.mrf.mxu0
      %v1735 = vadd.f32 0.0, %v1734
      %v1736 = vpop.f32.mrf.mxu0
      %v1737 = vadd.f32 0.0, %v1736
      %1738 = vmatmul.bf16.gmra.mxu0 %v1625
      %v1739 = vpop.f32.mrf.mxu0
      %v1740 = vadd.f32 0.0, %v1739
      %v1741 = vpop.f32.mrf.mxu0
      %v1742 = vadd.f32 0.0, %v1741
      %1743 = vmatmul.bf16.gmra.mxu0 %v1626
      %v1744 = vpop.f32.mrf.mxu0
      %v1745 = vadd.f32 0.0, %v1744
      %v1746 = vpop.f32.mrf.mxu0
      %v1747 = vadd.f32 0.0, %v1746
      %1748 = vmatmul.bf16.gmra.mxu0 %v1627
      %v1749 = vpop.f32.mrf.mxu0
      %v1750 = vadd.f32 0.0, %v1749
      %v1751 = vpop.f32.mrf.mxu0
      %v1752 = vadd.f32 0.0, %v1751
      %1753 = vmatmul.bf16.gmra.mxu0 %v1628
      %v1754 = vpop.f32.mrf.mxu0
      %v1755 = vadd.f32 0.0, %v1754
      %v1756 = vpop.f32.mrf.mxu0
      %v1757 = vadd.f32 0.0, %v1756
      %1758 = vmatmul.bf16.gmra.mxu0 %v1629
      %v1759 = vpop.f32.mrf.mxu0
      %v1760 = vadd.f32 0.0, %v1759
      %v1761 = vpop.f32.mrf.mxu0
      %v1762 = vadd.f32 0.0, %v1761
      %1763 = vmatmul.bf16.gmra.mxu0 %v1630
      %v1764 = vpop.f32.mrf.mxu0
      %v1765 = vadd.f32 0.0, %v1764
      %v1766 = vpop.f32.mrf.mxu0
      %v1767 = vadd.f32 0.0, %v1766
      %1768 = vmatmul.bf16.gmra.mxu0 %v1631
      %v1769 = vpop.f32.mrf.mxu0
      %v1770 = vadd.f32 0.0, %v1769
      %v1771 = vpop.f32.mrf.mxu0
      %v1772 = vadd.f32 0.0, %v1771
      %1773 = vmatmul.bf16.gmra.mxu0 %v1632
      %v1774 = vpop.f32.mrf.mxu0
      %v1775 = vadd.f32 0.0, %v1774
      %v1776 = vpop.f32.mrf.mxu0
      %v1777 = vadd.f32 0.0, %v1776
      %1778 = vmatmul.bf16.gmra.mxu0 %v1633
      %v1779 = vpop.f32.mrf.mxu0
      %v1780 = vadd.f32 0.0, %v1779
      %v1781 = vpop.f32.mrf.mxu0
      %v1782 = vadd.f32 0.0, %v1781
      %1783 = vmatmul.bf16.gmra.mxu0 %v1634
      %v1784 = vpop.f32.mrf.mxu0
      %v1785 = vadd.f32 0.0, %v1784
      %v1786 = vpop.f32.mrf.mxu0
      %v1787 = vadd.f32 0.0, %v1786
      %1788 = vdwg.mxu0
      %v1789 = vadd.f32 %v1555, %v1710
      %v1790 = vadd.f32 %v1556, %v1712
      %v1791 = vadd.f32 %v1557, %v1715
      %v1792 = vadd.f32 %v1558, %v1717
      %v1793 = vadd.f32 %v1559, %v1720
      %v1794 = vadd.f32 %v1560, %v1722
      %v1795 = vadd.f32 %v1561, %v1725
      %v1796 = vadd.f32 %v1562, %v1727
      %v1797 = vadd.f32 %v1563, %v1730
      %v1798 = vadd.f32 %v1564, %v1732
      %v1799 = vadd.f32 %v1565, %v1735
      %v1800 = vadd.f32 %v1566, %v1737
      %v1801 = vadd.f32 %v1567, %v1740
      %v1802 = vadd.f32 %v1568, %v1742
      %v1803 = vadd.f32 %v1569, %v1745
      %v1804 = vadd.f32 %v1570, %v1747
      %v1805 = vadd.f32 %v1571, %v1750
      %v1806 = vadd.f32 %v1572, %v1752
      %v1807 = vadd.f32 %v1573, %v1755
      %v1808 = vadd.f32 %v1574, %v1757
      %v1809 = vadd.f32 %v1575, %v1760
      %v1810 = vadd.f32 %v1576, %v1762
      %v1811 = vadd.f32 %v1577, %v1765
      %v1812 = vadd.f32 %v1578, %v1767
      %v1813 = vadd.f32 %v1579, %v1770
      %v1814 = vadd.f32 %v1580, %v1772
      %v1815 = vadd.f32 %v1581, %v1775
      %v1816 = vadd.f32 %v1582, %v1777
      %v1817 = vadd.f32 %v1583, %v1780
      %v1818 = vadd.f32 %v1584, %v1782
      %v1819 = vadd.f32 %v1585, %v1785
      %v1820 = vadd.f32 %v1586, %v1787
      %v1821 = vld [vmem:[%s683 + $0x2] sm:$0xff]
      %v1822 = vld [vmem:[%s683 + $0xa] sm:$0xff]
      %v1823 = vld [vmem:[%s683 + $0x1a] sm:$0xff]
      %v1824 = vld [vmem:[%s683 + $0x22] sm:$0xff]
      %v1825 = vld [vmem:[%s683 + $0x32] sm:$0xff]
      %v1826 = vld [vmem:[%s683 + $0x3a] sm:$0xff]
      %v1827 = vld [vmem:[%s683 + $0x4a] sm:$0xff]
      %v1828 = vld [vmem:[%s683 + $0x52] sm:$0xff]
      %v1829 = vld [vmem:[%s683 + $0x62] sm:$0xff]
      %v1830 = vld [vmem:[%s683 + $0x6a] sm:$0xff]
      %v1831 = vld [vmem:[%s683 + $0x7a] sm:$0xff]
      %v1832 = vld [vmem:[%s683 + $0x82] sm:$0xff]
      %v1833 = vld [vmem:[%s683 + $0x92] sm:$0xff]
      %v1834 = vld [vmem:[%s683 + $0x9a] sm:$0xff]
      %v1835 = vld [vmem:[%s683 + $0xaa] sm:$0xff]
      %v1836 = vld [vmem:[%s683 + $0xb2] sm:$0xff]
      %v1837 = vld [vmem:[%s683 + $0xc2] sm:$0xff]
      %v1838 = vld [vmem:[%s683 + $0xca] sm:$0xff]
      %v1839 = vld [vmem:[%s683 + $0xda] sm:$0xff]
      %v1840 = vld [vmem:[%s683 + $0xe2] sm:$0xff]
      %v1841 = vld [vmem:[%s683 + $0xf2] sm:$0xff]
      %v1842 = vld [vmem:[%s683 + $0xfa] sm:$0xff]
      %v1843 = vld [vmem:[%s683 + $0x10a] sm:$0xff]
      %v1844 = vld [vmem:[%s683 + $0x112] sm:$0xff]
      %v1845 = vld [vmem:[%s683 + $0x122] sm:$0xff]
      %v1846 = vld [vmem:[%s683 + $0x12a] sm:$0xff]
      %v1847 = vld [vmem:[%s683 + $0x13a] sm:$0xff]
      %v1848 = vld [vmem:[%s683 + $0x142] sm:$0xff]
      %v1849 = vld [vmem:[%s683 + $0x152] sm:$0xff]
      %v1850 = vld [vmem:[%s683 + $0x15a] sm:$0xff]
      %v1851 = vld [vmem:[%s683 + $0x16a] sm:$0xff]
      %v1852 = vld [vmem:[%s683 + $0x172] sm:$0xff]
      %v1853 = vpack.c.bf16 %v1822, %v1821
      %v1854 = vpack.c.bf16 %v1824, %v1823
      %v1855 = vpack.c.bf16 %v1826, %v1825
      %v1856 = vpack.c.bf16 %v1828, %v1827
      %v1857 = vpack.c.bf16 %v1830, %v1829
      %v1858 = vpack.c.bf16 %v1832, %v1831
      %v1859 = vpack.c.bf16 %v1834, %v1833
      %v1860 = vpack.c.bf16 %v1836, %v1835
      %v1861 = vpack.c.bf16 %v1838, %v1837
      %v1862 = vpack.c.bf16 %v1840, %v1839
      %v1863 = vpack.c.bf16 %v1842, %v1841
      %v1864 = vpack.c.bf16 %v1844, %v1843
      %v1865 = vpack.c.bf16 %v1846, %v1845
      %v1866 = vpack.c.bf16 %v1848, %v1847
      %v1867 = vpack.c.bf16 %v1850, %v1849
      %v1868 = vpack.c.bf16 %v1852, %v1851
      %s1869 = scalar_lea.vmem %s2, 320
      %v1870 = vld [vmem:[%s1869] sm:$0xf]
      %v1871 = vld [vmem:[%s1869 + $0x4] sm:$0xf]
      %v1872 = vld [vmem:[%s1869 + $0x8] sm:$0xf]
      %v1873 = vld [vmem:[%s1869 + $0xc] sm:$0xf]
      %v1874 = vld [vmem:[%s1869 + $0x10] sm:$0xf]
      %v1875 = vld [vmem:[%s1869 + $0x14] sm:$0xf]
      %v1876 = vld [vmem:[%s1869 + $0x18] sm:$0xf]
      %v1877 = vld [vmem:[%s1869 + $0x1c] sm:$0xf]
      %v1878 = vld [vmem:[%s1869 + $0x20] sm:$0xf]
      %v1879 = vld [vmem:[%s1869 + $0x24] sm:$0xf]
      %v1880 = vld [vmem:[%s1869 + $0x28] sm:$0xf]
      %v1881 = vld [vmem:[%s1869 + $0x2c] sm:$0xf]
      %v1882 = vld [vmem:[%s1869 + $0x30] sm:$0xf]
      %v1883 = vld [vmem:[%s1869 + $0x34] sm:$0xf]
      %v1884 = vld [vmem:[%s1869 + $0x38] sm:$0xf]
      %v1885 = vld [vmem:[%s1869 + $0x3c] sm:$0xf]
      %v1902 = vunpack.c.l.b16 %v1870
      %v1903 = vunpack.c.l.b16 %v1871
      %v1904 = vunpack.c.l.b16 %v1872
      %v1905 = vunpack.c.l.b16 %v1873
      %v1906 = vunpack.c.l.b16 %v1874
      %v1907 = vunpack.c.l.b16 %v1875
      %v1908 = vunpack.c.l.b16 %v1876
      %v1909 = vunpack.c.l.b16 %v1877
      %v1910 = vunpack.c.l.b16 %v1878
      %v1911 = vunpack.c.l.b16 %v1879
      %v1912 = vunpack.c.l.b16 %v1880
      %v1913 = vunpack.c.l.b16 %v1881
      %v1914 = vunpack.c.l.b16 %v1882
      %v1915 = vunpack.c.l.b16 %v1883
      %v1916 = vunpack.c.l.b16 %v1884
      %v1917 = vunpack.c.l.b16 %v1885
      %v1918 = vpack.c.b16 %v1903, %v1902
      %v1919 = vpack.c.b16 %v1905, %v1904
      %v1920 = vpack.c.b16 %v1907, %v1906
      %v1921 = vpack.c.b16 %v1909, %v1908
      %v1922 = vpack.c.b16 %v1911, %v1910
      %v1923 = vpack.c.b16 %v1913, %v1912
      %v1924 = vpack.c.b16 %v1915, %v1914
      %v1925 = vpack.c.b16 %v1917, %v1916
      %1934 = vmatpush.bf16.msra.mxu0 %v1925
      %1935 = vmatpush.bf16.msra.mxu0 %v1924
      %1936 = vmatpush.bf16.msra.mxu0 %v1923
      %1937 = vmatpush.bf16.msra.mxu0 %v1922
      %1938 = vmatpush.bf16.msra.mxu0 %v1921
      %1939 = vmatpush.bf16.msra.mxu0 %v1920
      %1940 = vmatpush.bf16.msra.mxu0 %v1919
      %1941 = vmatpush.bf16.msra.mxu0 %v1918
      %1942 = vmatmul.bf16.gmra.mxu0 %v1853
      %v1943 = vpop.f32.mrf.mxu0
      %v1944 = vadd.f32 0.0, %v1943
      %v1945 = vpop.f32.mrf.mxu0
      %v1946 = vadd.f32 0.0, %v1945
      %1947 = vmatmul.bf16.gmra.mxu0 %v1854
      %v1948 = vpop.f32.mrf.mxu0
      %v1949 = vadd.f32 0.0, %v1948
      %v1950 = vpop.f32.mrf.mxu0
      %v1951 = vadd.f32 0.0, %v1950
      %1952 = vmatmul.bf16.gmra.mxu0 %v1855
      %v1953 = vpop.f32.mrf.mxu0
      %v1954 = vadd.f32 0.0, %v1953
      %v1955 = vpop.f32.mrf.mxu0
      %v1956 = vadd.f32 0.0, %v1955
      %1957 = vmatmul.bf16.gmra.mxu0 %v1856
      %v1958 = vpop.f32.mrf.mxu0
      %v1959 = vadd.f32 0.0, %v1958
      %v1960 = vpop.f32.mrf.mxu0
      %v1961 = vadd.f32 0.0, %v1960
      %1962 = vmatmul.bf16.gmra.mxu0 %v1857
      %v1963 = vpop.f32.mrf.mxu0
      %v1964 = vadd.f32 0.0, %v1963
      %v1965 = vpop.f32.mrf.mxu0
      %v1966 = vadd.f32 0.0, %v1965
      %1967 = vmatmul.bf16.gmra.mxu0 %v1858
      %v1968 = vpop.f32.mrf.mxu0
      %v1969 = vadd.f32 0.0, %v1968
      %v1970 = vpop.f32.mrf.mxu0
      %v1971 = vadd.f32 0.0, %v1970
      %1972 = vmatmul.bf16.gmra.mxu0 %v1859
      %v1973 = vpop.f32.mrf.mxu0
      %v1974 = vadd.f32 0.0, %v1973
      %v1975 = vpop.f32.mrf.mxu0
      %v1976 = vadd.f32 0.0, %v1975
      %1977 = vmatmul.bf16.gmra.mxu0 %v1860
      %v1978 = vpop.f32.mrf.mxu0
      %v1979 = vadd.f32 0.0, %v1978
      %v1980 = vpop.f32.mrf.mxu0
      %v1981 = vadd.f32 0.0, %v1980
      %1982 = vmatmul.bf16.gmra.mxu0 %v1861
      %v1983 = vpop.f32.mrf.mxu0
      %v1984 = vadd.f32 0.0, %v1983
      %v1985 = vpop.f32.mrf.mxu0
      %v1986 = vadd.f32 0.0, %v1985
      %1987 = vmatmul.bf16.gmra.mxu0 %v1862
      %v1988 = vpop.f32.mrf.mxu0
      %v1989 = vadd.f32 0.0, %v1988
      %v1990 = vpop.f32.mrf.mxu0
      %v1991 = vadd.f32 0.0, %v1990
      %1992 = vmatmul.bf16.gmra.mxu0 %v1863
      %v1993 = vpop.f32.mrf.mxu0
      %v1994 = vadd.f32 0.0, %v1993
      %v1995 = vpop.f32.mrf.mxu0
      %v1996 = vadd.f32 0.0, %v1995
      %1997 = vmatmul.bf16.gmra.mxu0 %v1864
      %v1998 = vpop.f32.mrf.mxu0
      %v1999 = vadd.f32 0.0, %v1998
      %v2000 = vpop.f32.mrf.mxu0
      %v2001 = vadd.f32 0.0, %v2000
      %2002 = vmatmul.bf16.gmra.mxu0 %v1865
      %v2003 = vpop.f32.mrf.mxu0
      %v2004 = vadd.f32 0.0, %v2003
      %v2005 = vpop.f32.mrf.mxu0
      %v2006 = vadd.f32 0.0, %v2005
      %2007 = vmatmul.bf16.gmra.mxu0 %v1866
      %v2008 = vpop.f32.mrf.mxu0
      %v2009 = vadd.f32 0.0, %v2008
      %v2010 = vpop.f32.mrf.mxu0
      %v2011 = vadd.f32 0.0, %v2010
      %2012 = vmatmul.bf16.gmra.mxu0 %v1867
      %v2013 = vpop.f32.mrf.mxu0
      %v2014 = vadd.f32 0.0, %v2013
      %v2015 = vpop.f32.mrf.mxu0
      %v2016 = vadd.f32 0.0, %v2015
      %2017 = vmatmul.bf16.gmra.mxu0 %v1868
      %v2018 = vpop.f32.mrf.mxu0
      %v2019 = vadd.f32 0.0, %v2018
      %v2020 = vpop.f32.mrf.mxu0
      %v2021 = vadd.f32 0.0, %v2020
      %2022 = vdwg.mxu0
      %v2023 = vadd.f32 %v1789, %v1944
      %v2024 = vadd.f32 %v1790, %v1946
      %v2025 = vadd.f32 %v1791, %v1949
      %v2026 = vadd.f32 %v1792, %v1951
      %v2027 = vadd.f32 %v1793, %v1954
      %v2028 = vadd.f32 %v1794, %v1956
      %v2029 = vadd.f32 %v1795, %v1959
      %v2030 = vadd.f32 %v1796, %v1961
      %v2031 = vadd.f32 %v1797, %v1964
      %v2032 = vadd.f32 %v1798, %v1966
      %v2033 = vadd.f32 %v1799, %v1969
      %v2034 = vadd.f32 %v1800, %v1971
      %v2035 = vadd.f32 %v1801, %v1974
      %v2036 = vadd.f32 %v1802, %v1976
      %v2037 = vadd.f32 %v1803, %v1979
      %v2038 = vadd.f32 %v1804, %v1981
      %v2039 = vadd.f32 %v1805, %v1984
      %v2040 = vadd.f32 %v1806, %v1986
      %v2041 = vadd.f32 %v1807, %v1989
      %v2042 = vadd.f32 %v1808, %v1991
      %v2043 = vadd.f32 %v1809, %v1994
      %v2044 = vadd.f32 %v1810, %v1996
      %v2045 = vadd.f32 %v1811, %v1999
      %v2046 = vadd.f32 %v1812, %v2001
      %v2047 = vadd.f32 %v1813, %v2004
      %v2048 = vadd.f32 %v1814, %v2006
      %v2049 = vadd.f32 %v1815, %v2009
      %v2050 = vadd.f32 %v1816, %v2011
      %v2051 = vadd.f32 %v1817, %v2014
      %v2052 = vadd.f32 %v1818, %v2016
      %v2053 = vadd.f32 %v1819, %v2019
      %v2054 = vadd.f32 %v1820, %v2021
      %s2055 = scalar_lea.vmem [#allocation3], 48
      %v2056 = vld [vmem:[%s2055] sm:$0xff]
      %v2057 = vld [vmem:[%s2055 + $0x8] sm:$0xff]
      %v2058 = vld [vmem:[%s2055 + $0x18] sm:$0xff]
      %v2059 = vld [vmem:[%s2055 + $0x20] sm:$0xff]
      %v2060 = vld [vmem:[%s2055 + $0x30] sm:$0xff]
      %v2061 = vld [vmem:[%s2055 + $0x38] sm:$0xff]
      %v2062 = vld [vmem:[%s2055 + $0x48] sm:$0xff]
      %v2063 = vld [vmem:[%s2055 + $0x50] sm:$0xff]
      %v2064 = vld [vmem:[%s2055 + $0x60] sm:$0xff]
      %v2065 = vld [vmem:[%s2055 + $0x68] sm:$0xff]
      %v2066 = vld [vmem:[%s2055 + $0x78] sm:$0xff]
      %v2067 = vld [vmem:[%s2055 + $0x80] sm:$0xff]
      %v2068 = vld [vmem:[%s2055 + $0x90] sm:$0xff]
      %v2069 = vld [vmem:[%s2055 + $0x98] sm:$0xff]
      %v2070 = vld [vmem:[%s2055 + $0xa8] sm:$0xff]
      %v2071 = vld [vmem:[%s2055 + $0xb0] sm:$0xff]
      %v2072 = vld [vmem:[%s2055 + $0xc0] sm:$0xff]
      %v2073 = vld [vmem:[%s2055 + $0xc8] sm:$0xff]
      %v2074 = vld [vmem:[%s2055 + $0xd8] sm:$0xff]
      %v2075 = vld [vmem:[%s2055 + $0xe0] sm:$0xff]
      %v2076 = vld [vmem:[%s2055 + $0xf0] sm:$0xff]
      %v2077 = vld [vmem:[%s2055 + $0xf8] sm:$0xff]
      %v2078 = vld [vmem:[%s2055 + $0x108] sm:$0xff]
      %v2079 = vld [vmem:[%s2055 + $0x110] sm:$0xff]
      %v2080 = vld [vmem:[%s2055 + $0x120] sm:$0xff]
      %v2081 = vld [vmem:[%s2055 + $0x128] sm:$0xff]
      %v2082 = vld [vmem:[%s2055 + $0x138] sm:$0xff]
      %v2083 = vld [vmem:[%s2055 + $0x140] sm:$0xff]
      %v2084 = vld [vmem:[%s2055 + $0x150] sm:$0xff]
      %v2085 = vld [vmem:[%s2055 + $0x158] sm:$0xff]
      %v2086 = vld [vmem:[%s2055 + $0x168] sm:$0xff]
      %v2087 = vld [vmem:[%s2055 + $0x170] sm:$0xff]
      %v2088 = vpack.c.bf16 %v2057, %v2056
      %v2089 = vpack.c.bf16 %v2059, %v2058
      %v2090 = vpack.c.bf16 %v2061, %v2060
      %v2091 = vpack.c.bf16 %v2063, %v2062
      %v2092 = vpack.c.bf16 %v2065, %v2064
      %v2093 = vpack.c.bf16 %v2067, %v2066
      %v2094 = vpack.c.bf16 %v2069, %v2068
      %v2095 = vpack.c.bf16 %v2071, %v2070
      %v2096 = vpack.c.bf16 %v2073, %v2072
      %v2097 = vpack.c.bf16 %v2075, %v2074
      %v2098 = vpack.c.bf16 %v2077, %v2076
      %v2099 = vpack.c.bf16 %v2079, %v2078
      %v2100 = vpack.c.bf16 %v2081, %v2080
      %v2101 = vpack.c.bf16 %v2083, %v2082
      %v2102 = vpack.c.bf16 %v2085, %v2084
      %v2103 = vpack.c.bf16 %v2087, %v2086
      %s2104 = scalar_lea.vmem %s2, 384
      %v2105 = vld [vmem:[%s2104] sm:$0xf]
      %v2106 = vld [vmem:[%s2104 + $0x4] sm:$0xf]
      %v2107 = vld [vmem:[%s2104 + $0x8] sm:$0xf]
      %v2108 = vld [vmem:[%s2104 + $0xc] sm:$0xf]
      %v2109 = vld [vmem:[%s2104 + $0x10] sm:$0xf]
      %v2110 = vld [vmem:[%s2104 + $0x14] sm:$0xf]
      %v2111 = vld [vmem:[%s2104 + $0x18] sm:$0xf]
      %v2112 = vld [vmem:[%s2104 + $0x1c] sm:$0xf]
      %v2113 = vld [vmem:[%s2104 + $0x20] sm:$0xf]
      %v2114 = vld [vmem:[%s2104 + $0x24] sm:$0xf]
      %v2115 = vld [vmem:[%s2104 + $0x28] sm:$0xf]
      %v2116 = vld [vmem:[%s2104 + $0x2c] sm:$0xf]
      %v2117 = vld [vmem:[%s2104 + $0x30] sm:$0xf]
      %v2118 = vld [vmem:[%s2104 + $0x34] sm:$0xf]
      %v2119 = vld [vmem:[%s2104 + $0x38] sm:$0xf]
      %v2120 = vld [vmem:[%s2104 + $0x3c] sm:$0xf]
      %v2137 = vunpack.c.l.b16 %v2105
      %v2138 = vunpack.c.l.b16 %v2106
      %v2139 = vunpack.c.l.b16 %v2107
      %v2140 = vunpack.c.l.b16 %v2108
      %v2141 = vunpack.c.l.b16 %v2109
      %v2142 = vunpack.c.l.b16 %v2110
      %v2143 = vunpack.c.l.b16 %v2111
      %v2144 = vunpack.c.l.b16 %v2112
      %v2145 = vunpack.c.l.b16 %v2113
      %v2146 = vunpack.c.l.b16 %v2114
      %v2147 = vunpack.c.l.b16 %v2115
      %v2148 = vunpack.c.l.b16 %v2116
      %v2149 = vunpack.c.l.b16 %v2117
      %v2150 = vunpack.c.l.b16 %v2118
      %v2151 = vunpack.c.l.b16 %v2119
      %v2152 = vunpack.c.l.b16 %v2120
      %v2153 = vpack.c.b16 %v2138, %v2137
      %v2154 = vpack.c.b16 %v2140, %v2139
      %v2155 = vpack.c.b16 %v2142, %v2141
      %v2156 = vpack.c.b16 %v2144, %v2143
      %v2157 = vpack.c.b16 %v2146, %v2145
      %v2158 = vpack.c.b16 %v2148, %v2147
      %v2159 = vpack.c.b16 %v2150, %v2149
      %v2160 = vpack.c.b16 %v2152, %v2151
      %2169 = vmatpush.bf16.msra.mxu0 %v2160
      %2170 = vmatpush.bf16.msra.mxu0 %v2159
      %2171 = vmatpush.bf16.msra.mxu0 %v2158
      %2172 = vmatpush.bf16.msra.mxu0 %v2157
      %2173 = vmatpush.bf16.msra.mxu0 %v2156
      %2174 = vmatpush.bf16.msra.mxu0 %v2155
      %2175 = vmatpush.bf16.msra.mxu0 %v2154
      %2176 = vmatpush.bf16.msra.mxu0 %v2153
      %2177 = vmatmul.bf16.gmra.mxu0 %v2088
      %v2178 = vpop.f32.mrf.mxu0
      %v2179 = vadd.f32 0.0, %v2178
      %v2180 = vpop.f32.mrf.mxu0
      %v2181 = vadd.f32 0.0, %v2180
      %2182 = vmatmul.bf16.gmra.mxu0 %v2089
      %v2183 = vpop.f32.mrf.mxu0
      %v2184 = vadd.f32 0.0, %v2183
      %v2185 = vpop.f32.mrf.mxu0
      %v2186 = vadd.f32 0.0, %v2185
      %2187 = vmatmul.bf16.gmra.mxu0 %v2090
      %v2188 = vpop.f32.mrf.mxu0
      %v2189 = vadd.f32 0.0, %v2188
      %v2190 = vpop.f32.mrf.mxu0
      %v2191 = vadd.f32 0.0, %v2190
      %2192 = vmatmul.bf16.gmra.mxu0 %v2091
      %v2193 = vpop.f32.mrf.mxu0
      %v2194 = vadd.f32 0.0, %v2193
      %v2195 = vpop.f32.mrf.mxu0
      %v2196 = vadd.f32 0.0, %v2195
      %2197 = vmatmul.bf16.gmra.mxu0 %v2092
      %v2198 = vpop.f32.mrf.mxu0
      %v2199 = vadd.f32 0.0, %v2198
      %v2200 = vpop.f32.mrf.mxu0
      %v2201 = vadd.f32 0.0, %v2200
      %2202 = vmatmul.bf16.gmra.mxu0 %v2093
      %v2203 = vpop.f32.mrf.mxu0
      %v2204 = vadd.f32 0.0, %v2203
      %v2205 = vpop.f32.mrf.mxu0
      %v2206 = vadd.f32 0.0, %v2205
      %2207 = vmatmul.bf16.gmra.mxu0 %v2094
      %v2208 = vpop.f32.mrf.mxu0
      %v2209 = vadd.f32 0.0, %v2208
      %v2210 = vpop.f32.mrf.mxu0
      %v2211 = vadd.f32 0.0, %v2210
      %2212 = vmatmul.bf16.gmra.mxu0 %v2095
      %v2213 = vpop.f32.mrf.mxu0
      %v2214 = vadd.f32 0.0, %v2213
      %v2215 = vpop.f32.mrf.mxu0
      %v2216 = vadd.f32 0.0, %v2215
      %2217 = vmatmul.bf16.gmra.mxu0 %v2096
      %v2218 = vpop.f32.mrf.mxu0
      %v2219 = vadd.f32 0.0, %v2218
      %v2220 = vpop.f32.mrf.mxu0
      %v2221 = vadd.f32 0.0, %v2220
      %2222 = vmatmul.bf16.gmra.mxu0 %v2097
      %v2223 = vpop.f32.mrf.mxu0
      %v2224 = vadd.f32 0.0, %v2223
      %v2225 = vpop.f32.mrf.mxu0
      %v2226 = vadd.f32 0.0, %v2225
      %2227 = vmatmul.bf16.gmra.mxu0 %v2098
      %v2228 = vpop.f32.mrf.mxu0
      %v2229 = vadd.f32 0.0, %v2228
      %v2230 = vpop.f32.mrf.mxu0
      %v2231 = vadd.f32 0.0, %v2230
      %2232 = vmatmul.bf16.gmra.mxu0 %v2099
      %v2233 = vpop.f32.mrf.mxu0
      %v2234 = vadd.f32 0.0, %v2233
      %v2235 = vpop.f32.mrf.mxu0
      %v2236 = vadd.f32 0.0, %v2235
      %2237 = vmatmul.bf16.gmra.mxu0 %v2100
      %v2238 = vpop.f32.mrf.mxu0
      %v2239 = vadd.f32 0.0, %v2238
      %v2240 = vpop.f32.mrf.mxu0
      %v2241 = vadd.f32 0.0, %v2240
      %2242 = vmatmul.bf16.gmra.mxu0 %v2101
      %v2243 = vpop.f32.mrf.mxu0
      %v2244 = vadd.f32 0.0, %v2243
      %v2245 = vpop.f32.mrf.mxu0
      %v2246 = vadd.f32 0.0, %v2245
      %2247 = vmatmul.bf16.gmra.mxu0 %v2102
      %v2248 = vpop.f32.mrf.mxu0
      %v2249 = vadd.f32 0.0, %v2248
      %v2250 = vpop.f32.mrf.mxu0
      %v2251 = vadd.f32 0.0, %v2250
      %2252 = vmatmul.bf16.gmra.mxu0 %v2103
      %v2253 = vpop.f32.mrf.mxu0
      %v2254 = vadd.f32 0.0, %v2253
      %v2255 = vpop.f32.mrf.mxu0
      %v2256 = vadd.f32 0.0, %v2255
      %2257 = vdwg.mxu0
      %v2258 = vadd.f32 %v2023, %v2179
      %v2259 = vadd.f32 %v2024, %v2181
      %v2260 = vadd.f32 %v2025, %v2184
      %v2261 = vadd.f32 %v2026, %v2186
      %v2262 = vadd.f32 %v2027, %v2189
      %v2263 = vadd.f32 %v2028, %v2191
      %v2264 = vadd.f32 %v2029, %v2194
      %v2265 = vadd.f32 %v2030, %v2196
      %v2266 = vadd.f32 %v2031, %v2199
      %v2267 = vadd.f32 %v2032, %v2201
      %v2268 = vadd.f32 %v2033, %v2204
      %v2269 = vadd.f32 %v2034, %v2206
      %v2270 = vadd.f32 %v2035, %v2209
      %v2271 = vadd.f32 %v2036, %v2211
      %v2272 = vadd.f32 %v2037, %v2214
      %v2273 = vadd.f32 %v2038, %v2216
      %v2274 = vadd.f32 %v2039, %v2219
      %v2275 = vadd.f32 %v2040, %v2221
      %v2276 = vadd.f32 %v2041, %v2224
      %v2277 = vadd.f32 %v2042, %v2226
      %v2278 = vadd.f32 %v2043, %v2229
      %v2279 = vadd.f32 %v2044, %v2231
      %v2280 = vadd.f32 %v2045, %v2234
      %v2281 = vadd.f32 %v2046, %v2236
      %v2282 = vadd.f32 %v2047, %v2239
      %v2283 = vadd.f32 %v2048, %v2241
      %v2284 = vadd.f32 %v2049, %v2244
      %v2285 = vadd.f32 %v2050, %v2246
      %v2286 = vadd.f32 %v2051, %v2249
      %v2287 = vadd.f32 %v2052, %v2251
      %v2288 = vadd.f32 %v2053, %v2254
      %v2289 = vadd.f32 %v2054, %v2256
      %v2290 = vld [vmem:[%s2055 + $0x1] sm:$0xff]
      %v2291 = vld [vmem:[%s2055 + $0x9] sm:$0xff]
      %v2292 = vld [vmem:[%s2055 + $0x19] sm:$0xff]
      %v2293 = vld [vmem:[%s2055 + $0x21] sm:$0xff]
      %v2294 = vld [vmem:[%s2055 + $0x31] sm:$0xff]
      %v2295 = vld [vmem:[%s2055 + $0x39] sm:$0xff]
      %v2296 = vld [vmem:[%s2055 + $0x49] sm:$0xff]
      %v2297 = vld [vmem:[%s2055 + $0x51] sm:$0xff]
      %v2298 = vld [vmem:[%s2055 + $0x61] sm:$0xff]
      %v2299 = vld [vmem:[%s2055 + $0x69] sm:$0xff]
      %v2300 = vld [vmem:[%s2055 + $0x79] sm:$0xff]
      %v2301 = vld [vmem:[%s2055 + $0x81] sm:$0xff]
      %v2302 = vld [vmem:[%s2055 + $0x91] sm:$0xff]
      %v2303 = vld [vmem:[%s2055 + $0x99] sm:$0xff]
      %v2304 = vld [vmem:[%s2055 + $0xa9] sm:$0xff]
      %v2305 = vld [vmem:[%s2055 + $0xb1] sm:$0xff]
      %v2306 = vld [vmem:[%s2055 + $0xc1] sm:$0xff]
      %v2307 = vld [vmem:[%s2055 + $0xc9] sm:$0xff]
      %v2308 = vld [vmem:[%s2055 + $0xd9] sm:$0xff]
      %v2309 = vld [vmem:[%s2055 + $0xe1] sm:$0xff]
      %v2310 = vld [vmem:[%s2055 + $0xf1] sm:$0xff]
      %v2311 = vld [vmem:[%s2055 + $0xf9] sm:$0xff]
      %v2312 = vld [vmem:[%s2055 + $0x109] sm:$0xff]
      %v2313 = vld [vmem:[%s2055 + $0x111] sm:$0xff]
      %v2314 = vld [vmem:[%s2055 + $0x121] sm:$0xff]
      %v2315 = vld [vmem:[%s2055 + $0x129] sm:$0xff]
      %v2316 = vld [vmem:[%s2055 + $0x139] sm:$0xff]
      %v2317 = vld [vmem:[%s2055 + $0x141] sm:$0xff]
      %v2318 = vld [vmem:[%s2055 + $0x151] sm:$0xff]
      %v2319 = vld [vmem:[%s2055 + $0x159] sm:$0xff]
      %v2320 = vld [vmem:[%s2055 + $0x169] sm:$0xff]
      %v2321 = vld [vmem:[%s2055 + $0x171] sm:$0xff]
      %v2322 = vpack.c.bf16 %v2291, %v2290
      %v2323 = vpack.c.bf16 %v2293, %v2292
      %v2324 = vpack.c.bf16 %v2295, %v2294
      %v2325 = vpack.c.bf16 %v2297, %v2296
      %v2326 = vpack.c.bf16 %v2299, %v2298
      %v2327 = vpack.c.bf16 %v2301, %v2300
      %v2328 = vpack.c.bf16 %v2303, %v2302
      %v2329 = vpack.c.bf16 %v2305, %v2304
      %v2330 = vpack.c.bf16 %v2307, %v2306
      %v2331 = vpack.c.bf16 %v2309, %v2308
      %v2332 = vpack.c.bf16 %v2311, %v2310
      %v2333 = vpack.c.bf16 %v2313, %v2312
      %v2334 = vpack.c.bf16 %v2315, %v2314
      %v2335 = vpack.c.bf16 %v2317, %v2316
      %v2336 = vpack.c.bf16 %v2319, %v2318
      %v2337 = vpack.c.bf16 %v2321, %v2320
      %s2338 = scalar_lea.vmem %s2, 448
      %v2339 = vld [vmem:[%s2338] sm:$0xf]
      %v2340 = vld [vmem:[%s2338 + $0x4] sm:$0xf]
      %v2341 = vld [vmem:[%s2338 + $0x8] sm:$0xf]
      %v2342 = vld [vmem:[%s2338 + $0xc] sm:$0xf]
      %v2343 = vld [vmem:[%s2338 + $0x10] sm:$0xf]
      %v2344 = vld [vmem:[%s2338 + $0x14] sm:$0xf]
      %v2345 = vld [vmem:[%s2338 + $0x18] sm:$0xf]
      %v2346 = vld [vmem:[%s2338 + $0x1c] sm:$0xf]
      %v2347 = vld [vmem:[%s2338 + $0x20] sm:$0xf]
      %v2348 = vld [vmem:[%s2338 + $0x24] sm:$0xf]
      %v2349 = vld [vmem:[%s2338 + $0x28] sm:$0xf]
      %v2350 = vld [vmem:[%s2338 + $0x2c] sm:$0xf]
      %v2351 = vld [vmem:[%s2338 + $0x30] sm:$0xf]
      %v2352 = vld [vmem:[%s2338 + $0x34] sm:$0xf]
      %v2353 = vld [vmem:[%s2338 + $0x38] sm:$0xf]
      %v2354 = vld [vmem:[%s2338 + $0x3c] sm:$0xf]
      %v2371 = vunpack.c.l.b16 %v2339
      %v2372 = vunpack.c.l.b16 %v2340
      %v2373 = vunpack.c.l.b16 %v2341
      %v2374 = vunpack.c.l.b16 %v2342
      %v2375 = vunpack.c.l.b16 %v2343
      %v2376 = vunpack.c.l.b16 %v2344
      %v2377 = vunpack.c.l.b16 %v2345
      %v2378 = vunpack.c.l.b16 %v2346
      %v2379 = vunpack.c.l.b16 %v2347
      %v2380 = vunpack.c.l.b16 %v2348
      %v2381 = vunpack.c.l.b16 %v2349
      %v2382 = vunpack.c.l.b16 %v2350
      %v2383 = vunpack.c.l.b16 %v2351
      %v2384 = vunpack.c.l.b16 %v2352
      %v2385 = vunpack.c.l.b16 %v2353
      %v2386 = vunpack.c.l.b16 %v2354
      %v2387 = vpack.c.b16 %v2372, %v2371
      %v2388 = vpack.c.b16 %v2374, %v2373
      %v2389 = vpack.c.b16 %v2376, %v2375
      %v2390 = vpack.c.b16 %v2378, %v2377
      %v2391 = vpack.c.b16 %v2380, %v2379
      %v2392 = vpack.c.b16 %v2382, %v2381
      %v2393 = vpack.c.b16 %v2384, %v2383
      %v2394 = vpack.c.b16 %v2386, %v2385
      %2403 = vmatpush.bf16.msra.mxu0 %v2394
      %2404 = vmatpush.bf16.msra.mxu0 %v2393
      %2405 = vmatpush.bf16.msra.mxu0 %v2392
      %2406 = vmatpush.bf16.msra.mxu0 %v2391
      %2407 = vmatpush.bf16.msra.mxu0 %v2390
      %2408 = vmatpush.bf16.msra.mxu0 %v2389
      %2409 = vmatpush.bf16.msra.mxu0 %v2388
      %2410 = vmatpush.bf16.msra.mxu0 %v2387
      %2411 = vmatmul.bf16.gmra.mxu0 %v2322
      %v2412 = vpop.f32.mrf.mxu0
      %v2413 = vadd.f32 0.0, %v2412
      %v2414 = vpop.f32.mrf.mxu0
      %v2415 = vadd.f32 0.0, %v2414
      %2416 = vmatmul.bf16.gmra.mxu0 %v2323
      %v2417 = vpop.f32.mrf.mxu0
      %v2418 = vadd.f32 0.0, %v2417
      %v2419 = vpop.f32.mrf.mxu0
      %v2420 = vadd.f32 0.0, %v2419
      %2421 = vmatmul.bf16.gmra.mxu0 %v2324
      %v2422 = vpop.f32.mrf.mxu0
      %v2423 = vadd.f32 0.0, %v2422
      %v2424 = vpop.f32.mrf.mxu0
      %v2425 = vadd.f32 0.0, %v2424
      %2426 = vmatmul.bf16.gmra.mxu0 %v2325
      %v2427 = vpop.f32.mrf.mxu0
      %v2428 = vadd.f32 0.0, %v2427
      %v2429 = vpop.f32.mrf.mxu0
      %v2430 = vadd.f32 0.0, %v2429
      %2431 = vmatmul.bf16.gmra.mxu0 %v2326
      %v2432 = vpop.f32.mrf.mxu0
      %v2433 = vadd.f32 0.0, %v2432
      %v2434 = vpop.f32.mrf.mxu0
      %v2435 = vadd.f32 0.0, %v2434
      %2436 = vmatmul.bf16.gmra.mxu0 %v2327
      %v2437 = vpop.f32.mrf.mxu0
      %v2438 = vadd.f32 0.0, %v2437
      %v2439 = vpop.f32.mrf.mxu0
      %v2440 = vadd.f32 0.0, %v2439
      %2441 = vmatmul.bf16.gmra.mxu0 %v2328
      %v2442 = vpop.f32.mrf.mxu0
      %v2443 = vadd.f32 0.0, %v2442
      %v2444 = vpop.f32.mrf.mxu0
      %v2445 = vadd.f32 0.0, %v2444
      %2446 = vmatmul.bf16.gmra.mxu0 %v2329
      %v2447 = vpop.f32.mrf.mxu0
      %v2448 = vadd.f32 0.0, %v2447
      %v2449 = vpop.f32.mrf.mxu0
      %v2450 = vadd.f32 0.0, %v2449
      %2451 = vmatmul.bf16.gmra.mxu0 %v2330
      %v2452 = vpop.f32.mrf.mxu0
      %v2453 = vadd.f32 0.0, %v2452
      %v2454 = vpop.f32.mrf.mxu0
      %v2455 = vadd.f32 0.0, %v2454
      %2456 = vmatmul.bf16.gmra.mxu0 %v2331
      %v2457 = vpop.f32.mrf.mxu0
      %v2458 = vadd.f32 0.0, %v2457
      %v2459 = vpop.f32.mrf.mxu0
      %v2460 = vadd.f32 0.0, %v2459
      %2461 = vmatmul.bf16.gmra.mxu0 %v2332
      %v2462 = vpop.f32.mrf.mxu0
      %v2463 = vadd.f32 0.0, %v2462
      %v2464 = vpop.f32.mrf.mxu0
      %v2465 = vadd.f32 0.0, %v2464
      %2466 = vmatmul.bf16.gmra.mxu0 %v2333
      %v2467 = vpop.f32.mrf.mxu0
      %v2468 = vadd.f32 0.0, %v2467
      %v2469 = vpop.f32.mrf.mxu0
      %v2470 = vadd.f32 0.0, %v2469
      %2471 = vmatmul.bf16.gmra.mxu0 %v2334
      %v2472 = vpop.f32.mrf.mxu0
      %v2473 = vadd.f32 0.0, %v2472
      %v2474 = vpop.f32.mrf.mxu0
      %v2475 = vadd.f32 0.0, %v2474
      %2476 = vmatmul.bf16.gmra.mxu0 %v2335
      %v2477 = vpop.f32.mrf.mxu0
      %v2478 = vadd.f32 0.0, %v2477
      %v2479 = vpop.f32.mrf.mxu0
      %v2480 = vadd.f32 0.0, %v2479
      %2481 = vmatmul.bf16.gmra.mxu0 %v2336
      %v2482 = vpop.f32.mrf.mxu0
      %v2483 = vadd.f32 0.0, %v2482
      %v2484 = vpop.f32.mrf.mxu0
      %v2485 = vadd.f32 0.0, %v2484
      %2486 = vmatmul.bf16.gmra.mxu0 %v2337
      %v2487 = vpop.f32.mrf.mxu0
      %v2488 = vadd.f32 0.0, %v2487
      %v2489 = vpop.f32.mrf.mxu0
      %v2490 = vadd.f32 0.0, %v2489
      %2491 = vdwg.mxu0
      %v2492 = vadd.f32 %v2258, %v2413
      %v2493 = vadd.f32 %v2259, %v2415
      %v2494 = vadd.f32 %v2260, %v2418
      %v2495 = vadd.f32 %v2261, %v2420
      %v2496 = vadd.f32 %v2262, %v2423
      %v2497 = vadd.f32 %v2263, %v2425
      %v2498 = vadd.f32 %v2264, %v2428
      %v2499 = vadd.f32 %v2265, %v2430
      %v2500 = vadd.f32 %v2266, %v2433
      %v2501 = vadd.f32 %v2267, %v2435
      %v2502 = vadd.f32 %v2268, %v2438
      %v2503 = vadd.f32 %v2269, %v2440
      %v2504 = vadd.f32 %v2270, %v2443
      %v2505 = vadd.f32 %v2271, %v2445
      %v2506 = vadd.f32 %v2272, %v2448
      %v2507 = vadd.f32 %v2273, %v2450
      %v2508 = vadd.f32 %v2274, %v2453
      %v2509 = vadd.f32 %v2275, %v2455
      %v2510 = vadd.f32 %v2276, %v2458
      %v2511 = vadd.f32 %v2277, %v2460
      %v2512 = vadd.f32 %v2278, %v2463
      %v2513 = vadd.f32 %v2279, %v2465
      %v2514 = vadd.f32 %v2280, %v2468
      %v2515 = vadd.f32 %v2281, %v2470
      %v2516 = vadd.f32 %v2282, %v2473
      %v2517 = vadd.f32 %v2283, %v2475
      %v2518 = vadd.f32 %v2284, %v2478
      %v2519 = vadd.f32 %v2285, %v2480
      %v2520 = vadd.f32 %v2286, %v2483
      %v2521 = vadd.f32 %v2287, %v2485
      %v2522 = vadd.f32 %v2288, %v2488
      %v2523 = vadd.f32 %v2289, %v2490
      %v2524 = vld [vmem:[%s2055 + $0x2] sm:$0xff]
      %v2525 = vld [vmem:[%s2055 + $0xa] sm:$0xff]
      %v2526 = vld [vmem:[%s2055 + $0x1a] sm:$0xff]
      %v2527 = vld [vmem:[%s2055 + $0x22] sm:$0xff]
      %v2528 = vld [vmem:[%s2055 + $0x32] sm:$0xff]
      %v2529 = vld [vmem:[%s2055 + $0x3a] sm:$0xff]
      %v2530 = vld [vmem:[%s2055 + $0x4a] sm:$0xff]
      %v2531 = vld [vmem:[%s2055 + $0x52] sm:$0xff]
      %v2532 = vld [vmem:[%s2055 + $0x62] sm:$0xff]
      %v2533 = vld [vmem:[%s2055 + $0x6a] sm:$0xff]
      %v2534 = vld [vmem:[%s2055 + $0x7a] sm:$0xff]
      %v2535 = vld [vmem:[%s2055 + $0x82] sm:$0xff]
      %v2536 = vld [vmem:[%s2055 + $0x92] sm:$0xff]
      %v2537 = vld [vmem:[%s2055 + $0x9a] sm:$0xff]
      %v2538 = vld [vmem:[%s2055 + $0xaa] sm:$0xff]
      %v2539 = vld [vmem:[%s2055 + $0xb2] sm:$0xff]
      %v2540 = vld [vmem:[%s2055 + $0xc2] sm:$0xff]
      %v2541 = vld [vmem:[%s2055 + $0xca] sm:$0xff]
      %v2542 = vld [vmem:[%s2055 + $0xda] sm:$0xff]
      %v2543 = vld [vmem:[%s2055 + $0xe2] sm:$0xff]
      %v2544 = vld [vmem:[%s2055 + $0xf2] sm:$0xff]
      %v2545 = vld [vmem:[%s2055 + $0xfa] sm:$0xff]
      %v2546 = vld [vmem:[%s2055 + $0x10a] sm:$0xff]
      %v2547 = vld [vmem:[%s2055 + $0x112] sm:$0xff]
      %v2548 = vld [vmem:[%s2055 + $0x122] sm:$0xff]
      %v2549 = vld [vmem:[%s2055 + $0x12a] sm:$0xff]
      %v2550 = vld [vmem:[%s2055 + $0x13a] sm:$0xff]
      %v2551 = vld [vmem:[%s2055 + $0x142] sm:$0xff]
      %v2552 = vld [vmem:[%s2055 + $0x152] sm:$0xff]
      %v2553 = vld [vmem:[%s2055 + $0x15a] sm:$0xff]
      %v2554 = vld [vmem:[%s2055 + $0x16a] sm:$0xff]
      %v2555 = vld [vmem:[%s2055 + $0x172] sm:$0xff]
      %v2556 = vpack.c.bf16 %v2525, %v2524
      %v2557 = vpack.c.bf16 %v2527, %v2526
      %v2558 = vpack.c.bf16 %v2529, %v2528
      %v2559 = vpack.c.bf16 %v2531, %v2530
      %v2560 = vpack.c.bf16 %v2533, %v2532
      %v2561 = vpack.c.bf16 %v2535, %v2534
      %v2562 = vpack.c.bf16 %v2537, %v2536
      %v2563 = vpack.c.bf16 %v2539, %v2538
      %v2564 = vpack.c.bf16 %v2541, %v2540
      %v2565 = vpack.c.bf16 %v2543, %v2542
      %v2566 = vpack.c.bf16 %v2545, %v2544
      %v2567 = vpack.c.bf16 %v2547, %v2546
      %v2568 = vpack.c.bf16 %v2549, %v2548
      %v2569 = vpack.c.bf16 %v2551, %v2550
      %v2570 = vpack.c.bf16 %v2553, %v2552
      %v2571 = vpack.c.bf16 %v2555, %v2554
      %s2572 = scalar_lea.vmem %s2, 512
      %v2573 = vld [vmem:[%s2572] sm:$0xf]
      %v2574 = vld [vmem:[%s2572 + $0x4] sm:$0xf]
      %v2575 = vld [vmem:[%s2572 + $0x8] sm:$0xf]
      %v2576 = vld [vmem:[%s2572 + $0xc] sm:$0xf]
      %v2577 = vld [vmem:[%s2572 + $0x10] sm:$0xf]
      %v2578 = vld [vmem:[%s2572 + $0x14] sm:$0xf]
      %v2579 = vld [vmem:[%s2572 + $0x18] sm:$0xf]
      %v2580 = vld [vmem:[%s2572 + $0x1c] sm:$0xf]
      %v2581 = vld [vmem:[%s2572 + $0x20] sm:$0xf]
      %v2582 = vld [vmem:[%s2572 + $0x24] sm:$0xf]
      %v2583 = vld [vmem:[%s2572 + $0x28] sm:$0xf]
      %v2584 = vld [vmem:[%s2572 + $0x2c] sm:$0xf]
      %v2585 = vld [vmem:[%s2572 + $0x30] sm:$0xf]
      %v2586 = vld [vmem:[%s2572 + $0x34] sm:$0xf]
      %v2587 = vld [vmem:[%s2572 + $0x38] sm:$0xf]
      %v2588 = vld [vmem:[%s2572 + $0x3c] sm:$0xf]
      %v2605 = vunpack.c.l.b16 %v2573
      %v2606 = vunpack.c.l.b16 %v2574
      %v2607 = vunpack.c.l.b16 %v2575
      %v2608 = vunpack.c.l.b16 %v2576
      %v2609 = vunpack.c.l.b16 %v2577
      %v2610 = vunpack.c.l.b16 %v2578
      %v2611 = vunpack.c.l.b16 %v2579
      %v2612 = vunpack.c.l.b16 %v2580
      %v2613 = vunpack.c.l.b16 %v2581
      %v2614 = vunpack.c.l.b16 %v2582
      %v2615 = vunpack.c.l.b16 %v2583
      %v2616 = vunpack.c.l.b16 %v2584
      %v2617 = vunpack.c.l.b16 %v2585
      %v2618 = vunpack.c.l.b16 %v2586
      %v2619 = vunpack.c.l.b16 %v2587
      %v2620 = vunpack.c.l.b16 %v2588
      %v2621 = vpack.c.b16 %v2606, %v2605
      %v2622 = vpack.c.b16 %v2608, %v2607
      %v2623 = vpack.c.b16 %v2610, %v2609
      %v2624 = vpack.c.b16 %v2612, %v2611
      %v2625 = vpack.c.b16 %v2614, %v2613
      %v2626 = vpack.c.b16 %v2616, %v2615
      %v2627 = vpack.c.b16 %v2618, %v2617
      %v2628 = vpack.c.b16 %v2620, %v2619
      %2637 = vmatpush.bf16.msra.mxu0 %v2628
      %2638 = vmatpush.bf16.msra.mxu0 %v2627
      %2639 = vmatpush.bf16.msra.mxu0 %v2626
      %2640 = vmatpush.bf16.msra.mxu0 %v2625
      %2641 = vmatpush.bf16.msra.mxu0 %v2624
      %2642 = vmatpush.bf16.msra.mxu0 %v2623
      %2643 = vmatpush.bf16.msra.mxu0 %v2622
      %2644 = vmatpush.bf16.msra.mxu0 %v2621
      %2645 = vmatmul.bf16.gmra.mxu0 %v2556
      %v2646 = vpop.f32.mrf.mxu0
      %v2647 = vadd.f32 0.0, %v2646
      %v2648 = vpop.f32.mrf.mxu0
      %v2649 = vadd.f32 0.0, %v2648
      %2650 = vmatmul.bf16.gmra.mxu0 %v2557
      %v2651 = vpop.f32.mrf.mxu0
      %v2652 = vadd.f32 0.0, %v2651
      %v2653 = vpop.f32.mrf.mxu0
      %v2654 = vadd.f32 0.0, %v2653
      %2655 = vmatmul.bf16.gmra.mxu0 %v2558
      %v2656 = vpop.f32.mrf.mxu0
      %v2657 = vadd.f32 0.0, %v2656
      %v2658 = vpop.f32.mrf.mxu0
      %v2659 = vadd.f32 0.0, %v2658
      %2660 = vmatmul.bf16.gmra.mxu0 %v2559
      %v2661 = vpop.f32.mrf.mxu0
      %v2662 = vadd.f32 0.0, %v2661
      %v2663 = vpop.f32.mrf.mxu0
      %v2664 = vadd.f32 0.0, %v2663
      %2665 = vmatmul.bf16.gmra.mxu0 %v2560
      %v2666 = vpop.f32.mrf.mxu0
      %v2667 = vadd.f32 0.0, %v2666
      %v2668 = vpop.f32.mrf.mxu0
      %v2669 = vadd.f32 0.0, %v2668
      %2670 = vmatmul.bf16.gmra.mxu0 %v2561
      %v2671 = vpop.f32.mrf.mxu0
      %v2672 = vadd.f32 0.0, %v2671
      %v2673 = vpop.f32.mrf.mxu0
      %v2674 = vadd.f32 0.0, %v2673
      %2675 = vmatmul.bf16.gmra.mxu0 %v2562
      %v2676 = vpop.f32.mrf.mxu0
      %v2677 = vadd.f32 0.0, %v2676
      %v2678 = vpop.f32.mrf.mxu0
      %v2679 = vadd.f32 0.0, %v2678
      %2680 = vmatmul.bf16.gmra.mxu0 %v2563
      %v2681 = vpop.f32.mrf.mxu0
      %v2682 = vadd.f32 0.0, %v2681
      %v2683 = vpop.f32.mrf.mxu0
      %v2684 = vadd.f32 0.0, %v2683
      %2685 = vmatmul.bf16.gmra.mxu0 %v2564
      %v2686 = vpop.f32.mrf.mxu0
      %v2687 = vadd.f32 0.0, %v2686
      %v2688 = vpop.f32.mrf.mxu0
      %v2689 = vadd.f32 0.0, %v2688
      %2690 = vmatmul.bf16.gmra.mxu0 %v2565
      %v2691 = vpop.f32.mrf.mxu0
      %v2692 = vadd.f32 0.0, %v2691
      %v2693 = vpop.f32.mrf.mxu0
      %v2694 = vadd.f32 0.0, %v2693
      %2695 = vmatmul.bf16.gmra.mxu0 %v2566
      %v2696 = vpop.f32.mrf.mxu0
      %v2697 = vadd.f32 0.0, %v2696
      %v2698 = vpop.f32.mrf.mxu0
      %v2699 = vadd.f32 0.0, %v2698
      %2700 = vmatmul.bf16.gmra.mxu0 %v2567
      %v2701 = vpop.f32.mrf.mxu0
      %v2702 = vadd.f32 0.0, %v2701
      %v2703 = vpop.f32.mrf.mxu0
      %v2704 = vadd.f32 0.0, %v2703
      %2705 = vmatmul.bf16.gmra.mxu0 %v2568
      %v2706 = vpop.f32.mrf.mxu0
      %v2707 = vadd.f32 0.0, %v2706
      %v2708 = vpop.f32.mrf.mxu0
      %v2709 = vadd.f32 0.0, %v2708
      %2710 = vmatmul.bf16.gmra.mxu0 %v2569
      %v2711 = vpop.f32.mrf.mxu0
      %v2712 = vadd.f32 0.0, %v2711
      %v2713 = vpop.f32.mrf.mxu0
      %v2714 = vadd.f32 0.0, %v2713
      %2715 = vmatmul.bf16.gmra.mxu0 %v2570
      %v2716 = vpop.f32.mrf.mxu0
      %v2717 = vadd.f32 0.0, %v2716
      %v2718 = vpop.f32.mrf.mxu0
      %v2719 = vadd.f32 0.0, %v2718
      %2720 = vmatmul.bf16.gmra.mxu0 %v2571
      %v2721 = vpop.f32.mrf.mxu0
      %v2722 = vadd.f32 0.0, %v2721
      %v2723 = vpop.f32.mrf.mxu0
      %v2724 = vadd.f32 0.0, %v2723
      %2725 = vdwg.mxu0
      %v2726 = vadd.f32 %v2492, %v2647
      %v2727 = vadd.f32 %v2493, %v2649
      %v2728 = vadd.f32 %v2494, %v2652
      %v2729 = vadd.f32 %v2495, %v2654
      %v2730 = vadd.f32 %v2496, %v2657
      %v2731 = vadd.f32 %v2497, %v2659
      %v2732 = vadd.f32 %v2498, %v2662
      %v2733 = vadd.f32 %v2499, %v2664
      %v2734 = vadd.f32 %v2500, %v2667
      %v2735 = vadd.f32 %v2501, %v2669
      %v2736 = vadd.f32 %v2502, %v2672
      %v2737 = vadd.f32 %v2503, %v2674
      %v2738 = vadd.f32 %v2504, %v2677
      %v2739 = vadd.f32 %v2505, %v2679
      %v2740 = vadd.f32 %v2506, %v2682
      %v2741 = vadd.f32 %v2507, %v2684
      %v2742 = vadd.f32 %v2508, %v2687
      %v2743 = vadd.f32 %v2509, %v2689
      %v2744 = vadd.f32 %v2510, %v2692
      %v2745 = vadd.f32 %v2511, %v2694
      %v2746 = vadd.f32 %v2512, %v2697
      %v2747 = vadd.f32 %v2513, %v2699
      %v2748 = vadd.f32 %v2514, %v2702
      %v2749 = vadd.f32 %v2515, %v2704
      %v2750 = vadd.f32 %v2516, %v2707
      %v2751 = vadd.f32 %v2517, %v2709
      %v2752 = vadd.f32 %v2518, %v2712
      %v2753 = vadd.f32 %v2519, %v2714
      %v2754 = vadd.f32 %v2520, %v2717
      %v2755 = vadd.f32 %v2521, %v2719
      %v2756 = vadd.f32 %v2522, %v2722
      %v2757 = vadd.f32 %v2523, %v2724
      %v2758 = vld [vmem:[%s4] sm:$0x1]
      %v2760 = vperm.slane %v2758, 0
      %v2762 = vadd.f32 %v2726, %v2760
      %v2763 = vadd.f32 %v2727, %v2760
      %v2764 = vadd.f32 %v2728, %v2760
      %v2765 = vadd.f32 %v2729, %v2760
      %v2766 = vadd.f32 %v2730, %v2760
      %v2767 = vadd.f32 %v2731, %v2760
      %v2768 = vadd.f32 %v2732, %v2760
      %v2769 = vadd.f32 %v2733, %v2760
      %v2770 = vadd.f32 %v2734, %v2760
      %v2771 = vadd.f32 %v2735, %v2760
      %v2772 = vadd.f32 %v2736, %v2760
      %v2773 = vadd.f32 %v2737, %v2760
      %v2774 = vadd.f32 %v2738, %v2760
      %v2775 = vadd.f32 %v2739, %v2760
      %v2776 = vadd.f32 %v2740, %v2760
      %v2777 = vadd.f32 %v2741, %v2760
      %v2778 = vadd.f32 %v2742, %v2760
      %v2779 = vadd.f32 %v2743, %v2760
      %v2780 = vadd.f32 %v2744, %v2760
      %v2781 = vadd.f32 %v2745, %v2760
      %v2782 = vadd.f32 %v2746, %v2760
      %v2783 = vadd.f32 %v2747, %v2760
      %v2784 = vadd.f32 %v2748, %v2760
      %v2785 = vadd.f32 %v2749, %v2760
      %v2786 = vadd.f32 %v2750, %v2760
      %v2787 = vadd.f32 %v2751, %v2760
      %v2788 = vadd.f32 %v2752, %v2760
      %v2789 = vadd.f32 %v2753, %v2760
      %v2790 = vadd.f32 %v2754, %v2760
      %v2791 = vadd.f32 %v2755, %v2760
      %v2792 = vadd.f32 %v2756, %v2760
      %v2793 = vadd.f32 %v2757, %v2760
      %v2794 = vmax.f32 %v2762, 0.0
      %v2795 = vmax.f32 %v2763, 0.0
      %v2796 = vmax.f32 %v2764, 0.0
      %v2797 = vmax.f32 %v2765, 0.0
      %v2798 = vmax.f32 %v2766, 0.0
      %v2799 = vmax.f32 %v2767, 0.0
      %v2800 = vmax.f32 %v2768, 0.0
      %v2801 = vmax.f32 %v2769, 0.0
      %v2802 = vmax.f32 %v2770, 0.0
      %v2803 = vmax.f32 %v2771, 0.0
      %v2804 = vmax.f32 %v2772, 0.0
      %v2805 = vmax.f32 %v2773, 0.0
      %v2806 = vmax.f32 %v2774, 0.0
      %v2807 = vmax.f32 %v2775, 0.0
      %v2808 = vmax.f32 %v2776, 0.0
      %v2809 = vmax.f32 %v2777, 0.0
      %v2810 = vmax.f32 %v2778, 0.0
      %v2811 = vmax.f32 %v2779, 0.0
      %v2812 = vmax.f32 %v2780, 0.0
      %v2813 = vmax.f32 %v2781, 0.0
      %v2814 = vmax.f32 %v2782, 0.0
      %v2815 = vmax.f32 %v2783, 0.0
      %v2816 = vmax.f32 %v2784, 0.0
      %v2817 = vmax.f32 %v2785, 0.0
      %v2818 = vmax.f32 %v2786, 0.0
      %v2819 = vmax.f32 %v2787, 0.0
      %v2820 = vmax.f32 %v2788, 0.0
      %v2821 = vmax.f32 %v2789, 0.0
      %v2822 = vmax.f32 %v2790, 0.0
      %v2823 = vmax.f32 %v2791, 0.0
      %v2824 = vmax.f32 %v2792, 0.0
      %v2825 = vmax.f32 %v2793, 0.0
      %v2826 = vpack.c.bf16 %v2794, %v2794
      %v2827 = vpack.c.bf16 %v2795, %v2795
      %v2828 = vpack.c.bf16 %v2796, %v2796
      %v2829 = vpack.c.bf16 %v2797, %v2797
      %v2830 = vpack.c.bf16 %v2798, %v2798
      %v2831 = vpack.c.bf16 %v2799, %v2799
      %v2832 = vpack.c.bf16 %v2800, %v2800
      %v2833 = vpack.c.bf16 %v2801, %v2801
      %v2834 = vpack.c.bf16 %v2802, %v2802
      %v2835 = vpack.c.bf16 %v2803, %v2803
      %v2836 = vpack.c.bf16 %v2804, %v2804
      %v2837 = vpack.c.bf16 %v2805, %v2805
      %v2838 = vpack.c.bf16 %v2806, %v2806
      %v2839 = vpack.c.bf16 %v2807, %v2807
      %v2840 = vpack.c.bf16 %v2808, %v2808
      %v2841 = vpack.c.bf16 %v2809, %v2809
      %v2842 = vpack.c.bf16 %v2810, %v2810
      %v2843 = vpack.c.bf16 %v2811, %v2811
      %v2844 = vpack.c.bf16 %v2812, %v2812
      %v2845 = vpack.c.bf16 %v2813, %v2813
      %v2846 = vpack.c.bf16 %v2814, %v2814
      %v2847 = vpack.c.bf16 %v2815, %v2815
      %v2848 = vpack.c.bf16 %v2816, %v2816
      %v2849 = vpack.c.bf16 %v2817, %v2817
      %v2850 = vpack.c.bf16 %v2818, %v2818
      %v2851 = vpack.c.bf16 %v2819, %v2819
      %v2852 = vpack.c.bf16 %v2820, %v2820
      %v2853 = vpack.c.bf16 %v2821, %v2821
      %v2854 = vpack.c.bf16 %v2822, %v2822
      %v2855 = vpack.c.bf16 %v2823, %v2823
      %v2856 = vpack.c.bf16 %v2824, %v2824
      %v2857 = vpack.c.bf16 %v2825, %v2825
      %2890 = vrot.lane.b32.xlu0 %v2826, 4
      %v2891 = vpop.permute.xlu0 %2890
      %2892 = vrot.lane.b32.xlu0 %v2827, 4
      %v2893 = vpop.permute.xlu0 %2892
      %2894 = vrot.lane.b32.xlu0 %v2828, 4
      %v2895 = vpop.permute.xlu0 %2894
      %2896 = vrot.lane.b32.xlu0 %v2829, 4
      %v2897 = vpop.permute.xlu0 %2896
      %2898 = vrot.lane.b32.xlu0 %v2830, 4
      %v2899 = vpop.permute.xlu0 %2898
      %2900 = vrot.lane.b32.xlu0 %v2831, 4
      %v2901 = vpop.permute.xlu0 %2900
      %2902 = vrot.lane.b32.xlu0 %v2832, 4
      %v2903 = vpop.permute.xlu0 %2902
      %2904 = vrot.lane.b32.xlu0 %v2833, 4
      %v2905 = vpop.permute.xlu0 %2904
      %2906 = vrot.lane.b32.xlu0 %v2834, 4
      %v2907 = vpop.permute.xlu0 %2906
      %2908 = vrot.lane.b32.xlu0 %v2835, 4
      %v2909 = vpop.permute.xlu0 %2908
      %2910 = vrot.lane.b32.xlu0 %v2836, 4
      %v2911 = vpop.permute.xlu0 %2910
      %2912 = vrot.lane.b32.xlu0 %v2837, 4
      %v2913 = vpop.permute.xlu0 %2912
      %2914 = vrot.lane.b32.xlu0 %v2838, 4
      %v2915 = vpop.permute.xlu0 %2914
      %2916 = vrot.lane.b32.xlu0 %v2839, 4
      %v2917 = vpop.permute.xlu0 %2916
      %2918 = vrot.lane.b32.xlu0 %v2840, 4
      %v2919 = vpop.permute.xlu0 %2918
      %2920 = vrot.lane.b32.xlu0 %v2841, 4
      %v2921 = vpop.permute.xlu0 %2920
      %2922 = vrot.lane.b32.xlu0 %v2842, 4
      %v2923 = vpop.permute.xlu0 %2922
      %2924 = vrot.lane.b32.xlu0 %v2843, 4
      %v2925 = vpop.permute.xlu0 %2924
      %2926 = vrot.lane.b32.xlu0 %v2844, 4
      %v2927 = vpop.permute.xlu0 %2926
      %2928 = vrot.lane.b32.xlu0 %v2845, 4
      %v2929 = vpop.permute.xlu0 %2928
      %2930 = vrot.lane.b32.xlu0 %v2846, 4
      %v2931 = vpop.permute.xlu0 %2930
      %2932 = vrot.lane.b32.xlu0 %v2847, 4
      %v2933 = vpop.permute.xlu0 %2932
      %2934 = vrot.lane.b32.xlu0 %v2848, 4
      %v2935 = vpop.permute.xlu0 %2934
      %2936 = vrot.lane.b32.xlu0 %v2849, 4
      %v2937 = vpop.permute.xlu0 %2936
      %2938 = vrot.lane.b32.xlu0 %v2850, 4
      %v2939 = vpop.permute.xlu0 %2938
      %2940 = vrot.lane.b32.xlu0 %v2851, 4
      %v2941 = vpop.permute.xlu0 %2940
      %2942 = vrot.lane.b32.xlu0 %v2852, 4
      %v2943 = vpop.permute.xlu0 %2942
      %2944 = vrot.lane.b32.xlu0 %v2853, 4
      %v2945 = vpop.permute.xlu0 %2944
      %2946 = vrot.lane.b32.xlu0 %v2854, 4
      %v2947 = vpop.permute.xlu0 %2946
      %2948 = vrot.lane.b32.xlu0 %v2855, 4
      %v2949 = vpop.permute.xlu0 %2948
      %2950 = vrot.lane.b32.xlu0 %v2856, 4
      %v2951 = vpop.permute.xlu0 %2950
      %2952 = vrot.lane.b32.xlu0 %v2857, 4
      %v2953 = vpop.permute.xlu0 %2952
      %vm2986 = vcmask 60448
      %2987 = vst.msk [vmem:[#allocation2] sm:$0xf] %vm2986, %v2891
      %2988 = vst.msk [vmem:[#allocation2 + $0x4] sm:$0xf] %vm2986, %v2893
      %2989 = vst.msk [vmem:[#allocation2 + $0x8] sm:$0xf] %vm2986, %v2895
      %2990 = vst.msk [vmem:[#allocation2 + $0xc] sm:$0xf] %vm2986, %v2897
      %2991 = vst.msk [vmem:[#allocation2 + $0x10] sm:$0xf] %vm2986, %v2899
      %2992 = vst.msk [vmem:[#allocation2 + $0x14] sm:$0xf] %vm2986, %v2901
      %2993 = vst.msk [vmem:[#allocation2 + $0x18] sm:$0xf] %vm2986, %v2903
      %2994 = vst.msk [vmem:[#allocation2 + $0x1c] sm:$0xf] %vm2986, %v2905
      %2995 = vst.msk [vmem:[#allocation2 + $0x20] sm:$0xf] %vm2986, %v2907
      %2996 = vst.msk [vmem:[#allocation2 + $0x24] sm:$0xf] %vm2986, %v2909
      %2997 = vst.msk [vmem:[#allocation2 + $0x28] sm:$0xf] %vm2986, %v2911
      %2998 = vst.msk [vmem:[#allocation2 + $0x2c] sm:$0xf] %vm2986, %v2913
      %2999 = vst.msk [vmem:[#allocation2 + $0x30] sm:$0xf] %vm2986, %v2915
      %3000 = vst.msk [vmem:[#allocation2 + $0x34] sm:$0xf] %vm2986, %v2917
      %3001 = vst.msk [vmem:[#allocation2 + $0x38] sm:$0xf] %vm2986, %v2919
      %3002 = vst.msk [vmem:[#allocation2 + $0x3c] sm:$0xf] %vm2986, %v2921
      %3003 = vst.msk [vmem:[#allocation2 + $0x40] sm:$0xf] %vm2986, %v2923
      %3004 = vst.msk [vmem:[#allocation2 + $0x44] sm:$0xf] %vm2986, %v2925
      %3005 = vst.msk [vmem:[#allocation2 + $0x48] sm:$0xf] %vm2986, %v2927
      %3006 = vst.msk [vmem:[#allocation2 + $0x4c] sm:$0xf] %vm2986, %v2929
      %3007 = vst.msk [vmem:[#allocation2 + $0x50] sm:$0xf] %vm2986, %v2931
      %3008 = vst.msk [vmem:[#allocation2 + $0x54] sm:$0xf] %vm2986, %v2933
      %3009 = vst.msk [vmem:[#allocation2 + $0x58] sm:$0xf] %vm2986, %v2935
      %3010 = vst.msk [vmem:[#allocation2 + $0x5c] sm:$0xf] %vm2986, %v2937
      %3011 = vst.msk [vmem:[#allocation2 + $0x60] sm:$0xf] %vm2986, %v2939
      %3012 = vst.msk [vmem:[#allocation2 + $0x64] sm:$0xf] %vm2986, %v2941
      %3013 = vst.msk [vmem:[#allocation2 + $0x68] sm:$0xf] %vm2986, %v2943
      %3014 = vst.msk [vmem:[#allocation2 + $0x6c] sm:$0xf] %vm2986, %v2945
      %3015 = vst.msk [vmem:[#allocation2 + $0x70] sm:$0xf] %vm2986, %v2947
      %3016 = vst.msk [vmem:[#allocation2 + $0x74] sm:$0xf] %vm2986, %v2949
      %3017 = vst.msk [vmem:[#allocation2 + $0x78] sm:$0xf] %vm2986, %v2951
      %3018 = vst.msk [vmem:[#allocation2 + $0x7c] sm:$0xf] %vm2986, %v2953
      %v3019 = vld [vmem:[#allocation2] sm:$0xf]
      %v3020 = vld [vmem:[#allocation2 + $0x4] sm:$0xf]
      %v3021 = vld [vmem:[#allocation2 + $0x8] sm:$0xf]
      %v3022 = vld [vmem:[#allocation2 + $0xc] sm:$0xf]
      %v3023 = vld [vmem:[#allocation2 + $0x10] sm:$0xf]
      %v3024 = vld [vmem:[#allocation2 + $0x14] sm:$0xf]
      %v3025 = vld [vmem:[#allocation2 + $0x18] sm:$0xf]
      %v3026 = vld [vmem:[#allocation2 + $0x1c] sm:$0xf]
      %v3027 = vld [vmem:[#allocation2 + $0x20] sm:$0xf]
      %v3028 = vld [vmem:[#allocation2 + $0x24] sm:$0xf]
      %v3029 = vld [vmem:[#allocation2 + $0x28] sm:$0xf]
      %v3030 = vld [vmem:[#allocation2 + $0x2c] sm:$0xf]
      %v3031 = vld [vmem:[#allocation2 + $0x30] sm:$0xf]
      %v3032 = vld [vmem:[#allocation2 + $0x34] sm:$0xf]
      %v3033 = vld [vmem:[#allocation2 + $0x38] sm:$0xf]
      %v3034 = vld [vmem:[#allocation2 + $0x3c] sm:$0xf]
      %v3035 = vld [vmem:[#allocation2 + $0x40] sm:$0xf]
      %v3036 = vld [vmem:[#allocation2 + $0x44] sm:$0xf]
      %v3037 = vld [vmem:[#allocation2 + $0x48] sm:$0xf]
      %v3038 = vld [vmem:[#allocation2 + $0x4c] sm:$0xf]
      %v3039 = vld [vmem:[#allocation2 + $0x50] sm:$0xf]
      %v3040 = vld [vmem:[#allocation2 + $0x54] sm:$0xf]
      %v3041 = vld [vmem:[#allocation2 + $0x58] sm:$0xf]
      %v3042 = vld [vmem:[#allocation2 + $0x5c] sm:$0xf]
      %v3043 = vld [vmem:[#allocation2 + $0x60] sm:$0xf]
      %v3044 = vld [vmem:[#allocation2 + $0x64] sm:$0xf]
      %v3045 = vld [vmem:[#allocation2 + $0x68] sm:$0xf]
      %v3046 = vld [vmem:[#allocation2 + $0x6c] sm:$0xf]
      %v3047 = vld [vmem:[#allocation2 + $0x70] sm:$0xf]
      %v3048 = vld [vmem:[#allocation2 + $0x74] sm:$0xf]
      %v3049 = vld [vmem:[#allocation2 + $0x78] sm:$0xf]
      %v3050 = vld [vmem:[#allocation2 + $0x7c] sm:$0xf]
      %s3051 = scalar_lea.vmem %s1, 64
      %v3052 = vld [vmem:[%s3051] sm:$0xf]
      %v3053 = vld [vmem:[%s3051 + $0x4] sm:$0xf]
      %v3054 = vld [vmem:[%s3051 + $0x8] sm:$0xf]
      %v3055 = vld [vmem:[%s3051 + $0xc] sm:$0xf]
      %v3056 = vld [vmem:[%s3051 + $0x10] sm:$0xf]
      %v3057 = vld [vmem:[%s3051 + $0x14] sm:$0xf]
      %v3058 = vld [vmem:[%s3051 + $0x18] sm:$0xf]
      %v3059 = vld [vmem:[%s3051 + $0x1c] sm:$0xf]
      %v3060 = vld [vmem:[%s3051 + $0x20] sm:$0xf]
      %v3061 = vld [vmem:[%s3051 + $0x24] sm:$0xf]
      %v3062 = vld [vmem:[%s3051 + $0x28] sm:$0xf]
      %v3063 = vld [vmem:[%s3051 + $0x2c] sm:$0xf]
      %v3064 = vld [vmem:[%s3051 + $0x30] sm:$0xf]
      %v3065 = vld [vmem:[%s3051 + $0x34] sm:$0xf]
      %v3066 = vld [vmem:[%s3051 + $0x38] sm:$0xf]
      %v3067 = vld [vmem:[%s3051 + $0x3c] sm:$0xf]
      %s3068 = scalar_lea.vmem %s3, 1
      %v3069 = vld [vmem:[%s3068] sm:$0x1]
      %v3071 = vperm.slane %v3069, 0
      %v3105 = vunpack.c.l.b16 %v3019
      %v3106 = vunpack.c.l.b16 %v3020
      %v3107 = vunpack.c.l.b16 %v3021
      %v3108 = vunpack.c.l.b16 %v3022
      %v3109 = vunpack.c.l.b16 %v3023
      %v3110 = vunpack.c.l.b16 %v3024
      %v3111 = vunpack.c.l.b16 %v3025
      %v3112 = vunpack.c.l.b16 %v3026
      %v3113 = vunpack.c.l.b16 %v3027
      %v3114 = vunpack.c.l.b16 %v3028
      %v3115 = vunpack.c.l.b16 %v3029
      %v3116 = vunpack.c.l.b16 %v3030
      %v3117 = vunpack.c.l.b16 %v3031
      %v3118 = vunpack.c.l.b16 %v3032
      %v3119 = vunpack.c.l.b16 %v3033
      %v3120 = vunpack.c.l.b16 %v3034
      %v3121 = vunpack.c.l.b16 %v3035
      %v3122 = vunpack.c.l.b16 %v3036
      %v3123 = vunpack.c.l.b16 %v3037
      %v3124 = vunpack.c.l.b16 %v3038
      %v3125 = vunpack.c.l.b16 %v3039
      %v3126 = vunpack.c.l.b16 %v3040
      %v3127 = vunpack.c.l.b16 %v3041
      %v3128 = vunpack.c.l.b16 %v3042
      %v3129 = vunpack.c.l.b16 %v3043
      %v3130 = vunpack.c.l.b16 %v3044
      %v3131 = vunpack.c.l.b16 %v3045
      %v3132 = vunpack.c.l.b16 %v3046
      %v3133 = vunpack.c.l.b16 %v3047
      %v3134 = vunpack.c.l.b16 %v3048
      %v3135 = vunpack.c.l.b16 %v3049
      %v3136 = vunpack.c.l.b16 %v3050
      %v3137 = vpack.c.b16 %v3106, %v3105
      %v3138 = vpack.c.b16 %v3108, %v3107
      %v3139 = vpack.c.b16 %v3110, %v3109
      %v3140 = vpack.c.b16 %v3112, %v3111
      %v3141 = vpack.c.b16 %v3114, %v3113
      %v3142 = vpack.c.b16 %v3116, %v3115
      %v3143 = vpack.c.b16 %v3118, %v3117
      %v3144 = vpack.c.b16 %v3120, %v3119
      %v3145 = vpack.c.b16 %v3122, %v3121
      %v3146 = vpack.c.b16 %v3124, %v3123
      %v3147 = vpack.c.b16 %v3126, %v3125
      %v3148 = vpack.c.b16 %v3128, %v3127
      %v3149 = vpack.c.b16 %v3130, %v3129
      %v3150 = vpack.c.b16 %v3132, %v3131
      %v3151 = vpack.c.b16 %v3134, %v3133
      %v3152 = vpack.c.b16 %v3136, %v3135
      %v3185 = vunpack.c.l.b16 %v3052
      %v3186 = vunpack.c.l.b16 %v3053
      %v3187 = vunpack.c.l.b16 %v3054
      %v3188 = vunpack.c.l.b16 %v3055
      %v3189 = vunpack.c.l.b16 %v3056
      %v3190 = vunpack.c.l.b16 %v3057
      %v3191 = vunpack.c.l.b16 %v3058
      %v3192 = vunpack.c.l.b16 %v3059
      %v3193 = vunpack.c.l.b16 %v3060
      %v3194 = vunpack.c.l.b16 %v3061
      %v3195 = vunpack.c.l.b16 %v3062
      %v3196 = vunpack.c.l.b16 %v3063
      %v3197 = vunpack.c.l.b16 %v3064
      %v3198 = vunpack.c.l.b16 %v3065
      %v3199 = vunpack.c.l.b16 %v3066
      %v3200 = vunpack.c.l.b16 %v3067
      %v3201 = vpack.c.b16 %v3186, %v3185
      %v3202 = vpack.c.b16 %v3188, %v3187
      %v3203 = vpack.c.b16 %v3190, %v3189
      %v3204 = vpack.c.b16 %v3192, %v3191
      %v3205 = vpack.c.b16 %v3194, %v3193
      %v3206 = vpack.c.b16 %v3196, %v3195
      %v3207 = vpack.c.b16 %v3198, %v3197
      %v3208 = vpack.c.b16 %v3200, %v3199
      %3217 = vmatpush.bf16.msra.mxu0 %v3208
      %3218 = vmatpush.bf16.msra.mxu0 %v3207
      %3219 = vmatpush.bf16.msra.mxu0 %v3206
      %3220 = vmatpush.bf16.msra.mxu0 %v3205
      %3221 = vmatpush.bf16.msra.mxu0 %v3204
      %3222 = vmatpush.bf16.msra.mxu0 %v3203
      %3223 = vmatpush.bf16.msra.mxu0 %v3202
      %3224 = vmatpush.bf16.msra.mxu0 %v3201
      %3225 = vmatmul.bf16.gmra.mxu0 %v3137
      %v3226 = vpop.f32.mrf.mxu0
      %v3227 = vadd.f32 %v3071, %v3226
      %v3228 = vpop.f32.mrf.mxu0
      %v3229 = vadd.f32 %v3071, %v3228
      %3230 = vmatmul.bf16.gmra.mxu0 %v3138
      %v3231 = vpop.f32.mrf.mxu0
      %v3232 = vadd.f32 %v3071, %v3231
      %v3233 = vpop.f32.mrf.mxu0
      %v3234 = vadd.f32 %v3071, %v3233
      %3235 = vmatmul.bf16.gmra.mxu0 %v3139
      %v3236 = vpop.f32.mrf.mxu0
      %v3237 = vadd.f32 %v3071, %v3236
      %v3238 = vpop.f32.mrf.mxu0
      %v3239 = vadd.f32 %v3071, %v3238
      %3240 = vmatmul.bf16.gmra.mxu0 %v3140
      %v3241 = vpop.f32.mrf.mxu0
      %v3242 = vadd.f32 %v3071, %v3241
      %v3243 = vpop.f32.mrf.mxu0
      %v3244 = vadd.f32 %v3071, %v3243
      %3245 = vmatmul.bf16.gmra.mxu0 %v3141
      %v3246 = vpop.f32.mrf.mxu0
      %v3247 = vadd.f32 %v3071, %v3246
      %v3248 = vpop.f32.mrf.mxu0
      %v3249 = vadd.f32 %v3071, %v3248
      %3250 = vmatmul.bf16.gmra.mxu0 %v3142
      %v3251 = vpop.f32.mrf.mxu0
      %v3252 = vadd.f32 %v3071, %v3251
      %v3253 = vpop.f32.mrf.mxu0
      %v3254 = vadd.f32 %v3071, %v3253
      %3255 = vmatmul.bf16.gmra.mxu0 %v3143
      %v3256 = vpop.f32.mrf.mxu0
      %v3257 = vadd.f32 %v3071, %v3256
      %v3258 = vpop.f32.mrf.mxu0
      %v3259 = vadd.f32 %v3071, %v3258
      %3260 = vmatmul.bf16.gmra.mxu0 %v3144
      %v3261 = vpop.f32.mrf.mxu0
      %v3262 = vadd.f32 %v3071, %v3261
      %v3263 = vpop.f32.mrf.mxu0
      %v3264 = vadd.f32 %v3071, %v3263
      %3265 = vmatmul.bf16.gmra.mxu0 %v3145
      %v3266 = vpop.f32.mrf.mxu0
      %v3267 = vadd.f32 %v3071, %v3266
      %v3268 = vpop.f32.mrf.mxu0
      %v3269 = vadd.f32 %v3071, %v3268
      %3270 = vmatmul.bf16.gmra.mxu0 %v3146
      %v3271 = vpop.f32.mrf.mxu0
      %v3272 = vadd.f32 %v3071, %v3271
      %v3273 = vpop.f32.mrf.mxu0
      %v3274 = vadd.f32 %v3071, %v3273
      %3275 = vmatmul.bf16.gmra.mxu0 %v3147
      %v3276 = vpop.f32.mrf.mxu0
      %v3277 = vadd.f32 %v3071, %v3276
      %v3278 = vpop.f32.mrf.mxu0
      %v3279 = vadd.f32 %v3071, %v3278
      %3280 = vmatmul.bf16.gmra.mxu0 %v3148
      %v3281 = vpop.f32.mrf.mxu0
      %v3282 = vadd.f32 %v3071, %v3281
      %v3283 = vpop.f32.mrf.mxu0
      %v3284 = vadd.f32 %v3071, %v3283
      %3285 = vmatmul.bf16.gmra.mxu0 %v3149
      %v3286 = vpop.f32.mrf.mxu0
      %v3287 = vadd.f32 %v3071, %v3286
      %v3288 = vpop.f32.mrf.mxu0
      %v3289 = vadd.f32 %v3071, %v3288
      %3290 = vmatmul.bf16.gmra.mxu0 %v3150
      %v3291 = vpop.f32.mrf.mxu0
      %v3292 = vadd.f32 %v3071, %v3291
      %v3293 = vpop.f32.mrf.mxu0
      %v3294 = vadd.f32 %v3071, %v3293
      %3295 = vmatmul.bf16.gmra.mxu0 %v3151
      %v3296 = vpop.f32.mrf.mxu0
      %v3297 = vadd.f32 %v3071, %v3296
      %v3298 = vpop.f32.mrf.mxu0
      %v3299 = vadd.f32 %v3071, %v3298
      %3300 = vmatmul.bf16.gmra.mxu0 %v3152
      %v3301 = vpop.f32.mrf.mxu0
      %v3302 = vadd.f32 %v3071, %v3301
      %v3303 = vpop.f32.mrf.mxu0
      %v3304 = vadd.f32 %v3071, %v3303
      %3305 = vdwg.mxu0
      %v3306 = vmax.f32 %v3227, 0.0
      %v3307 = vmax.f32 %v3229, 0.0
      %v3308 = vmax.f32 %v3232, 0.0
      %v3309 = vmax.f32 %v3234, 0.0
      %v3310 = vmax.f32 %v3237, 0.0
      %v3311 = vmax.f32 %v3239, 0.0
      %v3312 = vmax.f32 %v3242, 0.0
      %v3313 = vmax.f32 %v3244, 0.0
      %v3314 = vmax.f32 %v3247, 0.0
      %v3315 = vmax.f32 %v3249, 0.0
      %v3316 = vmax.f32 %v3252, 0.0
      %v3317 = vmax.f32 %v3254, 0.0
      %v3318 = vmax.f32 %v3257, 0.0
      %v3319 = vmax.f32 %v3259, 0.0
      %v3320 = vmax.f32 %v3262, 0.0
      %v3321 = vmax.f32 %v3264, 0.0
      %v3322 = vmax.f32 %v3267, 0.0
      %v3323 = vmax.f32 %v3269, 0.0
      %v3324 = vmax.f32 %v3272, 0.0
      %v3325 = vmax.f32 %v3274, 0.0
      %v3326 = vmax.f32 %v3277, 0.0
      %v3327 = vmax.f32 %v3279, 0.0
      %v3328 = vmax.f32 %v3282, 0.0
      %v3329 = vmax.f32 %v3284, 0.0
      %v3330 = vmax.f32 %v3287, 0.0
      %v3331 = vmax.f32 %v3289, 0.0
      %v3332 = vmax.f32 %v3292, 0.0
      %v3333 = vmax.f32 %v3294, 0.0
      %v3334 = vmax.f32 %v3297, 0.0
      %v3335 = vmax.f32 %v3299, 0.0
      %v3336 = vmax.f32 %v3302, 0.0
      %v3337 = vmax.f32 %v3304, 0.0
      %3338 = vst [vmem:[%s683 + $0x1] sm:$0xff] %v3306
      %3339 = vst [vmem:[%s683 + $0x9] sm:$0xff] %v3307
      %3340 = vst [vmem:[%s683 + $0x19] sm:$0xff] %v3308
      %3341 = vst [vmem:[%s683 + $0x21] sm:$0xff] %v3309
      %3342 = vst [vmem:[%s683 + $0x31] sm:$0xff] %v3310
      %3343 = vst [vmem:[%s683 + $0x39] sm:$0xff] %v3311
      %3344 = vst [vmem:[%s683 + $0x49] sm:$0xff] %v3312
      %3345 = vst [vmem:[%s683 + $0x51] sm:$0xff] %v3313
      %3346 = vst [vmem:[%s683 + $0x61] sm:$0xff] %v3314
      %3347 = vst [vmem:[%s683 + $0x69] sm:$0xff] %v3315
      %3348 = vst [vmem:[%s683 + $0x79] sm:$0xff] %v3316
      %3349 = vst [vmem:[%s683 + $0x81] sm:$0xff] %v3317
      %3350 = vst [vmem:[%s683 + $0x91] sm:$0xff] %v3318
      %3351 = vst [vmem:[%s683 + $0x99] sm:$0xff] %v3319
      %3352 = vst [vmem:[%s683 + $0xa9] sm:$0xff] %v3320
      %3353 = vst [vmem:[%s683 + $0xb1] sm:$0xff] %v3321
      %3354 = vst [vmem:[%s683 + $0xc1] sm:$0xff] %v3322
      %3355 = vst [vmem:[%s683 + $0xc9] sm:$0xff] %v3323
      %3356 = vst [vmem:[%s683 + $0xd9] sm:$0xff] %v3324
      %3357 = vst [vmem:[%s683 + $0xe1] sm:$0xff] %v3325
      %3358 = vst [vmem:[%s683 + $0xf1] sm:$0xff] %v3326
      %3359 = vst [vmem:[%s683 + $0xf9] sm:$0xff] %v3327
      %3360 = vst [vmem:[%s683 + $0x109] sm:$0xff] %v3328
      %3361 = vst [vmem:[%s683 + $0x111] sm:$0xff] %v3329
      %3362 = vst [vmem:[%s683 + $0x121] sm:$0xff] %v3330
      %3363 = vst [vmem:[%s683 + $0x129] sm:$0xff] %v3331
      %3364 = vst [vmem:[%s683 + $0x139] sm:$0xff] %v3332
      %3365 = vst [vmem:[%s683 + $0x141] sm:$0xff] %v3333
      %3366 = vst [vmem:[%s683 + $0x151] sm:$0xff] %v3334
      %3367 = vst [vmem:[%s683 + $0x159] sm:$0xff] %v3335
      %3368 = vst [vmem:[%s683 + $0x169] sm:$0xff] %v3336
      %3369 = vst [vmem:[%s683 + $0x171] sm:$0xff] %v3337
      %v3370 = vld [vmem:[#allocation3] sm:$0xff]
      %v3371 = vld [vmem:[#allocation3 + $0x8] sm:$0xff]
      %v3372 = vld [vmem:[#allocation3 + $0x18] sm:$0xff]
      %v3373 = vld [vmem:[#allocation3 + $0x20] sm:$0xff]
      %v3374 = vld [vmem:[#allocation3 + $0x30] sm:$0xff]
      %v3375 = vld [vmem:[#allocation3 + $0x38] sm:$0xff]
      %v3376 = vld [vmem:[#allocation3 + $0x48] sm:$0xff]
      %v3377 = vld [vmem:[#allocation3 + $0x50] sm:$0xff]
      %v3378 = vld [vmem:[#allocation3 + $0x60] sm:$0xff]
      %v3379 = vld [vmem:[#allocation3 + $0x68] sm:$0xff]
      %v3380 = vld [vmem:[#allocation3 + $0x78] sm:$0xff]
      %v3381 = vld [vmem:[#allocation3 + $0x80] sm:$0xff]
      %v3382 = vld [vmem:[#allocation3 + $0x90] sm:$0xff]
      %v3383 = vld [vmem:[#allocation3 + $0x98] sm:$0xff]
      %v3384 = vld [vmem:[#allocation3 + $0xa8] sm:$0xff]
      %v3385 = vld [vmem:[#allocation3 + $0xb0] sm:$0xff]
      %v3386 = vld [vmem:[#allocation3 + $0xc0] sm:$0xff]
      %v3387 = vld [vmem:[#allocation3 + $0xc8] sm:$0xff]
      %v3388 = vld [vmem:[#allocation3 + $0xd8] sm:$0xff]
      %v3389 = vld [vmem:[#allocation3 + $0xe0] sm:$0xff]
      %v3390 = vld [vmem:[#allocation3 + $0xf0] sm:$0xff]
      %v3391 = vld [vmem:[#allocation3 + $0xf8] sm:$0xff]
      %v3392 = vld [vmem:[#allocation3 + $0x108] sm:$0xff]
      %v3393 = vld [vmem:[#allocation3 + $0x110] sm:$0xff]
      %v3394 = vld [vmem:[#allocation3 + $0x120] sm:$0xff]
      %v3395 = vld [vmem:[#allocation3 + $0x128] sm:$0xff]
      %v3396 = vld [vmem:[#allocation3 + $0x138] sm:$0xff]
      %v3397 = vld [vmem:[#allocation3 + $0x140] sm:$0xff]
      %v3398 = vld [vmem:[#allocation3 + $0x150] sm:$0xff]
      %v3399 = vld [vmem:[#allocation3 + $0x158] sm:$0xff]
      %v3400 = vld [vmem:[#allocation3 + $0x168] sm:$0xff]
      %v3401 = vld [vmem:[#allocation3 + $0x170] sm:$0xff]
      %v3402 = vpack.c.bf16 %v3371, %v3370
      %v3403 = vpack.c.bf16 %v3373, %v3372
      %v3404 = vpack.c.bf16 %v3375, %v3374
      %v3405 = vpack.c.bf16 %v3377, %v3376
      %v3406 = vpack.c.bf16 %v3379, %v3378
      %v3407 = vpack.c.bf16 %v3381, %v3380
      %v3408 = vpack.c.bf16 %v3383, %v3382
      %v3409 = vpack.c.bf16 %v3385, %v3384
      %v3410 = vpack.c.bf16 %v3387, %v3386
      %v3411 = vpack.c.bf16 %v3389, %v3388
      %v3412 = vpack.c.bf16 %v3391, %v3390
      %v3413 = vpack.c.bf16 %v3393, %v3392
      %v3414 = vpack.c.bf16 %v3395, %v3394
      %v3415 = vpack.c.bf16 %v3397, %v3396
      %v3416 = vpack.c.bf16 %v3399, %v3398
      %v3417 = vpack.c.bf16 %v3401, %v3400
      %s3418 = scalar_lea.vmem %s2, 576
      %v3419 = vld [vmem:[%s3418] sm:$0xf]
      %v3420 = vld [vmem:[%s3418 + $0x4] sm:$0xf]
      %v3421 = vld [vmem:[%s3418 + $0x8] sm:$0xf]
      %v3422 = vld [vmem:[%s3418 + $0xc] sm:$0xf]
      %v3423 = vld [vmem:[%s3418 + $0x10] sm:$0xf]
      %v3424 = vld [vmem:[%s3418 + $0x14] sm:$0xf]
      %v3425 = vld [vmem:[%s3418 + $0x18] sm:$0xf]
      %v3426 = vld [vmem:[%s3418 + $0x1c] sm:$0xf]
      %v3427 = vld [vmem:[%s3418 + $0x20] sm:$0xf]
      %v3428 = vld [vmem:[%s3418 + $0x24] sm:$0xf]
      %v3429 = vld [vmem:[%s3418 + $0x28] sm:$0xf]
      %v3430 = vld [vmem:[%s3418 + $0x2c] sm:$0xf]
      %v3431 = vld [vmem:[%s3418 + $0x30] sm:$0xf]
      %v3432 = vld [vmem:[%s3418 + $0x34] sm:$0xf]
      %v3433 = vld [vmem:[%s3418 + $0x38] sm:$0xf]
      %v3434 = vld [vmem:[%s3418 + $0x3c] sm:$0xf]
      %v3435 = vld [vmem:[#allocation3 + $0x1] sm:$0xff]
      %v3436 = vld [vmem:[#allocation3 + $0x9] sm:$0xff]
      %v3437 = vld [vmem:[#allocation3 + $0x19] sm:$0xff]
      %v3438 = vld [vmem:[#allocation3 + $0x21] sm:$0xff]
      %v3439 = vld [vmem:[#allocation3 + $0x31] sm:$0xff]
      %v3440 = vld [vmem:[#allocation3 + $0x39] sm:$0xff]
      %v3441 = vld [vmem:[#allocation3 + $0x49] sm:$0xff]
      %v3442 = vld [vmem:[#allocation3 + $0x51] sm:$0xff]
      %v3443 = vld [vmem:[#allocation3 + $0x61] sm:$0xff]
      %v3444 = vld [vmem:[#allocation3 + $0x69] sm:$0xff]
      %v3445 = vld [vmem:[#allocation3 + $0x79] sm:$0xff]
      %v3446 = vld [vmem:[#allocation3 + $0x81] sm:$0xff]
      %v3447 = vld [vmem:[#allocation3 + $0x91] sm:$0xff]
      %v3448 = vld [vmem:[#allocation3 + $0x99] sm:$0xff]
      %v3449 = vld [vmem:[#allocation3 + $0xa9] sm:$0xff]
      %v3450 = vld [vmem:[#allocation3 + $0xb1] sm:$0xff]
      %v3451 = vld [vmem:[#allocation3 + $0xc1] sm:$0xff]
      %v3452 = vld [vmem:[#allocation3 + $0xc9] sm:$0xff]
      %v3453 = vld [vmem:[#allocation3 + $0xd9] sm:$0xff]
      %v3454 = vld [vmem:[#allocation3 + $0xe1] sm:$0xff]
      %v3455 = vld [vmem:[#allocation3 + $0xf1] sm:$0xff]
      %v3456 = vld [vmem:[#allocation3 + $0xf9] sm:$0xff]
      %v3457 = vld [vmem:[#allocation3 + $0x109] sm:$0xff]
      %v3458 = vld [vmem:[#allocation3 + $0x111] sm:$0xff]
      %v3459 = vld [vmem:[#allocation3 + $0x121] sm:$0xff]
      %v3460 = vld [vmem:[#allocation3 + $0x129] sm:$0xff]
      %v3461 = vld [vmem:[#allocation3 + $0x139] sm:$0xff]
      %v3462 = vld [vmem:[#allocation3 + $0x141] sm:$0xff]
      %v3463 = vld [vmem:[#allocation3 + $0x151] sm:$0xff]
      %v3464 = vld [vmem:[#allocation3 + $0x159] sm:$0xff]
      %v3465 = vld [vmem:[#allocation3 + $0x169] sm:$0xff]
      %v3466 = vld [vmem:[#allocation3 + $0x171] sm:$0xff]
      %v3467 = vpack.c.bf16 %v3436, %v3435
      %v3468 = vpack.c.bf16 %v3438, %v3437
      %v3469 = vpack.c.bf16 %v3440, %v3439
      %v3470 = vpack.c.bf16 %v3442, %v3441
      %v3471 = vpack.c.bf16 %v3444, %v3443
      %v3472 = vpack.c.bf16 %v3446, %v3445
      %v3473 = vpack.c.bf16 %v3448, %v3447
      %v3474 = vpack.c.bf16 %v3450, %v3449
      %v3475 = vpack.c.bf16 %v3452, %v3451
      %v3476 = vpack.c.bf16 %v3454, %v3453
      %v3477 = vpack.c.bf16 %v3456, %v3455
      %v3478 = vpack.c.bf16 %v3458, %v3457
      %v3479 = vpack.c.bf16 %v3460, %v3459
      %v3480 = vpack.c.bf16 %v3462, %v3461
      %v3481 = vpack.c.bf16 %v3464, %v3463
      %v3482 = vpack.c.bf16 %v3466, %v3465
      %s3483 = scalar_lea.vmem %s2, 640
      %v3484 = vld [vmem:[%s3483] sm:$0xf]
      %v3485 = vld [vmem:[%s3483 + $0x4] sm:$0xf]
      %v3486 = vld [vmem:[%s3483 + $0x8] sm:$0xf]
      %v3487 = vld [vmem:[%s3483 + $0xc] sm:$0xf]
      %v3488 = vld [vmem:[%s3483 + $0x10] sm:$0xf]
      %v3489 = vld [vmem:[%s3483 + $0x14] sm:$0xf]
      %v3490 = vld [vmem:[%s3483 + $0x18] sm:$0xf]
      %v3491 = vld [vmem:[%s3483 + $0x1c] sm:$0xf]
      %v3492 = vld [vmem:[%s3483 + $0x20] sm:$0xf]
      %v3493 = vld [vmem:[%s3483 + $0x24] sm:$0xf]
      %v3494 = vld [vmem:[%s3483 + $0x28] sm:$0xf]
      %v3495 = vld [vmem:[%s3483 + $0x2c] sm:$0xf]
      %v3496 = vld [vmem:[%s3483 + $0x30] sm:$0xf]
      %v3497 = vld [vmem:[%s3483 + $0x34] sm:$0xf]
      %v3498 = vld [vmem:[%s3483 + $0x38] sm:$0xf]
      %v3499 = vld [vmem:[%s3483 + $0x3c] sm:$0xf]
      %v3516 = vunpack.c.l.b16 %v3484
      %v3517 = vunpack.c.l.b16 %v3485
      %v3518 = vunpack.c.l.b16 %v3486
      %v3519 = vunpack.c.l.b16 %v3487
      %v3520 = vunpack.c.l.b16 %v3488
      %v3521 = vunpack.c.l.b16 %v3489
      %v3522 = vunpack.c.l.b16 %v3490
      %v3523 = vunpack.c.l.b16 %v3491
      %v3524 = vunpack.c.l.b16 %v3492
      %v3525 = vunpack.c.l.b16 %v3493
      %v3526 = vunpack.c.l.b16 %v3494
      %v3527 = vunpack.c.l.b16 %v3495
      %v3528 = vunpack.c.l.b16 %v3496
      %v3529 = vunpack.c.l.b16 %v3497
      %v3530 = vunpack.c.l.b16 %v3498
      %v3531 = vunpack.c.l.b16 %v3499
      %v3532 = vpack.c.b16 %v3517, %v3516
      %v3533 = vpack.c.b16 %v3519, %v3518
      %v3534 = vpack.c.b16 %v3521, %v3520
      %v3535 = vpack.c.b16 %v3523, %v3522
      %v3536 = vpack.c.b16 %v3525, %v3524
      %v3537 = vpack.c.b16 %v3527, %v3526
      %v3538 = vpack.c.b16 %v3529, %v3528
      %v3539 = vpack.c.b16 %v3531, %v3530
      %3548 = vmatpush.bf16.msra.mxu0 %v3539
      %3549 = vmatpush.bf16.msra.mxu0 %v3538
      %3550 = vmatpush.bf16.msra.mxu0 %v3537
      %3551 = vmatpush.bf16.msra.mxu0 %v3536
      %3552 = vmatpush.bf16.msra.mxu0 %v3535
      %3553 = vmatpush.bf16.msra.mxu0 %v3534
      %3554 = vmatpush.bf16.msra.mxu0 %v3533
      %3555 = vmatpush.bf16.msra.mxu0 %v3532
      %3556 = vmatmul.bf16.gmra.mxu0 %v3467
      %v3557 = vpop.f32.mrf.mxu0
      %v3558 = vadd.f32 0.0, %v3557
      %v3559 = vpop.f32.mrf.mxu0
      %v3560 = vadd.f32 0.0, %v3559
      %3561 = vmatmul.bf16.gmra.mxu0 %v3468
      %v3562 = vpop.f32.mrf.mxu0
      %v3563 = vadd.f32 0.0, %v3562
      %v3564 = vpop.f32.mrf.mxu0
      %v3565 = vadd.f32 0.0, %v3564
      %3566 = vmatmul.bf16.gmra.mxu0 %v3469
      %v3567 = vpop.f32.mrf.mxu0
      %v3568 = vadd.f32 0.0, %v3567
      %v3569 = vpop.f32.mrf.mxu0
      %v3570 = vadd.f32 0.0, %v3569
      %3571 = vmatmul.bf16.gmra.mxu0 %v3470
      %v3572 = vpop.f32.mrf.mxu0
      %v3573 = vadd.f32 0.0, %v3572
      %v3574 = vpop.f32.mrf.mxu0
      %v3575 = vadd.f32 0.0, %v3574
      %3576 = vmatmul.bf16.gmra.mxu0 %v3471
      %v3577 = vpop.f32.mrf.mxu0
      %v3578 = vadd.f32 0.0, %v3577
      %v3579 = vpop.f32.mrf.mxu0
      %v3580 = vadd.f32 0.0, %v3579
      %3581 = vmatmul.bf16.gmra.mxu0 %v3472
      %v3582 = vpop.f32.mrf.mxu0
      %v3583 = vadd.f32 0.0, %v3582
      %v3584 = vpop.f32.mrf.mxu0
      %v3585 = vadd.f32 0.0, %v3584
      %3586 = vmatmul.bf16.gmra.mxu0 %v3473
      %v3587 = vpop.f32.mrf.mxu0
      %v3588 = vadd.f32 0.0, %v3587
      %v3589 = vpop.f32.mrf.mxu0
      %v3590 = vadd.f32 0.0, %v3589
      %3591 = vmatmul.bf16.gmra.mxu0 %v3474
      %v3592 = vpop.f32.mrf.mxu0
      %v3593 = vadd.f32 0.0, %v3592
      %v3594 = vpop.f32.mrf.mxu0
      %v3595 = vadd.f32 0.0, %v3594
      %3596 = vmatmul.bf16.gmra.mxu0 %v3475
      %v3597 = vpop.f32.mrf.mxu0
      %v3598 = vadd.f32 0.0, %v3597
      %v3599 = vpop.f32.mrf.mxu0
      %v3600 = vadd.f32 0.0, %v3599
      %3601 = vmatmul.bf16.gmra.mxu0 %v3476
      %v3602 = vpop.f32.mrf.mxu0
      %v3603 = vadd.f32 0.0, %v3602
      %v3604 = vpop.f32.mrf.mxu0
      %v3605 = vadd.f32 0.0, %v3604
      %3606 = vmatmul.bf16.gmra.mxu0 %v3477
      %v3607 = vpop.f32.mrf.mxu0
      %v3608 = vadd.f32 0.0, %v3607
      %v3609 = vpop.f32.mrf.mxu0
      %v3610 = vadd.f32 0.0, %v3609
      %3611 = vmatmul.bf16.gmra.mxu0 %v3478
      %v3612 = vpop.f32.mrf.mxu0
      %v3613 = vadd.f32 0.0, %v3612
      %v3614 = vpop.f32.mrf.mxu0
      %v3615 = vadd.f32 0.0, %v3614
      %3616 = vmatmul.bf16.gmra.mxu0 %v3479
      %v3617 = vpop.f32.mrf.mxu0
      %v3618 = vadd.f32 0.0, %v3617
      %v3619 = vpop.f32.mrf.mxu0
      %v3620 = vadd.f32 0.0, %v3619
      %3621 = vmatmul.bf16.gmra.mxu0 %v3480
      %v3622 = vpop.f32.mrf.mxu0
      %v3623 = vadd.f32 0.0, %v3622
      %v3624 = vpop.f32.mrf.mxu0
      %v3625 = vadd.f32 0.0, %v3624
      %3626 = vmatmul.bf16.gmra.mxu0 %v3481
      %v3627 = vpop.f32.mrf.mxu0
      %v3628 = vadd.f32 0.0, %v3627
      %v3629 = vpop.f32.mrf.mxu0
      %v3630 = vadd.f32 0.0, %v3629
      %3631 = vmatmul.bf16.gmra.mxu0 %v3482
      %v3632 = vpop.f32.mrf.mxu0
      %v3633 = vadd.f32 0.0, %v3632
      %v3634 = vpop.f32.mrf.mxu0
      %v3635 = vadd.f32 0.0, %v3634
      %3636 = vdwg.mxu0
      %v3653 = vunpack.c.l.b16 %v3419
      %v3654 = vunpack.c.l.b16 %v3420
      %v3655 = vunpack.c.l.b16 %v3421
      %v3656 = vunpack.c.l.b16 %v3422
      %v3657 = vunpack.c.l.b16 %v3423
      %v3658 = vunpack.c.l.b16 %v3424
      %v3659 = vunpack.c.l.b16 %v3425
      %v3660 = vunpack.c.l.b16 %v3426
      %v3661 = vunpack.c.l.b16 %v3427
      %v3662 = vunpack.c.l.b16 %v3428
      %v3663 = vunpack.c.l.b16 %v3429
      %v3664 = vunpack.c.l.b16 %v3430
      %v3665 = vunpack.c.l.b16 %v3431
      %v3666 = vunpack.c.l.b16 %v3432
      %v3667 = vunpack.c.l.b16 %v3433
      %v3668 = vunpack.c.l.b16 %v3434
      %v3669 = vpack.c.b16 %v3654, %v3653
      %v3670 = vpack.c.b16 %v3656, %v3655
      %v3671 = vpack.c.b16 %v3658, %v3657
      %v3672 = vpack.c.b16 %v3660, %v3659
      %v3673 = vpack.c.b16 %v3662, %v3661
      %v3674 = vpack.c.b16 %v3664, %v3663
      %v3675 = vpack.c.b16 %v3666, %v3665
      %v3676 = vpack.c.b16 %v3668, %v3667
      %3685 = vmatpush.bf16.msra.mxu0 %v3676
      %3686 = vmatpush.bf16.msra.mxu0 %v3675
      %3687 = vmatpush.bf16.msra.mxu0 %v3674
      %3688 = vmatpush.bf16.msra.mxu0 %v3673
      %3689 = vmatpush.bf16.msra.mxu0 %v3672
      %3690 = vmatpush.bf16.msra.mxu0 %v3671
      %3691 = vmatpush.bf16.msra.mxu0 %v3670
      %3692 = vmatpush.bf16.msra.mxu0 %v3669
      %3693 = vmatmul.bf16.gmra.mxu0 %v3402
      %v3694 = vpop.f32.mrf.mxu0
      %v3695 = vadd.f32 %v3558, %v3694
      %v3696 = vpop.f32.mrf.mxu0
      %v3697 = vadd.f32 %v3560, %v3696
      %3698 = vmatmul.bf16.gmra.mxu0 %v3403
      %v3699 = vpop.f32.mrf.mxu0
      %v3700 = vadd.f32 %v3563, %v3699
      %v3701 = vpop.f32.mrf.mxu0
      %v3702 = vadd.f32 %v3565, %v3701
      %3703 = vmatmul.bf16.gmra.mxu0 %v3404
      %v3704 = vpop.f32.mrf.mxu0
      %v3705 = vadd.f32 %v3568, %v3704
      %v3706 = vpop.f32.mrf.mxu0
      %v3707 = vadd.f32 %v3570, %v3706
      %3708 = vmatmul.bf16.gmra.mxu0 %v3405
      %v3709 = vpop.f32.mrf.mxu0
      %v3710 = vadd.f32 %v3573, %v3709
      %v3711 = vpop.f32.mrf.mxu0
      %v3712 = vadd.f32 %v3575, %v3711
      %3713 = vmatmul.bf16.gmra.mxu0 %v3406
      %v3714 = vpop.f32.mrf.mxu0
      %v3715 = vadd.f32 %v3578, %v3714
      %v3716 = vpop.f32.mrf.mxu0
      %v3717 = vadd.f32 %v3580, %v3716
      %3718 = vmatmul.bf16.gmra.mxu0 %v3407
      %v3719 = vpop.f32.mrf.mxu0
      %v3720 = vadd.f32 %v3583, %v3719
      %v3721 = vpop.f32.mrf.mxu0
      %v3722 = vadd.f32 %v3585, %v3721
      %3723 = vmatmul.bf16.gmra.mxu0 %v3408
      %v3724 = vpop.f32.mrf.mxu0
      %v3725 = vadd.f32 %v3588, %v3724
      %v3726 = vpop.f32.mrf.mxu0
      %v3727 = vadd.f32 %v3590, %v3726
      %3728 = vmatmul.bf16.gmra.mxu0 %v3409
      %v3729 = vpop.f32.mrf.mxu0
      %v3730 = vadd.f32 %v3593, %v3729
      %v3731 = vpop.f32.mrf.mxu0
      %v3732 = vadd.f32 %v3595, %v3731
      %3733 = vmatmul.bf16.gmra.mxu0 %v3410
      %v3734 = vpop.f32.mrf.mxu0
      %v3735 = vadd.f32 %v3598, %v3734
      %v3736 = vpop.f32.mrf.mxu0
      %v3737 = vadd.f32 %v3600, %v3736
      %3738 = vmatmul.bf16.gmra.mxu0 %v3411
      %v3739 = vpop.f32.mrf.mxu0
      %v3740 = vadd.f32 %v3603, %v3739
      %v3741 = vpop.f32.mrf.mxu0
      %v3742 = vadd.f32 %v3605, %v3741
      %3743 = vmatmul.bf16.gmra.mxu0 %v3412
      %v3744 = vpop.f32.mrf.mxu0
      %v3745 = vadd.f32 %v3608, %v3744
      %v3746 = vpop.f32.mrf.mxu0
      %v3747 = vadd.f32 %v3610, %v3746
      %3748 = vmatmul.bf16.gmra.mxu0 %v3413
      %v3749 = vpop.f32.mrf.mxu0
      %v3750 = vadd.f32 %v3613, %v3749
      %v3751 = vpop.f32.mrf.mxu0
      %v3752 = vadd.f32 %v3615, %v3751
      %3753 = vmatmul.bf16.gmra.mxu0 %v3414
      %v3754 = vpop.f32.mrf.mxu0
      %v3755 = vadd.f32 %v3618, %v3754
      %v3756 = vpop.f32.mrf.mxu0
      %v3757 = vadd.f32 %v3620, %v3756
      %3758 = vmatmul.bf16.gmra.mxu0 %v3415
      %v3759 = vpop.f32.mrf.mxu0
      %v3760 = vadd.f32 %v3623, %v3759
      %v3761 = vpop.f32.mrf.mxu0
      %v3762 = vadd.f32 %v3625, %v3761
      %3763 = vmatmul.bf16.gmra.mxu0 %v3416
      %v3764 = vpop.f32.mrf.mxu0
      %v3765 = vadd.f32 %v3628, %v3764
      %v3766 = vpop.f32.mrf.mxu0
      %v3767 = vadd.f32 %v3630, %v3766
      %3768 = vmatmul.bf16.gmra.mxu0 %v3417
      %v3769 = vpop.f32.mrf.mxu0
      %v3770 = vadd.f32 %v3633, %v3769
      %v3771 = vpop.f32.mrf.mxu0
      %v3772 = vadd.f32 %v3635, %v3771
      %3773 = vdwg.mxu0
      %v3774 = vld [vmem:[#allocation3 + $0x2] sm:$0xff]
      %v3775 = vld [vmem:[#allocation3 + $0xa] sm:$0xff]
      %v3776 = vld [vmem:[#allocation3 + $0x1a] sm:$0xff]
      %v3777 = vld [vmem:[#allocation3 + $0x22] sm:$0xff]
      %v3778 = vld [vmem:[#allocation3 + $0x32] sm:$0xff]
      %v3779 = vld [vmem:[#allocation3 + $0x3a] sm:$0xff]
      %v3780 = vld [vmem:[#allocation3 + $0x4a] sm:$0xff]
      %v3781 = vld [vmem:[#allocation3 + $0x52] sm:$0xff]
      %v3782 = vld [vmem:[#allocation3 + $0x62] sm:$0xff]
      %v3783 = vld [vmem:[#allocation3 + $0x6a] sm:$0xff]
      %v3784 = vld [vmem:[#allocation3 + $0x7a] sm:$0xff]
      %v3785 = vld [vmem:[#allocation3 + $0x82] sm:$0xff]
      %v3786 = vld [vmem:[#allocation3 + $0x92] sm:$0xff]
      %v3787 = vld [vmem:[#allocation3 + $0x9a] sm:$0xff]
      %v3788 = vld [vmem:[#allocation3 + $0xaa] sm:$0xff]
      %v3789 = vld [vmem:[#allocation3 + $0xb2] sm:$0xff]
      %v3790 = vld [vmem:[#allocation3 + $0xc2] sm:$0xff]
      %v3791 = vld [vmem:[#allocation3 + $0xca] sm:$0xff]
      %v3792 = vld [vmem:[#allocation3 + $0xda] sm:$0xff]
      %v3793 = vld [vmem:[#allocation3 + $0xe2] sm:$0xff]
      %v3794 = vld [vmem:[#allocation3 + $0xf2] sm:$0xff]
      %v3795 = vld [vmem:[#allocation3 + $0xfa] sm:$0xff]
      %v3796 = vld [vmem:[#allocation3 + $0x10a] sm:$0xff]
      %v3797 = vld [vmem:[#allocation3 + $0x112] sm:$0xff]
      %v3798 = vld [vmem:[#allocation3 + $0x122] sm:$0xff]
      %v3799 = vld [vmem:[#allocation3 + $0x12a] sm:$0xff]
      %v3800 = vld [vmem:[#allocation3 + $0x13a] sm:$0xff]
      %v3801 = vld [vmem:[#allocation3 + $0x142] sm:$0xff]
      %v3802 = vld [vmem:[#allocation3 + $0x152] sm:$0xff]
      %v3803 = vld [vmem:[#allocation3 + $0x15a] sm:$0xff]
      %v3804 = vld [vmem:[#allocation3 + $0x16a] sm:$0xff]
      %v3805 = vld [vmem:[#allocation3 + $0x172] sm:$0xff]
      %v3806 = vpack.c.bf16 %v3775, %v3774
      %v3807 = vpack.c.bf16 %v3777, %v3776
      %v3808 = vpack.c.bf16 %v3779, %v3778
      %v3809 = vpack.c.bf16 %v3781, %v3780
      %v3810 = vpack.c.bf16 %v3783, %v3782
      %v3811 = vpack.c.bf16 %v3785, %v3784
      %v3812 = vpack.c.bf16 %v3787, %v3786
      %v3813 = vpack.c.bf16 %v3789, %v3788
      %v3814 = vpack.c.bf16 %v3791, %v3790
      %v3815 = vpack.c.bf16 %v3793, %v3792
      %v3816 = vpack.c.bf16 %v3795, %v3794
      %v3817 = vpack.c.bf16 %v3797, %v3796
      %v3818 = vpack.c.bf16 %v3799, %v3798
      %v3819 = vpack.c.bf16 %v3801, %v3800
      %v3820 = vpack.c.bf16 %v3803, %v3802
      %v3821 = vpack.c.bf16 %v3805, %v3804
      %s3822 = scalar_lea.vmem %s2, 704
      %v3823 = vld [vmem:[%s3822] sm:$0xf]
      %v3824 = vld [vmem:[%s3822 + $0x4] sm:$0xf]
      %v3825 = vld [vmem:[%s3822 + $0x8] sm:$0xf]
      %v3826 = vld [vmem:[%s3822 + $0xc] sm:$0xf]
      %v3827 = vld [vmem:[%s3822 + $0x10] sm:$0xf]
      %v3828 = vld [vmem:[%s3822 + $0x14] sm:$0xf]
      %v3829 = vld [vmem:[%s3822 + $0x18] sm:$0xf]
      %v3830 = vld [vmem:[%s3822 + $0x1c] sm:$0xf]
      %v3831 = vld [vmem:[%s3822 + $0x20] sm:$0xf]
      %v3832 = vld [vmem:[%s3822 + $0x24] sm:$0xf]
      %v3833 = vld [vmem:[%s3822 + $0x28] sm:$0xf]
      %v3834 = vld [vmem:[%s3822 + $0x2c] sm:$0xf]
      %v3835 = vld [vmem:[%s3822 + $0x30] sm:$0xf]
      %v3836 = vld [vmem:[%s3822 + $0x34] sm:$0xf]
      %v3837 = vld [vmem:[%s3822 + $0x38] sm:$0xf]
      %v3838 = vld [vmem:[%s3822 + $0x3c] sm:$0xf]
      %v3855 = vunpack.c.l.b16 %v3823
      %v3856 = vunpack.c.l.b16 %v3824
      %v3857 = vunpack.c.l.b16 %v3825
      %v3858 = vunpack.c.l.b16 %v3826
      %v3859 = vunpack.c.l.b16 %v3827
      %v3860 = vunpack.c.l.b16 %v3828
      %v3861 = vunpack.c.l.b16 %v3829
      %v3862 = vunpack.c.l.b16 %v3830
      %v3863 = vunpack.c.l.b16 %v3831
      %v3864 = vunpack.c.l.b16 %v3832
      %v3865 = vunpack.c.l.b16 %v3833
      %v3866 = vunpack.c.l.b16 %v3834
      %v3867 = vunpack.c.l.b16 %v3835
      %v3868 = vunpack.c.l.b16 %v3836
      %v3869 = vunpack.c.l.b16 %v3837
      %v3870 = vunpack.c.l.b16 %v3838
      %v3871 = vpack.c.b16 %v3856, %v3855
      %v3872 = vpack.c.b16 %v3858, %v3857
      %v3873 = vpack.c.b16 %v3860, %v3859
      %v3874 = vpack.c.b16 %v3862, %v3861
      %v3875 = vpack.c.b16 %v3864, %v3863
      %v3876 = vpack.c.b16 %v3866, %v3865
      %v3877 = vpack.c.b16 %v3868, %v3867
      %v3878 = vpack.c.b16 %v3870, %v3869
      %3887 = vmatpush.bf16.msra.mxu0 %v3878
      %3888 = vmatpush.bf16.msra.mxu0 %v3877
      %3889 = vmatpush.bf16.msra.mxu0 %v3876
      %3890 = vmatpush.bf16.msra.mxu0 %v3875
      %3891 = vmatpush.bf16.msra.mxu0 %v3874
      %3892 = vmatpush.bf16.msra.mxu0 %v3873
      %3893 = vmatpush.bf16.msra.mxu0 %v3872
      %3894 = vmatpush.bf16.msra.mxu0 %v3871
      %3895 = vmatmul.bf16.gmra.mxu0 %v3806
      %v3896 = vpop.f32.mrf.mxu0
      %v3897 = vadd.f32 0.0, %v3896
      %v3898 = vpop.f32.mrf.mxu0
      %v3899 = vadd.f32 0.0, %v3898
      %3900 = vmatmul.bf16.gmra.mxu0 %v3807
      %v3901 = vpop.f32.mrf.mxu0
      %v3902 = vadd.f32 0.0, %v3901
      %v3903 = vpop.f32.mrf.mxu0
      %v3904 = vadd.f32 0.0, %v3903
      %3905 = vmatmul.bf16.gmra.mxu0 %v3808
      %v3906 = vpop.f32.mrf.mxu0
      %v3907 = vadd.f32 0.0, %v3906
      %v3908 = vpop.f32.mrf.mxu0
      %v3909 = vadd.f32 0.0, %v3908
      %3910 = vmatmul.bf16.gmra.mxu0 %v3809
      %v3911 = vpop.f32.mrf.mxu0
      %v3912 = vadd.f32 0.0, %v3911
      %v3913 = vpop.f32.mrf.mxu0
      %v3914 = vadd.f32 0.0, %v3913
      %3915 = vmatmul.bf16.gmra.mxu0 %v3810
      %v3916 = vpop.f32.mrf.mxu0
      %v3917 = vadd.f32 0.0, %v3916
      %v3918 = vpop.f32.mrf.mxu0
      %v3919 = vadd.f32 0.0, %v3918
      %3920 = vmatmul.bf16.gmra.mxu0 %v3811
      %v3921 = vpop.f32.mrf.mxu0
      %v3922 = vadd.f32 0.0, %v3921
      %v3923 = vpop.f32.mrf.mxu0
      %v3924 = vadd.f32 0.0, %v3923
      %3925 = vmatmul.bf16.gmra.mxu0 %v3812
      %v3926 = vpop.f32.mrf.mxu0
      %v3927 = vadd.f32 0.0, %v3926
      %v3928 = vpop.f32.mrf.mxu0
      %v3929 = vadd.f32 0.0, %v3928
      %3930 = vmatmul.bf16.gmra.mxu0 %v3813
      %v3931 = vpop.f32.mrf.mxu0
      %v3932 = vadd.f32 0.0, %v3931
      %v3933 = vpop.f32.mrf.mxu0
      %v3934 = vadd.f32 0.0, %v3933
      %3935 = vmatmul.bf16.gmra.mxu0 %v3814
      %v3936 = vpop.f32.mrf.mxu0
      %v3937 = vadd.f32 0.0, %v3936
      %v3938 = vpop.f32.mrf.mxu0
      %v3939 = vadd.f32 0.0, %v3938
      %3940 = vmatmul.bf16.gmra.mxu0 %v3815
      %v3941 = vpop.f32.mrf.mxu0
      %v3942 = vadd.f32 0.0, %v3941
      %v3943 = vpop.f32.mrf.mxu0
      %v3944 = vadd.f32 0.0, %v3943
      %3945 = vmatmul.bf16.gmra.mxu0 %v3816
      %v3946 = vpop.f32.mrf.mxu0
      %v3947 = vadd.f32 0.0, %v3946
      %v3948 = vpop.f32.mrf.mxu0
      %v3949 = vadd.f32 0.0, %v3948
      %3950 = vmatmul.bf16.gmra.mxu0 %v3817
      %v3951 = vpop.f32.mrf.mxu0
      %v3952 = vadd.f32 0.0, %v3951
      %v3953 = vpop.f32.mrf.mxu0
      %v3954 = vadd.f32 0.0, %v3953
      %3955 = vmatmul.bf16.gmra.mxu0 %v3818
      %v3956 = vpop.f32.mrf.mxu0
      %v3957 = vadd.f32 0.0, %v3956
      %v3958 = vpop.f32.mrf.mxu0
      %v3959 = vadd.f32 0.0, %v3958
      %3960 = vmatmul.bf16.gmra.mxu0 %v3819
      %v3961 = vpop.f32.mrf.mxu0
      %v3962 = vadd.f32 0.0, %v3961
      %v3963 = vpop.f32.mrf.mxu0
      %v3964 = vadd.f32 0.0, %v3963
      %3965 = vmatmul.bf16.gmra.mxu0 %v3820
      %v3966 = vpop.f32.mrf.mxu0
      %v3967 = vadd.f32 0.0, %v3966
      %v3968 = vpop.f32.mrf.mxu0
      %v3969 = vadd.f32 0.0, %v3968
      %3970 = vmatmul.bf16.gmra.mxu0 %v3821
      %v3971 = vpop.f32.mrf.mxu0
      %v3972 = vadd.f32 0.0, %v3971
      %v3973 = vpop.f32.mrf.mxu0
      %v3974 = vadd.f32 0.0, %v3973
      %3975 = vdwg.mxu0
      %v3976 = vadd.f32 %v3695, %v3897
      %v3977 = vadd.f32 %v3697, %v3899
      %v3978 = vadd.f32 %v3700, %v3902
      %v3979 = vadd.f32 %v3702, %v3904
      %v3980 = vadd.f32 %v3705, %v3907
      %v3981 = vadd.f32 %v3707, %v3909
      %v3982 = vadd.f32 %v3710, %v3912
      %v3983 = vadd.f32 %v3712, %v3914
      %v3984 = vadd.f32 %v3715, %v3917
      %v3985 = vadd.f32 %v3717, %v3919
      %v3986 = vadd.f32 %v3720, %v3922
      %v3987 = vadd.f32 %v3722, %v3924
      %v3988 = vadd.f32 %v3725, %v3927
      %v3989 = vadd.f32 %v3727, %v3929
      %v3990 = vadd.f32 %v3730, %v3932
      %v3991 = vadd.f32 %v3732, %v3934
      %v3992 = vadd.f32 %v3735, %v3937
      %v3993 = vadd.f32 %v3737, %v3939
      %v3994 = vadd.f32 %v3740, %v3942
      %v3995 = vadd.f32 %v3742, %v3944
      %v3996 = vadd.f32 %v3745, %v3947
      %v3997 = vadd.f32 %v3747, %v3949
      %v3998 = vadd.f32 %v3750, %v3952
      %v3999 = vadd.f32 %v3752, %v3954
      %v4000 = vadd.f32 %v3755, %v3957
      %v4001 = vadd.f32 %v3757, %v3959
      %v4002 = vadd.f32 %v3760, %v3962
      %v4003 = vadd.f32 %v3762, %v3964
      %v4004 = vadd.f32 %v3765, %v3967
      %v4005 = vadd.f32 %v3767, %v3969
      %v4006 = vadd.f32 %v3770, %v3972
      %v4007 = vadd.f32 %v3772, %v3974
      %v4008 = vld [vmem:[%s683] sm:$0xff]
      %v4009 = vld [vmem:[%s683 + $0x8] sm:$0xff]
      %v4010 = vld [vmem:[%s683 + $0x18] sm:$0xff]
      %v4011 = vld [vmem:[%s683 + $0x20] sm:$0xff]
      %v4012 = vld [vmem:[%s683 + $0x30] sm:$0xff]
      %v4013 = vld [vmem:[%s683 + $0x38] sm:$0xff]
      %v4014 = vld [vmem:[%s683 + $0x48] sm:$0xff]
      %v4015 = vld [vmem:[%s683 + $0x50] sm:$0xff]
      %v4016 = vld [vmem:[%s683 + $0x60] sm:$0xff]
      %v4017 = vld [vmem:[%s683 + $0x68] sm:$0xff]
      %v4018 = vld [vmem:[%s683 + $0x78] sm:$0xff]
      %v4019 = vld [vmem:[%s683 + $0x80] sm:$0xff]
      %v4020 = vld [vmem:[%s683 + $0x90] sm:$0xff]
      %v4021 = vld [vmem:[%s683 + $0x98] sm:$0xff]
      %v4022 = vld [vmem:[%s683 + $0xa8] sm:$0xff]
      %v4023 = vld [vmem:[%s683 + $0xb0] sm:$0xff]
      %v4024 = vld [vmem:[%s683 + $0xc0] sm:$0xff]
      %v4025 = vld [vmem:[%s683 + $0xc8] sm:$0xff]
      %v4026 = vld [vmem:[%s683 + $0xd8] sm:$0xff]
      %v4027 = vld [vmem:[%s683 + $0xe0] sm:$0xff]
      %v4028 = vld [vmem:[%s683 + $0xf0] sm:$0xff]
      %v4029 = vld [vmem:[%s683 + $0xf8] sm:$0xff]
      %v4030 = vld [vmem:[%s683 + $0x108] sm:$0xff]
      %v4031 = vld [vmem:[%s683 + $0x110] sm:$0xff]
      %v4032 = vld [vmem:[%s683 + $0x120] sm:$0xff]
      %v4033 = vld [vmem:[%s683 + $0x128] sm:$0xff]
      %v4034 = vld [vmem:[%s683 + $0x138] sm:$0xff]
      %v4035 = vld [vmem:[%s683 + $0x140] sm:$0xff]
      %v4036 = vld [vmem:[%s683 + $0x150] sm:$0xff]
      %v4037 = vld [vmem:[%s683 + $0x158] sm:$0xff]
      %v4038 = vld [vmem:[%s683 + $0x168] sm:$0xff]
      %v4039 = vld [vmem:[%s683 + $0x170] sm:$0xff]
      %v4040 = vpack.c.bf16 %v4009, %v4008
      %v4041 = vpack.c.bf16 %v4011, %v4010
      %v4042 = vpack.c.bf16 %v4013, %v4012
      %v4043 = vpack.c.bf16 %v4015, %v4014
      %v4044 = vpack.c.bf16 %v4017, %v4016
      %v4045 = vpack.c.bf16 %v4019, %v4018
      %v4046 = vpack.c.bf16 %v4021, %v4020
      %v4047 = vpack.c.bf16 %v4023, %v4022
      %v4048 = vpack.c.bf16 %v4025, %v4024
      %v4049 = vpack.c.bf16 %v4027, %v4026
      %v4050 = vpack.c.bf16 %v4029, %v4028
      %v4051 = vpack.c.bf16 %v4031, %v4030
      %v4052 = vpack.c.bf16 %v4033, %v4032
      %v4053 = vpack.c.bf16 %v4035, %v4034
      %v4054 = vpack.c.bf16 %v4037, %v4036
      %v4055 = vpack.c.bf16 %v4039, %v4038
      %s4056 = scalar_lea.vmem %s2, 768
      %v4057 = vld [vmem:[%s4056] sm:$0xf]
      %v4058 = vld [vmem:[%s4056 + $0x4] sm:$0xf]
      %v4059 = vld [vmem:[%s4056 + $0x8] sm:$0xf]
      %v4060 = vld [vmem:[%s4056 + $0xc] sm:$0xf]
      %v4061 = vld [vmem:[%s4056 + $0x10] sm:$0xf]
      %v4062 = vld [vmem:[%s4056 + $0x14] sm:$0xf]
      %v4063 = vld [vmem:[%s4056 + $0x18] sm:$0xf]
      %v4064 = vld [vmem:[%s4056 + $0x1c] sm:$0xf]
      %v4065 = vld [vmem:[%s4056 + $0x20] sm:$0xf]
      %v4066 = vld [vmem:[%s4056 + $0x24] sm:$0xf]
      %v4067 = vld [vmem:[%s4056 + $0x28] sm:$0xf]
      %v4068 = vld [vmem:[%s4056 + $0x2c] sm:$0xf]
      %v4069 = vld [vmem:[%s4056 + $0x30] sm:$0xf]
      %v4070 = vld [vmem:[%s4056 + $0x34] sm:$0xf]
      %v4071 = vld [vmem:[%s4056 + $0x38] sm:$0xf]
      %v4072 = vld [vmem:[%s4056 + $0x3c] sm:$0xf]
      %v4089 = vunpack.c.l.b16 %v4057
      %v4090 = vunpack.c.l.b16 %v4058
      %v4091 = vunpack.c.l.b16 %v4059
      %v4092 = vunpack.c.l.b16 %v4060
      %v4093 = vunpack.c.l.b16 %v4061
      %v4094 = vunpack.c.l.b16 %v4062
      %v4095 = vunpack.c.l.b16 %v4063
      %v4096 = vunpack.c.l.b16 %v4064
      %v4097 = vunpack.c.l.b16 %v4065
      %v4098 = vunpack.c.l.b16 %v4066
      %v4099 = vunpack.c.l.b16 %v4067
      %v4100 = vunpack.c.l.b16 %v4068
      %v4101 = vunpack.c.l.b16 %v4069
      %v4102 = vunpack.c.l.b16 %v4070
      %v4103 = vunpack.c.l.b16 %v4071
      %v4104 = vunpack.c.l.b16 %v4072
      %v4105 = vpack.c.b16 %v4090, %v4089
      %v4106 = vpack.c.b16 %v4092, %v4091
      %v4107 = vpack.c.b16 %v4094, %v4093
      %v4108 = vpack.c.b16 %v4096, %v4095
      %v4109 = vpack.c.b16 %v4098, %v4097
      %v4110 = vpack.c.b16 %v4100, %v4099
      %v4111 = vpack.c.b16 %v4102, %v4101
      %v4112 = vpack.c.b16 %v4104, %v4103
      %4121 = vmatpush.bf16.msra.mxu0 %v4112
      %4122 = vmatpush.bf16.msra.mxu0 %v4111
      %4123 = vmatpush.bf16.msra.mxu0 %v4110
      %4124 = vmatpush.bf16.msra.mxu0 %v4109
      %4125 = vmatpush.bf16.msra.mxu0 %v4108
      %4126 = vmatpush.bf16.msra.mxu0 %v4107
      %4127 = vmatpush.bf16.msra.mxu0 %v4106
      %4128 = vmatpush.bf16.msra.mxu0 %v4105
      %4129 = vmatmul.bf16.gmra.mxu0 %v4040
      %v4130 = vpop.f32.mrf.mxu0
      %v4131 = vadd.f32 0.0, %v4130
      %v4132 = vpop.f32.mrf.mxu0
      %v4133 = vadd.f32 0.0, %v4132
      %4134 = vmatmul.bf16.gmra.mxu0 %v4041
      %v4135 = vpop.f32.mrf.mxu0
      %v4136 = vadd.f32 0.0, %v4135
      %v4137 = vpop.f32.mrf.mxu0
      %v4138 = vadd.f32 0.0, %v4137
      %4139 = vmatmul.bf16.gmra.mxu0 %v4042
      %v4140 = vpop.f32.mrf.mxu0
      %v4141 = vadd.f32 0.0, %v4140
      %v4142 = vpop.f32.mrf.mxu0
      %v4143 = vadd.f32 0.0, %v4142
      %4144 = vmatmul.bf16.gmra.mxu0 %v4043
      %v4145 = vpop.f32.mrf.mxu0
      %v4146 = vadd.f32 0.0, %v4145
      %v4147 = vpop.f32.mrf.mxu0
      %v4148 = vadd.f32 0.0, %v4147
      %4149 = vmatmul.bf16.gmra.mxu0 %v4044
      %v4150 = vpop.f32.mrf.mxu0
      %v4151 = vadd.f32 0.0, %v4150
      %v4152 = vpop.f32.mrf.mxu0
      %v4153 = vadd.f32 0.0, %v4152
      %4154 = vmatmul.bf16.gmra.mxu0 %v4045
      %v4155 = vpop.f32.mrf.mxu0
      %v4156 = vadd.f32 0.0, %v4155
      %v4157 = vpop.f32.mrf.mxu0
      %v4158 = vadd.f32 0.0, %v4157
      %4159 = vmatmul.bf16.gmra.mxu0 %v4046
      %v4160 = vpop.f32.mrf.mxu0
      %v4161 = vadd.f32 0.0, %v4160
      %v4162 = vpop.f32.mrf.mxu0
      %v4163 = vadd.f32 0.0, %v4162
      %4164 = vmatmul.bf16.gmra.mxu0 %v4047
      %v4165 = vpop.f32.mrf.mxu0
      %v4166 = vadd.f32 0.0, %v4165
      %v4167 = vpop.f32.mrf.mxu0
      %v4168 = vadd.f32 0.0, %v4167
      %4169 = vmatmul.bf16.gmra.mxu0 %v4048
      %v4170 = vpop.f32.mrf.mxu0
      %v4171 = vadd.f32 0.0, %v4170
      %v4172 = vpop.f32.mrf.mxu0
      %v4173 = vadd.f32 0.0, %v4172
      %4174 = vmatmul.bf16.gmra.mxu0 %v4049
      %v4175 = vpop.f32.mrf.mxu0
      %v4176 = vadd.f32 0.0, %v4175
      %v4177 = vpop.f32.mrf.mxu0
      %v4178 = vadd.f32 0.0, %v4177
      %4179 = vmatmul.bf16.gmra.mxu0 %v4050
      %v4180 = vpop.f32.mrf.mxu0
      %v4181 = vadd.f32 0.0, %v4180
      %v4182 = vpop.f32.mrf.mxu0
      %v4183 = vadd.f32 0.0, %v4182
      %4184 = vmatmul.bf16.gmra.mxu0 %v4051
      %v4185 = vpop.f32.mrf.mxu0
      %v4186 = vadd.f32 0.0, %v4185
      %v4187 = vpop.f32.mrf.mxu0
      %v4188 = vadd.f32 0.0, %v4187
      %4189 = vmatmul.bf16.gmra.mxu0 %v4052
      %v4190 = vpop.f32.mrf.mxu0
      %v4191 = vadd.f32 0.0, %v4190
      %v4192 = vpop.f32.mrf.mxu0
      %v4193 = vadd.f32 0.0, %v4192
      %4194 = vmatmul.bf16.gmra.mxu0 %v4053
      %v4195 = vpop.f32.mrf.mxu0
      %v4196 = vadd.f32 0.0, %v4195
      %v4197 = vpop.f32.mrf.mxu0
      %v4198 = vadd.f32 0.0, %v4197
      %4199 = vmatmul.bf16.gmra.mxu0 %v4054
      %v4200 = vpop.f32.mrf.mxu0
      %v4201 = vadd.f32 0.0, %v4200
      %v4202 = vpop.f32.mrf.mxu0
      %v4203 = vadd.f32 0.0, %v4202
      %4204 = vmatmul.bf16.gmra.mxu0 %v4055
      %v4205 = vpop.f32.mrf.mxu0
      %v4206 = vadd.f32 0.0, %v4205
      %v4207 = vpop.f32.mrf.mxu0
      %v4208 = vadd.f32 0.0, %v4207
      %4209 = vdwg.mxu0
      %v4210 = vadd.f32 %v3976, %v4131
      %v4211 = vadd.f32 %v3977, %v4133
      %v4212 = vadd.f32 %v3978, %v4136
      %v4213 = vadd.f32 %v3979, %v4138
      %v4214 = vadd.f32 %v3980, %v4141
      %v4215 = vadd.f32 %v3981, %v4143
      %v4216 = vadd.f32 %v3982, %v4146
      %v4217 = vadd.f32 %v3983, %v4148
      %v4218 = vadd.f32 %v3984, %v4151
      %v4219 = vadd.f32 %v3985, %v4153
      %v4220 = vadd.f32 %v3986, %v4156
      %v4221 = vadd.f32 %v3987, %v4158
      %v4222 = vadd.f32 %v3988, %v4161
      %v4223 = vadd.f32 %v3989, %v4163
      %v4224 = vadd.f32 %v3990, %v4166
      %v4225 = vadd.f32 %v3991, %v4168
      %v4226 = vadd.f32 %v3992, %v4171
      %v4227 = vadd.f32 %v3993, %v4173
      %v4228 = vadd.f32 %v3994, %v4176
      %v4229 = vadd.f32 %v3995, %v4178
      %v4230 = vadd.f32 %v3996, %v4181
      %v4231 = vadd.f32 %v3997, %v4183
      %v4232 = vadd.f32 %v3998, %v4186
      %v4233 = vadd.f32 %v3999, %v4188
      %v4234 = vadd.f32 %v4000, %v4191
      %v4235 = vadd.f32 %v4001, %v4193
      %v4236 = vadd.f32 %v4002, %v4196
      %v4237 = vadd.f32 %v4003, %v4198
      %v4238 = vadd.f32 %v4004, %v4201
      %v4239 = vadd.f32 %v4005, %v4203
      %v4240 = vadd.f32 %v4006, %v4206
      %v4241 = vadd.f32 %v4007, %v4208
      %v4242 = vld [vmem:[%s683 + $0x1] sm:$0xff]
      %v4243 = vld [vmem:[%s683 + $0x9] sm:$0xff]
      %v4244 = vld [vmem:[%s683 + $0x19] sm:$0xff]
      %v4245 = vld [vmem:[%s683 + $0x21] sm:$0xff]
      %v4246 = vld [vmem:[%s683 + $0x31] sm:$0xff]
      %v4247 = vld [vmem:[%s683 + $0x39] sm:$0xff]
      %v4248 = vld [vmem:[%s683 + $0x49] sm:$0xff]
      %v4249 = vld [vmem:[%s683 + $0x51] sm:$0xff]
      %v4250 = vld [vmem:[%s683 + $0x61] sm:$0xff]
      %v4251 = vld [vmem:[%s683 + $0x69] sm:$0xff]
      %v4252 = vld [vmem:[%s683 + $0x79] sm:$0xff]
      %v4253 = vld [vmem:[%s683 + $0x81] sm:$0xff]
      %v4254 = vld [vmem:[%s683 + $0x91] sm:$0xff]
      %v4255 = vld [vmem:[%s683 + $0x99] sm:$0xff]
      %v4256 = vld [vmem:[%s683 + $0xa9] sm:$0xff]
      %v4257 = vld [vmem:[%s683 + $0xb1] sm:$0xff]
      %v4258 = vld [vmem:[%s683 + $0xc1] sm:$0xff]
      %v4259 = vld [vmem:[%s683 + $0xc9] sm:$0xff]
      %v4260 = vld [vmem:[%s683 + $0xd9] sm:$0xff]
      %v4261 = vld [vmem:[%s683 + $0xe1] sm:$0xff]
      %v4262 = vld [vmem:[%s683 + $0xf1] sm:$0xff]
      %v4263 = vld [vmem:[%s683 + $0xf9] sm:$0xff]
      %v4264 = vld [vmem:[%s683 + $0x109] sm:$0xff]
      %v4265 = vld [vmem:[%s683 + $0x111] sm:$0xff]
      %v4266 = vld [vmem:[%s683 + $0x121] sm:$0xff]
      %v4267 = vld [vmem:[%s683 + $0x129] sm:$0xff]
      %v4268 = vld [vmem:[%s683 + $0x139] sm:$0xff]
      %v4269 = vld [vmem:[%s683 + $0x141] sm:$0xff]
      %v4270 = vld [vmem:[%s683 + $0x151] sm:$0xff]
      %v4271 = vld [vmem:[%s683 + $0x159] sm:$0xff]
      %v4272 = vld [vmem:[%s683 + $0x169] sm:$0xff]
      %v4273 = vld [vmem:[%s683 + $0x171] sm:$0xff]
      %v4274 = vpack.c.bf16 %v4243, %v4242
      %v4275 = vpack.c.bf16 %v4245, %v4244
      %v4276 = vpack.c.bf16 %v4247, %v4246
      %v4277 = vpack.c.bf16 %v4249, %v4248
      %v4278 = vpack.c.bf16 %v4251, %v4250
      %v4279 = vpack.c.bf16 %v4253, %v4252
      %v4280 = vpack.c.bf16 %v4255, %v4254
      %v4281 = vpack.c.bf16 %v4257, %v4256
      %v4282 = vpack.c.bf16 %v4259, %v4258
      %v4283 = vpack.c.bf16 %v4261, %v4260
      %v4284 = vpack.c.bf16 %v4263, %v4262
      %v4285 = vpack.c.bf16 %v4265, %v4264
      %v4286 = vpack.c.bf16 %v4267, %v4266
      %v4287 = vpack.c.bf16 %v4269, %v4268
      %v4288 = vpack.c.bf16 %v4271, %v4270
      %v4289 = vpack.c.bf16 %v4273, %v4272
      %s4290 = scalar_lea.vmem %s2, 832
      %v4291 = vld [vmem:[%s4290] sm:$0xf]
      %v4292 = vld [vmem:[%s4290 + $0x4] sm:$0xf]
      %v4293 = vld [vmem:[%s4290 + $0x8] sm:$0xf]
      %v4294 = vld [vmem:[%s4290 + $0xc] sm:$0xf]
      %v4295 = vld [vmem:[%s4290 + $0x10] sm:$0xf]
      %v4296 = vld [vmem:[%s4290 + $0x14] sm:$0xf]
      %v4297 = vld [vmem:[%s4290 + $0x18] sm:$0xf]
      %v4298 = vld [vmem:[%s4290 + $0x1c] sm:$0xf]
      %v4299 = vld [vmem:[%s4290 + $0x20] sm:$0xf]
      %v4300 = vld [vmem:[%s4290 + $0x24] sm:$0xf]
      %v4301 = vld [vmem:[%s4290 + $0x28] sm:$0xf]
      %v4302 = vld [vmem:[%s4290 + $0x2c] sm:$0xf]
      %v4303 = vld [vmem:[%s4290 + $0x30] sm:$0xf]
      %v4304 = vld [vmem:[%s4290 + $0x34] sm:$0xf]
      %v4305 = vld [vmem:[%s4290 + $0x38] sm:$0xf]
      %v4306 = vld [vmem:[%s4290 + $0x3c] sm:$0xf]
      %v4323 = vunpack.c.l.b16 %v4291
      %v4324 = vunpack.c.l.b16 %v4292
      %v4325 = vunpack.c.l.b16 %v4293
      %v4326 = vunpack.c.l.b16 %v4294
      %v4327 = vunpack.c.l.b16 %v4295
      %v4328 = vunpack.c.l.b16 %v4296
      %v4329 = vunpack.c.l.b16 %v4297
      %v4330 = vunpack.c.l.b16 %v4298
      %v4331 = vunpack.c.l.b16 %v4299
      %v4332 = vunpack.c.l.b16 %v4300
      %v4333 = vunpack.c.l.b16 %v4301
      %v4334 = vunpack.c.l.b16 %v4302
      %v4335 = vunpack.c.l.b16 %v4303
      %v4336 = vunpack.c.l.b16 %v4304
      %v4337 = vunpack.c.l.b16 %v4305
      %v4338 = vunpack.c.l.b16 %v4306
      %v4339 = vpack.c.b16 %v4324, %v4323
      %v4340 = vpack.c.b16 %v4326, %v4325
      %v4341 = vpack.c.b16 %v4328, %v4327
      %v4342 = vpack.c.b16 %v4330, %v4329
      %v4343 = vpack.c.b16 %v4332, %v4331
      %v4344 = vpack.c.b16 %v4334, %v4333
      %v4345 = vpack.c.b16 %v4336, %v4335
      %v4346 = vpack.c.b16 %v4338, %v4337
      %4355 = vmatpush.bf16.msra.mxu0 %v4346
      %4356 = vmatpush.bf16.msra.mxu0 %v4345
      %4357 = vmatpush.bf16.msra.mxu0 %v4344
      %4358 = vmatpush.bf16.msra.mxu0 %v4343
      %4359 = vmatpush.bf16.msra.mxu0 %v4342
      %4360 = vmatpush.bf16.msra.mxu0 %v4341
      %4361 = vmatpush.bf16.msra.mxu0 %v4340
      %4362 = vmatpush.bf16.msra.mxu0 %v4339
      %4363 = vmatmul.bf16.gmra.mxu0 %v4274
      %v4364 = vpop.f32.mrf.mxu0
      %v4365 = vadd.f32 0.0, %v4364
      %v4366 = vpop.f32.mrf.mxu0
      %v4367 = vadd.f32 0.0, %v4366
      %4368 = vmatmul.bf16.gmra.mxu0 %v4275
      %v4369 = vpop.f32.mrf.mxu0
      %v4370 = vadd.f32 0.0, %v4369
      %v4371 = vpop.f32.mrf.mxu0
      %v4372 = vadd.f32 0.0, %v4371
      %4373 = vmatmul.bf16.gmra.mxu0 %v4276
      %v4374 = vpop.f32.mrf.mxu0
      %v4375 = vadd.f32 0.0, %v4374
      %v4376 = vpop.f32.mrf.mxu0
      %v4377 = vadd.f32 0.0, %v4376
      %4378 = vmatmul.bf16.gmra.mxu0 %v4277
      %v4379 = vpop.f32.mrf.mxu0
      %v4380 = vadd.f32 0.0, %v4379
      %v4381 = vpop.f32.mrf.mxu0
      %v4382 = vadd.f32 0.0, %v4381
      %4383 = vmatmul.bf16.gmra.mxu0 %v4278
      %v4384 = vpop.f32.mrf.mxu0
      %v4385 = vadd.f32 0.0, %v4384
      %v4386 = vpop.f32.mrf.mxu0
      %v4387 = vadd.f32 0.0, %v4386
      %4388 = vmatmul.bf16.gmra.mxu0 %v4279
      %v4389 = vpop.f32.mrf.mxu0
      %v4390 = vadd.f32 0.0, %v4389
      %v4391 = vpop.f32.mrf.mxu0
      %v4392 = vadd.f32 0.0, %v4391
      %4393 = vmatmul.bf16.gmra.mxu0 %v4280
      %v4394 = vpop.f32.mrf.mxu0
      %v4395 = vadd.f32 0.0, %v4394
      %v4396 = vpop.f32.mrf.mxu0
      %v4397 = vadd.f32 0.0, %v4396
      %4398 = vmatmul.bf16.gmra.mxu0 %v4281
      %v4399 = vpop.f32.mrf.mxu0
      %v4400 = vadd.f32 0.0, %v4399
      %v4401 = vpop.f32.mrf.mxu0
      %v4402 = vadd.f32 0.0, %v4401
      %4403 = vmatmul.bf16.gmra.mxu0 %v4282
      %v4404 = vpop.f32.mrf.mxu0
      %v4405 = vadd.f32 0.0, %v4404
      %v4406 = vpop.f32.mrf.mxu0
      %v4407 = vadd.f32 0.0, %v4406
      %4408 = vmatmul.bf16.gmra.mxu0 %v4283
      %v4409 = vpop.f32.mrf.mxu0
      %v4410 = vadd.f32 0.0, %v4409
      %v4411 = vpop.f32.mrf.mxu0
      %v4412 = vadd.f32 0.0, %v4411
      %4413 = vmatmul.bf16.gmra.mxu0 %v4284
      %v4414 = vpop.f32.mrf.mxu0
      %v4415 = vadd.f32 0.0, %v4414
      %v4416 = vpop.f32.mrf.mxu0
      %v4417 = vadd.f32 0.0, %v4416
      %4418 = vmatmul.bf16.gmra.mxu0 %v4285
      %v4419 = vpop.f32.mrf.mxu0
      %v4420 = vadd.f32 0.0, %v4419
      %v4421 = vpop.f32.mrf.mxu0
      %v4422 = vadd.f32 0.0, %v4421
      %4423 = vmatmul.bf16.gmra.mxu0 %v4286
      %v4424 = vpop.f32.mrf.mxu0
      %v4425 = vadd.f32 0.0, %v4424
      %v4426 = vpop.f32.mrf.mxu0
      %v4427 = vadd.f32 0.0, %v4426
      %4428 = vmatmul.bf16.gmra.mxu0 %v4287
      %v4429 = vpop.f32.mrf.mxu0
      %v4430 = vadd.f32 0.0, %v4429
      %v4431 = vpop.f32.mrf.mxu0
      %v4432 = vadd.f32 0.0, %v4431
      %4433 = vmatmul.bf16.gmra.mxu0 %v4288
      %v4434 = vpop.f32.mrf.mxu0
      %v4435 = vadd.f32 0.0, %v4434
      %v4436 = vpop.f32.mrf.mxu0
      %v4437 = vadd.f32 0.0, %v4436
      %4438 = vmatmul.bf16.gmra.mxu0 %v4289
      %v4439 = vpop.f32.mrf.mxu0
      %v4440 = vadd.f32 0.0, %v4439
      %v4441 = vpop.f32.mrf.mxu0
      %v4442 = vadd.f32 0.0, %v4441
      %4443 = vdwg.mxu0
      %v4444 = vadd.f32 %v4210, %v4365
      %v4445 = vadd.f32 %v4211, %v4367
      %v4446 = vadd.f32 %v4212, %v4370
      %v4447 = vadd.f32 %v4213, %v4372
      %v4448 = vadd.f32 %v4214, %v4375
      %v4449 = vadd.f32 %v4215, %v4377
      %v4450 = vadd.f32 %v4216, %v4380
      %v4451 = vadd.f32 %v4217, %v4382
      %v4452 = vadd.f32 %v4218, %v4385
      %v4453 = vadd.f32 %v4219, %v4387
      %v4454 = vadd.f32 %v4220, %v4390
      %v4455 = vadd.f32 %v4221, %v4392
      %v4456 = vadd.f32 %v4222, %v4395
      %v4457 = vadd.f32 %v4223, %v4397
      %v4458 = vadd.f32 %v4224, %v4400
      %v4459 = vadd.f32 %v4225, %v4402
      %v4460 = vadd.f32 %v4226, %v4405
      %v4461 = vadd.f32 %v4227, %v4407
      %v4462 = vadd.f32 %v4228, %v4410
      %v4463 = vadd.f32 %v4229, %v4412
      %v4464 = vadd.f32 %v4230, %v4415
      %v4465 = vadd.f32 %v4231, %v4417
      %v4466 = vadd.f32 %v4232, %v4420
      %v4467 = vadd.f32 %v4233, %v4422
      %v4468 = vadd.f32 %v4234, %v4425
      %v4469 = vadd.f32 %v4235, %v4427
      %v4470 = vadd.f32 %v4236, %v4430
      %v4471 = vadd.f32 %v4237, %v4432
      %v4472 = vadd.f32 %v4238, %v4435
      %v4473 = vadd.f32 %v4239, %v4437
      %v4474 = vadd.f32 %v4240, %v4440
      %v4475 = vadd.f32 %v4241, %v4442
      %v4476 = vld [vmem:[%s683 + $0x2] sm:$0xff]
      %v4477 = vld [vmem:[%s683 + $0xa] sm:$0xff]
      %v4478 = vld [vmem:[%s683 + $0x1a] sm:$0xff]
      %v4479 = vld [vmem:[%s683 + $0x22] sm:$0xff]
      %v4480 = vld [vmem:[%s683 + $0x32] sm:$0xff]
      %v4481 = vld [vmem:[%s683 + $0x3a] sm:$0xff]
      %v4482 = vld [vmem:[%s683 + $0x4a] sm:$0xff]
      %v4483 = vld [vmem:[%s683 + $0x52] sm:$0xff]
      %v4484 = vld [vmem:[%s683 + $0x62] sm:$0xff]
      %v4485 = vld [vmem:[%s683 + $0x6a] sm:$0xff]
      %v4486 = vld [vmem:[%s683 + $0x7a] sm:$0xff]
      %v4487 = vld [vmem:[%s683 + $0x82] sm:$0xff]
      %v4488 = vld [vmem:[%s683 + $0x92] sm:$0xff]
      %v4489 = vld [vmem:[%s683 + $0x9a] sm:$0xff]
      %v4490 = vld [vmem:[%s683 + $0xaa] sm:$0xff]
      %v4491 = vld [vmem:[%s683 + $0xb2] sm:$0xff]
      %v4492 = vld [vmem:[%s683 + $0xc2] sm:$0xff]
      %v4493 = vld [vmem:[%s683 + $0xca] sm:$0xff]
      %v4494 = vld [vmem:[%s683 + $0xda] sm:$0xff]
      %v4495 = vld [vmem:[%s683 + $0xe2] sm:$0xff]
      %v4496 = vld [vmem:[%s683 + $0xf2] sm:$0xff]
      %v4497 = vld [vmem:[%s683 + $0xfa] sm:$0xff]
      %v4498 = vld [vmem:[%s683 + $0x10a] sm:$0xff]
      %v4499 = vld [vmem:[%s683 + $0x112] sm:$0xff]
      %v4500 = vld [vmem:[%s683 + $0x122] sm:$0xff]
      %v4501 = vld [vmem:[%s683 + $0x12a] sm:$0xff]
      %v4502 = vld [vmem:[%s683 + $0x13a] sm:$0xff]
      %v4503 = vld [vmem:[%s683 + $0x142] sm:$0xff]
      %v4504 = vld [vmem:[%s683 + $0x152] sm:$0xff]
      %v4505 = vld [vmem:[%s683 + $0x15a] sm:$0xff]
      %v4506 = vld [vmem:[%s683 + $0x16a] sm:$0xff]
      %v4507 = vld [vmem:[%s683 + $0x172] sm:$0xff]
      %v4508 = vpack.c.bf16 %v4477, %v4476
      %v4509 = vpack.c.bf16 %v4479, %v4478
      %v4510 = vpack.c.bf16 %v4481, %v4480
      %v4511 = vpack.c.bf16 %v4483, %v4482
      %v4512 = vpack.c.bf16 %v4485, %v4484
      %v4513 = vpack.c.bf16 %v4487, %v4486
      %v4514 = vpack.c.bf16 %v4489, %v4488
      %v4515 = vpack.c.bf16 %v4491, %v4490
      %v4516 = vpack.c.bf16 %v4493, %v4492
      %v4517 = vpack.c.bf16 %v4495, %v4494
      %v4518 = vpack.c.bf16 %v4497, %v4496
      %v4519 = vpack.c.bf16 %v4499, %v4498
      %v4520 = vpack.c.bf16 %v4501, %v4500
      %v4521 = vpack.c.bf16 %v4503, %v4502
      %v4522 = vpack.c.bf16 %v4505, %v4504
      %v4523 = vpack.c.bf16 %v4507, %v4506
      %s4524 = scalar_lea.vmem %s2, 896
      %v4525 = vld [vmem:[%s4524] sm:$0xf]
      %v4526 = vld [vmem:[%s4524 + $0x4] sm:$0xf]
      %v4527 = vld [vmem:[%s4524 + $0x8] sm:$0xf]
      %v4528 = vld [vmem:[%s4524 + $0xc] sm:$0xf]
      %v4529 = vld [vmem:[%s4524 + $0x10] sm:$0xf]
      %v4530 = vld [vmem:[%s4524 + $0x14] sm:$0xf]
      %v4531 = vld [vmem:[%s4524 + $0x18] sm:$0xf]
      %v4532 = vld [vmem:[%s4524 + $0x1c] sm:$0xf]
      %v4533 = vld [vmem:[%s4524 + $0x20] sm:$0xf]
      %v4534 = vld [vmem:[%s4524 + $0x24] sm:$0xf]
      %v4535 = vld [vmem:[%s4524 + $0x28] sm:$0xf]
      %v4536 = vld [vmem:[%s4524 + $0x2c] sm:$0xf]
      %v4537 = vld [vmem:[%s4524 + $0x30] sm:$0xf]
      %v4538 = vld [vmem:[%s4524 + $0x34] sm:$0xf]
      %v4539 = vld [vmem:[%s4524 + $0x38] sm:$0xf]
      %v4540 = vld [vmem:[%s4524 + $0x3c] sm:$0xf]
      %v4557 = vunpack.c.l.b16 %v4525
      %v4558 = vunpack.c.l.b16 %v4526
      %v4559 = vunpack.c.l.b16 %v4527
      %v4560 = vunpack.c.l.b16 %v4528
      %v4561 = vunpack.c.l.b16 %v4529
      %v4562 = vunpack.c.l.b16 %v4530
      %v4563 = vunpack.c.l.b16 %v4531
      %v4564 = vunpack.c.l.b16 %v4532
      %v4565 = vunpack.c.l.b16 %v4533
      %v4566 = vunpack.c.l.b16 %v4534
      %v4567 = vunpack.c.l.b16 %v4535
      %v4568 = vunpack.c.l.b16 %v4536
      %v4569 = vunpack.c.l.b16 %v4537
      %v4570 = vunpack.c.l.b16 %v4538
      %v4571 = vunpack.c.l.b16 %v4539
      %v4572 = vunpack.c.l.b16 %v4540
      %v4573 = vpack.c.b16 %v4558, %v4557
      %v4574 = vpack.c.b16 %v4560, %v4559
      %v4575 = vpack.c.b16 %v4562, %v4561
      %v4576 = vpack.c.b16 %v4564, %v4563
      %v4577 = vpack.c.b16 %v4566, %v4565
      %v4578 = vpack.c.b16 %v4568, %v4567
      %v4579 = vpack.c.b16 %v4570, %v4569
      %v4580 = vpack.c.b16 %v4572, %v4571
      %4589 = vmatpush.bf16.msra.mxu0 %v4580
      %4590 = vmatpush.bf16.msra.mxu0 %v4579
      %4591 = vmatpush.bf16.msra.mxu0 %v4578
      %4592 = vmatpush.bf16.msra.mxu0 %v4577
      %4593 = vmatpush.bf16.msra.mxu0 %v4576
      %4594 = vmatpush.bf16.msra.mxu0 %v4575
      %4595 = vmatpush.bf16.msra.mxu0 %v4574
      %4596 = vmatpush.bf16.msra.mxu0 %v4573
      %4597 = vmatmul.bf16.gmra.mxu0 %v4508
      %v4598 = vpop.f32.mrf.mxu0
      %v4599 = vadd.f32 0.0, %v4598
      %v4600 = vpop.f32.mrf.mxu0
      %v4601 = vadd.f32 0.0, %v4600
      %4602 = vmatmul.bf16.gmra.mxu0 %v4509
      %v4603 = vpop.f32.mrf.mxu0
      %v4604 = vadd.f32 0.0, %v4603
      %v4605 = vpop.f32.mrf.mxu0
      %v4606 = vadd.f32 0.0, %v4605
      %4607 = vmatmul.bf16.gmra.mxu0 %v4510
      %v4608 = vpop.f32.mrf.mxu0
      %v4609 = vadd.f32 0.0, %v4608
      %v4610 = vpop.f32.mrf.mxu0
      %v4611 = vadd.f32 0.0, %v4610
      %4612 = vmatmul.bf16.gmra.mxu0 %v4511
      %v4613 = vpop.f32.mrf.mxu0
      %v4614 = vadd.f32 0.0, %v4613
      %v4615 = vpop.f32.mrf.mxu0
      %v4616 = vadd.f32 0.0, %v4615
      %4617 = vmatmul.bf16.gmra.mxu0 %v4512
      %v4618 = vpop.f32.mrf.mxu0
      %v4619 = vadd.f32 0.0, %v4618
      %v4620 = vpop.f32.mrf.mxu0
      %v4621 = vadd.f32 0.0, %v4620
      %4622 = vmatmul.bf16.gmra.mxu0 %v4513
      %v4623 = vpop.f32.mrf.mxu0
      %v4624 = vadd.f32 0.0, %v4623
      %v4625 = vpop.f32.mrf.mxu0
      %v4626 = vadd.f32 0.0, %v4625
      %4627 = vmatmul.bf16.gmra.mxu0 %v4514
      %v4628 = vpop.f32.mrf.mxu0
      %v4629 = vadd.f32 0.0, %v4628
      %v4630 = vpop.f32.mrf.mxu0
      %v4631 = vadd.f32 0.0, %v4630
      %4632 = vmatmul.bf16.gmra.mxu0 %v4515
      %v4633 = vpop.f32.mrf.mxu0
      %v4634 = vadd.f32 0.0, %v4633
      %v4635 = vpop.f32.mrf.mxu0
      %v4636 = vadd.f32 0.0, %v4635
      %4637 = vmatmul.bf16.gmra.mxu0 %v4516
      %v4638 = vpop.f32.mrf.mxu0
      %v4639 = vadd.f32 0.0, %v4638
      %v4640 = vpop.f32.mrf.mxu0
      %v4641 = vadd.f32 0.0, %v4640
      %4642 = vmatmul.bf16.gmra.mxu0 %v4517
      %v4643 = vpop.f32.mrf.mxu0
      %v4644 = vadd.f32 0.0, %v4643
      %v4645 = vpop.f32.mrf.mxu0
      %v4646 = vadd.f32 0.0, %v4645
      %4647 = vmatmul.bf16.gmra.mxu0 %v4518
      %v4648 = vpop.f32.mrf.mxu0
      %v4649 = vadd.f32 0.0, %v4648
      %v4650 = vpop.f32.mrf.mxu0
      %v4651 = vadd.f32 0.0, %v4650
      %4652 = vmatmul.bf16.gmra.mxu0 %v4519
      %v4653 = vpop.f32.mrf.mxu0
      %v4654 = vadd.f32 0.0, %v4653
      %v4655 = vpop.f32.mrf.mxu0
      %v4656 = vadd.f32 0.0, %v4655
      %4657 = vmatmul.bf16.gmra.mxu0 %v4520
      %v4658 = vpop.f32.mrf.mxu0
      %v4659 = vadd.f32 0.0, %v4658
      %v4660 = vpop.f32.mrf.mxu0
      %v4661 = vadd.f32 0.0, %v4660
      %4662 = vmatmul.bf16.gmra.mxu0 %v4521
      %v4663 = vpop.f32.mrf.mxu0
      %v4664 = vadd.f32 0.0, %v4663
      %v4665 = vpop.f32.mrf.mxu0
      %v4666 = vadd.f32 0.0, %v4665
      %4667 = vmatmul.bf16.gmra.mxu0 %v4522
      %v4668 = vpop.f32.mrf.mxu0
      %v4669 = vadd.f32 0.0, %v4668
      %v4670 = vpop.f32.mrf.mxu0
      %v4671 = vadd.f32 0.0, %v4670
      %4672 = vmatmul.bf16.gmra.mxu0 %v4523
      %v4673 = vpop.f32.mrf.mxu0
      %v4674 = vadd.f32 0.0, %v4673
      %v4675 = vpop.f32.mrf.mxu0
      %v4676 = vadd.f32 0.0, %v4675
      %4677 = vdwg.mxu0
      %v4678 = vadd.f32 %v4444, %v4599
      %v4679 = vadd.f32 %v4445, %v4601
      %v4680 = vadd.f32 %v4446, %v4604
      %v4681 = vadd.f32 %v4447, %v4606
      %v4682 = vadd.f32 %v4448, %v4609
      %v4683 = vadd.f32 %v4449, %v4611
      %v4684 = vadd.f32 %v4450, %v4614
      %v4685 = vadd.f32 %v4451, %v4616
      %v4686 = vadd.f32 %v4452, %v4619
      %v4687 = vadd.f32 %v4453, %v4621
      %v4688 = vadd.f32 %v4454, %v4624
      %v4689 = vadd.f32 %v4455, %v4626
      %v4690 = vadd.f32 %v4456, %v4629
      %v4691 = vadd.f32 %v4457, %v4631
      %v4692 = vadd.f32 %v4458, %v4634
      %v4693 = vadd.f32 %v4459, %v4636
      %v4694 = vadd.f32 %v4460, %v4639
      %v4695 = vadd.f32 %v4461, %v4641
      %v4696 = vadd.f32 %v4462, %v4644
      %v4697 = vadd.f32 %v4463, %v4646
      %v4698 = vadd.f32 %v4464, %v4649
      %v4699 = vadd.f32 %v4465, %v4651
      %v4700 = vadd.f32 %v4466, %v4654
      %v4701 = vadd.f32 %v4467, %v4656
      %v4702 = vadd.f32 %v4468, %v4659
      %v4703 = vadd.f32 %v4469, %v4661
      %v4704 = vadd.f32 %v4470, %v4664
      %v4705 = vadd.f32 %v4471, %v4666
      %v4706 = vadd.f32 %v4472, %v4669
      %v4707 = vadd.f32 %v4473, %v4671
      %v4708 = vadd.f32 %v4474, %v4674
      %v4709 = vadd.f32 %v4475, %v4676
      %v4710 = vld [vmem:[%s2055] sm:$0xff]
      %v4711 = vld [vmem:[%s2055 + $0x8] sm:$0xff]
      %v4712 = vld [vmem:[%s2055 + $0x18] sm:$0xff]
      %v4713 = vld [vmem:[%s2055 + $0x20] sm:$0xff]
      %v4714 = vld [vmem:[%s2055 + $0x30] sm:$0xff]
      %v4715 = vld [vmem:[%s2055 + $0x38] sm:$0xff]
      %v4716 = vld [vmem:[%s2055 + $0x48] sm:$0xff]
      %v4717 = vld [vmem:[%s2055 + $0x50] sm:$0xff]
      %v4718 = vld [vmem:[%s2055 + $0x60] sm:$0xff]
      %v4719 = vld [vmem:[%s2055 + $0x68] sm:$0xff]
      %v4720 = vld [vmem:[%s2055 + $0x78] sm:$0xff]
      %v4721 = vld [vmem:[%s2055 + $0x80] sm:$0xff]
      %v4722 = vld [vmem:[%s2055 + $0x90] sm:$0xff]
      %v4723 = vld [vmem:[%s2055 + $0x98] sm:$0xff]
      %v4724 = vld [vmem:[%s2055 + $0xa8] sm:$0xff]
      %v4725 = vld [vmem:[%s2055 + $0xb0] sm:$0xff]
      %v4726 = vld [vmem:[%s2055 + $0xc0] sm:$0xff]
      %v4727 = vld [vmem:[%s2055 + $0xc8] sm:$0xff]
      %v4728 = vld [vmem:[%s2055 + $0xd8] sm:$0xff]
      %v4729 = vld [vmem:[%s2055 + $0xe0] sm:$0xff]
      %v4730 = vld [vmem:[%s2055 + $0xf0] sm:$0xff]
      %v4731 = vld [vmem:[%s2055 + $0xf8] sm:$0xff]
      %v4732 = vld [vmem:[%s2055 + $0x108] sm:$0xff]
      %v4733 = vld [vmem:[%s2055 + $0x110] sm:$0xff]
      %v4734 = vld [vmem:[%s2055 + $0x120] sm:$0xff]
      %v4735 = vld [vmem:[%s2055 + $0x128] sm:$0xff]
      %v4736 = vld [vmem:[%s2055 + $0x138] sm:$0xff]
      %v4737 = vld [vmem:[%s2055 + $0x140] sm:$0xff]
      %v4738 = vld [vmem:[%s2055 + $0x150] sm:$0xff]
      %v4739 = vld [vmem:[%s2055 + $0x158] sm:$0xff]
      %v4740 = vld [vmem:[%s2055 + $0x168] sm:$0xff]
      %v4741 = vld [vmem:[%s2055 + $0x170] sm:$0xff]
      %v4742 = vpack.c.bf16 %v4711, %v4710
      %v4743 = vpack.c.bf16 %v4713, %v4712
      %v4744 = vpack.c.bf16 %v4715, %v4714
      %v4745 = vpack.c.bf16 %v4717, %v4716
      %v4746 = vpack.c.bf16 %v4719, %v4718
      %v4747 = vpack.c.bf16 %v4721, %v4720
      %v4748 = vpack.c.bf16 %v4723, %v4722
      %v4749 = vpack.c.bf16 %v4725, %v4724
      %v4750 = vpack.c.bf16 %v4727, %v4726
      %v4751 = vpack.c.bf16 %v4729, %v4728
      %v4752 = vpack.c.bf16 %v4731, %v4730
      %v4753 = vpack.c.bf16 %v4733, %v4732
      %v4754 = vpack.c.bf16 %v4735, %v4734
      %v4755 = vpack.c.bf16 %v4737, %v4736
      %v4756 = vpack.c.bf16 %v4739, %v4738
      %v4757 = vpack.c.bf16 %v4741, %v4740
      %s4758 = scalar_lea.vmem %s2, 960
      %v4759 = vld [vmem:[%s4758] sm:$0xf]
      %v4760 = vld [vmem:[%s4758 + $0x4] sm:$0xf]
      %v4761 = vld [vmem:[%s4758 + $0x8] sm:$0xf]
      %v4762 = vld [vmem:[%s4758 + $0xc] sm:$0xf]
      %v4763 = vld [vmem:[%s4758 + $0x10] sm:$0xf]
      %v4764 = vld [vmem:[%s4758 + $0x14] sm:$0xf]
      %v4765 = vld [vmem:[%s4758 + $0x18] sm:$0xf]
      %v4766 = vld [vmem:[%s4758 + $0x1c] sm:$0xf]
      %v4767 = vld [vmem:[%s4758 + $0x20] sm:$0xf]
      %v4768 = vld [vmem:[%s4758 + $0x24] sm:$0xf]
      %v4769 = vld [vmem:[%s4758 + $0x28] sm:$0xf]
      %v4770 = vld [vmem:[%s4758 + $0x2c] sm:$0xf]
      %v4771 = vld [vmem:[%s4758 + $0x30] sm:$0xf]
      %v4772 = vld [vmem:[%s4758 + $0x34] sm:$0xf]
      %v4773 = vld [vmem:[%s4758 + $0x38] sm:$0xf]
      %v4774 = vld [vmem:[%s4758 + $0x3c] sm:$0xf]
      %v4791 = vunpack.c.l.b16 %v4759
      %v4792 = vunpack.c.l.b16 %v4760
      %v4793 = vunpack.c.l.b16 %v4761
      %v4794 = vunpack.c.l.b16 %v4762
      %v4795 = vunpack.c.l.b16 %v4763
      %v4796 = vunpack.c.l.b16 %v4764
      %v4797 = vunpack.c.l.b16 %v4765
      %v4798 = vunpack.c.l.b16 %v4766
      %v4799 = vunpack.c.l.b16 %v4767
      %v4800 = vunpack.c.l.b16 %v4768
      %v4801 = vunpack.c.l.b16 %v4769
      %v4802 = vunpack.c.l.b16 %v4770
      %v4803 = vunpack.c.l.b16 %v4771
      %v4804 = vunpack.c.l.b16 %v4772
      %v4805 = vunpack.c.l.b16 %v4773
      %v4806 = vunpack.c.l.b16 %v4774
      %v4807 = vpack.c.b16 %v4792, %v4791
      %v4808 = vpack.c.b16 %v4794, %v4793
      %v4809 = vpack.c.b16 %v4796, %v4795
      %v4810 = vpack.c.b16 %v4798, %v4797
      %v4811 = vpack.c.b16 %v4800, %v4799
      %v4812 = vpack.c.b16 %v4802, %v4801
      %v4813 = vpack.c.b16 %v4804, %v4803
      %v4814 = vpack.c.b16 %v4806, %v4805
      %4823 = vmatpush.bf16.msra.mxu0 %v4814
      %4824 = vmatpush.bf16.msra.mxu0 %v4813
      %4825 = vmatpush.bf16.msra.mxu0 %v4812
      %4826 = vmatpush.bf16.msra.mxu0 %v4811
      %4827 = vmatpush.bf16.msra.mxu0 %v4810
      %4828 = vmatpush.bf16.msra.mxu0 %v4809
      %4829 = vmatpush.bf16.msra.mxu0 %v4808
      %4830 = vmatpush.bf16.msra.mxu0 %v4807
      %4831 = vmatmul.bf16.gmra.mxu0 %v4742
      %v4832 = vpop.f32.mrf.mxu0
      %v4833 = vadd.f32 0.0, %v4832
      %v4834 = vpop.f32.mrf.mxu0
      %v4835 = vadd.f32 0.0, %v4834
      %4836 = vmatmul.bf16.gmra.mxu0 %v4743
      %v4837 = vpop.f32.mrf.mxu0
      %v4838 = vadd.f32 0.0, %v4837
      %v4839 = vpop.f32.mrf.mxu0
      %v4840 = vadd.f32 0.0, %v4839
      %4841 = vmatmul.bf16.gmra.mxu0 %v4744
      %v4842 = vpop.f32.mrf.mxu0
      %v4843 = vadd.f32 0.0, %v4842
      %v4844 = vpop.f32.mrf.mxu0
      %v4845 = vadd.f32 0.0, %v4844
      %4846 = vmatmul.bf16.gmra.mxu0 %v4745
      %v4847 = vpop.f32.mrf.mxu0
      %v4848 = vadd.f32 0.0, %v4847
      %v4849 = vpop.f32.mrf.mxu0
      %v4850 = vadd.f32 0.0, %v4849
      %4851 = vmatmul.bf16.gmra.mxu0 %v4746
      %v4852 = vpop.f32.mrf.mxu0
      %v4853 = vadd.f32 0.0, %v4852
      %v4854 = vpop.f32.mrf.mxu0
      %v4855 = vadd.f32 0.0, %v4854
      %4856 = vmatmul.bf16.gmra.mxu0 %v4747
      %v4857 = vpop.f32.mrf.mxu0
      %v4858 = vadd.f32 0.0, %v4857
      %v4859 = vpop.f32.mrf.mxu0
      %v4860 = vadd.f32 0.0, %v4859
      %4861 = vmatmul.bf16.gmra.mxu0 %v4748
      %v4862 = vpop.f32.mrf.mxu0
      %v4863 = vadd.f32 0.0, %v4862
      %v4864 = vpop.f32.mrf.mxu0
      %v4865 = vadd.f32 0.0, %v4864
      %4866 = vmatmul.bf16.gmra.mxu0 %v4749
      %v4867 = vpop.f32.mrf.mxu0
      %v4868 = vadd.f32 0.0, %v4867
      %v4869 = vpop.f32.mrf.mxu0
      %v4870 = vadd.f32 0.0, %v4869
      %4871 = vmatmul.bf16.gmra.mxu0 %v4750
      %v4872 = vpop.f32.mrf.mxu0
      %v4873 = vadd.f32 0.0, %v4872
      %v4874 = vpop.f32.mrf.mxu0
      %v4875 = vadd.f32 0.0, %v4874
      %4876 = vmatmul.bf16.gmra.mxu0 %v4751
      %v4877 = vpop.f32.mrf.mxu0
      %v4878 = vadd.f32 0.0, %v4877
      %v4879 = vpop.f32.mrf.mxu0
      %v4880 = vadd.f32 0.0, %v4879
      %4881 = vmatmul.bf16.gmra.mxu0 %v4752
      %v4882 = vpop.f32.mrf.mxu0
      %v4883 = vadd.f32 0.0, %v4882
      %v4884 = vpop.f32.mrf.mxu0
      %v4885 = vadd.f32 0.0, %v4884
      %4886 = vmatmul.bf16.gmra.mxu0 %v4753
      %v4887 = vpop.f32.mrf.mxu0
      %v4888 = vadd.f32 0.0, %v4887
      %v4889 = vpop.f32.mrf.mxu0
      %v4890 = vadd.f32 0.0, %v4889
      %4891 = vmatmul.bf16.gmra.mxu0 %v4754
      %v4892 = vpop.f32.mrf.mxu0
      %v4893 = vadd.f32 0.0, %v4892
      %v4894 = vpop.f32.mrf.mxu0
      %v4895 = vadd.f32 0.0, %v4894
      %4896 = vmatmul.bf16.gmra.mxu0 %v4755
      %v4897 = vpop.f32.mrf.mxu0
      %v4898 = vadd.f32 0.0, %v4897
      %v4899 = vpop.f32.mrf.mxu0
      %v4900 = vadd.f32 0.0, %v4899
      %4901 = vmatmul.bf16.gmra.mxu0 %v4756
      %v4902 = vpop.f32.mrf.mxu0
      %v4903 = vadd.f32 0.0, %v4902
      %v4904 = vpop.f32.mrf.mxu0
      %v4905 = vadd.f32 0.0, %v4904
      %4906 = vmatmul.bf16.gmra.mxu0 %v4757
      %v4907 = vpop.f32.mrf.mxu0
      %v4908 = vadd.f32 0.0, %v4907
      %v4909 = vpop.f32.mrf.mxu0
      %v4910 = vadd.f32 0.0, %v4909
      %4911 = vdwg.mxu0
      %v4912 = vadd.f32 %v4678, %v4833
      %v4913 = vadd.f32 %v4679, %v4835
      %v4914 = vadd.f32 %v4680, %v4838
      %v4915 = vadd.f32 %v4681, %v4840
      %v4916 = vadd.f32 %v4682, %v4843
      %v4917 = vadd.f32 %v4683, %v4845
      %v4918 = vadd.f32 %v4684, %v4848
      %v4919 = vadd.f32 %v4685, %v4850
      %v4920 = vadd.f32 %v4686, %v4853
      %v4921 = vadd.f32 %v4687, %v4855
      %v4922 = vadd.f32 %v4688, %v4858
      %v4923 = vadd.f32 %v4689, %v4860
      %v4924 = vadd.f32 %v4690, %v4863
      %v4925 = vadd.f32 %v4691, %v4865
      %v4926 = vadd.f32 %v4692, %v4868
      %v4927 = vadd.f32 %v4693, %v4870
      %v4928 = vadd.f32 %v4694, %v4873
      %v4929 = vadd.f32 %v4695, %v4875
      %v4930 = vadd.f32 %v4696, %v4878
      %v4931 = vadd.f32 %v4697, %v4880
      %v4932 = vadd.f32 %v4698, %v4883
      %v4933 = vadd.f32 %v4699, %v4885
      %v4934 = vadd.f32 %v4700, %v4888
      %v4935 = vadd.f32 %v4701, %v4890
      %v4936 = vadd.f32 %v4702, %v4893
      %v4937 = vadd.f32 %v4703, %v4895
      %v4938 = vadd.f32 %v4704, %v4898
      %v4939 = vadd.f32 %v4705, %v4900
      %v4940 = vadd.f32 %v4706, %v4903
      %v4941 = vadd.f32 %v4707, %v4905
      %v4942 = vadd.f32 %v4708, %v4908
      %v4943 = vadd.f32 %v4709, %v4910
      %v4944 = vld [vmem:[%s2055 + $0x1] sm:$0xff]
      %v4945 = vld [vmem:[%s2055 + $0x9] sm:$0xff]
      %v4946 = vld [vmem:[%s2055 + $0x19] sm:$0xff]
      %v4947 = vld [vmem:[%s2055 + $0x21] sm:$0xff]
      %v4948 = vld [vmem:[%s2055 + $0x31] sm:$0xff]
      %v4949 = vld [vmem:[%s2055 + $0x39] sm:$0xff]
      %v4950 = vld [vmem:[%s2055 + $0x49] sm:$0xff]
      %v4951 = vld [vmem:[%s2055 + $0x51] sm:$0xff]
      %v4952 = vld [vmem:[%s2055 + $0x61] sm:$0xff]
      %v4953 = vld [vmem:[%s2055 + $0x69] sm:$0xff]
      %v4954 = vld [vmem:[%s2055 + $0x79] sm:$0xff]
      %v4955 = vld [vmem:[%s2055 + $0x81] sm:$0xff]
      %v4956 = vld [vmem:[%s2055 + $0x91] sm:$0xff]
      %v4957 = vld [vmem:[%s2055 + $0x99] sm:$0xff]
      %v4958 = vld [vmem:[%s2055 + $0xa9] sm:$0xff]
      %v4959 = vld [vmem:[%s2055 + $0xb1] sm:$0xff]
      %v4960 = vld [vmem:[%s2055 + $0xc1] sm:$0xff]
      %v4961 = vld [vmem:[%s2055 + $0xc9] sm:$0xff]
      %v4962 = vld [vmem:[%s2055 + $0xd9] sm:$0xff]
      %v4963 = vld [vmem:[%s2055 + $0xe1] sm:$0xff]
      %v4964 = vld [vmem:[%s2055 + $0xf1] sm:$0xff]
      %v4965 = vld [vmem:[%s2055 + $0xf9] sm:$0xff]
      %v4966 = vld [vmem:[%s2055 + $0x109] sm:$0xff]
      %v4967 = vld [vmem:[%s2055 + $0x111] sm:$0xff]
      %v4968 = vld [vmem:[%s2055 + $0x121] sm:$0xff]
      %v4969 = vld [vmem:[%s2055 + $0x129] sm:$0xff]
      %v4970 = vld [vmem:[%s2055 + $0x139] sm:$0xff]
      %v4971 = vld [vmem:[%s2055 + $0x141] sm:$0xff]
      %v4972 = vld [vmem:[%s2055 + $0x151] sm:$0xff]
      %v4973 = vld [vmem:[%s2055 + $0x159] sm:$0xff]
      %v4974 = vld [vmem:[%s2055 + $0x169] sm:$0xff]
      %v4975 = vld [vmem:[%s2055 + $0x171] sm:$0xff]
      %v4976 = vpack.c.bf16 %v4945, %v4944
      %v4977 = vpack.c.bf16 %v4947, %v4946
      %v4978 = vpack.c.bf16 %v4949, %v4948
      %v4979 = vpack.c.bf16 %v4951, %v4950
      %v4980 = vpack.c.bf16 %v4953, %v4952
      %v4981 = vpack.c.bf16 %v4955, %v4954
      %v4982 = vpack.c.bf16 %v4957, %v4956
      %v4983 = vpack.c.bf16 %v4959, %v4958
      %v4984 = vpack.c.bf16 %v4961, %v4960
      %v4985 = vpack.c.bf16 %v4963, %v4962
      %v4986 = vpack.c.bf16 %v4965, %v4964
      %v4987 = vpack.c.bf16 %v4967, %v4966
      %v4988 = vpack.c.bf16 %v4969, %v4968
      %v4989 = vpack.c.bf16 %v4971, %v4970
      %v4990 = vpack.c.bf16 %v4973, %v4972
      %v4991 = vpack.c.bf16 %v4975, %v4974
      %s4992 = scalar_lea.vmem %s2, 1024
      %v4993 = vld [vmem:[%s4992] sm:$0xf]
      %v4994 = vld [vmem:[%s4992 + $0x4] sm:$0xf]
      %v4995 = vld [vmem:[%s4992 + $0x8] sm:$0xf]
      %v4996 = vld [vmem:[%s4992 + $0xc] sm:$0xf]
      %v4997 = vld [vmem:[%s4992 + $0x10] sm:$0xf]
      %v4998 = vld [vmem:[%s4992 + $0x14] sm:$0xf]
      %v4999 = vld [vmem:[%s4992 + $0x18] sm:$0xf]
      %v5000 = vld [vmem:[%s4992 + $0x1c] sm:$0xf]
      %v5001 = vld [vmem:[%s4992 + $0x20] sm:$0xf]
      %v5002 = vld [vmem:[%s4992 + $0x24] sm:$0xf]
      %v5003 = vld [vmem:[%s4992 + $0x28] sm:$0xf]
      %v5004 = vld [vmem:[%s4992 + $0x2c] sm:$0xf]
      %v5005 = vld [vmem:[%s4992 + $0x30] sm:$0xf]
      %v5006 = vld [vmem:[%s4992 + $0x34] sm:$0xf]
      %v5007 = vld [vmem:[%s4992 + $0x38] sm:$0xf]
      %v5008 = vld [vmem:[%s4992 + $0x3c] sm:$0xf]
      %v5025 = vunpack.c.l.b16 %v4993
      %v5026 = vunpack.c.l.b16 %v4994
      %v5027 = vunpack.c.l.b16 %v4995
      %v5028 = vunpack.c.l.b16 %v4996
      %v5029 = vunpack.c.l.b16 %v4997
      %v5030 = vunpack.c.l.b16 %v4998
      %v5031 = vunpack.c.l.b16 %v4999
      %v5032 = vunpack.c.l.b16 %v5000
      %v5033 = vunpack.c.l.b16 %v5001
      %v5034 = vunpack.c.l.b16 %v5002
      %v5035 = vunpack.c.l.b16 %v5003
      %v5036 = vunpack.c.l.b16 %v5004
      %v5037 = vunpack.c.l.b16 %v5005
      %v5038 = vunpack.c.l.b16 %v5006
      %v5039 = vunpack.c.l.b16 %v5007
      %v5040 = vunpack.c.l.b16 %v5008
      %v5041 = vpack.c.b16 %v5026, %v5025
      %v5042 = vpack.c.b16 %v5028, %v5027
      %v5043 = vpack.c.b16 %v5030, %v5029
      %v5044 = vpack.c.b16 %v5032, %v5031
      %v5045 = vpack.c.b16 %v5034, %v5033
      %v5046 = vpack.c.b16 %v5036, %v5035
      %v5047 = vpack.c.b16 %v5038, %v5037
      %v5048 = vpack.c.b16 %v5040, %v5039
      %5057 = vmatpush.bf16.msra.mxu0 %v5048
      %5058 = vmatpush.bf16.msra.mxu0 %v5047
      %5059 = vmatpush.bf16.msra.mxu0 %v5046
      %5060 = vmatpush.bf16.msra.mxu0 %v5045
      %5061 = vmatpush.bf16.msra.mxu0 %v5044
      %5062 = vmatpush.bf16.msra.mxu0 %v5043
      %5063 = vmatpush.bf16.msra.mxu0 %v5042
      %5064 = vmatpush.bf16.msra.mxu0 %v5041
      %5065 = vmatmul.bf16.gmra.mxu0 %v4976
      %v5066 = vpop.f32.mrf.mxu0
      %v5067 = vadd.f32 0.0, %v5066
      %v5068 = vpop.f32.mrf.mxu0
      %v5069 = vadd.f32 0.0, %v5068
      %5070 = vmatmul.bf16.gmra.mxu0 %v4977
      %v5071 = vpop.f32.mrf.mxu0
      %v5072 = vadd.f32 0.0, %v5071
      %v5073 = vpop.f32.mrf.mxu0
      %v5074 = vadd.f32 0.0, %v5073
      %5075 = vmatmul.bf16.gmra.mxu0 %v4978
      %v5076 = vpop.f32.mrf.mxu0
      %v5077 = vadd.f32 0.0, %v5076
      %v5078 = vpop.f32.mrf.mxu0
      %v5079 = vadd.f32 0.0, %v5078
      %5080 = vmatmul.bf16.gmra.mxu0 %v4979
      %v5081 = vpop.f32.mrf.mxu0
      %v5082 = vadd.f32 0.0, %v5081
      %v5083 = vpop.f32.mrf.mxu0
      %v5084 = vadd.f32 0.0, %v5083
      %5085 = vmatmul.bf16.gmra.mxu0 %v4980
      %v5086 = vpop.f32.mrf.mxu0
      %v5087 = vadd.f32 0.0, %v5086
      %v5088 = vpop.f32.mrf.mxu0
      %v5089 = vadd.f32 0.0, %v5088
      %5090 = vmatmul.bf16.gmra.mxu0 %v4981
      %v5091 = vpop.f32.mrf.mxu0
      %v5092 = vadd.f32 0.0, %v5091
      %v5093 = vpop.f32.mrf.mxu0
      %v5094 = vadd.f32 0.0, %v5093
      %5095 = vmatmul.bf16.gmra.mxu0 %v4982
      %v5096 = vpop.f32.mrf.mxu0
      %v5097 = vadd.f32 0.0, %v5096
      %v5098 = vpop.f32.mrf.mxu0
      %v5099 = vadd.f32 0.0, %v5098
      %5100 = vmatmul.bf16.gmra.mxu0 %v4983
      %v5101 = vpop.f32.mrf.mxu0
      %v5102 = vadd.f32 0.0, %v5101
      %v5103 = vpop.f32.mrf.mxu0
      %v5104 = vadd.f32 0.0, %v5103
      %5105 = vmatmul.bf16.gmra.mxu0 %v4984
      %v5106 = vpop.f32.mrf.mxu0
      %v5107 = vadd.f32 0.0, %v5106
      %v5108 = vpop.f32.mrf.mxu0
      %v5109 = vadd.f32 0.0, %v5108
      %5110 = vmatmul.bf16.gmra.mxu0 %v4985
      %v5111 = vpop.f32.mrf.mxu0
      %v5112 = vadd.f32 0.0, %v5111
      %v5113 = vpop.f32.mrf.mxu0
      %v5114 = vadd.f32 0.0, %v5113
      %5115 = vmatmul.bf16.gmra.mxu0 %v4986
      %v5116 = vpop.f32.mrf.mxu0
      %v5117 = vadd.f32 0.0, %v5116
      %v5118 = vpop.f32.mrf.mxu0
      %v5119 = vadd.f32 0.0, %v5118
      %5120 = vmatmul.bf16.gmra.mxu0 %v4987
      %v5121 = vpop.f32.mrf.mxu0
      %v5122 = vadd.f32 0.0, %v5121
      %v5123 = vpop.f32.mrf.mxu0
      %v5124 = vadd.f32 0.0, %v5123
      %5125 = vmatmul.bf16.gmra.mxu0 %v4988
      %v5126 = vpop.f32.mrf.mxu0
      %v5127 = vadd.f32 0.0, %v5126
      %v5128 = vpop.f32.mrf.mxu0
      %v5129 = vadd.f32 0.0, %v5128
      %5130 = vmatmul.bf16.gmra.mxu0 %v4989
      %v5131 = vpop.f32.mrf.mxu0
      %v5132 = vadd.f32 0.0, %v5131
      %v5133 = vpop.f32.mrf.mxu0
      %v5134 = vadd.f32 0.0, %v5133
      %5135 = vmatmul.bf16.gmra.mxu0 %v4990
      %v5136 = vpop.f32.mrf.mxu0
      %v5137 = vadd.f32 0.0, %v5136
      %v5138 = vpop.f32.mrf.mxu0
      %v5139 = vadd.f32 0.0, %v5138
      %5140 = vmatmul.bf16.gmra.mxu0 %v4991
      %v5141 = vpop.f32.mrf.mxu0
      %v5142 = vadd.f32 0.0, %v5141
      %v5143 = vpop.f32.mrf.mxu0
      %v5144 = vadd.f32 0.0, %v5143
      %5145 = vdwg.mxu0
      %v5146 = vadd.f32 %v4912, %v5067
      %v5147 = vadd.f32 %v4913, %v5069
      %v5148 = vadd.f32 %v4914, %v5072
      %v5149 = vadd.f32 %v4915, %v5074
      %v5150 = vadd.f32 %v4916, %v5077
      %v5151 = vadd.f32 %v4917, %v5079
      %v5152 = vadd.f32 %v4918, %v5082
      %v5153 = vadd.f32 %v4919, %v5084
      %v5154 = vadd.f32 %v4920, %v5087
      %v5155 = vadd.f32 %v4921, %v5089
      %v5156 = vadd.f32 %v4922, %v5092
      %v5157 = vadd.f32 %v4923, %v5094
      %v5158 = vadd.f32 %v4924, %v5097
      %v5159 = vadd.f32 %v4925, %v5099
      %v5160 = vadd.f32 %v4926, %v5102
      %v5161 = vadd.f32 %v4927, %v5104
      %v5162 = vadd.f32 %v4928, %v5107
      %v5163 = vadd.f32 %v4929, %v5109
      %v5164 = vadd.f32 %v4930, %v5112
      %v5165 = vadd.f32 %v4931, %v5114
      %v5166 = vadd.f32 %v4932, %v5117
      %v5167 = vadd.f32 %v4933, %v5119
      %v5168 = vadd.f32 %v4934, %v5122
      %v5169 = vadd.f32 %v4935, %v5124
      %v5170 = vadd.f32 %v4936, %v5127
      %v5171 = vadd.f32 %v4937, %v5129
      %v5172 = vadd.f32 %v4938, %v5132
      %v5173 = vadd.f32 %v4939, %v5134
      %v5174 = vadd.f32 %v4940, %v5137
      %v5175 = vadd.f32 %v4941, %v5139
      %v5176 = vadd.f32 %v4942, %v5142
      %v5177 = vadd.f32 %v4943, %v5144
      %v5178 = vld [vmem:[%s2055 + $0x2] sm:$0xff]
      %v5179 = vld [vmem:[%s2055 + $0xa] sm:$0xff]
      %v5180 = vld [vmem:[%s2055 + $0x1a] sm:$0xff]
      %v5181 = vld [vmem:[%s2055 + $0x22] sm:$0xff]
      %v5182 = vld [vmem:[%s2055 + $0x32] sm:$0xff]
      %v5183 = vld [vmem:[%s2055 + $0x3a] sm:$0xff]
      %v5184 = vld [vmem:[%s2055 + $0x4a] sm:$0xff]
      %v5185 = vld [vmem:[%s2055 + $0x52] sm:$0xff]
      %v5186 = vld [vmem:[%s2055 + $0x62] sm:$0xff]
      %v5187 = vld [vmem:[%s2055 + $0x6a] sm:$0xff]
      %v5188 = vld [vmem:[%s2055 + $0x7a] sm:$0xff]
      %v5189 = vld [vmem:[%s2055 + $0x82] sm:$0xff]
      %v5190 = vld [vmem:[%s2055 + $0x92] sm:$0xff]
      %v5191 = vld [vmem:[%s2055 + $0x9a] sm:$0xff]
      %v5192 = vld [vmem:[%s2055 + $0xaa] sm:$0xff]
      %v5193 = vld [vmem:[%s2055 + $0xb2] sm:$0xff]
      %v5194 = vld [vmem:[%s2055 + $0xc2] sm:$0xff]
      %v5195 = vld [vmem:[%s2055 + $0xca] sm:$0xff]
      %v5196 = vld [vmem:[%s2055 + $0xda] sm:$0xff]
      %v5197 = vld [vmem:[%s2055 + $0xe2] sm:$0xff]
      %v5198 = vld [vmem:[%s2055 + $0xf2] sm:$0xff]
      %v5199 = vld [vmem:[%s2055 + $0xfa] sm:$0xff]
      %v5200 = vld [vmem:[%s2055 + $0x10a] sm:$0xff]
      %v5201 = vld [vmem:[%s2055 + $0x112] sm:$0xff]
      %v5202 = vld [vmem:[%s2055 + $0x122] sm:$0xff]
      %v5203 = vld [vmem:[%s2055 + $0x12a] sm:$0xff]
      %v5204 = vld [vmem:[%s2055 + $0x13a] sm:$0xff]
      %v5205 = vld [vmem:[%s2055 + $0x142] sm:$0xff]
      %v5206 = vld [vmem:[%s2055 + $0x152] sm:$0xff]
      %v5207 = vld [vmem:[%s2055 + $0x15a] sm:$0xff]
      %v5208 = vld [vmem:[%s2055 + $0x16a] sm:$0xff]
      %v5209 = vld [vmem:[%s2055 + $0x172] sm:$0xff]
      %v5210 = vpack.c.bf16 %v5179, %v5178
      %v5211 = vpack.c.bf16 %v5181, %v5180
      %v5212 = vpack.c.bf16 %v5183, %v5182
      %v5213 = vpack.c.bf16 %v5185, %v5184
      %v5214 = vpack.c.bf16 %v5187, %v5186
      %v5215 = vpack.c.bf16 %v5189, %v5188
      %v5216 = vpack.c.bf16 %v5191, %v5190
      %v5217 = vpack.c.bf16 %v5193, %v5192
      %v5218 = vpack.c.bf16 %v5195, %v5194
      %v5219 = vpack.c.bf16 %v5197, %v5196
      %v5220 = vpack.c.bf16 %v5199, %v5198
      %v5221 = vpack.c.bf16 %v5201, %v5200
      %v5222 = vpack.c.bf16 %v5203, %v5202
      %v5223 = vpack.c.bf16 %v5205, %v5204
      %v5224 = vpack.c.bf16 %v5207, %v5206
      %v5225 = vpack.c.bf16 %v5209, %v5208
      %s5226 = scalar_lea.vmem %s2, 1088
      %v5227 = vld [vmem:[%s5226] sm:$0xf]
      %v5228 = vld [vmem:[%s5226 + $0x4] sm:$0xf]
      %v5229 = vld [vmem:[%s5226 + $0x8] sm:$0xf]
      %v5230 = vld [vmem:[%s5226 + $0xc] sm:$0xf]
      %v5231 = vld [vmem:[%s5226 + $0x10] sm:$0xf]
      %v5232 = vld [vmem:[%s5226 + $0x14] sm:$0xf]
      %v5233 = vld [vmem:[%s5226 + $0x18] sm:$0xf]
      %v5234 = vld [vmem:[%s5226 + $0x1c] sm:$0xf]
      %v5235 = vld [vmem:[%s5226 + $0x20] sm:$0xf]
      %v5236 = vld [vmem:[%s5226 + $0x24] sm:$0xf]
      %v5237 = vld [vmem:[%s5226 + $0x28] sm:$0xf]
      %v5238 = vld [vmem:[%s5226 + $0x2c] sm:$0xf]
      %v5239 = vld [vmem:[%s5226 + $0x30] sm:$0xf]
      %v5240 = vld [vmem:[%s5226 + $0x34] sm:$0xf]
      %v5241 = vld [vmem:[%s5226 + $0x38] sm:$0xf]
      %v5242 = vld [vmem:[%s5226 + $0x3c] sm:$0xf]
      %v5259 = vunpack.c.l.b16 %v5227
      %v5260 = vunpack.c.l.b16 %v5228
      %v5261 = vunpack.c.l.b16 %v5229
      %v5262 = vunpack.c.l.b16 %v5230
      %v5263 = vunpack.c.l.b16 %v5231
      %v5264 = vunpack.c.l.b16 %v5232
      %v5265 = vunpack.c.l.b16 %v5233
      %v5266 = vunpack.c.l.b16 %v5234
      %v5267 = vunpack.c.l.b16 %v5235
      %v5268 = vunpack.c.l.b16 %v5236
      %v5269 = vunpack.c.l.b16 %v5237
      %v5270 = vunpack.c.l.b16 %v5238
      %v5271 = vunpack.c.l.b16 %v5239
      %v5272 = vunpack.c.l.b16 %v5240
      %v5273 = vunpack.c.l.b16 %v5241
      %v5274 = vunpack.c.l.b16 %v5242
      %v5275 = vpack.c.b16 %v5260, %v5259
      %v5276 = vpack.c.b16 %v5262, %v5261
      %v5277 = vpack.c.b16 %v5264, %v5263
      %v5278 = vpack.c.b16 %v5266, %v5265
      %v5279 = vpack.c.b16 %v5268, %v5267
      %v5280 = vpack.c.b16 %v5270, %v5269
      %v5281 = vpack.c.b16 %v5272, %v5271
      %v5282 = vpack.c.b16 %v5274, %v5273
      %5291 = vmatpush.bf16.msra.mxu0 %v5282
      %5292 = vmatpush.bf16.msra.mxu0 %v5281
      %5293 = vmatpush.bf16.msra.mxu0 %v5280
      %5294 = vmatpush.bf16.msra.mxu0 %v5279
      %5295 = vmatpush.bf16.msra.mxu0 %v5278
      %5296 = vmatpush.bf16.msra.mxu0 %v5277
      %5297 = vmatpush.bf16.msra.mxu0 %v5276
      %5298 = vmatpush.bf16.msra.mxu0 %v5275
      %5299 = vmatmul.bf16.gmra.mxu0 %v5210
      %v5300 = vpop.f32.mrf.mxu0
      %v5301 = vadd.f32 0.0, %v5300
      %v5302 = vpop.f32.mrf.mxu0
      %v5303 = vadd.f32 0.0, %v5302
      %5304 = vmatmul.bf16.gmra.mxu0 %v5211
      %v5305 = vpop.f32.mrf.mxu0
      %v5306 = vadd.f32 0.0, %v5305
      %v5307 = vpop.f32.mrf.mxu0
      %v5308 = vadd.f32 0.0, %v5307
      %5309 = vmatmul.bf16.gmra.mxu0 %v5212
      %v5310 = vpop.f32.mrf.mxu0
      %v5311 = vadd.f32 0.0, %v5310
      %v5312 = vpop.f32.mrf.mxu0
      %v5313 = vadd.f32 0.0, %v5312
      %5314 = vmatmul.bf16.gmra.mxu0 %v5213
      %v5315 = vpop.f32.mrf.mxu0
      %v5316 = vadd.f32 0.0, %v5315
      %v5317 = vpop.f32.mrf.mxu0
      %v5318 = vadd.f32 0.0, %v5317
      %5319 = vmatmul.bf16.gmra.mxu0 %v5214
      %v5320 = vpop.f32.mrf.mxu0
      %v5321 = vadd.f32 0.0, %v5320
      %v5322 = vpop.f32.mrf.mxu0
      %v5323 = vadd.f32 0.0, %v5322
      %5324 = vmatmul.bf16.gmra.mxu0 %v5215
      %v5325 = vpop.f32.mrf.mxu0
      %v5326 = vadd.f32 0.0, %v5325
      %v5327 = vpop.f32.mrf.mxu0
      %v5328 = vadd.f32 0.0, %v5327
      %5329 = vmatmul.bf16.gmra.mxu0 %v5216
      %v5330 = vpop.f32.mrf.mxu0
      %v5331 = vadd.f32 0.0, %v5330
      %v5332 = vpop.f32.mrf.mxu0
      %v5333 = vadd.f32 0.0, %v5332
      %5334 = vmatmul.bf16.gmra.mxu0 %v5217
      %v5335 = vpop.f32.mrf.mxu0
      %v5336 = vadd.f32 0.0, %v5335
      %v5337 = vpop.f32.mrf.mxu0
      %v5338 = vadd.f32 0.0, %v5337
      %5339 = vmatmul.bf16.gmra.mxu0 %v5218
      %v5340 = vpop.f32.mrf.mxu0
      %v5341 = vadd.f32 0.0, %v5340
      %v5342 = vpop.f32.mrf.mxu0
      %v5343 = vadd.f32 0.0, %v5342
      %5344 = vmatmul.bf16.gmra.mxu0 %v5219
      %v5345 = vpop.f32.mrf.mxu0
      %v5346 = vadd.f32 0.0, %v5345
      %v5347 = vpop.f32.mrf.mxu0
      %v5348 = vadd.f32 0.0, %v5347
      %5349 = vmatmul.bf16.gmra.mxu0 %v5220
      %v5350 = vpop.f32.mrf.mxu0
      %v5351 = vadd.f32 0.0, %v5350
      %v5352 = vpop.f32.mrf.mxu0
      %v5353 = vadd.f32 0.0, %v5352
      %5354 = vmatmul.bf16.gmra.mxu0 %v5221
      %v5355 = vpop.f32.mrf.mxu0
      %v5356 = vadd.f32 0.0, %v5355
      %v5357 = vpop.f32.mrf.mxu0
      %v5358 = vadd.f32 0.0, %v5357
      %5359 = vmatmul.bf16.gmra.mxu0 %v5222
      %v5360 = vpop.f32.mrf.mxu0
      %v5361 = vadd.f32 0.0, %v5360
      %v5362 = vpop.f32.mrf.mxu0
      %v5363 = vadd.f32 0.0, %v5362
      %5364 = vmatmul.bf16.gmra.mxu0 %v5223
      %v5365 = vpop.f32.mrf.mxu0
      %v5366 = vadd.f32 0.0, %v5365
      %v5367 = vpop.f32.mrf.mxu0
      %v5368 = vadd.f32 0.0, %v5367
      %5369 = vmatmul.bf16.gmra.mxu0 %v5224
      %v5370 = vpop.f32.mrf.mxu0
      %v5371 = vadd.f32 0.0, %v5370
      %v5372 = vpop.f32.mrf.mxu0
      %v5373 = vadd.f32 0.0, %v5372
      %5374 = vmatmul.bf16.gmra.mxu0 %v5225
      %v5375 = vpop.f32.mrf.mxu0
      %v5376 = vadd.f32 0.0, %v5375
      %v5377 = vpop.f32.mrf.mxu0
      %v5378 = vadd.f32 0.0, %v5377
      %5379 = vdwg.mxu0
      %v5380 = vadd.f32 %v5146, %v5301
      %v5381 = vadd.f32 %v5147, %v5303
      %v5382 = vadd.f32 %v5148, %v5306
      %v5383 = vadd.f32 %v5149, %v5308
      %v5384 = vadd.f32 %v5150, %v5311
      %v5385 = vadd.f32 %v5151, %v5313
      %v5386 = vadd.f32 %v5152, %v5316
      %v5387 = vadd.f32 %v5153, %v5318
      %v5388 = vadd.f32 %v5154, %v5321
      %v5389 = vadd.f32 %v5155, %v5323
      %v5390 = vadd.f32 %v5156, %v5326
      %v5391 = vadd.f32 %v5157, %v5328
      %v5392 = vadd.f32 %v5158, %v5331
      %v5393 = vadd.f32 %v5159, %v5333
      %v5394 = vadd.f32 %v5160, %v5336
      %v5395 = vadd.f32 %v5161, %v5338
      %v5396 = vadd.f32 %v5162, %v5341
      %v5397 = vadd.f32 %v5163, %v5343
      %v5398 = vadd.f32 %v5164, %v5346
      %v5399 = vadd.f32 %v5165, %v5348
      %v5400 = vadd.f32 %v5166, %v5351
      %v5401 = vadd.f32 %v5167, %v5353
      %v5402 = vadd.f32 %v5168, %v5356
      %v5403 = vadd.f32 %v5169, %v5358
      %v5404 = vadd.f32 %v5170, %v5361
      %v5405 = vadd.f32 %v5171, %v5363
      %v5406 = vadd.f32 %v5172, %v5366
      %v5407 = vadd.f32 %v5173, %v5368
      %v5408 = vadd.f32 %v5174, %v5371
      %v5409 = vadd.f32 %v5175, %v5373
      %v5410 = vadd.f32 %v5176, %v5376
      %v5411 = vadd.f32 %v5177, %v5378
      %s5412 = scalar_lea.vmem %s4, 1
      %v5413 = vld [vmem:[%s5412] sm:$0x1]
      %v5415 = vperm.slane %v5413, 0
      %v5417 = vadd.f32 %v5380, %v5415
      %v5418 = vadd.f32 %v5381, %v5415
      %v5419 = vadd.f32 %v5382, %v5415
      %v5420 = vadd.f32 %v5383, %v5415
      %v5421 = vadd.f32 %v5384, %v5415
      %v5422 = vadd.f32 %v5385, %v5415
      %v5423 = vadd.f32 %v5386, %v5415
      %v5424 = vadd.f32 %v5387, %v5415
      %v5425 = vadd.f32 %v5388, %v5415
      %v5426 = vadd.f32 %v5389, %v5415
      %v5427 = vadd.f32 %v5390, %v5415
      %v5428 = vadd.f32 %v5391, %v5415
      %v5429 = vadd.f32 %v5392, %v5415
      %v5430 = vadd.f32 %v5393, %v5415
      %v5431 = vadd.f32 %v5394, %v5415
      %v5432 = vadd.f32 %v5395, %v5415
      %v5433 = vadd.f32 %v5396, %v5415
      %v5434 = vadd.f32 %v5397, %v5415
      %v5435 = vadd.f32 %v5398, %v5415
      %v5436 = vadd.f32 %v5399, %v5415
      %v5437 = vadd.f32 %v5400, %v5415
      %v5438 = vadd.f32 %v5401, %v5415
      %v5439 = vadd.f32 %v5402, %v5415
      %v5440 = vadd.f32 %v5403, %v5415
      %v5441 = vadd.f32 %v5404, %v5415
      %v5442 = vadd.f32 %v5405, %v5415
      %v5443 = vadd.f32 %v5406, %v5415
      %v5444 = vadd.f32 %v5407, %v5415
      %v5445 = vadd.f32 %v5408, %v5415
      %v5446 = vadd.f32 %v5409, %v5415
      %v5447 = vadd.f32 %v5410, %v5415
      %v5448 = vadd.f32 %v5411, %v5415
      %v5449 = vmax.f32 %v5417, 0.0
      %v5450 = vmax.f32 %v5418, 0.0
      %v5451 = vmax.f32 %v5419, 0.0
      %v5452 = vmax.f32 %v5420, 0.0
      %v5453 = vmax.f32 %v5421, 0.0
      %v5454 = vmax.f32 %v5422, 0.0
      %v5455 = vmax.f32 %v5423, 0.0
      %v5456 = vmax.f32 %v5424, 0.0
      %v5457 = vmax.f32 %v5425, 0.0
      %v5458 = vmax.f32 %v5426, 0.0
      %v5459 = vmax.f32 %v5427, 0.0
      %v5460 = vmax.f32 %v5428, 0.0
      %v5461 = vmax.f32 %v5429, 0.0
      %v5462 = vmax.f32 %v5430, 0.0
      %v5463 = vmax.f32 %v5431, 0.0
      %v5464 = vmax.f32 %v5432, 0.0
      %v5465 = vmax.f32 %v5433, 0.0
      %v5466 = vmax.f32 %v5434, 0.0
      %v5467 = vmax.f32 %v5435, 0.0
      %v5468 = vmax.f32 %v5436, 0.0
      %v5469 = vmax.f32 %v5437, 0.0
      %v5470 = vmax.f32 %v5438, 0.0
      %v5471 = vmax.f32 %v5439, 0.0
      %v5472 = vmax.f32 %v5440, 0.0
      %v5473 = vmax.f32 %v5441, 0.0
      %v5474 = vmax.f32 %v5442, 0.0
      %v5475 = vmax.f32 %v5443, 0.0
      %v5476 = vmax.f32 %v5444, 0.0
      %v5477 = vmax.f32 %v5445, 0.0
      %v5478 = vmax.f32 %v5446, 0.0
      %v5479 = vmax.f32 %v5447, 0.0
      %v5480 = vmax.f32 %v5448, 0.0
      %v5481 = vpack.c.bf16 %v5449, %v5449
      %v5482 = vpack.c.bf16 %v5450, %v5450
      %v5483 = vpack.c.bf16 %v5451, %v5451
      %v5484 = vpack.c.bf16 %v5452, %v5452
      %v5485 = vpack.c.bf16 %v5453, %v5453
      %v5486 = vpack.c.bf16 %v5454, %v5454
      %v5487 = vpack.c.bf16 %v5455, %v5455
      %v5488 = vpack.c.bf16 %v5456, %v5456
      %v5489 = vpack.c.bf16 %v5457, %v5457
      %v5490 = vpack.c.bf16 %v5458, %v5458
      %v5491 = vpack.c.bf16 %v5459, %v5459
      %v5492 = vpack.c.bf16 %v5460, %v5460
      %v5493 = vpack.c.bf16 %v5461, %v5461
      %v5494 = vpack.c.bf16 %v5462, %v5462
      %v5495 = vpack.c.bf16 %v5463, %v5463
      %v5496 = vpack.c.bf16 %v5464, %v5464
      %v5497 = vpack.c.bf16 %v5465, %v5465
      %v5498 = vpack.c.bf16 %v5466, %v5466
      %v5499 = vpack.c.bf16 %v5467, %v5467
      %v5500 = vpack.c.bf16 %v5468, %v5468
      %v5501 = vpack.c.bf16 %v5469, %v5469
      %v5502 = vpack.c.bf16 %v5470, %v5470
      %v5503 = vpack.c.bf16 %v5471, %v5471
      %v5504 = vpack.c.bf16 %v5472, %v5472
      %v5505 = vpack.c.bf16 %v5473, %v5473
      %v5506 = vpack.c.bf16 %v5474, %v5474
      %v5507 = vpack.c.bf16 %v5475, %v5475
      %v5508 = vpack.c.bf16 %v5476, %v5476
      %v5509 = vpack.c.bf16 %v5477, %v5477
      %v5510 = vpack.c.bf16 %v5478, %v5478
      %v5511 = vpack.c.bf16 %v5479, %v5479
      %v5512 = vpack.c.bf16 %v5480, %v5480
      %5545 = vrot.lane.b32.xlu0 %v5481, 8
      %v5546 = vpop.permute.xlu0 %5545
      %5547 = vrot.lane.b32.xlu0 %v5482, 8
      %v5548 = vpop.permute.xlu0 %5547
      %5549 = vrot.lane.b32.xlu0 %v5483, 8
      %v5550 = vpop.permute.xlu0 %5549
      %5551 = vrot.lane.b32.xlu0 %v5484, 8
      %v5552 = vpop.permute.xlu0 %5551
      %5553 = vrot.lane.b32.xlu0 %v5485, 8
      %v5554 = vpop.permute.xlu0 %5553
      %5555 = vrot.lane.b32.xlu0 %v5486, 8
      %v5556 = vpop.permute.xlu0 %5555
      %5557 = vrot.lane.b32.xlu0 %v5487, 8
      %v5558 = vpop.permute.xlu0 %5557
      %5559 = vrot.lane.b32.xlu0 %v5488, 8
      %v5560 = vpop.permute.xlu0 %5559
      %5561 = vrot.lane.b32.xlu0 %v5489, 8
      %v5562 = vpop.permute.xlu0 %5561
      %5563 = vrot.lane.b32.xlu0 %v5490, 8
      %v5564 = vpop.permute.xlu0 %5563
      %5565 = vrot.lane.b32.xlu0 %v5491, 8
      %v5566 = vpop.permute.xlu0 %5565
      %5567 = vrot.lane.b32.xlu0 %v5492, 8
      %v5568 = vpop.permute.xlu0 %5567
      %5569 = vrot.lane.b32.xlu0 %v5493, 8
      %v5570 = vpop.permute.xlu0 %5569
      %5571 = vrot.lane.b32.xlu0 %v5494, 8
      %v5572 = vpop.permute.xlu0 %5571
      %5573 = vrot.lane.b32.xlu0 %v5495, 8
      %v5574 = vpop.permute.xlu0 %5573
      %5575 = vrot.lane.b32.xlu0 %v5496, 8
      %v5576 = vpop.permute.xlu0 %5575
      %5577 = vrot.lane.b32.xlu0 %v5497, 8
      %v5578 = vpop.permute.xlu0 %5577
      %5579 = vrot.lane.b32.xlu0 %v5498, 8
      %v5580 = vpop.permute.xlu0 %5579
      %5581 = vrot.lane.b32.xlu0 %v5499, 8
      %v5582 = vpop.permute.xlu0 %5581
      %5583 = vrot.lane.b32.xlu0 %v5500, 8
      %v5584 = vpop.permute.xlu0 %5583
      %5585 = vrot.lane.b32.xlu0 %v5501, 8
      %v5586 = vpop.permute.xlu0 %5585
      %5587 = vrot.lane.b32.xlu0 %v5502, 8
      %v5588 = vpop.permute.xlu0 %5587
      %5589 = vrot.lane.b32.xlu0 %v5503, 8
      %v5590 = vpop.permute.xlu0 %5589
      %5591 = vrot.lane.b32.xlu0 %v5504, 8
      %v5592 = vpop.permute.xlu0 %5591
      %5593 = vrot.lane.b32.xlu0 %v5505, 8
      %v5594 = vpop.permute.xlu0 %5593
      %5595 = vrot.lane.b32.xlu0 %v5506, 8
      %v5596 = vpop.permute.xlu0 %5595
      %5597 = vrot.lane.b32.xlu0 %v5507, 8
      %v5598 = vpop.permute.xlu0 %5597
      %5599 = vrot.lane.b32.xlu0 %v5508, 8
      %v5600 = vpop.permute.xlu0 %5599
      %5601 = vrot.lane.b32.xlu0 %v5509, 8
      %v5602 = vpop.permute.xlu0 %5601
      %5603 = vrot.lane.b32.xlu0 %v5510, 8
      %v5604 = vpop.permute.xlu0 %5603
      %5605 = vrot.lane.b32.xlu0 %v5511, 8
      %v5606 = vpop.permute.xlu0 %5605
      %5607 = vrot.lane.b32.xlu0 %v5512, 8
      %v5608 = vpop.permute.xlu0 %5607
      %vm5641 = vcmask 93248
      %5642 = vst.msk [vmem:[#allocation2] sm:$0xf] %vm5641, %v5546
      %5643 = vst.msk [vmem:[#allocation2 + $0x4] sm:$0xf] %vm5641, %v5548
      %5644 = vst.msk [vmem:[#allocation2 + $0x8] sm:$0xf] %vm5641, %v5550
      %5645 = vst.msk [vmem:[#allocation2 + $0xc] sm:$0xf] %vm5641, %v5552
      %5646 = vst.msk [vmem:[#allocation2 + $0x10] sm:$0xf] %vm5641, %v5554
      %5647 = vst.msk [vmem:[#allocation2 + $0x14] sm:$0xf] %vm5641, %v5556
      %5648 = vst.msk [vmem:[#allocation2 + $0x18] sm:$0xf] %vm5641, %v5558
      %5649 = vst.msk [vmem:[#allocation2 + $0x1c] sm:$0xf] %vm5641, %v5560
      %5650 = vst.msk [vmem:[#allocation2 + $0x20] sm:$0xf] %vm5641, %v5562
      %5651 = vst.msk [vmem:[#allocation2 + $0x24] sm:$0xf] %vm5641, %v5564
      %5652 = vst.msk [vmem:[#allocation2 + $0x28] sm:$0xf] %vm5641, %v5566
      %5653 = vst.msk [vmem:[#allocation2 + $0x2c] sm:$0xf] %vm5641, %v5568
      %5654 = vst.msk [vmem:[#allocation2 + $0x30] sm:$0xf] %vm5641, %v5570
      %5655 = vst.msk [vmem:[#allocation2 + $0x34] sm:$0xf] %vm5641, %v5572
      %5656 = vst.msk [vmem:[#allocation2 + $0x38] sm:$0xf] %vm5641, %v5574
      %5657 = vst.msk [vmem:[#allocation2 + $0x3c] sm:$0xf] %vm5641, %v5576
      %5658 = vst.msk [vmem:[#allocation2 + $0x40] sm:$0xf] %vm5641, %v5578
      %5659 = vst.msk [vmem:[#allocation2 + $0x44] sm:$0xf] %vm5641, %v5580
      %5660 = vst.msk [vmem:[#allocation2 + $0x48] sm:$0xf] %vm5641, %v5582
      %5661 = vst.msk [vmem:[#allocation2 + $0x4c] sm:$0xf] %vm5641, %v5584
      %5662 = vst.msk [vmem:[#allocation2 + $0x50] sm:$0xf] %vm5641, %v5586
      %5663 = vst.msk [vmem:[#allocation2 + $0x54] sm:$0xf] %vm5641, %v5588
      %5664 = vst.msk [vmem:[#allocation2 + $0x58] sm:$0xf] %vm5641, %v5590
      %5665 = vst.msk [vmem:[#allocation2 + $0x5c] sm:$0xf] %vm5641, %v5592
      %5666 = vst.msk [vmem:[#allocation2 + $0x60] sm:$0xf] %vm5641, %v5594
      %5667 = vst.msk [vmem:[#allocation2 + $0x64] sm:$0xf] %vm5641, %v5596
      %5668 = vst.msk [vmem:[#allocation2 + $0x68] sm:$0xf] %vm5641, %v5598
      %5669 = vst.msk [vmem:[#allocation2 + $0x6c] sm:$0xf] %vm5641, %v5600
      %5670 = vst.msk [vmem:[#allocation2 + $0x70] sm:$0xf] %vm5641, %v5602
      %5671 = vst.msk [vmem:[#allocation2 + $0x74] sm:$0xf] %vm5641, %v5604
      %5672 = vst.msk [vmem:[#allocation2 + $0x78] sm:$0xf] %vm5641, %v5606
      %5673 = vst.msk [vmem:[#allocation2 + $0x7c] sm:$0xf] %vm5641, %v5608
      %v5674 = vld [vmem:[#allocation2] sm:$0xf]
      %v5675 = vld [vmem:[#allocation2 + $0x4] sm:$0xf]
      %v5676 = vld [vmem:[#allocation2 + $0x8] sm:$0xf]
      %v5677 = vld [vmem:[#allocation2 + $0xc] sm:$0xf]
      %v5678 = vld [vmem:[#allocation2 + $0x10] sm:$0xf]
      %v5679 = vld [vmem:[#allocation2 + $0x14] sm:$0xf]
      %v5680 = vld [vmem:[#allocation2 + $0x18] sm:$0xf]
      %v5681 = vld [vmem:[#allocation2 + $0x1c] sm:$0xf]
      %v5682 = vld [vmem:[#allocation2 + $0x20] sm:$0xf]
      %v5683 = vld [vmem:[#allocation2 + $0x24] sm:$0xf]
      %v5684 = vld [vmem:[#allocation2 + $0x28] sm:$0xf]
      %v5685 = vld [vmem:[#allocation2 + $0x2c] sm:$0xf]
      %v5686 = vld [vmem:[#allocation2 + $0x30] sm:$0xf]
      %v5687 = vld [vmem:[#allocation2 + $0x34] sm:$0xf]
      %v5688 = vld [vmem:[#allocation2 + $0x38] sm:$0xf]
      %v5689 = vld [vmem:[#allocation2 + $0x3c] sm:$0xf]
      %v5690 = vld [vmem:[#allocation2 + $0x40] sm:$0xf]
      %v5691 = vld [vmem:[#allocation2 + $0x44] sm:$0xf]
      %v5692 = vld [vmem:[#allocation2 + $0x48] sm:$0xf]
      %v5693 = vld [vmem:[#allocation2 + $0x4c] sm:$0xf]
      %v5694 = vld [vmem:[#allocation2 + $0x50] sm:$0xf]
      %v5695 = vld [vmem:[#allocation2 + $0x54] sm:$0xf]
      %v5696 = vld [vmem:[#allocation2 + $0x58] sm:$0xf]
      %v5697 = vld [vmem:[#allocation2 + $0x5c] sm:$0xf]
      %v5698 = vld [vmem:[#allocation2 + $0x60] sm:$0xf]
      %v5699 = vld [vmem:[#allocation2 + $0x64] sm:$0xf]
      %v5700 = vld [vmem:[#allocation2 + $0x68] sm:$0xf]
      %v5701 = vld [vmem:[#allocation2 + $0x6c] sm:$0xf]
      %v5702 = vld [vmem:[#allocation2 + $0x70] sm:$0xf]
      %v5703 = vld [vmem:[#allocation2 + $0x74] sm:$0xf]
      %v5704 = vld [vmem:[#allocation2 + $0x78] sm:$0xf]
      %v5705 = vld [vmem:[#allocation2 + $0x7c] sm:$0xf]
      %s5706 = scalar_lea.vmem %s1, 128
      %v5707 = vld [vmem:[%s5706] sm:$0xf]
      %v5708 = vld [vmem:[%s5706 + $0x4] sm:$0xf]
      %v5709 = vld [vmem:[%s5706 + $0x8] sm:$0xf]
      %v5710 = vld [vmem:[%s5706 + $0xc] sm:$0xf]
      %v5711 = vld [vmem:[%s5706 + $0x10] sm:$0xf]
      %v5712 = vld [vmem:[%s5706 + $0x14] sm:$0xf]
      %v5713 = vld [vmem:[%s5706 + $0x18] sm:$0xf]
      %v5714 = vld [vmem:[%s5706 + $0x1c] sm:$0xf]
      %v5715 = vld [vmem:[%s5706 + $0x20] sm:$0xf]
      %v5716 = vld [vmem:[%s5706 + $0x24] sm:$0xf]
      %v5717 = vld [vmem:[%s5706 + $0x28] sm:$0xf]
      %v5718 = vld [vmem:[%s5706 + $0x2c] sm:$0xf]
      %v5719 = vld [vmem:[%s5706 + $0x30] sm:$0xf]
      %v5720 = vld [vmem:[%s5706 + $0x34] sm:$0xf]
      %v5721 = vld [vmem:[%s5706 + $0x38] sm:$0xf]
      %v5722 = vld [vmem:[%s5706 + $0x3c] sm:$0xf]
      %s5723 = scalar_lea.vmem %s3, 2
      %v5724 = vld [vmem:[%s5723] sm:$0x1]
      %v5726 = vperm.slane %v5724, 0
      %v5760 = vunpack.c.l.b16 %v5674
      %v5761 = vunpack.c.l.b16 %v5675
      %v5762 = vunpack.c.l.b16 %v5676
      %v5763 = vunpack.c.l.b16 %v5677
      %v5764 = vunpack.c.l.b16 %v5678
      %v5765 = vunpack.c.l.b16 %v5679
      %v5766 = vunpack.c.l.b16 %v5680
      %v5767 = vunpack.c.l.b16 %v5681
      %v5768 = vunpack.c.l.b16 %v5682
      %v5769 = vunpack.c.l.b16 %v5683
      %v5770 = vunpack.c.l.b16 %v5684
      %v5771 = vunpack.c.l.b16 %v5685
      %v5772 = vunpack.c.l.b16 %v5686
      %v5773 = vunpack.c.l.b16 %v5687
      %v5774 = vunpack.c.l.b16 %v5688
      %v5775 = vunpack.c.l.b16 %v5689
      %v5776 = vunpack.c.l.b16 %v5690
      %v5777 = vunpack.c.l.b16 %v5691
      %v5778 = vunpack.c.l.b16 %v5692
      %v5779 = vunpack.c.l.b16 %v5693
      %v5780 = vunpack.c.l.b16 %v5694
      %v5781 = vunpack.c.l.b16 %v5695
      %v5782 = vunpack.c.l.b16 %v5696
      %v5783 = vunpack.c.l.b16 %v5697
      %v5784 = vunpack.c.l.b16 %v5698
      %v5785 = vunpack.c.l.b16 %v5699
      %v5786 = vunpack.c.l.b16 %v5700
      %v5787 = vunpack.c.l.b16 %v5701
      %v5788 = vunpack.c.l.b16 %v5702
      %v5789 = vunpack.c.l.b16 %v5703
      %v5790 = vunpack.c.l.b16 %v5704
      %v5791 = vunpack.c.l.b16 %v5705
      %v5792 = vpack.c.b16 %v5761, %v5760
      %v5793 = vpack.c.b16 %v5763, %v5762
      %v5794 = vpack.c.b16 %v5765, %v5764
      %v5795 = vpack.c.b16 %v5767, %v5766
      %v5796 = vpack.c.b16 %v5769, %v5768
      %v5797 = vpack.c.b16 %v5771, %v5770
      %v5798 = vpack.c.b16 %v5773, %v5772
      %v5799 = vpack.c.b16 %v5775, %v5774
      %v5800 = vpack.c.b16 %v5777, %v5776
      %v5801 = vpack.c.b16 %v5779, %v5778
      %v5802 = vpack.c.b16 %v5781, %v5780
      %v5803 = vpack.c.b16 %v5783, %v5782
      %v5804 = vpack.c.b16 %v5785, %v5784
      %v5805 = vpack.c.b16 %v5787, %v5786
      %v5806 = vpack.c.b16 %v5789, %v5788
      %v5807 = vpack.c.b16 %v5791, %v5790
      %v5840 = vunpack.c.l.b16 %v5707
      %v5841 = vunpack.c.l.b16 %v5708
      %v5842 = vunpack.c.l.b16 %v5709
      %v5843 = vunpack.c.l.b16 %v5710
      %v5844 = vunpack.c.l.b16 %v5711
      %v5845 = vunpack.c.l.b16 %v5712
      %v5846 = vunpack.c.l.b16 %v5713
      %v5847 = vunpack.c.l.b16 %v5714
      %v5848 = vunpack.c.l.b16 %v5715
      %v5849 = vunpack.c.l.b16 %v5716
      %v5850 = vunpack.c.l.b16 %v5717
      %v5851 = vunpack.c.l.b16 %v5718
      %v5852 = vunpack.c.l.b16 %v5719
      %v5853 = vunpack.c.l.b16 %v5720
      %v5854 = vunpack.c.l.b16 %v5721
      %v5855 = vunpack.c.l.b16 %v5722
      %v5856 = vpack.c.b16 %v5841, %v5840
      %v5857 = vpack.c.b16 %v5843, %v5842
      %v5858 = vpack.c.b16 %v5845, %v5844
      %v5859 = vpack.c.b16 %v5847, %v5846
      %v5860 = vpack.c.b16 %v5849, %v5848
      %v5861 = vpack.c.b16 %v5851, %v5850
      %v5862 = vpack.c.b16 %v5853, %v5852
      %v5863 = vpack.c.b16 %v5855, %v5854
      %5872 = vmatpush.bf16.msra.mxu0 %v5863
      %5873 = vmatpush.bf16.msra.mxu0 %v5862
      %5874 = vmatpush.bf16.msra.mxu0 %v5861
      %5875 = vmatpush.bf16.msra.mxu0 %v5860
      %5876 = vmatpush.bf16.msra.mxu0 %v5859
      %5877 = vmatpush.bf16.msra.mxu0 %v5858
      %5878 = vmatpush.bf16.msra.mxu0 %v5857
      %5879 = vmatpush.bf16.msra.mxu0 %v5856
      %5880 = vmatmul.bf16.gmra.mxu0 %v5792
      %v5881 = vpop.f32.mrf.mxu0
      %v5882 = vadd.f32 %v5726, %v5881
      %v5883 = vpop.f32.mrf.mxu0
      %v5884 = vadd.f32 %v5726, %v5883
      %5885 = vmatmul.bf16.gmra.mxu0 %v5793
      %v5886 = vpop.f32.mrf.mxu0
      %v5887 = vadd.f32 %v5726, %v5886
      %v5888 = vpop.f32.mrf.mxu0
      %v5889 = vadd.f32 %v5726, %v5888
      %5890 = vmatmul.bf16.gmra.mxu0 %v5794
      %v5891 = vpop.f32.mrf.mxu0
      %v5892 = vadd.f32 %v5726, %v5891
      %v5893 = vpop.f32.mrf.mxu0
      %v5894 = vadd.f32 %v5726, %v5893
      %5895 = vmatmul.bf16.gmra.mxu0 %v5795
      %v5896 = vpop.f32.mrf.mxu0
      %v5897 = vadd.f32 %v5726, %v5896
      %v5898 = vpop.f32.mrf.mxu0
      %v5899 = vadd.f32 %v5726, %v5898
      %5900 = vmatmul.bf16.gmra.mxu0 %v5796
      %v5901 = vpop.f32.mrf.mxu0
      %v5902 = vadd.f32 %v5726, %v5901
      %v5903 = vpop.f32.mrf.mxu0
      %v5904 = vadd.f32 %v5726, %v5903
      %5905 = vmatmul.bf16.gmra.mxu0 %v5797
      %v5906 = vpop.f32.mrf.mxu0
      %v5907 = vadd.f32 %v5726, %v5906
      %v5908 = vpop.f32.mrf.mxu0
      %v5909 = vadd.f32 %v5726, %v5908
      %5910 = vmatmul.bf16.gmra.mxu0 %v5798
      %v5911 = vpop.f32.mrf.mxu0
      %v5912 = vadd.f32 %v5726, %v5911
      %v5913 = vpop.f32.mrf.mxu0
      %v5914 = vadd.f32 %v5726, %v5913
      %5915 = vmatmul.bf16.gmra.mxu0 %v5799
      %v5916 = vpop.f32.mrf.mxu0
      %v5917 = vadd.f32 %v5726, %v5916
      %v5918 = vpop.f32.mrf.mxu0
      %v5919 = vadd.f32 %v5726, %v5918
      %5920 = vmatmul.bf16.gmra.mxu0 %v5800
      %v5921 = vpop.f32.mrf.mxu0
      %v5922 = vadd.f32 %v5726, %v5921
      %v5923 = vpop.f32.mrf.mxu0
      %v5924 = vadd.f32 %v5726, %v5923
      %5925 = vmatmul.bf16.gmra.mxu0 %v5801
      %v5926 = vpop.f32.mrf.mxu0
      %v5927 = vadd.f32 %v5726, %v5926
      %v5928 = vpop.f32.mrf.mxu0
      %v5929 = vadd.f32 %v5726, %v5928
      %5930 = vmatmul.bf16.gmra.mxu0 %v5802
      %v5931 = vpop.f32.mrf.mxu0
      %v5932 = vadd.f32 %v5726, %v5931
      %v5933 = vpop.f32.mrf.mxu0
      %v5934 = vadd.f32 %v5726, %v5933
      %5935 = vmatmul.bf16.gmra.mxu0 %v5803
      %v5936 = vpop.f32.mrf.mxu0
      %v5937 = vadd.f32 %v5726, %v5936
      %v5938 = vpop.f32.mrf.mxu0
      %v5939 = vadd.f32 %v5726, %v5938
      %5940 = vmatmul.bf16.gmra.mxu0 %v5804
      %v5941 = vpop.f32.mrf.mxu0
      %v5942 = vadd.f32 %v5726, %v5941
      %v5943 = vpop.f32.mrf.mxu0
      %v5944 = vadd.f32 %v5726, %v5943
      %5945 = vmatmul.bf16.gmra.mxu0 %v5805
      %v5946 = vpop.f32.mrf.mxu0
      %v5947 = vadd.f32 %v5726, %v5946
      %v5948 = vpop.f32.mrf.mxu0
      %v5949 = vadd.f32 %v5726, %v5948
      %5950 = vmatmul.bf16.gmra.mxu0 %v5806
      %v5951 = vpop.f32.mrf.mxu0
      %v5952 = vadd.f32 %v5726, %v5951
      %v5953 = vpop.f32.mrf.mxu0
      %v5954 = vadd.f32 %v5726, %v5953
      %5955 = vmatmul.bf16.gmra.mxu0 %v5807
      %v5956 = vpop.f32.mrf.mxu0
      %v5957 = vadd.f32 %v5726, %v5956
      %v5958 = vpop.f32.mrf.mxu0
      %v5959 = vadd.f32 %v5726, %v5958
      %5960 = vdwg.mxu0
      %v5961 = vmax.f32 %v5882, 0.0
      %v5962 = vmax.f32 %v5884, 0.0
      %v5963 = vmax.f32 %v5887, 0.0
      %v5964 = vmax.f32 %v5889, 0.0
      %v5965 = vmax.f32 %v5892, 0.0
      %v5966 = vmax.f32 %v5894, 0.0
      %v5967 = vmax.f32 %v5897, 0.0
      %v5968 = vmax.f32 %v5899, 0.0
      %v5969 = vmax.f32 %v5902, 0.0
      %v5970 = vmax.f32 %v5904, 0.0
      %v5971 = vmax.f32 %v5907, 0.0
      %v5972 = vmax.f32 %v5909, 0.0
      %v5973 = vmax.f32 %v5912, 0.0
      %v5974 = vmax.f32 %v5914, 0.0
      %v5975 = vmax.f32 %v5917, 0.0
      %v5976 = vmax.f32 %v5919, 0.0
      %v5977 = vmax.f32 %v5922, 0.0
      %v5978 = vmax.f32 %v5924, 0.0
      %v5979 = vmax.f32 %v5927, 0.0
      %v5980 = vmax.f32 %v5929, 0.0
      %v5981 = vmax.f32 %v5932, 0.0
      %v5982 = vmax.f32 %v5934, 0.0
      %v5983 = vmax.f32 %v5937, 0.0
      %v5984 = vmax.f32 %v5939, 0.0
      %v5985 = vmax.f32 %v5942, 0.0
      %v5986 = vmax.f32 %v5944, 0.0
      %v5987 = vmax.f32 %v5947, 0.0
      %v5988 = vmax.f32 %v5949, 0.0
      %v5989 = vmax.f32 %v5952, 0.0
      %v5990 = vmax.f32 %v5954, 0.0
      %v5991 = vmax.f32 %v5957, 0.0
      %v5992 = vmax.f32 %v5959, 0.0
      %5993 = vst [vmem:[%s683 + $0x1] sm:$0xff] %v5961
      %5994 = vst [vmem:[%s683 + $0x9] sm:$0xff] %v5962
      %5995 = vst [vmem:[%s683 + $0x19] sm:$0xff] %v5963
      %5996 = vst [vmem:[%s683 + $0x21] sm:$0xff] %v5964
      %5997 = vst [vmem:[%s683 + $0x31] sm:$0xff] %v5965
      %5998 = vst [vmem:[%s683 + $0x39] sm:$0xff] %v5966
      %5999 = vst [vmem:[%s683 + $0x49] sm:$0xff] %v5967
      %6000 = vst [vmem:[%s683 + $0x51] sm:$0xff] %v5968
      %6001 = vst [vmem:[%s683 + $0x61] sm:$0xff] %v5969
      %6002 = vst [vmem:[%s683 + $0x69] sm:$0xff] %v5970
      %6003 = vst [vmem:[%s683 + $0x79] sm:$0xff] %v5971
      %6004 = vst [vmem:[%s683 + $0x81] sm:$0xff] %v5972
      %6005 = vst [vmem:[%s683 + $0x91] sm:$0xff] %v5973
      %6006 = vst [vmem:[%s683 + $0x99] sm:$0xff] %v5974
      %6007 = vst [vmem:[%s683 + $0xa9] sm:$0xff] %v5975
      %6008 = vst [vmem:[%s683 + $0xb1] sm:$0xff] %v5976
      %6009 = vst [vmem:[%s683 + $0xc1] sm:$0xff] %v5977
      %6010 = vst [vmem:[%s683 + $0xc9] sm:$0xff] %v5978
      %6011 = vst [vmem:[%s683 + $0xd9] sm:$0xff] %v5979
      %6012 = vst [vmem:[%s683 + $0xe1] sm:$0xff] %v5980
      %6013 = vst [vmem:[%s683 + $0xf1] sm:$0xff] %v5981
      %6014 = vst [vmem:[%s683 + $0xf9] sm:$0xff] %v5982
      %6015 = vst [vmem:[%s683 + $0x109] sm:$0xff] %v5983
      %6016 = vst [vmem:[%s683 + $0x111] sm:$0xff] %v5984
      %6017 = vst [vmem:[%s683 + $0x121] sm:$0xff] %v5985
      %6018 = vst [vmem:[%s683 + $0x129] sm:$0xff] %v5986
      %6019 = vst [vmem:[%s683 + $0x139] sm:$0xff] %v5987
      %6020 = vst [vmem:[%s683 + $0x141] sm:$0xff] %v5988
      %6021 = vst [vmem:[%s683 + $0x151] sm:$0xff] %v5989
      %6022 = vst [vmem:[%s683 + $0x159] sm:$0xff] %v5990
      %6023 = vst [vmem:[%s683 + $0x169] sm:$0xff] %v5991
      %6024 = vst [vmem:[%s683 + $0x171] sm:$0xff] %v5992
      %v6025 = vld [vmem:[#allocation3] sm:$0xff]
      %v6026 = vld [vmem:[#allocation3 + $0x8] sm:$0xff]
      %v6027 = vld [vmem:[#allocation3 + $0x18] sm:$0xff]
      %v6028 = vld [vmem:[#allocation3 + $0x20] sm:$0xff]
      %v6029 = vld [vmem:[#allocation3 + $0x30] sm:$0xff]
      %v6030 = vld [vmem:[#allocation3 + $0x38] sm:$0xff]
      %v6031 = vld [vmem:[#allocation3 + $0x48] sm:$0xff]
      %v6032 = vld [vmem:[#allocation3 + $0x50] sm:$0xff]
      %v6033 = vld [vmem:[#allocation3 + $0x60] sm:$0xff]
      %v6034 = vld [vmem:[#allocation3 + $0x68] sm:$0xff]
      %v6035 = vld [vmem:[#allocation3 + $0x78] sm:$0xff]
      %v6036 = vld [vmem:[#allocation3 + $0x80] sm:$0xff]
      %v6037 = vld [vmem:[#allocation3 + $0x90] sm:$0xff]
      %v6038 = vld [vmem:[#allocation3 + $0x98] sm:$0xff]
      %v6039 = vld [vmem:[#allocation3 + $0xa8] sm:$0xff]
      %v6040 = vld [vmem:[#allocation3 + $0xb0] sm:$0xff]
      %v6041 = vld [vmem:[#allocation3 + $0xc0] sm:$0xff]
      %v6042 = vld [vmem:[#allocation3 + $0xc8] sm:$0xff]
      %v6043 = vld [vmem:[#allocation3 + $0xd8] sm:$0xff]
      %v6044 = vld [vmem:[#allocation3 + $0xe0] sm:$0xff]
      %v6045 = vld [vmem:[#allocation3 + $0xf0] sm:$0xff]
      %v6046 = vld [vmem:[#allocation3 + $0xf8] sm:$0xff]
      %v6047 = vld [vmem:[#allocation3 + $0x108] sm:$0xff]
      %v6048 = vld [vmem:[#allocation3 + $0x110] sm:$0xff]
      %v6049 = vld [vmem:[#allocation3 + $0x120] sm:$0xff]
      %v6050 = vld [vmem:[#allocation3 + $0x128] sm:$0xff]
      %v6051 = vld [vmem:[#allocation3 + $0x138] sm:$0xff]
      %v6052 = vld [vmem:[#allocation3 + $0x140] sm:$0xff]
      %v6053 = vld [vmem:[#allocation3 + $0x150] sm:$0xff]
      %v6054 = vld [vmem:[#allocation3 + $0x158] sm:$0xff]
      %v6055 = vld [vmem:[#allocation3 + $0x168] sm:$0xff]
      %v6056 = vld [vmem:[#allocation3 + $0x170] sm:$0xff]
      %v6057 = vpack.c.bf16 %v6026, %v6025
      %v6058 = vpack.c.bf16 %v6028, %v6027
      %v6059 = vpack.c.bf16 %v6030, %v6029
      %v6060 = vpack.c.bf16 %v6032, %v6031
      %v6061 = vpack.c.bf16 %v6034, %v6033
      %v6062 = vpack.c.bf16 %v6036, %v6035
      %v6063 = vpack.c.bf16 %v6038, %v6037
      %v6064 = vpack.c.bf16 %v6040, %v6039
      %v6065 = vpack.c.bf16 %v6042, %v6041
      %v6066 = vpack.c.bf16 %v6044, %v6043
      %v6067 = vpack.c.bf16 %v6046, %v6045
      %v6068 = vpack.c.bf16 %v6048, %v6047
      %v6069 = vpack.c.bf16 %v6050, %v6049
      %v6070 = vpack.c.bf16 %v6052, %v6051
      %v6071 = vpack.c.bf16 %v6054, %v6053
      %v6072 = vpack.c.bf16 %v6056, %v6055
      %s6073 = scalar_lea.vmem %s2, 1152
      %v6074 = vld [vmem:[%s6073] sm:$0xf]
      %v6075 = vld [vmem:[%s6073 + $0x4] sm:$0xf]
      %v6076 = vld [vmem:[%s6073 + $0x8] sm:$0xf]
      %v6077 = vld [vmem:[%s6073 + $0xc] sm:$0xf]
      %v6078 = vld [vmem:[%s6073 + $0x10] sm:$0xf]
      %v6079 = vld [vmem:[%s6073 + $0x14] sm:$0xf]
      %v6080 = vld [vmem:[%s6073 + $0x18] sm:$0xf]
      %v6081 = vld [vmem:[%s6073 + $0x1c] sm:$0xf]
      %v6082 = vld [vmem:[%s6073 + $0x20] sm:$0xf]
      %v6083 = vld [vmem:[%s6073 + $0x24] sm:$0xf]
      %v6084 = vld [vmem:[%s6073 + $0x28] sm:$0xf]
      %v6085 = vld [vmem:[%s6073 + $0x2c] sm:$0xf]
      %v6086 = vld [vmem:[%s6073 + $0x30] sm:$0xf]
      %v6087 = vld [vmem:[%s6073 + $0x34] sm:$0xf]
      %v6088 = vld [vmem:[%s6073 + $0x38] sm:$0xf]
      %v6089 = vld [vmem:[%s6073 + $0x3c] sm:$0xf]
      %v6090 = vld [vmem:[#allocation3 + $0x1] sm:$0xff]
      %v6091 = vld [vmem:[#allocation3 + $0x9] sm:$0xff]
      %v6092 = vld [vmem:[#allocation3 + $0x19] sm:$0xff]
      %v6093 = vld [vmem:[#allocation3 + $0x21] sm:$0xff]
      %v6094 = vld [vmem:[#allocation3 + $0x31] sm:$0xff]
      %v6095 = vld [vmem:[#allocation3 + $0x39] sm:$0xff]
      %v6096 = vld [vmem:[#allocation3 + $0x49] sm:$0xff]
      %v6097 = vld [vmem:[#allocation3 + $0x51] sm:$0xff]
      %v6098 = vld [vmem:[#allocation3 + $0x61] sm:$0xff]
      %v6099 = vld [vmem:[#allocation3 + $0x69] sm:$0xff]
      %v6100 = vld [vmem:[#allocation3 + $0x79] sm:$0xff]
      %v6101 = vld [vmem:[#allocation3 + $0x81] sm:$0xff]
      %v6102 = vld [vmem:[#allocation3 + $0x91] sm:$0xff]
      %v6103 = vld [vmem:[#allocation3 + $0x99] sm:$0xff]
      %v6104 = vld [vmem:[#allocation3 + $0xa9] sm:$0xff]
      %v6105 = vld [vmem:[#allocation3 + $0xb1] sm:$0xff]
      %v6106 = vld [vmem:[#allocation3 + $0xc1] sm:$0xff]
      %v6107 = vld [vmem:[#allocation3 + $0xc9] sm:$0xff]
      %v6108 = vld [vmem:[#allocation3 + $0xd9] sm:$0xff]
      %v6109 = vld [vmem:[#allocation3 + $0xe1] sm:$0xff]
      %v6110 = vld [vmem:[#allocation3 + $0xf1] sm:$0xff]
      %v6111 = vld [vmem:[#allocation3 + $0xf9] sm:$0xff]
      %v6112 = vld [vmem:[#allocation3 + $0x109] sm:$0xff]
      %v6113 = vld [vmem:[#allocation3 + $0x111] sm:$0xff]
      %v6114 = vld [vmem:[#allocation3 + $0x121] sm:$0xff]
      %v6115 = vld [vmem:[#allocation3 + $0x129] sm:$0xff]
      %v6116 = vld [vmem:[#allocation3 + $0x139] sm:$0xff]
      %v6117 = vld [vmem:[#allocation3 + $0x141] sm:$0xff]
      %v6118 = vld [vmem:[#allocation3 + $0x151] sm:$0xff]
      %v6119 = vld [vmem:[#allocation3 + $0x159] sm:$0xff]
      %v6120 = vld [vmem:[#allocation3 + $0x169] sm:$0xff]
      %v6121 = vld [vmem:[#allocation3 + $0x171] sm:$0xff]
      %v6122 = vpack.c.bf16 %v6091, %v6090
      %v6123 = vpack.c.bf16 %v6093, %v6092
      %v6124 = vpack.c.bf16 %v6095, %v6094
      %v6125 = vpack.c.bf16 %v6097, %v6096
      %v6126 = vpack.c.bf16 %v6099, %v6098
      %v6127 = vpack.c.bf16 %v6101, %v6100
      %v6128 = vpack.c.bf16 %v6103, %v6102
      %v6129 = vpack.c.bf16 %v6105, %v6104
      %v6130 = vpack.c.bf16 %v6107, %v6106
      %v6131 = vpack.c.bf16 %v6109, %v6108
      %v6132 = vpack.c.bf16 %v6111, %v6110
      %v6133 = vpack.c.bf16 %v6113, %v6112
      %v6134 = vpack.c.bf16 %v6115, %v6114
      %v6135 = vpack.c.bf16 %v6117, %v6116
      %v6136 = vpack.c.bf16 %v6119, %v6118
      %v6137 = vpack.c.bf16 %v6121, %v6120
      %s6138 = scalar_lea.vmem %s2, 1216
      %v6139 = vld [vmem:[%s6138] sm:$0xf]
      %v6140 = vld [vmem:[%s6138 + $0x4] sm:$0xf]
      %v6141 = vld [vmem:[%s6138 + $0x8] sm:$0xf]
      %v6142 = vld [vmem:[%s6138 + $0xc] sm:$0xf]
      %v6143 = vld [vmem:[%s6138 + $0x10] sm:$0xf]
      %v6144 = vld [vmem:[%s6138 + $0x14] sm:$0xf]
      %v6145 = vld [vmem:[%s6138 + $0x18] sm:$0xf]
      %v6146 = vld [vmem:[%s6138 + $0x1c] sm:$0xf]
      %v6147 = vld [vmem:[%s6138 + $0x20] sm:$0xf]
      %v6148 = vld [vmem:[%s6138 + $0x24] sm:$0xf]
      %v6149 = vld [vmem:[%s6138 + $0x28] sm:$0xf]
      %v6150 = vld [vmem:[%s6138 + $0x2c] sm:$0xf]
      %v6151 = vld [vmem:[%s6138 + $0x30] sm:$0xf]
      %v6152 = vld [vmem:[%s6138 + $0x34] sm:$0xf]
      %v6153 = vld [vmem:[%s6138 + $0x38] sm:$0xf]
      %v6154 = vld [vmem:[%s6138 + $0x3c] sm:$0xf]
      %v6171 = vunpack.c.l.b16 %v6139
      %v6172 = vunpack.c.l.b16 %v6140
      %v6173 = vunpack.c.l.b16 %v6141
      %v6174 = vunpack.c.l.b16 %v6142
      %v6175 = vunpack.c.l.b16 %v6143
      %v6176 = vunpack.c.l.b16 %v6144
      %v6177 = vunpack.c.l.b16 %v6145
      %v6178 = vunpack.c.l.b16 %v6146
      %v6179 = vunpack.c.l.b16 %v6147
      %v6180 = vunpack.c.l.b16 %v6148
      %v6181 = vunpack.c.l.b16 %v6149
      %v6182 = vunpack.c.l.b16 %v6150
      %v6183 = vunpack.c.l.b16 %v6151
      %v6184 = vunpack.c.l.b16 %v6152
      %v6185 = vunpack.c.l.b16 %v6153
      %v6186 = vunpack.c.l.b16 %v6154
      %v6187 = vpack.c.b16 %v6172, %v6171
      %v6188 = vpack.c.b16 %v6174, %v6173
      %v6189 = vpack.c.b16 %v6176, %v6175
      %v6190 = vpack.c.b16 %v6178, %v6177
      %v6191 = vpack.c.b16 %v6180, %v6179
      %v6192 = vpack.c.b16 %v6182, %v6181
      %v6193 = vpack.c.b16 %v6184, %v6183
      %v6194 = vpack.c.b16 %v6186, %v6185
      %6203 = vmatpush.bf16.msra.mxu0 %v6194
      %6204 = vmatpush.bf16.msra.mxu0 %v6193
      %6205 = vmatpush.bf16.msra.mxu0 %v6192
      %6206 = vmatpush.bf16.msra.mxu0 %v6191
      %6207 = vmatpush.bf16.msra.mxu0 %v6190
      %6208 = vmatpush.bf16.msra.mxu0 %v6189
      %6209 = vmatpush.bf16.msra.mxu0 %v6188
      %6210 = vmatpush.bf16.msra.mxu0 %v6187
      %6211 = vmatmul.bf16.gmra.mxu0 %v6122
      %v6212 = vpop.f32.mrf.mxu0
      %v6213 = vadd.f32 0.0, %v6212
      %v6214 = vpop.f32.mrf.mxu0
      %v6215 = vadd.f32 0.0, %v6214
      %6216 = vmatmul.bf16.gmra.mxu0 %v6123
      %v6217 = vpop.f32.mrf.mxu0
      %v6218 = vadd.f32 0.0, %v6217
      %v6219 = vpop.f32.mrf.mxu0
      %v6220 = vadd.f32 0.0, %v6219
      %6221 = vmatmul.bf16.gmra.mxu0 %v6124
      %v6222 = vpop.f32.mrf.mxu0
      %v6223 = vadd.f32 0.0, %v6222
      %v6224 = vpop.f32.mrf.mxu0
      %v6225 = vadd.f32 0.0, %v6224
      %6226 = vmatmul.bf16.gmra.mxu0 %v6125
      %v6227 = vpop.f32.mrf.mxu0
      %v6228 = vadd.f32 0.0, %v6227
      %v6229 = vpop.f32.mrf.mxu0
      %v6230 = vadd.f32 0.0, %v6229
      %6231 = vmatmul.bf16.gmra.mxu0 %v6126
      %v6232 = vpop.f32.mrf.mxu0
      %v6233 = vadd.f32 0.0, %v6232
      %v6234 = vpop.f32.mrf.mxu0
      %v6235 = vadd.f32 0.0, %v6234
      %6236 = vmatmul.bf16.gmra.mxu0 %v6127
      %v6237 = vpop.f32.mrf.mxu0
      %v6238 = vadd.f32 0.0, %v6237
      %v6239 = vpop.f32.mrf.mxu0
      %v6240 = vadd.f32 0.0, %v6239
      %6241 = vmatmul.bf16.gmra.mxu0 %v6128
      %v6242 = vpop.f32.mrf.mxu0
      %v6243 = vadd.f32 0.0, %v6242
      %v6244 = vpop.f32.mrf.mxu0
      %v6245 = vadd.f32 0.0, %v6244
      %6246 = vmatmul.bf16.gmra.mxu0 %v6129
      %v6247 = vpop.f32.mrf.mxu0
      %v6248 = vadd.f32 0.0, %v6247
      %v6249 = vpop.f32.mrf.mxu0
      %v6250 = vadd.f32 0.0, %v6249
      %6251 = vmatmul.bf16.gmra.mxu0 %v6130
      %v6252 = vpop.f32.mrf.mxu0
      %v6253 = vadd.f32 0.0, %v6252
      %v6254 = vpop.f32.mrf.mxu0
      %v6255 = vadd.f32 0.0, %v6254
      %6256 = vmatmul.bf16.gmra.mxu0 %v6131
      %v6257 = vpop.f32.mrf.mxu0
      %v6258 = vadd.f32 0.0, %v6257
      %v6259 = vpop.f32.mrf.mxu0
      %v6260 = vadd.f32 0.0, %v6259
      %6261 = vmatmul.bf16.gmra.mxu0 %v6132
      %v6262 = vpop.f32.mrf.mxu0
      %v6263 = vadd.f32 0.0, %v6262
      %v6264 = vpop.f32.mrf.mxu0
      %v6265 = vadd.f32 0.0, %v6264
      %6266 = vmatmul.bf16.gmra.mxu0 %v6133
      %v6267 = vpop.f32.mrf.mxu0
      %v6268 = vadd.f32 0.0, %v6267
      %v6269 = vpop.f32.mrf.mxu0
      %v6270 = vadd.f32 0.0, %v6269
      %6271 = vmatmul.bf16.gmra.mxu0 %v6134
      %v6272 = vpop.f32.mrf.mxu0
      %v6273 = vadd.f32 0.0, %v6272
      %v6274 = vpop.f32.mrf.mxu0
      %v6275 = vadd.f32 0.0, %v6274
      %6276 = vmatmul.bf16.gmra.mxu0 %v6135
      %v6277 = vpop.f32.mrf.mxu0
      %v6278 = vadd.f32 0.0, %v6277
      %v6279 = vpop.f32.mrf.mxu0
      %v6280 = vadd.f32 0.0, %v6279
      %6281 = vmatmul.bf16.gmra.mxu0 %v6136
      %v6282 = vpop.f32.mrf.mxu0
      %v6283 = vadd.f32 0.0, %v6282
      %v6284 = vpop.f32.mrf.mxu0
      %v6285 = vadd.f32 0.0, %v6284
      %6286 = vmatmul.bf16.gmra.mxu0 %v6137
      %v6287 = vpop.f32.mrf.mxu0
      %v6288 = vadd.f32 0.0, %v6287
      %v6289 = vpop.f32.mrf.mxu0
      %v6290 = vadd.f32 0.0, %v6289
      %6291 = vdwg.mxu0
      %v6308 = vunpack.c.l.b16 %v6074
      %v6309 = vunpack.c.l.b16 %v6075
      %v6310 = vunpack.c.l.b16 %v6076
      %v6311 = vunpack.c.l.b16 %v6077
      %v6312 = vunpack.c.l.b16 %v6078
      %v6313 = vunpack.c.l.b16 %v6079
      %v6314 = vunpack.c.l.b16 %v6080
      %v6315 = vunpack.c.l.b16 %v6081
      %v6316 = vunpack.c.l.b16 %v6082
      %v6317 = vunpack.c.l.b16 %v6083
      %v6318 = vunpack.c.l.b16 %v6084
      %v6319 = vunpack.c.l.b16 %v6085
      %v6320 = vunpack.c.l.b16 %v6086
      %v6321 = vunpack.c.l.b16 %v6087
      %v6322 = vunpack.c.l.b16 %v6088
      %v6323 = vunpack.c.l.b16 %v6089
      %v6324 = vpack.c.b16 %v6309, %v6308
      %v6325 = vpack.c.b16 %v6311, %v6310
      %v6326 = vpack.c.b16 %v6313, %v6312
      %v6327 = vpack.c.b16 %v6315, %v6314
      %v6328 = vpack.c.b16 %v6317, %v6316
      %v6329 = vpack.c.b16 %v6319, %v6318
      %v6330 = vpack.c.b16 %v6321, %v6320
      %v6331 = vpack.c.b16 %v6323, %v6322
      %6340 = vmatpush.bf16.msra.mxu0 %v6331
      %6341 = vmatpush.bf16.msra.mxu0 %v6330
      %6342 = vmatpush.bf16.msra.mxu0 %v6329
      %6343 = vmatpush.bf16.msra.mxu0 %v6328
      %6344 = vmatpush.bf16.msra.mxu0 %v6327
      %6345 = vmatpush.bf16.msra.mxu0 %v6326
      %6346 = vmatpush.bf16.msra.mxu0 %v6325
      %6347 = vmatpush.bf16.msra.mxu0 %v6324
      %6348 = vmatmul.bf16.gmra.mxu0 %v6057
      %v6349 = vpop.f32.mrf.mxu0
      %v6350 = vadd.f32 %v6213, %v6349
      %v6351 = vpop.f32.mrf.mxu0
      %v6352 = vadd.f32 %v6215, %v6351
      %6353 = vmatmul.bf16.gmra.mxu0 %v6058
      %v6354 = vpop.f32.mrf.mxu0
      %v6355 = vadd.f32 %v6218, %v6354
      %v6356 = vpop.f32.mrf.mxu0
      %v6357 = vadd.f32 %v6220, %v6356
      %6358 = vmatmul.bf16.gmra.mxu0 %v6059
      %v6359 = vpop.f32.mrf.mxu0
      %v6360 = vadd.f32 %v6223, %v6359
      %v6361 = vpop.f32.mrf.mxu0
      %v6362 = vadd.f32 %v6225, %v6361
      %6363 = vmatmul.bf16.gmra.mxu0 %v6060
      %v6364 = vpop.f32.mrf.mxu0
      %v6365 = vadd.f32 %v6228, %v6364
      %v6366 = vpop.f32.mrf.mxu0
      %v6367 = vadd.f32 %v6230, %v6366
      %6368 = vmatmul.bf16.gmra.mxu0 %v6061
      %v6369 = vpop.f32.mrf.mxu0
      %v6370 = vadd.f32 %v6233, %v6369
      %v6371 = vpop.f32.mrf.mxu0
      %v6372 = vadd.f32 %v6235, %v6371
      %6373 = vmatmul.bf16.gmra.mxu0 %v6062
      %v6374 = vpop.f32.mrf.mxu0
      %v6375 = vadd.f32 %v6238, %v6374
      %v6376 = vpop.f32.mrf.mxu0
      %v6377 = vadd.f32 %v6240, %v6376
      %6378 = vmatmul.bf16.gmra.mxu0 %v6063
      %v6379 = vpop.f32.mrf.mxu0
      %v6380 = vadd.f32 %v6243, %v6379
      %v6381 = vpop.f32.mrf.mxu0
      %v6382 = vadd.f32 %v6245, %v6381
      %6383 = vmatmul.bf16.gmra.mxu0 %v6064
      %v6384 = vpop.f32.mrf.mxu0
      %v6385 = vadd.f32 %v6248, %v6384
      %v6386 = vpop.f32.mrf.mxu0
      %v6387 = vadd.f32 %v6250, %v6386
      %6388 = vmatmul.bf16.gmra.mxu0 %v6065
      %v6389 = vpop.f32.mrf.mxu0
      %v6390 = vadd.f32 %v6253, %v6389
      %v6391 = vpop.f32.mrf.mxu0
      %v6392 = vadd.f32 %v6255, %v6391
      %6393 = vmatmul.bf16.gmra.mxu0 %v6066
      %v6394 = vpop.f32.mrf.mxu0
      %v6395 = vadd.f32 %v6258, %v6394
      %v6396 = vpop.f32.mrf.mxu0
      %v6397 = vadd.f32 %v6260, %v6396
      %6398 = vmatmul.bf16.gmra.mxu0 %v6067
      %v6399 = vpop.f32.mrf.mxu0
      %v6400 = vadd.f32 %v6263, %v6399
      %v6401 = vpop.f32.mrf.mxu0
      %v6402 = vadd.f32 %v6265, %v6401
      %6403 = vmatmul.bf16.gmra.mxu0 %v6068
      %v6404 = vpop.f32.mrf.mxu0
      %v6405 = vadd.f32 %v6268, %v6404
      %v6406 = vpop.f32.mrf.mxu0
      %v6407 = vadd.f32 %v6270, %v6406
      %6408 = vmatmul.bf16.gmra.mxu0 %v6069
      %v6409 = vpop.f32.mrf.mxu0
      %v6410 = vadd.f32 %v6273, %v6409
      %v6411 = vpop.f32.mrf.mxu0
      %v6412 = vadd.f32 %v6275, %v6411
      %6413 = vmatmul.bf16.gmra.mxu0 %v6070
      %v6414 = vpop.f32.mrf.mxu0
      %v6415 = vadd.f32 %v6278, %v6414
      %v6416 = vpop.f32.mrf.mxu0
      %v6417 = vadd.f32 %v6280, %v6416
      %6418 = vmatmul.bf16.gmra.mxu0 %v6071
      %v6419 = vpop.f32.mrf.mxu0
      %v6420 = vadd.f32 %v6283, %v6419
      %v6421 = vpop.f32.mrf.mxu0
      %v6422 = vadd.f32 %v6285, %v6421
      %6423 = vmatmul.bf16.gmra.mxu0 %v6072
      %v6424 = vpop.f32.mrf.mxu0
      %v6425 = vadd.f32 %v6288, %v6424
      %v6426 = vpop.f32.mrf.mxu0
      %v6427 = vadd.f32 %v6290, %v6426
      %6428 = vdwg.mxu0
      %v6429 = vld [vmem:[#allocation3 + $0x2] sm:$0xff]
      %v6430 = vld [vmem:[#allocation3 + $0xa] sm:$0xff]
      %v6431 = vld [vmem:[#allocation3 + $0x1a] sm:$0xff]
      %v6432 = vld [vmem:[#allocation3 + $0x22] sm:$0xff]
      %v6433 = vld [vmem:[#allocation3 + $0x32] sm:$0xff]
      %v6434 = vld [vmem:[#allocation3 + $0x3a] sm:$0xff]
      %v6435 = vld [vmem:[#allocation3 + $0x4a] sm:$0xff]
      %v6436 = vld [vmem:[#allocation3 + $0x52] sm:$0xff]
      %v6437 = vld [vmem:[#allocation3 + $0x62] sm:$0xff]
      %v6438 = vld [vmem:[#allocation3 + $0x6a] sm:$0xff]
      %v6439 = vld [vmem:[#allocation3 + $0x7a] sm:$0xff]
      %v6440 = vld [vmem:[#allocation3 + $0x82] sm:$0xff]
      %v6441 = vld [vmem:[#allocation3 + $0x92] sm:$0xff]
      %v6442 = vld [vmem:[#allocation3 + $0x9a] sm:$0xff]
      %v6443 = vld [vmem:[#allocation3 + $0xaa] sm:$0xff]
      %v6444 = vld [vmem:[#allocation3 + $0xb2] sm:$0xff]
      %v6445 = vld [vmem:[#allocation3 + $0xc2] sm:$0xff]
      %v6446 = vld [vmem:[#allocation3 + $0xca] sm:$0xff]
      %v6447 = vld [vmem:[#allocation3 + $0xda] sm:$0xff]
      %v6448 = vld [vmem:[#allocation3 + $0xe2] sm:$0xff]
      %v6449 = vld [vmem:[#allocation3 + $0xf2] sm:$0xff]
      %v6450 = vld [vmem:[#allocation3 + $0xfa] sm:$0xff]
      %v6451 = vld [vmem:[#allocation3 + $0x10a] sm:$0xff]
      %v6452 = vld [vmem:[#allocation3 + $0x112] sm:$0xff]
      %v6453 = vld [vmem:[#allocation3 + $0x122] sm:$0xff]
      %v6454 = vld [vmem:[#allocation3 + $0x12a] sm:$0xff]
      %v6455 = vld [vmem:[#allocation3 + $0x13a] sm:$0xff]
      %v6456 = vld [vmem:[#allocation3 + $0x142] sm:$0xff]
      %v6457 = vld [vmem:[#allocation3 + $0x152] sm:$0xff]
      %v6458 = vld [vmem:[#allocation3 + $0x15a] sm:$0xff]
      %v6459 = vld [vmem:[#allocation3 + $0x16a] sm:$0xff]
      %v6460 = vld [vmem:[#allocation3 + $0x172] sm:$0xff]
      %v6461 = vpack.c.bf16 %v6430, %v6429
      %v6462 = vpack.c.bf16 %v6432, %v6431
      %v6463 = vpack.c.bf16 %v6434, %v6433
      %v6464 = vpack.c.bf16 %v6436, %v6435
      %v6465 = vpack.c.bf16 %v6438, %v6437
      %v6466 = vpack.c.bf16 %v6440, %v6439
      %v6467 = vpack.c.bf16 %v6442, %v6441
      %v6468 = vpack.c.bf16 %v6444, %v6443
      %v6469 = vpack.c.bf16 %v6446, %v6445
      %v6470 = vpack.c.bf16 %v6448, %v6447
      %v6471 = vpack.c.bf16 %v6450, %v6449
      %v6472 = vpack.c.bf16 %v6452, %v6451
      %v6473 = vpack.c.bf16 %v6454, %v6453
      %v6474 = vpack.c.bf16 %v6456, %v6455
      %v6475 = vpack.c.bf16 %v6458, %v6457
      %v6476 = vpack.c.bf16 %v6460, %v6459
      %s6477 = scalar_lea.vmem %s2, 1280
      %v6478 = vld [vmem:[%s6477] sm:$0xf]
      %v6479 = vld [vmem:[%s6477 + $0x4] sm:$0xf]
      %v6480 = vld [vmem:[%s6477 + $0x8] sm:$0xf]
      %v6481 = vld [vmem:[%s6477 + $0xc] sm:$0xf]
      %v6482 = vld [vmem:[%s6477 + $0x10] sm:$0xf]
      %v6483 = vld [vmem:[%s6477 + $0x14] sm:$0xf]
      %v6484 = vld [vmem:[%s6477 + $0x18] sm:$0xf]
      %v6485 = vld [vmem:[%s6477 + $0x1c] sm:$0xf]
      %v6486 = vld [vmem:[%s6477 + $0x20] sm:$0xf]
      %v6487 = vld [vmem:[%s6477 + $0x24] sm:$0xf]
      %v6488 = vld [vmem:[%s6477 + $0x28] sm:$0xf]
      %v6489 = vld [vmem:[%s6477 + $0x2c] sm:$0xf]
      %v6490 = vld [vmem:[%s6477 + $0x30] sm:$0xf]
      %v6491 = vld [vmem:[%s6477 + $0x34] sm:$0xf]
      %v6492 = vld [vmem:[%s6477 + $0x38] sm:$0xf]
      %v6493 = vld [vmem:[%s6477 + $0x3c] sm:$0xf]
      %v6510 = vunpack.c.l.b16 %v6478
      %v6511 = vunpack.c.l.b16 %v6479
      %v6512 = vunpack.c.l.b16 %v6480
      %v6513 = vunpack.c.l.b16 %v6481
      %v6514 = vunpack.c.l.b16 %v6482
      %v6515 = vunpack.c.l.b16 %v6483
      %v6516 = vunpack.c.l.b16 %v6484
      %v6517 = vunpack.c.l.b16 %v6485
      %v6518 = vunpack.c.l.b16 %v6486
      %v6519 = vunpack.c.l.b16 %v6487
      %v6520 = vunpack.c.l.b16 %v6488
      %v6521 = vunpack.c.l.b16 %v6489
      %v6522 = vunpack.c.l.b16 %v6490
      %v6523 = vunpack.c.l.b16 %v6491
      %v6524 = vunpack.c.l.b16 %v6492
      %v6525 = vunpack.c.l.b16 %v6493
      %v6526 = vpack.c.b16 %v6511, %v6510
      %v6527 = vpack.c.b16 %v6513, %v6512
      %v6528 = vpack.c.b16 %v6515, %v6514
      %v6529 = vpack.c.b16 %v6517, %v6516
      %v6530 = vpack.c.b16 %v6519, %v6518
      %v6531 = vpack.c.b16 %v6521, %v6520
      %v6532 = vpack.c.b16 %v6523, %v6522
      %v6533 = vpack.c.b16 %v6525, %v6524
      %6542 = vmatpush.bf16.msra.mxu0 %v6533
      %6543 = vmatpush.bf16.msra.mxu0 %v6532
      %6544 = vmatpush.bf16.msra.mxu0 %v6531
      %6545 = vmatpush.bf16.msra.mxu0 %v6530
      %6546 = vmatpush.bf16.msra.mxu0 %v6529
      %6547 = vmatpush.bf16.msra.mxu0 %v6528
      %6548 = vmatpush.bf16.msra.mxu0 %v6527
      %6549 = vmatpush.bf16.msra.mxu0 %v6526
      %6550 = vmatmul.bf16.gmra.mxu0 %v6461
      %v6551 = vpop.f32.mrf.mxu0
      %v6552 = vadd.f32 0.0, %v6551
      %v6553 = vpop.f32.mrf.mxu0
      %v6554 = vadd.f32 0.0, %v6553
      %6555 = vmatmul.bf16.gmra.mxu0 %v6462
      %v6556 = vpop.f32.mrf.mxu0
      %v6557 = vadd.f32 0.0, %v6556
      %v6558 = vpop.f32.mrf.mxu0
      %v6559 = vadd.f32 0.0, %v6558
      %6560 = vmatmul.bf16.gmra.mxu0 %v6463
      %v6561 = vpop.f32.mrf.mxu0
      %v6562 = vadd.f32 0.0, %v6561
      %v6563 = vpop.f32.mrf.mxu0
      %v6564 = vadd.f32 0.0, %v6563
      %6565 = vmatmul.bf16.gmra.mxu0 %v6464
      %v6566 = vpop.f32.mrf.mxu0
      %v6567 = vadd.f32 0.0, %v6566
      %v6568 = vpop.f32.mrf.mxu0
      %v6569 = vadd.f32 0.0, %v6568
      %6570 = vmatmul.bf16.gmra.mxu0 %v6465
      %v6571 = vpop.f32.mrf.mxu0
      %v6572 = vadd.f32 0.0, %v6571
      %v6573 = vpop.f32.mrf.mxu0
      %v6574 = vadd.f32 0.0, %v6573
      %6575 = vmatmul.bf16.gmra.mxu0 %v6466
      %v6576 = vpop.f32.mrf.mxu0
      %v6577 = vadd.f32 0.0, %v6576
      %v6578 = vpop.f32.mrf.mxu0
      %v6579 = vadd.f32 0.0, %v6578
      %6580 = vmatmul.bf16.gmra.mxu0 %v6467
      %v6581 = vpop.f32.mrf.mxu0
      %v6582 = vadd.f32 0.0, %v6581
      %v6583 = vpop.f32.mrf.mxu0
      %v6584 = vadd.f32 0.0, %v6583
      %6585 = vmatmul.bf16.gmra.mxu0 %v6468
      %v6586 = vpop.f32.mrf.mxu0
      %v6587 = vadd.f32 0.0, %v6586
      %v6588 = vpop.f32.mrf.mxu0
      %v6589 = vadd.f32 0.0, %v6588
      %6590 = vmatmul.bf16.gmra.mxu0 %v6469
      %v6591 = vpop.f32.mrf.mxu0
      %v6592 = vadd.f32 0.0, %v6591
      %v6593 = vpop.f32.mrf.mxu0
      %v6594 = vadd.f32 0.0, %v6593
      %6595 = vmatmul.bf16.gmra.mxu0 %v6470
      %v6596 = vpop.f32.mrf.mxu0
      %v6597 = vadd.f32 0.0, %v6596
      %v6598 = vpop.f32.mrf.mxu0
      %v6599 = vadd.f32 0.0, %v6598
      %6600 = vmatmul.bf16.gmra.mxu0 %v6471
      %v6601 = vpop.f32.mrf.mxu0
      %v6602 = vadd.f32 0.0, %v6601
      %v6603 = vpop.f32.mrf.mxu0
      %v6604 = vadd.f32 0.0, %v6603
      %6605 = vmatmul.bf16.gmra.mxu0 %v6472
      %v6606 = vpop.f32.mrf.mxu0
      %v6607 = vadd.f32 0.0, %v6606
      %v6608 = vpop.f32.mrf.mxu0
      %v6609 = vadd.f32 0.0, %v6608
      %6610 = vmatmul.bf16.gmra.mxu0 %v6473
      %v6611 = vpop.f32.mrf.mxu0
      %v6612 = vadd.f32 0.0, %v6611
      %v6613 = vpop.f32.mrf.mxu0
      %v6614 = vadd.f32 0.0, %v6613
      %6615 = vmatmul.bf16.gmra.mxu0 %v6474
      %v6616 = vpop.f32.mrf.mxu0
      %v6617 = vadd.f32 0.0, %v6616
      %v6618 = vpop.f32.mrf.mxu0
      %v6619 = vadd.f32 0.0, %v6618
      %6620 = vmatmul.bf16.gmra.mxu0 %v6475
      %v6621 = vpop.f32.mrf.mxu0
      %v6622 = vadd.f32 0.0, %v6621
      %v6623 = vpop.f32.mrf.mxu0
      %v6624 = vadd.f32 0.0, %v6623
      %6625 = vmatmul.bf16.gmra.mxu0 %v6476
      %v6626 = vpop.f32.mrf.mxu0
      %v6627 = vadd.f32 0.0, %v6626
      %v6628 = vpop.f32.mrf.mxu0
      %v6629 = vadd.f32 0.0, %v6628
      %6630 = vdwg.mxu0
      %v6631 = vadd.f32 %v6350, %v6552
      %v6632 = vadd.f32 %v6352, %v6554
      %v6633 = vadd.f32 %v6355, %v6557
      %v6634 = vadd.f32 %v6357, %v6559
      %v6635 = vadd.f32 %v6360, %v6562
      %v6636 = vadd.f32 %v6362, %v6564
      %v6637 = vadd.f32 %v6365, %v6567
      %v6638 = vadd.f32 %v6367, %v6569
      %v6639 = vadd.f32 %v6370, %v6572
      %v6640 = vadd.f32 %v6372, %v6574
      %v6641 = vadd.f32 %v6375, %v6577
      %v6642 = vadd.f32 %v6377, %v6579
      %v6643 = vadd.f32 %v6380, %v6582
      %v6644 = vadd.f32 %v6382, %v6584
      %v6645 = vadd.f32 %v6385, %v6587
      %v6646 = vadd.f32 %v6387, %v6589
      %v6647 = vadd.f32 %v6390, %v6592
      %v6648 = vadd.f32 %v6392, %v6594
      %v6649 = vadd.f32 %v6395, %v6597
      %v6650 = vadd.f32 %v6397, %v6599
      %v6651 = vadd.f32 %v6400, %v6602
      %v6652 = vadd.f32 %v6402, %v6604
      %v6653 = vadd.f32 %v6405, %v6607
      %v6654 = vadd.f32 %v6407, %v6609
      %v6655 = vadd.f32 %v6410, %v6612
      %v6656 = vadd.f32 %v6412, %v6614
      %v6657 = vadd.f32 %v6415, %v6617
      %v6658 = vadd.f32 %v6417, %v6619
      %v6659 = vadd.f32 %v6420, %v6622
      %v6660 = vadd.f32 %v6422, %v6624
      %v6661 = vadd.f32 %v6425, %v6627
      %v6662 = vadd.f32 %v6427, %v6629
      %v6663 = vld [vmem:[%s683] sm:$0xff]
      %v6664 = vld [vmem:[%s683 + $0x8] sm:$0xff]
      %v6665 = vld [vmem:[%s683 + $0x18] sm:$0xff]
      %v6666 = vld [vmem:[%s683 + $0x20] sm:$0xff]
      %v6667 = vld [vmem:[%s683 + $0x30] sm:$0xff]
      %v6668 = vld [vmem:[%s683 + $0x38] sm:$0xff]
      %v6669 = vld [vmem:[%s683 + $0x48] sm:$0xff]
      %v6670 = vld [vmem:[%s683 + $0x50] sm:$0xff]
      %v6671 = vld [vmem:[%s683 + $0x60] sm:$0xff]
      %v6672 = vld [vmem:[%s683 + $0x68] sm:$0xff]
      %v6673 = vld [vmem:[%s683 + $0x78] sm:$0xff]
      %v6674 = vld [vmem:[%s683 + $0x80] sm:$0xff]
      %v6675 = vld [vmem:[%s683 + $0x90] sm:$0xff]
      %v6676 = vld [vmem:[%s683 + $0x98] sm:$0xff]
      %v6677 = vld [vmem:[%s683 + $0xa8] sm:$0xff]
      %v6678 = vld [vmem:[%s683 + $0xb0] sm:$0xff]
      %v6679 = vld [vmem:[%s683 + $0xc0] sm:$0xff]
      %v6680 = vld [vmem:[%s683 + $0xc8] sm:$0xff]
      %v6681 = vld [vmem:[%s683 + $0xd8] sm:$0xff]
      %v6682 = vld [vmem:[%s683 + $0xe0] sm:$0xff]
      %v6683 = vld [vmem:[%s683 + $0xf0] sm:$0xff]
      %v6684 = vld [vmem:[%s683 + $0xf8] sm:$0xff]
      %v6685 = vld [vmem:[%s683 + $0x108] sm:$0xff]
      %v6686 = vld [vmem:[%s683 + $0x110] sm:$0xff]
      %v6687 = vld [vmem:[%s683 + $0x120] sm:$0xff]
      %v6688 = vld [vmem:[%s683 + $0x128] sm:$0xff]
      %v6689 = vld [vmem:[%s683 + $0x138] sm:$0xff]
      %v6690 = vld [vmem:[%s683 + $0x140] sm:$0xff]
      %v6691 = vld [vmem:[%s683 + $0x150] sm:$0xff]
      %v6692 = vld [vmem:[%s683 + $0x158] sm:$0xff]
      %v6693 = vld [vmem:[%s683 + $0x168] sm:$0xff]
      %v6694 = vld [vmem:[%s683 + $0x170] sm:$0xff]
      %v6695 = vpack.c.bf16 %v6664, %v6663
      %v6696 = vpack.c.bf16 %v6666, %v6665
      %v6697 = vpack.c.bf16 %v6668, %v6667
      %v6698 = vpack.c.bf16 %v6670, %v6669
      %v6699 = vpack.c.bf16 %v6672, %v6671
      %v6700 = vpack.c.bf16 %v6674, %v6673
      %v6701 = vpack.c.bf16 %v6676, %v6675
      %v6702 = vpack.c.bf16 %v6678, %v6677
      %v6703 = vpack.c.bf16 %v6680, %v6679
      %v6704 = vpack.c.bf16 %v6682, %v6681
      %v6705 = vpack.c.bf16 %v6684, %v6683
      %v6706 = vpack.c.bf16 %v6686, %v6685
      %v6707 = vpack.c.bf16 %v6688, %v6687
      %v6708 = vpack.c.bf16 %v6690, %v6689
      %v6709 = vpack.c.bf16 %v6692, %v6691
      %v6710 = vpack.c.bf16 %v6694, %v6693
      %s6711 = scalar_lea.vmem %s2, 1344
      %v6712 = vld [vmem:[%s6711] sm:$0xf]
      %v6713 = vld [vmem:[%s6711 + $0x4] sm:$0xf]
      %v6714 = vld [vmem:[%s6711 + $0x8] sm:$0xf]
      %v6715 = vld [vmem:[%s6711 + $0xc] sm:$0xf]
      %v6716 = vld [vmem:[%s6711 + $0x10] sm:$0xf]
      %v6717 = vld [vmem:[%s6711 + $0x14] sm:$0xf]
      %v6718 = vld [vmem:[%s6711 + $0x18] sm:$0xf]
      %v6719 = vld [vmem:[%s6711 + $0x1c] sm:$0xf]
      %v6720 = vld [vmem:[%s6711 + $0x20] sm:$0xf]
      %v6721 = vld [vmem:[%s6711 + $0x24] sm:$0xf]
      %v6722 = vld [vmem:[%s6711 + $0x28] sm:$0xf]
      %v6723 = vld [vmem:[%s6711 + $0x2c] sm:$0xf]
      %v6724 = vld [vmem:[%s6711 + $0x30] sm:$0xf]
      %v6725 = vld [vmem:[%s6711 + $0x34] sm:$0xf]
      %v6726 = vld [vmem:[%s6711 + $0x38] sm:$0xf]
      %v6727 = vld [vmem:[%s6711 + $0x3c] sm:$0xf]
      %v6744 = vunpack.c.l.b16 %v6712
      %v6745 = vunpack.c.l.b16 %v6713
      %v6746 = vunpack.c.l.b16 %v6714
      %v6747 = vunpack.c.l.b16 %v6715
      %v6748 = vunpack.c.l.b16 %v6716
      %v6749 = vunpack.c.l.b16 %v6717
      %v6750 = vunpack.c.l.b16 %v6718
      %v6751 = vunpack.c.l.b16 %v6719
      %v6752 = vunpack.c.l.b16 %v6720
      %v6753 = vunpack.c.l.b16 %v6721
      %v6754 = vunpack.c.l.b16 %v6722
      %v6755 = vunpack.c.l.b16 %v6723
      %v6756 = vunpack.c.l.b16 %v6724
      %v6757 = vunpack.c.l.b16 %v6725
      %v6758 = vunpack.c.l.b16 %v6726
      %v6759 = vunpack.c.l.b16 %v6727
      %v6760 = vpack.c.b16 %v6745, %v6744
      %v6761 = vpack.c.b16 %v6747, %v6746
      %v6762 = vpack.c.b16 %v6749, %v6748
      %v6763 = vpack.c.b16 %v6751, %v6750
      %v6764 = vpack.c.b16 %v6753, %v6752
      %v6765 = vpack.c.b16 %v6755, %v6754
      %v6766 = vpack.c.b16 %v6757, %v6756
      %v6767 = vpack.c.b16 %v6759, %v6758
      %6776 = vmatpush.bf16.msra.mxu0 %v6767
      %6777 = vmatpush.bf16.msra.mxu0 %v6766
      %6778 = vmatpush.bf16.msra.mxu0 %v6765
      %6779 = vmatpush.bf16.msra.mxu0 %v6764
      %6780 = vmatpush.bf16.msra.mxu0 %v6763
      %6781 = vmatpush.bf16.msra.mxu0 %v6762
      %6782 = vmatpush.bf16.msra.mxu0 %v6761
      %6783 = vmatpush.bf16.msra.mxu0 %v6760
      %6784 = vmatmul.bf16.gmra.mxu0 %v6695
      %v6785 = vpop.f32.mrf.mxu0
      %v6786 = vadd.f32 0.0, %v6785
      %v6787 = vpop.f32.mrf.mxu0
      %v6788 = vadd.f32 0.0, %v6787
      %6789 = vmatmul.bf16.gmra.mxu0 %v6696
      %v6790 = vpop.f32.mrf.mxu0
      %v6791 = vadd.f32 0.0, %v6790
      %v6792 = vpop.f32.mrf.mxu0
      %v6793 = vadd.f32 0.0, %v6792
      %6794 = vmatmul.bf16.gmra.mxu0 %v6697
      %v6795 = vpop.f32.mrf.mxu0
      %v6796 = vadd.f32 0.0, %v6795
      %v6797 = vpop.f32.mrf.mxu0
      %v6798 = vadd.f32 0.0, %v6797
      %6799 = vmatmul.bf16.gmra.mxu0 %v6698
      %v6800 = vpop.f32.mrf.mxu0
      %v6801 = vadd.f32 0.0, %v6800
      %v6802 = vpop.f32.mrf.mxu0
      %v6803 = vadd.f32 0.0, %v6802
      %6804 = vmatmul.bf16.gmra.mxu0 %v6699
      %v6805 = vpop.f32.mrf.mxu0
      %v6806 = vadd.f32 0.0, %v6805
      %v6807 = vpop.f32.mrf.mxu0
      %v6808 = vadd.f32 0.0, %v6807
      %6809 = vmatmul.bf16.gmra.mxu0 %v6700
      %v6810 = vpop.f32.mrf.mxu0
      %v6811 = vadd.f32 0.0, %v6810
      %v6812 = vpop.f32.mrf.mxu0
      %v6813 = vadd.f32 0.0, %v6812
      %6814 = vmatmul.bf16.gmra.mxu0 %v6701
      %v6815 = vpop.f32.mrf.mxu0
      %v6816 = vadd.f32 0.0, %v6815
      %v6817 = vpop.f32.mrf.mxu0
      %v6818 = vadd.f32 0.0, %v6817
      %6819 = vmatmul.bf16.gmra.mxu0 %v6702
      %v6820 = vpop.f32.mrf.mxu0
      %v6821 = vadd.f32 0.0, %v6820
      %v6822 = vpop.f32.mrf.mxu0
      %v6823 = vadd.f32 0.0, %v6822
      %6824 = vmatmul.bf16.gmra.mxu0 %v6703
      %v6825 = vpop.f32.mrf.mxu0
      %v6826 = vadd.f32 0.0, %v6825
      %v6827 = vpop.f32.mrf.mxu0
      %v6828 = vadd.f32 0.0, %v6827
      %6829 = vmatmul.bf16.gmra.mxu0 %v6704
      %v6830 = vpop.f32.mrf.mxu0
      %v6831 = vadd.f32 0.0, %v6830
      %v6832 = vpop.f32.mrf.mxu0
      %v6833 = vadd.f32 0.0, %v6832
      %6834 = vmatmul.bf16.gmra.mxu0 %v6705
      %v6835 = vpop.f32.mrf.mxu0
      %v6836 = vadd.f32 0.0, %v6835
      %v6837 = vpop.f32.mrf.mxu0
      %v6838 = vadd.f32 0.0, %v6837
      %6839 = vmatmul.bf16.gmra.mxu0 %v6706
      %v6840 = vpop.f32.mrf.mxu0
      %v6841 = vadd.f32 0.0, %v6840
      %v6842 = vpop.f32.mrf.mxu0
      %v6843 = vadd.f32 0.0, %v6842
      %6844 = vmatmul.bf16.gmra.mxu0 %v6707
      %v6845 = vpop.f32.mrf.mxu0
      %v6846 = vadd.f32 0.0, %v6845
      %v6847 = vpop.f32.mrf.mxu0
      %v6848 = vadd.f32 0.0, %v6847
      %6849 = vmatmul.bf16.gmra.mxu0 %v6708
      %v6850 = vpop.f32.mrf.mxu0
      %v6851 = vadd.f32 0.0, %v6850
      %v6852 = vpop.f32.mrf.mxu0
      %v6853 = vadd.f32 0.0, %v6852
      %6854 = vmatmul.bf16.gmra.mxu0 %v6709
      %v6855 = vpop.f32.mrf.mxu0
      %v6856 = vadd.f32 0.0, %v6855
      %v6857 = vpop.f32.mrf.mxu0
      %v6858 = vadd.f32 0.0, %v6857
      %6859 = vmatmul.bf16.gmra.mxu0 %v6710
      %v6860 = vpop.f32.mrf.mxu0
      %v6861 = vadd.f32 0.0, %v6860
      %v6862 = vpop.f32.mrf.mxu0
      %v6863 = vadd.f32 0.0, %v6862
      %6864 = vdwg.mxu0
      %v6865 = vadd.f32 %v6631, %v6786
      %v6866 = vadd.f32 %v6632, %v6788
      %v6867 = vadd.f32 %v6633, %v6791
      %v6868 = vadd.f32 %v6634, %v6793
      %v6869 = vadd.f32 %v6635, %v6796
      %v6870 = vadd.f32 %v6636, %v6798
      %v6871 = vadd.f32 %v6637, %v6801
      %v6872 = vadd.f32 %v6638, %v6803
      %v6873 = vadd.f32 %v6639, %v6806
      %v6874 = vadd.f32 %v6640, %v6808
      %v6875 = vadd.f32 %v6641, %v6811
      %v6876 = vadd.f32 %v6642, %v6813
      %v6877 = vadd.f32 %v6643, %v6816
      %v6878 = vadd.f32 %v6644, %v6818
      %v6879 = vadd.f32 %v6645, %v6821
      %v6880 = vadd.f32 %v6646, %v6823
      %v6881 = vadd.f32 %v6647, %v6826
      %v6882 = vadd.f32 %v6648, %v6828
      %v6883 = vadd.f32 %v6649, %v6831
      %v6884 = vadd.f32 %v6650, %v6833
      %v6885 = vadd.f32 %v6651, %v6836
      %v6886 = vadd.f32 %v6652, %v6838
      %v6887 = vadd.f32 %v6653, %v6841
      %v6888 = vadd.f32 %v6654, %v6843
      %v6889 = vadd.f32 %v6655, %v6846
      %v6890 = vadd.f32 %v6656, %v6848
      %v6891 = vadd.f32 %v6657, %v6851
      %v6892 = vadd.f32 %v6658, %v6853
      %v6893 = vadd.f32 %v6659, %v6856
      %v6894 = vadd.f32 %v6660, %v6858
      %v6895 = vadd.f32 %v6661, %v6861
      %v6896 = vadd.f32 %v6662, %v6863
      %v6897 = vld [vmem:[%s683 + $0x1] sm:$0xff]
      %v6898 = vld [vmem:[%s683 + $0x9] sm:$0xff]
      %v6899 = vld [vmem:[%s683 + $0x19] sm:$0xff]
      %v6900 = vld [vmem:[%s683 + $0x21] sm:$0xff]
      %v6901 = vld [vmem:[%s683 + $0x31] sm:$0xff]
      %v6902 = vld [vmem:[%s683 + $0x39] sm:$0xff]
      %v6903 = vld [vmem:[%s683 + $0x49] sm:$0xff]
      %v6904 = vld [vmem:[%s683 + $0x51] sm:$0xff]
      %v6905 = vld [vmem:[%s683 + $0x61] sm:$0xff]
      %v6906 = vld [vmem:[%s683 + $0x69] sm:$0xff]
      %v6907 = vld [vmem:[%s683 + $0x79] sm:$0xff]
      %v6908 = vld [vmem:[%s683 + $0x81] sm:$0xff]
      %v6909 = vld [vmem:[%s683 + $0x91] sm:$0xff]
      %v6910 = vld [vmem:[%s683 + $0x99] sm:$0xff]
      %v6911 = vld [vmem:[%s683 + $0xa9] sm:$0xff]
      %v6912 = vld [vmem:[%s683 + $0xb1] sm:$0xff]
      %v6913 = vld [vmem:[%s683 + $0xc1] sm:$0xff]
      %v6914 = vld [vmem:[%s683 + $0xc9] sm:$0xff]
      %v6915 = vld [vmem:[%s683 + $0xd9] sm:$0xff]
      %v6916 = vld [vmem:[%s683 + $0xe1] sm:$0xff]
      %v6917 = vld [vmem:[%s683 + $0xf1] sm:$0xff]
      %v6918 = vld [vmem:[%s683 + $0xf9] sm:$0xff]
      %v6919 = vld [vmem:[%s683 + $0x109] sm:$0xff]
      %v6920 = vld [vmem:[%s683 + $0x111] sm:$0xff]
      %v6921 = vld [vmem:[%s683 + $0x121] sm:$0xff]
      %v6922 = vld [vmem:[%s683 + $0x129] sm:$0xff]
      %v6923 = vld [vmem:[%s683 + $0x139] sm:$0xff]
      %v6924 = vld [vmem:[%s683 + $0x141] sm:$0xff]
      %v6925 = vld [vmem:[%s683 + $0x151] sm:$0xff]
      %v6926 = vld [vmem:[%s683 + $0x159] sm:$0xff]
      %v6927 = vld [vmem:[%s683 + $0x169] sm:$0xff]
      %v6928 = vld [vmem:[%s683 + $0x171] sm:$0xff]
      %v6929 = vpack.c.bf16 %v6898, %v6897
      %v6930 = vpack.c.bf16 %v6900, %v6899
      %v6931 = vpack.c.bf16 %v6902, %v6901
      %v6932 = vpack.c.bf16 %v6904, %v6903
      %v6933 = vpack.c.bf16 %v6906, %v6905
      %v6934 = vpack.c.bf16 %v6908, %v6907
      %v6935 = vpack.c.bf16 %v6910, %v6909
      %v6936 = vpack.c.bf16 %v6912, %v6911
      %v6937 = vpack.c.bf16 %v6914, %v6913
      %v6938 = vpack.c.bf16 %v6916, %v6915
      %v6939 = vpack.c.bf16 %v6918, %v6917
      %v6940 = vpack.c.bf16 %v6920, %v6919
      %v6941 = vpack.c.bf16 %v6922, %v6921
      %v6942 = vpack.c.bf16 %v6924, %v6923
      %v6943 = vpack.c.bf16 %v6926, %v6925
      %v6944 = vpack.c.bf16 %v6928, %v6927
      %s6945 = scalar_lea.vmem %s2, 1408
      %v6946 = vld [vmem:[%s6945] sm:$0xf]
      %v6947 = vld [vmem:[%s6945 + $0x4] sm:$0xf]
      %v6948 = vld [vmem:[%s6945 + $0x8] sm:$0xf]
      %v6949 = vld [vmem:[%s6945 + $0xc] sm:$0xf]
      %v6950 = vld [vmem:[%s6945 + $0x10] sm:$0xf]
      %v6951 = vld [vmem:[%s6945 + $0x14] sm:$0xf]
      %v6952 = vld [vmem:[%s6945 + $0x18] sm:$0xf]
      %v6953 = vld [vmem:[%s6945 + $0x1c] sm:$0xf]
      %v6954 = vld [vmem:[%s6945 + $0x20] sm:$0xf]
      %v6955 = vld [vmem:[%s6945 + $0x24] sm:$0xf]
      %v6956 = vld [vmem:[%s6945 + $0x28] sm:$0xf]
      %v6957 = vld [vmem:[%s6945 + $0x2c] sm:$0xf]
      %v6958 = vld [vmem:[%s6945 + $0x30] sm:$0xf]
      %v6959 = vld [vmem:[%s6945 + $0x34] sm:$0xf]
      %v6960 = vld [vmem:[%s6945 + $0x38] sm:$0xf]
      %v6961 = vld [vmem:[%s6945 + $0x3c] sm:$0xf]
      %v6978 = vunpack.c.l.b16 %v6946
      %v6979 = vunpack.c.l.b16 %v6947
      %v6980 = vunpack.c.l.b16 %v6948
      %v6981 = vunpack.c.l.b16 %v6949
      %v6982 = vunpack.c.l.b16 %v6950
      %v6983 = vunpack.c.l.b16 %v6951
      %v6984 = vunpack.c.l.b16 %v6952
      %v6985 = vunpack.c.l.b16 %v6953
      %v6986 = vunpack.c.l.b16 %v6954
      %v6987 = vunpack.c.l.b16 %v6955
      %v6988 = vunpack.c.l.b16 %v6956
      %v6989 = vunpack.c.l.b16 %v6957
      %v6990 = vunpack.c.l.b16 %v6958
      %v6991 = vunpack.c.l.b16 %v6959
      %v6992 = vunpack.c.l.b16 %v6960
      %v6993 = vunpack.c.l.b16 %v6961
      %v6994 = vpack.c.b16 %v6979, %v6978
      %v6995 = vpack.c.b16 %v6981, %v6980
      %v6996 = vpack.c.b16 %v6983, %v6982
      %v6997 = vpack.c.b16 %v6985, %v6984
      %v6998 = vpack.c.b16 %v6987, %v6986
      %v6999 = vpack.c.b16 %v6989, %v6988
      %v7000 = vpack.c.b16 %v6991, %v6990
      %v7001 = vpack.c.b16 %v6993, %v6992
      %7010 = vmatpush.bf16.msra.mxu0 %v7001
      %7011 = vmatpush.bf16.msra.mxu0 %v7000
      %7012 = vmatpush.bf16.msra.mxu0 %v6999
      %7013 = vmatpush.bf16.msra.mxu0 %v6998
      %7014 = vmatpush.bf16.msra.mxu0 %v6997
      %7015 = vmatpush.bf16.msra.mxu0 %v6996
      %7016 = vmatpush.bf16.msra.mxu0 %v6995
      %7017 = vmatpush.bf16.msra.mxu0 %v6994
      %7018 = vmatmul.bf16.gmra.mxu0 %v6929
      %v7019 = vpop.f32.mrf.mxu0
      %v7020 = vadd.f32 0.0, %v7019
      %v7021 = vpop.f32.mrf.mxu0
      %v7022 = vadd.f32 0.0, %v7021
      %7023 = vmatmul.bf16.gmra.mxu0 %v6930
      %v7024 = vpop.f32.mrf.mxu0
      %v7025 = vadd.f32 0.0, %v7024
      %v7026 = vpop.f32.mrf.mxu0
      %v7027 = vadd.f32 0.0, %v7026
      %7028 = vmatmul.bf16.gmra.mxu0 %v6931
      %v7029 = vpop.f32.mrf.mxu0
      %v7030 = vadd.f32 0.0, %v7029
      %v7031 = vpop.f32.mrf.mxu0
      %v7032 = vadd.f32 0.0, %v7031
      %7033 = vmatmul.bf16.gmra.mxu0 %v6932
      %v7034 = vpop.f32.mrf.mxu0
      %v7035 = vadd.f32 0.0, %v7034
      %v7036 = vpop.f32.mrf.mxu0
      %v7037 = vadd.f32 0.0, %v7036
      %7038 = vmatmul.bf16.gmra.mxu0 %v6933
      %v7039 = vpop.f32.mrf.mxu0
      %v7040 = vadd.f32 0.0, %v7039
      %v7041 = vpop.f32.mrf.mxu0
      %v7042 = vadd.f32 0.0, %v7041
      %7043 = vmatmul.bf16.gmra.mxu0 %v6934
      %v7044 = vpop.f32.mrf.mxu0
      %v7045 = vadd.f32 0.0, %v7044
      %v7046 = vpop.f32.mrf.mxu0
      %v7047 = vadd.f32 0.0, %v7046
      %7048 = vmatmul.bf16.gmra.mxu0 %v6935
      %v7049 = vpop.f32.mrf.mxu0
      %v7050 = vadd.f32 0.0, %v7049
      %v7051 = vpop.f32.mrf.mxu0
      %v7052 = vadd.f32 0.0, %v7051
      %7053 = vmatmul.bf16.gmra.mxu0 %v6936
      %v7054 = vpop.f32.mrf.mxu0
      %v7055 = vadd.f32 0.0, %v7054
      %v7056 = vpop.f32.mrf.mxu0
      %v7057 = vadd.f32 0.0, %v7056
      %7058 = vmatmul.bf16.gmra.mxu0 %v6937
      %v7059 = vpop.f32.mrf.mxu0
      %v7060 = vadd.f32 0.0, %v7059
      %v7061 = vpop.f32.mrf.mxu0
      %v7062 = vadd.f32 0.0, %v7061
      %7063 = vmatmul.bf16.gmra.mxu0 %v6938
      %v7064 = vpop.f32.mrf.mxu0
      %v7065 = vadd.f32 0.0, %v7064
      %v7066 = vpop.f32.mrf.mxu0
      %v7067 = vadd.f32 0.0, %v7066
      %7068 = vmatmul.bf16.gmra.mxu0 %v6939
      %v7069 = vpop.f32.mrf.mxu0
      %v7070 = vadd.f32 0.0, %v7069
      %v7071 = vpop.f32.mrf.mxu0
      %v7072 = vadd.f32 0.0, %v7071
      %7073 = vmatmul.bf16.gmra.mxu0 %v6940
      %v7074 = vpop.f32.mrf.mxu0
      %v7075 = vadd.f32 0.0, %v7074
      %v7076 = vpop.f32.mrf.mxu0
      %v7077 = vadd.f32 0.0, %v7076
      %7078 = vmatmul.bf16.gmra.mxu0 %v6941
      %v7079 = vpop.f32.mrf.mxu0
      %v7080 = vadd.f32 0.0, %v7079
      %v7081 = vpop.f32.mrf.mxu0
      %v7082 = vadd.f32 0.0, %v7081
      %7083 = vmatmul.bf16.gmra.mxu0 %v6942
      %v7084 = vpop.f32.mrf.mxu0
      %v7085 = vadd.f32 0.0, %v7084
      %v7086 = vpop.f32.mrf.mxu0
      %v7087 = vadd.f32 0.0, %v7086
      %7088 = vmatmul.bf16.gmra.mxu0 %v6943
      %v7089 = vpop.f32.mrf.mxu0
      %v7090 = vadd.f32 0.0, %v7089
      %v7091 = vpop.f32.mrf.mxu0
      %v7092 = vadd.f32 0.0, %v7091
      %7093 = vmatmul.bf16.gmra.mxu0 %v6944
      %v7094 = vpop.f32.mrf.mxu0
      %v7095 = vadd.f32 0.0, %v7094
      %v7096 = vpop.f32.mrf.mxu0
      %v7097 = vadd.f32 0.0, %v7096
      %7098 = vdwg.mxu0
      %v7099 = vadd.f32 %v6865, %v7020
      %v7100 = vadd.f32 %v6866, %v7022
      %v7101 = vadd.f32 %v6867, %v7025
      %v7102 = vadd.f32 %v6868, %v7027
      %v7103 = vadd.f32 %v6869, %v7030
      %v7104 = vadd.f32 %v6870, %v7032
      %v7105 = vadd.f32 %v6871, %v7035
      %v7106 = vadd.f32 %v6872, %v7037
      %v7107 = vadd.f32 %v6873, %v7040
      %v7108 = vadd.f32 %v6874, %v7042
      %v7109 = vadd.f32 %v6875, %v7045
      %v7110 = vadd.f32 %v6876, %v7047
      %v7111 = vadd.f32 %v6877, %v7050
      %v7112 = vadd.f32 %v6878, %v7052
      %v7113 = vadd.f32 %v6879, %v7055
      %v7114 = vadd.f32 %v6880, %v7057
      %v7115 = vadd.f32 %v6881, %v7060
      %v7116 = vadd.f32 %v6882, %v7062
      %v7117 = vadd.f32 %v6883, %v7065
      %v7118 = vadd.f32 %v6884, %v7067
      %v7119 = vadd.f32 %v6885, %v7070
      %v7120 = vadd.f32 %v6886, %v7072
      %v7121 = vadd.f32 %v6887, %v7075
      %v7122 = vadd.f32 %v6888, %v7077
      %v7123 = vadd.f32 %v6889, %v7080
      %v7124 = vadd.f32 %v6890, %v7082
      %v7125 = vadd.f32 %v6891, %v7085
      %v7126 = vadd.f32 %v6892, %v7087
      %v7127 = vadd.f32 %v6893, %v7090
      %v7128 = vadd.f32 %v6894, %v7092
      %v7129 = vadd.f32 %v6895, %v7095
      %v7130 = vadd.f32 %v6896, %v7097
      %v7131 = vld [vmem:[%s683 + $0x2] sm:$0xff]
      %v7132 = vld [vmem:[%s683 + $0xa] sm:$0xff]
      %v7133 = vld [vmem:[%s683 + $0x1a] sm:$0xff]
      %v7134 = vld [vmem:[%s683 + $0x22] sm:$0xff]
      %v7135 = vld [vmem:[%s683 + $0x32] sm:$0xff]
      %v7136 = vld [vmem:[%s683 + $0x3a] sm:$0xff]
      %v7137 = vld [vmem:[%s683 + $0x4a] sm:$0xff]
      %v7138 = vld [vmem:[%s683 + $0x52] sm:$0xff]
      %v7139 = vld [vmem:[%s683 + $0x62] sm:$0xff]
      %v7140 = vld [vmem:[%s683 + $0x6a] sm:$0xff]
      %v7141 = vld [vmem:[%s683 + $0x7a] sm:$0xff]
      %v7142 = vld [vmem:[%s683 + $0x82] sm:$0xff]
      %v7143 = vld [vmem:[%s683 + $0x92] sm:$0xff]
      %v7144 = vld [vmem:[%s683 + $0x9a] sm:$0xff]
      %v7145 = vld [vmem:[%s683 + $0xaa] sm:$0xff]
      %v7146 = vld [vmem:[%s683 + $0xb2] sm:$0xff]
      %v7147 = vld [vmem:[%s683 + $0xc2] sm:$0xff]
      %v7148 = vld [vmem:[%s683 + $0xca] sm:$0xff]
      %v7149 = vld [vmem:[%s683 + $0xda] sm:$0xff]
      %v7150 = vld [vmem:[%s683 + $0xe2] sm:$0xff]
      %v7151 = vld [vmem:[%s683 + $0xf2] sm:$0xff]
      %v7152 = vld [vmem:[%s683 + $0xfa] sm:$0xff]
      %v7153 = vld [vmem:[%s683 + $0x10a] sm:$0xff]
      %v7154 = vld [vmem:[%s683 + $0x112] sm:$0xff]
      %v7155 = vld [vmem:[%s683 + $0x122] sm:$0xff]
      %v7156 = vld [vmem:[%s683 + $0x12a] sm:$0xff]
      %v7157 = vld [vmem:[%s683 + $0x13a] sm:$0xff]
      %v7158 = vld [vmem:[%s683 + $0x142] sm:$0xff]
      %v7159 = vld [vmem:[%s683 + $0x152] sm:$0xff]
      %v7160 = vld [vmem:[%s683 + $0x15a] sm:$0xff]
      %v7161 = vld [vmem:[%s683 + $0x16a] sm:$0xff]
      %v7162 = vld [vmem:[%s683 + $0x172] sm:$0xff]
      %v7163 = vpack.c.bf16 %v7132, %v7131
      %v7164 = vpack.c.bf16 %v7134, %v7133
      %v7165 = vpack.c.bf16 %v7136, %v7135
      %v7166 = vpack.c.bf16 %v7138, %v7137
      %v7167 = vpack.c.bf16 %v7140, %v7139
      %v7168 = vpack.c.bf16 %v7142, %v7141
      %v7169 = vpack.c.bf16 %v7144, %v7143
      %v7170 = vpack.c.bf16 %v7146, %v7145
      %v7171 = vpack.c.bf16 %v7148, %v7147
      %v7172 = vpack.c.bf16 %v7150, %v7149
      %v7173 = vpack.c.bf16 %v7152, %v7151
      %v7174 = vpack.c.bf16 %v7154, %v7153
      %v7175 = vpack.c.bf16 %v7156, %v7155
      %v7176 = vpack.c.bf16 %v7158, %v7157
      %v7177 = vpack.c.bf16 %v7160, %v7159
      %v7178 = vpack.c.bf16 %v7162, %v7161
      %s7179 = scalar_lea.vmem %s2, 1472
      %v7180 = vld [vmem:[%s7179] sm:$0xf]
      %v7181 = vld [vmem:[%s7179 + $0x4] sm:$0xf]
      %v7182 = vld [vmem:[%s7179 + $0x8] sm:$0xf]
      %v7183 = vld [vmem:[%s7179 + $0xc] sm:$0xf]
      %v7184 = vld [vmem:[%s7179 + $0x10] sm:$0xf]
      %v7185 = vld [vmem:[%s7179 + $0x14] sm:$0xf]
      %v7186 = vld [vmem:[%s7179 + $0x18] sm:$0xf]
      %v7187 = vld [vmem:[%s7179 + $0x1c] sm:$0xf]
      %v7188 = vld [vmem:[%s7179 + $0x20] sm:$0xf]
      %v7189 = vld [vmem:[%s7179 + $0x24] sm:$0xf]
      %v7190 = vld [vmem:[%s7179 + $0x28] sm:$0xf]
      %v7191 = vld [vmem:[%s7179 + $0x2c] sm:$0xf]
      %v7192 = vld [vmem:[%s7179 + $0x30] sm:$0xf]
      %v7193 = vld [vmem:[%s7179 + $0x34] sm:$0xf]
      %v7194 = vld [vmem:[%s7179 + $0x38] sm:$0xf]
      %v7195 = vld [vmem:[%s7179 + $0x3c] sm:$0xf]
      %v7212 = vunpack.c.l.b16 %v7180
      %v7213 = vunpack.c.l.b16 %v7181
      %v7214 = vunpack.c.l.b16 %v7182
      %v7215 = vunpack.c.l.b16 %v7183
      %v7216 = vunpack.c.l.b16 %v7184
      %v7217 = vunpack.c.l.b16 %v7185
      %v7218 = vunpack.c.l.b16 %v7186
      %v7219 = vunpack.c.l.b16 %v7187
      %v7220 = vunpack.c.l.b16 %v7188
      %v7221 = vunpack.c.l.b16 %v7189
      %v7222 = vunpack.c.l.b16 %v7190
      %v7223 = vunpack.c.l.b16 %v7191
      %v7224 = vunpack.c.l.b16 %v7192
      %v7225 = vunpack.c.l.b16 %v7193
      %v7226 = vunpack.c.l.b16 %v7194
      %v7227 = vunpack.c.l.b16 %v7195
      %v7228 = vpack.c.b16 %v7213, %v7212
      %v7229 = vpack.c.b16 %v7215, %v7214
      %v7230 = vpack.c.b16 %v7217, %v7216
      %v7231 = vpack.c.b16 %v7219, %v7218
      %v7232 = vpack.c.b16 %v7221, %v7220
      %v7233 = vpack.c.b16 %v7223, %v7222
      %v7234 = vpack.c.b16 %v7225, %v7224
      %v7235 = vpack.c.b16 %v7227, %v7226
      %7244 = vmatpush.bf16.msra.mxu0 %v7235
      %7245 = vmatpush.bf16.msra.mxu0 %v7234
      %7246 = vmatpush.bf16.msra.mxu0 %v7233
      %7247 = vmatpush.bf16.msra.mxu0 %v7232
      %7248 = vmatpush.bf16.msra.mxu0 %v7231
      %7249 = vmatpush.bf16.msra.mxu0 %v7230
      %7250 = vmatpush.bf16.msra.mxu0 %v7229
      %7251 = vmatpush.bf16.msra.mxu0 %v7228
      %7252 = vmatmul.bf16.gmra.mxu0 %v7163
      %v7253 = vpop.f32.mrf.mxu0
      %v7254 = vadd.f32 0.0, %v7253
      %v7255 = vpop.f32.mrf.mxu0
      %v7256 = vadd.f32 0.0, %v7255
      %7257 = vmatmul.bf16.gmra.mxu0 %v7164
      %v7258 = vpop.f32.mrf.mxu0
      %v7259 = vadd.f32 0.0, %v7258
      %v7260 = vpop.f32.mrf.mxu0
      %v7261 = vadd.f32 0.0, %v7260
      %7262 = vmatmul.bf16.gmra.mxu0 %v7165
      %v7263 = vpop.f32.mrf.mxu0
      %v7264 = vadd.f32 0.0, %v7263
      %v7265 = vpop.f32.mrf.mxu0
      %v7266 = vadd.f32 0.0, %v7265
      %7267 = vmatmul.bf16.gmra.mxu0 %v7166
      %v7268 = vpop.f32.mrf.mxu0
      %v7269 = vadd.f32 0.0, %v7268
      %v7270 = vpop.f32.mrf.mxu0
      %v7271 = vadd.f32 0.0, %v7270
      %7272 = vmatmul.bf16.gmra.mxu0 %v7167
      %v7273 = vpop.f32.mrf.mxu0
      %v7274 = vadd.f32 0.0, %v7273
      %v7275 = vpop.f32.mrf.mxu0
      %v7276 = vadd.f32 0.0, %v7275
      %7277 = vmatmul.bf16.gmra.mxu0 %v7168
      %v7278 = vpop.f32.mrf.mxu0
      %v7279 = vadd.f32 0.0, %v7278
      %v7280 = vpop.f32.mrf.mxu0
      %v7281 = vadd.f32 0.0, %v7280
      %7282 = vmatmul.bf16.gmra.mxu0 %v7169
      %v7283 = vpop.f32.mrf.mxu0
      %v7284 = vadd.f32 0.0, %v7283
      %v7285 = vpop.f32.mrf.mxu0
      %v7286 = vadd.f32 0.0, %v7285
      %7287 = vmatmul.bf16.gmra.mxu0 %v7170
      %v7288 = vpop.f32.mrf.mxu0
      %v7289 = vadd.f32 0.0, %v7288
      %v7290 = vpop.f32.mrf.mxu0
      %v7291 = vadd.f32 0.0, %v7290
      %7292 = vmatmul.bf16.gmra.mxu0 %v7171
      %v7293 = vpop.f32.mrf.mxu0
      %v7294 = vadd.f32 0.0, %v7293
      %v7295 = vpop.f32.mrf.mxu0
      %v7296 = vadd.f32 0.0, %v7295
      %7297 = vmatmul.bf16.gmra.mxu0 %v7172
      %v7298 = vpop.f32.mrf.mxu0
      %v7299 = vadd.f32 0.0, %v7298
      %v7300 = vpop.f32.mrf.mxu0
      %v7301 = vadd.f32 0.0, %v7300
      %7302 = vmatmul.bf16.gmra.mxu0 %v7173
      %v7303 = vpop.f32.mrf.mxu0
      %v7304 = vadd.f32 0.0, %v7303
      %v7305 = vpop.f32.mrf.mxu0
      %v7306 = vadd.f32 0.0, %v7305
      %7307 = vmatmul.bf16.gmra.mxu0 %v7174
      %v7308 = vpop.f32.mrf.mxu0
      %v7309 = vadd.f32 0.0, %v7308
      %v7310 = vpop.f32.mrf.mxu0
      %v7311 = vadd.f32 0.0, %v7310
      %7312 = vmatmul.bf16.gmra.mxu0 %v7175
      %v7313 = vpop.f32.mrf.mxu0
      %v7314 = vadd.f32 0.0, %v7313
      %v7315 = vpop.f32.mrf.mxu0
      %v7316 = vadd.f32 0.0, %v7315
      %7317 = vmatmul.bf16.gmra.mxu0 %v7176
      %v7318 = vpop.f32.mrf.mxu0
      %v7319 = vadd.f32 0.0, %v7318
      %v7320 = vpop.f32.mrf.mxu0
      %v7321 = vadd.f32 0.0, %v7320
      %7322 = vmatmul.bf16.gmra.mxu0 %v7177
      %v7323 = vpop.f32.mrf.mxu0
      %v7324 = vadd.f32 0.0, %v7323
      %v7325 = vpop.f32.mrf.mxu0
      %v7326 = vadd.f32 0.0, %v7325
      %7327 = vmatmul.bf16.gmra.mxu0 %v7178
      %v7328 = vpop.f32.mrf.mxu0
      %v7329 = vadd.f32 0.0, %v7328
      %v7330 = vpop.f32.mrf.mxu0
      %v7331 = vadd.f32 0.0, %v7330
      %7332 = vdwg.mxu0
      %v7333 = vadd.f32 %v7099, %v7254
      %v7334 = vadd.f32 %v7100, %v7256
      %v7335 = vadd.f32 %v7101, %v7259
      %v7336 = vadd.f32 %v7102, %v7261
      %v7337 = vadd.f32 %v7103, %v7264
      %v7338 = vadd.f32 %v7104, %v7266
      %v7339 = vadd.f32 %v7105, %v7269
      %v7340 = vadd.f32 %v7106, %v7271
      %v7341 = vadd.f32 %v7107, %v7274
      %v7342 = vadd.f32 %v7108, %v7276
      %v7343 = vadd.f32 %v7109, %v7279
      %v7344 = vadd.f32 %v7110, %v7281
      %v7345 = vadd.f32 %v7111, %v7284
      %v7346 = vadd.f32 %v7112, %v7286
      %v7347 = vadd.f32 %v7113, %v7289
      %v7348 = vadd.f32 %v7114, %v7291
      %v7349 = vadd.f32 %v7115, %v7294
      %v7350 = vadd.f32 %v7116, %v7296
      %v7351 = vadd.f32 %v7117, %v7299
      %v7352 = vadd.f32 %v7118, %v7301
      %v7353 = vadd.f32 %v7119, %v7304
      %v7354 = vadd.f32 %v7120, %v7306
      %v7355 = vadd.f32 %v7121, %v7309
      %v7356 = vadd.f32 %v7122, %v7311
      %v7357 = vadd.f32 %v7123, %v7314
      %v7358 = vadd.f32 %v7124, %v7316
      %v7359 = vadd.f32 %v7125, %v7319
      %v7360 = vadd.f32 %v7126, %v7321
      %v7361 = vadd.f32 %v7127, %v7324
      %v7362 = vadd.f32 %v7128, %v7326
      %v7363 = vadd.f32 %v7129, %v7329
      %v7364 = vadd.f32 %v7130, %v7331
      %v7365 = vld [vmem:[%s2055] sm:$0xff]
      %v7366 = vld [vmem:[%s2055 + $0x8] sm:$0xff]
      %v7367 = vld [vmem:[%s2055 + $0x18] sm:$0xff]
      %v7368 = vld [vmem:[%s2055 + $0x20] sm:$0xff]
      %v7369 = vld [vmem:[%s2055 + $0x30] sm:$0xff]
      %v7370 = vld [vmem:[%s2055 + $0x38] sm:$0xff]
      %v7371 = vld [vmem:[%s2055 + $0x48] sm:$0xff]
      %v7372 = vld [vmem:[%s2055 + $0x50] sm:$0xff]
      %v7373 = vld [vmem:[%s2055 + $0x60] sm:$0xff]
      %v7374 = vld [vmem:[%s2055 + $0x68] sm:$0xff]
      %v7375 = vld [vmem:[%s2055 + $0x78] sm:$0xff]
      %v7376 = vld [vmem:[%s2055 + $0x80] sm:$0xff]
      %v7377 = vld [vmem:[%s2055 + $0x90] sm:$0xff]
      %v7378 = vld [vmem:[%s2055 + $0x98] sm:$0xff]
      %v7379 = vld [vmem:[%s2055 + $0xa8] sm:$0xff]
      %v7380 = vld [vmem:[%s2055 + $0xb0] sm:$0xff]
      %v7381 = vld [vmem:[%s2055 + $0xc0] sm:$0xff]
      %v7382 = vld [vmem:[%s2055 + $0xc8] sm:$0xff]
      %v7383 = vld [vmem:[%s2055 + $0xd8] sm:$0xff]
      %v7384 = vld [vmem:[%s2055 + $0xe0] sm:$0xff]
      %v7385 = vld [vmem:[%s2055 + $0xf0] sm:$0xff]
      %v7386 = vld [vmem:[%s2055 + $0xf8] sm:$0xff]
      %v7387 = vld [vmem:[%s2055 + $0x108] sm:$0xff]
      %v7388 = vld [vmem:[%s2055 + $0x110] sm:$0xff]
      %v7389 = vld [vmem:[%s2055 + $0x120] sm:$0xff]
      %v7390 = vld [vmem:[%s2055 + $0x128] sm:$0xff]
      %v7391 = vld [vmem:[%s2055 + $0x138] sm:$0xff]
      %v7392 = vld [vmem:[%s2055 + $0x140] sm:$0xff]
      %v7393 = vld [vmem:[%s2055 + $0x150] sm:$0xff]
      %v7394 = vld [vmem:[%s2055 + $0x158] sm:$0xff]
      %v7395 = vld [vmem:[%s2055 + $0x168] sm:$0xff]
      %v7396 = vld [vmem:[%s2055 + $0x170] sm:$0xff]
      %v7397 = vpack.c.bf16 %v7366, %v7365
      %v7398 = vpack.c.bf16 %v7368, %v7367
      %v7399 = vpack.c.bf16 %v7370, %v7369
      %v7400 = vpack.c.bf16 %v7372, %v7371
      %v7401 = vpack.c.bf16 %v7374, %v7373
      %v7402 = vpack.c.bf16 %v7376, %v7375
      %v7403 = vpack.c.bf16 %v7378, %v7377
      %v7404 = vpack.c.bf16 %v7380, %v7379
      %v7405 = vpack.c.bf16 %v7382, %v7381
      %v7406 = vpack.c.bf16 %v7384, %v7383
      %v7407 = vpack.c.bf16 %v7386, %v7385
      %v7408 = vpack.c.bf16 %v7388, %v7387
      %v7409 = vpack.c.bf16 %v7390, %v7389
      %v7410 = vpack.c.bf16 %v7392, %v7391
      %v7411 = vpack.c.bf16 %v7394, %v7393
      %v7412 = vpack.c.bf16 %v7396, %v7395
      %s7413 = scalar_lea.vmem %s2, 1536
      %v7414 = vld [vmem:[%s7413] sm:$0xf]
      %v7415 = vld [vmem:[%s7413 + $0x4] sm:$0xf]
      %v7416 = vld [vmem:[%s7413 + $0x8] sm:$0xf]
      %v7417 = vld [vmem:[%s7413 + $0xc] sm:$0xf]
      %v7418 = vld [vmem:[%s7413 + $0x10] sm:$0xf]
      %v7419 = vld [vmem:[%s7413 + $0x14] sm:$0xf]
      %v7420 = vld [vmem:[%s7413 + $0x18] sm:$0xf]
      %v7421 = vld [vmem:[%s7413 + $0x1c] sm:$0xf]
      %v7422 = vld [vmem:[%s7413 + $0x20] sm:$0xf]
      %v7423 = vld [vmem:[%s7413 + $0x24] sm:$0xf]
      %v7424 = vld [vmem:[%s7413 + $0x28] sm:$0xf]
      %v7425 = vld [vmem:[%s7413 + $0x2c] sm:$0xf]
      %v7426 = vld [vmem:[%s7413 + $0x30] sm:$0xf]
      %v7427 = vld [vmem:[%s7413 + $0x34] sm:$0xf]
      %v7428 = vld [vmem:[%s7413 + $0x38] sm:$0xf]
      %v7429 = vld [vmem:[%s7413 + $0x3c] sm:$0xf]
      %v7446 = vunpack.c.l.b16 %v7414
      %v7447 = vunpack.c.l.b16 %v7415
      %v7448 = vunpack.c.l.b16 %v7416
      %v7449 = vunpack.c.l.b16 %v7417
      %v7450 = vunpack.c.l.b16 %v7418
      %v7451 = vunpack.c.l.b16 %v7419
      %v7452 = vunpack.c.l.b16 %v7420
      %v7453 = vunpack.c.l.b16 %v7421
      %v7454 = vunpack.c.l.b16 %v7422
      %v7455 = vunpack.c.l.b16 %v7423
      %v7456 = vunpack.c.l.b16 %v7424
      %v7457 = vunpack.c.l.b16 %v7425
      %v7458 = vunpack.c.l.b16 %v7426
      %v7459 = vunpack.c.l.b16 %v7427
      %v7460 = vunpack.c.l.b16 %v7428
      %v7461 = vunpack.c.l.b16 %v7429
      %v7462 = vpack.c.b16 %v7447, %v7446
      %v7463 = vpack.c.b16 %v7449, %v7448
      %v7464 = vpack.c.b16 %v7451, %v7450
      %v7465 = vpack.c.b16 %v7453, %v7452
      %v7466 = vpack.c.b16 %v7455, %v7454
      %v7467 = vpack.c.b16 %v7457, %v7456
      %v7468 = vpack.c.b16 %v7459, %v7458
      %v7469 = vpack.c.b16 %v7461, %v7460
      %7478 = vmatpush.bf16.msra.mxu0 %v7469
      %7479 = vmatpush.bf16.msra.mxu0 %v7468
      %7480 = vmatpush.bf16.msra.mxu0 %v7467
      %7481 = vmatpush.bf16.msra.mxu0 %v7466
      %7482 = vmatpush.bf16.msra.mxu0 %v7465
      %7483 = vmatpush.bf16.msra.mxu0 %v7464
      %7484 = vmatpush.bf16.msra.mxu0 %v7463
      %7485 = vmatpush.bf16.msra.mxu0 %v7462
      %7486 = vmatmul.bf16.gmra.mxu0 %v7397
      %v7487 = vpop.f32.mrf.mxu0
      %v7488 = vadd.f32 0.0, %v7487
      %v7489 = vpop.f32.mrf.mxu0
      %v7490 = vadd.f32 0.0, %v7489
      %7491 = vmatmul.bf16.gmra.mxu0 %v7398
      %v7492 = vpop.f32.mrf.mxu0
      %v7493 = vadd.f32 0.0, %v7492
      %v7494 = vpop.f32.mrf.mxu0
      %v7495 = vadd.f32 0.0, %v7494
      %7496 = vmatmul.bf16.gmra.mxu0 %v7399
      %v7497 = vpop.f32.mrf.mxu0
      %v7498 = vadd.f32 0.0, %v7497
      %v7499 = vpop.f32.mrf.mxu0
      %v7500 = vadd.f32 0.0, %v7499
      %7501 = vmatmul.bf16.gmra.mxu0 %v7400
      %v7502 = vpop.f32.mrf.mxu0
      %v7503 = vadd.f32 0.0, %v7502
      %v7504 = vpop.f32.mrf.mxu0
      %v7505 = vadd.f32 0.0, %v7504
      %7506 = vmatmul.bf16.gmra.mxu0 %v7401
      %v7507 = vpop.f32.mrf.mxu0
      %v7508 = vadd.f32 0.0, %v7507
      %v7509 = vpop.f32.mrf.mxu0
      %v7510 = vadd.f32 0.0, %v7509
      %7511 = vmatmul.bf16.gmra.mxu0 %v7402
      %v7512 = vpop.f32.mrf.mxu0
      %v7513 = vadd.f32 0.0, %v7512
      %v7514 = vpop.f32.mrf.mxu0
      %v7515 = vadd.f32 0.0, %v7514
      %7516 = vmatmul.bf16.gmra.mxu0 %v7403
      %v7517 = vpop.f32.mrf.mxu0
      %v7518 = vadd.f32 0.0, %v7517
      %v7519 = vpop.f32.mrf.mxu0
      %v7520 = vadd.f32 0.0, %v7519
      %7521 = vmatmul.bf16.gmra.mxu0 %v7404
      %v7522 = vpop.f32.mrf.mxu0
      %v7523 = vadd.f32 0.0, %v7522
      %v7524 = vpop.f32.mrf.mxu0
      %v7525 = vadd.f32 0.0, %v7524
      %7526 = vmatmul.bf16.gmra.mxu0 %v7405
      %v7527 = vpop.f32.mrf.mxu0
      %v7528 = vadd.f32 0.0, %v7527
      %v7529 = vpop.f32.mrf.mxu0
      %v7530 = vadd.f32 0.0, %v7529
      %7531 = vmatmul.bf16.gmra.mxu0 %v7406
      %v7532 = vpop.f32.mrf.mxu0
      %v7533 = vadd.f32 0.0, %v7532
      %v7534 = vpop.f32.mrf.mxu0
      %v7535 = vadd.f32 0.0, %v7534
      %7536 = vmatmul.bf16.gmra.mxu0 %v7407
      %v7537 = vpop.f32.mrf.mxu0
      %v7538 = vadd.f32 0.0, %v7537
      %v7539 = vpop.f32.mrf.mxu0
      %v7540 = vadd.f32 0.0, %v7539
      %7541 = vmatmul.bf16.gmra.mxu0 %v7408
      %v7542 = vpop.f32.mrf.mxu0
      %v7543 = vadd.f32 0.0, %v7542
      %v7544 = vpop.f32.mrf.mxu0
      %v7545 = vadd.f32 0.0, %v7544
      %7546 = vmatmul.bf16.gmra.mxu0 %v7409
      %v7547 = vpop.f32.mrf.mxu0
      %v7548 = vadd.f32 0.0, %v7547
      %v7549 = vpop.f32.mrf.mxu0
      %v7550 = vadd.f32 0.0, %v7549
      %7551 = vmatmul.bf16.gmra.mxu0 %v7410
      %v7552 = vpop.f32.mrf.mxu0
      %v7553 = vadd.f32 0.0, %v7552
      %v7554 = vpop.f32.mrf.mxu0
      %v7555 = vadd.f32 0.0, %v7554
      %7556 = vmatmul.bf16.gmra.mxu0 %v7411
      %v7557 = vpop.f32.mrf.mxu0
      %v7558 = vadd.f32 0.0, %v7557
      %v7559 = vpop.f32.mrf.mxu0
      %v7560 = vadd.f32 0.0, %v7559
      %7561 = vmatmul.bf16.gmra.mxu0 %v7412
      %v7562 = vpop.f32.mrf.mxu0
      %v7563 = vadd.f32 0.0, %v7562
      %v7564 = vpop.f32.mrf.mxu0
      %v7565 = vadd.f32 0.0, %v7564
      %7566 = vdwg.mxu0
      %v7567 = vadd.f32 %v7333, %v7488
      %v7568 = vadd.f32 %v7334, %v7490
      %v7569 = vadd.f32 %v7335, %v7493
      %v7570 = vadd.f32 %v7336, %v7495
      %v7571 = vadd.f32 %v7337, %v7498
      %v7572 = vadd.f32 %v7338, %v7500
      %v7573 = vadd.f32 %v7339, %v7503
      %v7574 = vadd.f32 %v7340, %v7505
      %v7575 = vadd.f32 %v7341, %v7508
      %v7576 = vadd.f32 %v7342, %v7510
      %v7577 = vadd.f32 %v7343, %v7513
      %v7578 = vadd.f32 %v7344, %v7515
      %v7579 = vadd.f32 %v7345, %v7518
      %v7580 = vadd.f32 %v7346, %v7520
      %v7581 = vadd.f32 %v7347, %v7523
      %v7582 = vadd.f32 %v7348, %v7525
      %v7583 = vadd.f32 %v7349, %v7528
      %v7584 = vadd.f32 %v7350, %v7530
      %v7585 = vadd.f32 %v7351, %v7533
      %v7586 = vadd.f32 %v7352, %v7535
      %v7587 = vadd.f32 %v7353, %v7538
      %v7588 = vadd.f32 %v7354, %v7540
      %v7589 = vadd.f32 %v7355, %v7543
      %v7590 = vadd.f32 %v7356, %v7545
      %v7591 = vadd.f32 %v7357, %v7548
      %v7592 = vadd.f32 %v7358, %v7550
      %v7593 = vadd.f32 %v7359, %v7553
      %v7594 = vadd.f32 %v7360, %v7555
      %v7595 = vadd.f32 %v7361, %v7558
      %v7596 = vadd.f32 %v7362, %v7560
      %v7597 = vadd.f32 %v7363, %v7563
      %v7598 = vadd.f32 %v7364, %v7565
      %v7599 = vld [vmem:[%s2055 + $0x1] sm:$0xff]
      %v7600 = vld [vmem:[%s2055 + $0x9] sm:$0xff]
      %v7601 = vld [vmem:[%s2055 + $0x19] sm:$0xff]
      %v7602 = vld [vmem:[%s2055 + $0x21] sm:$0xff]
      %v7603 = vld [vmem:[%s2055 + $0x31] sm:$0xff]
      %v7604 = vld [vmem:[%s2055 + $0x39] sm:$0xff]
      %v7605 = vld [vmem:[%s2055 + $0x49] sm:$0xff]
      %v7606 = vld [vmem:[%s2055 + $0x51] sm:$0xff]
      %v7607 = vld [vmem:[%s2055 + $0x61] sm:$0xff]
      %v7608 = vld [vmem:[%s2055 + $0x69] sm:$0xff]
      %v7609 = vld [vmem:[%s2055 + $0x79] sm:$0xff]
      %v7610 = vld [vmem:[%s2055 + $0x81] sm:$0xff]
      %v7611 = vld [vmem:[%s2055 + $0x91] sm:$0xff]
      %v7612 = vld [vmem:[%s2055 + $0x99] sm:$0xff]
      %v7613 = vld [vmem:[%s2055 + $0xa9] sm:$0xff]
      %v7614 = vld [vmem:[%s2055 + $0xb1] sm:$0xff]
      %v7615 = vld [vmem:[%s2055 + $0xc1] sm:$0xff]
      %v7616 = vld [vmem:[%s2055 + $0xc9] sm:$0xff]
      %v7617 = vld [vmem:[%s2055 + $0xd9] sm:$0xff]
      %v7618 = vld [vmem:[%s2055 + $0xe1] sm:$0xff]
      %v7619 = vld [vmem:[%s2055 + $0xf1] sm:$0xff]
      %v7620 = vld [vmem:[%s2055 + $0xf9] sm:$0xff]
      %v7621 = vld [vmem:[%s2055 + $0x109] sm:$0xff]
      %v7622 = vld [vmem:[%s2055 + $0x111] sm:$0xff]
      %v7623 = vld [vmem:[%s2055 + $0x121] sm:$0xff]
      %v7624 = vld [vmem:[%s2055 + $0x129] sm:$0xff]
      %v7625 = vld [vmem:[%s2055 + $0x139] sm:$0xff]
      %v7626 = vld [vmem:[%s2055 + $0x141] sm:$0xff]
      %v7627 = vld [vmem:[%s2055 + $0x151] sm:$0xff]
      %v7628 = vld [vmem:[%s2055 + $0x159] sm:$0xff]
      %v7629 = vld [vmem:[%s2055 + $0x169] sm:$0xff]
      %v7630 = vld [vmem:[%s2055 + $0x171] sm:$0xff]
      %v7631 = vpack.c.bf16 %v7600, %v7599
      %v7632 = vpack.c.bf16 %v7602, %v7601
      %v7633 = vpack.c.bf16 %v7604, %v7603
      %v7634 = vpack.c.bf16 %v7606, %v7605
      %v7635 = vpack.c.bf16 %v7608, %v7607
      %v7636 = vpack.c.bf16 %v7610, %v7609
      %v7637 = vpack.c.bf16 %v7612, %v7611
      %v7638 = vpack.c.bf16 %v7614, %v7613
      %v7639 = vpack.c.bf16 %v7616, %v7615
      %v7640 = vpack.c.bf16 %v7618, %v7617
      %v7641 = vpack.c.bf16 %v7620, %v7619
      %v7642 = vpack.c.bf16 %v7622, %v7621
      %v7643 = vpack.c.bf16 %v7624, %v7623
      %v7644 = vpack.c.bf16 %v7626, %v7625
      %v7645 = vpack.c.bf16 %v7628, %v7627
      %v7646 = vpack.c.bf16 %v7630, %v7629
      %s7647 = scalar_lea.vmem %s2, 1600
      %v7648 = vld [vmem:[%s7647] sm:$0xf]
      %v7649 = vld [vmem:[%s7647 + $0x4] sm:$0xf]
      %v7650 = vld [vmem:[%s7647 + $0x8] sm:$0xf]
      %v7651 = vld [vmem:[%s7647 + $0xc] sm:$0xf]
      %v7652 = vld [vmem:[%s7647 + $0x10] sm:$0xf]
      %v7653 = vld [vmem:[%s7647 + $0x14] sm:$0xf]
      %v7654 = vld [vmem:[%s7647 + $0x18] sm:$0xf]
      %v7655 = vld [vmem:[%s7647 + $0x1c] sm:$0xf]
      %v7656 = vld [vmem:[%s7647 + $0x20] sm:$0xf]
      %v7657 = vld [vmem:[%s7647 + $0x24] sm:$0xf]
      %v7658 = vld [vmem:[%s7647 + $0x28] sm:$0xf]
      %v7659 = vld [vmem:[%s7647 + $0x2c] sm:$0xf]
      %v7660 = vld [vmem:[%s7647 + $0x30] sm:$0xf]
      %v7661 = vld [vmem:[%s7647 + $0x34] sm:$0xf]
      %v7662 = vld [vmem:[%s7647 + $0x38] sm:$0xf]
      %v7663 = vld [vmem:[%s7647 + $0x3c] sm:$0xf]
      %v7680 = vunpack.c.l.b16 %v7648
      %v7681 = vunpack.c.l.b16 %v7649
      %v7682 = vunpack.c.l.b16 %v7650
      %v7683 = vunpack.c.l.b16 %v7651
      %v7684 = vunpack.c.l.b16 %v7652
      %v7685 = vunpack.c.l.b16 %v7653
      %v7686 = vunpack.c.l.b16 %v7654
      %v7687 = vunpack.c.l.b16 %v7655
      %v7688 = vunpack.c.l.b16 %v7656
      %v7689 = vunpack.c.l.b16 %v7657
      %v7690 = vunpack.c.l.b16 %v7658
      %v7691 = vunpack.c.l.b16 %v7659
      %v7692 = vunpack.c.l.b16 %v7660
      %v7693 = vunpack.c.l.b16 %v7661
      %v7694 = vunpack.c.l.b16 %v7662
      %v7695 = vunpack.c.l.b16 %v7663
      %v7696 = vpack.c.b16 %v7681, %v7680
      %v7697 = vpack.c.b16 %v7683, %v7682
      %v7698 = vpack.c.b16 %v7685, %v7684
      %v7699 = vpack.c.b16 %v7687, %v7686
      %v7700 = vpack.c.b16 %v7689, %v7688
      %v7701 = vpack.c.b16 %v7691, %v7690
      %v7702 = vpack.c.b16 %v7693, %v7692
      %v7703 = vpack.c.b16 %v7695, %v7694
      %7712 = vmatpush.bf16.msra.mxu0 %v7703
      %7713 = vmatpush.bf16.msra.mxu0 %v7702
      %7714 = vmatpush.bf16.msra.mxu0 %v7701
      %7715 = vmatpush.bf16.msra.mxu0 %v7700
      %7716 = vmatpush.bf16.msra.mxu0 %v7699
      %7717 = vmatpush.bf16.msra.mxu0 %v7698
      %7718 = vmatpush.bf16.msra.mxu0 %v7697
      %7719 = vmatpush.bf16.msra.mxu0 %v7696
      %7720 = vmatmul.bf16.gmra.mxu0 %v7631
      %v7721 = vpop.f32.mrf.mxu0
      %v7722 = vadd.f32 0.0, %v7721
      %v7723 = vpop.f32.mrf.mxu0
      %v7724 = vadd.f32 0.0, %v7723
      %7725 = vmatmul.bf16.gmra.mxu0 %v7632
      %v7726 = vpop.f32.mrf.mxu0
      %v7727 = vadd.f32 0.0, %v7726
      %v7728 = vpop.f32.mrf.mxu0
      %v7729 = vadd.f32 0.0, %v7728
      %7730 = vmatmul.bf16.gmra.mxu0 %v7633
      %v7731 = vpop.f32.mrf.mxu0
      %v7732 = vadd.f32 0.0, %v7731
      %v7733 = vpop.f32.mrf.mxu0
      %v7734 = vadd.f32 0.0, %v7733
      %7735 = vmatmul.bf16.gmra.mxu0 %v7634
      %v7736 = vpop.f32.mrf.mxu0
      %v7737 = vadd.f32 0.0, %v7736
      %v7738 = vpop.f32.mrf.mxu0
      %v7739 = vadd.f32 0.0, %v7738
      %7740 = vmatmul.bf16.gmra.mxu0 %v7635
      %v7741 = vpop.f32.mrf.mxu0
      %v7742 = vadd.f32 0.0, %v7741
      %v7743 = vpop.f32.mrf.mxu0
      %v7744 = vadd.f32 0.0, %v7743
      %7745 = vmatmul.bf16.gmra.mxu0 %v7636
      %v7746 = vpop.f32.mrf.mxu0
      %v7747 = vadd.f32 0.0, %v7746
      %v7748 = vpop.f32.mrf.mxu0
      %v7749 = vadd.f32 0.0, %v7748
      %7750 = vmatmul.bf16.gmra.mxu0 %v7637
      %v7751 = vpop.f32.mrf.mxu0
      %v7752 = vadd.f32 0.0, %v7751
      %v7753 = vpop.f32.mrf.mxu0
      %v7754 = vadd.f32 0.0, %v7753
      %7755 = vmatmul.bf16.gmra.mxu0 %v7638
      %v7756 = vpop.f32.mrf.mxu0
      %v7757 = vadd.f32 0.0, %v7756
      %v7758 = vpop.f32.mrf.mxu0
      %v7759 = vadd.f32 0.0, %v7758
      %7760 = vmatmul.bf16.gmra.mxu0 %v7639
      %v7761 = vpop.f32.mrf.mxu0
      %v7762 = vadd.f32 0.0, %v7761
      %v7763 = vpop.f32.mrf.mxu0
      %v7764 = vadd.f32 0.0, %v7763
      %7765 = vmatmul.bf16.gmra.mxu0 %v7640
      %v7766 = vpop.f32.mrf.mxu0
      %v7767 = vadd.f32 0.0, %v7766
      %v7768 = vpop.f32.mrf.mxu0
      %v7769 = vadd.f32 0.0, %v7768
      %7770 = vmatmul.bf16.gmra.mxu0 %v7641
      %v7771 = vpop.f32.mrf.mxu0
      %v7772 = vadd.f32 0.0, %v7771
      %v7773 = vpop.f32.mrf.mxu0
      %v7774 = vadd.f32 0.0, %v7773
      %7775 = vmatmul.bf16.gmra.mxu0 %v7642
      %v7776 = vpop.f32.mrf.mxu0
      %v7777 = vadd.f32 0.0, %v7776
      %v7778 = vpop.f32.mrf.mxu0
      %v7779 = vadd.f32 0.0, %v7778
      %7780 = vmatmul.bf16.gmra.mxu0 %v7643
      %v7781 = vpop.f32.mrf.mxu0
      %v7782 = vadd.f32 0.0, %v7781
      %v7783 = vpop.f32.mrf.mxu0
      %v7784 = vadd.f32 0.0, %v7783
      %7785 = vmatmul.bf16.gmra.mxu0 %v7644
      %v7786 = vpop.f32.mrf.mxu0
      %v7787 = vadd.f32 0.0, %v7786
      %v7788 = vpop.f32.mrf.mxu0
      %v7789 = vadd.f32 0.0, %v7788
      %7790 = vmatmul.bf16.gmra.mxu0 %v7645
      %v7791 = vpop.f32.mrf.mxu0
      %v7792 = vadd.f32 0.0, %v7791
      %v7793 = vpop.f32.mrf.mxu0
      %v7794 = vadd.f32 0.0, %v7793
      %7795 = vmatmul.bf16.gmra.mxu0 %v7646
      %v7796 = vpop.f32.mrf.mxu0
      %v7797 = vadd.f32 0.0, %v7796
      %v7798 = vpop.f32.mrf.mxu0
      %v7799 = vadd.f32 0.0, %v7798
      %7800 = vdwg.mxu0
      %v7801 = vadd.f32 %v7567, %v7722
      %v7802 = vadd.f32 %v7568, %v7724
      %v7803 = vadd.f32 %v7569, %v7727
      %v7804 = vadd.f32 %v7570, %v7729
      %v7805 = vadd.f32 %v7571, %v7732
      %v7806 = vadd.f32 %v7572, %v7734
      %v7807 = vadd.f32 %v7573, %v7737
      %v7808 = vadd.f32 %v7574, %v7739
      %v7809 = vadd.f32 %v7575, %v7742
      %v7810 = vadd.f32 %v7576, %v7744
      %v7811 = vadd.f32 %v7577, %v7747
      %v7812 = vadd.f32 %v7578, %v7749
      %v7813 = vadd.f32 %v7579, %v7752
      %v7814 = vadd.f32 %v7580, %v7754
      %v7815 = vadd.f32 %v7581, %v7757
      %v7816 = vadd.f32 %v7582, %v7759
      %v7817 = vadd.f32 %v7583, %v7762
      %v7818 = vadd.f32 %v7584, %v7764
      %v7819 = vadd.f32 %v7585, %v7767
      %v7820 = vadd.f32 %v7586, %v7769
      %v7821 = vadd.f32 %v7587, %v7772
      %v7822 = vadd.f32 %v7588, %v7774
      %v7823 = vadd.f32 %v7589, %v7777
      %v7824 = vadd.f32 %v7590, %v7779
      %v7825 = vadd.f32 %v7591, %v7782
      %v7826 = vadd.f32 %v7592, %v7784
      %v7827 = vadd.f32 %v7593, %v7787
      %v7828 = vadd.f32 %v7594, %v7789
      %v7829 = vadd.f32 %v7595, %v7792
      %v7830 = vadd.f32 %v7596, %v7794
      %v7831 = vadd.f32 %v7597, %v7797
      %v7832 = vadd.f32 %v7598, %v7799
      %v7833 = vld [vmem:[%s2055 + $0x2] sm:$0xff]
      %v7834 = vld [vmem:[%s2055 + $0xa] sm:$0xff]
      %v7835 = vld [vmem:[%s2055 + $0x1a] sm:$0xff]
      %v7836 = vld [vmem:[%s2055 + $0x22] sm:$0xff]
      %v7837 = vld [vmem:[%s2055 + $0x32] sm:$0xff]
      %v7838 = vld [vmem:[%s2055 + $0x3a] sm:$0xff]
      %v7839 = vld [vmem:[%s2055 + $0x4a] sm:$0xff]
      %v7840 = vld [vmem:[%s2055 + $0x52] sm:$0xff]
      %v7841 = vld [vmem:[%s2055 + $0x62] sm:$0xff]
      %v7842 = vld [vmem:[%s2055 + $0x6a] sm:$0xff]
      %v7843 = vld [vmem:[%s2055 + $0x7a] sm:$0xff]
      %v7844 = vld [vmem:[%s2055 + $0x82] sm:$0xff]
      %v7845 = vld [vmem:[%s2055 + $0x92] sm:$0xff]
      %v7846 = vld [vmem:[%s2055 + $0x9a] sm:$0xff]
      %v7847 = vld [vmem:[%s2055 + $0xaa] sm:$0xff]
      %v7848 = vld [vmem:[%s2055 + $0xb2] sm:$0xff]
      %v7849 = vld [vmem:[%s2055 + $0xc2] sm:$0xff]
      %v7850 = vld [vmem:[%s2055 + $0xca] sm:$0xff]
      %v7851 = vld [vmem:[%s2055 + $0xda] sm:$0xff]
      %v7852 = vld [vmem:[%s2055 + $0xe2] sm:$0xff]
      %v7853 = vld [vmem:[%s2055 + $0xf2] sm:$0xff]
      %v7854 = vld [vmem:[%s2055 + $0xfa] sm:$0xff]
      %v7855 = vld [vmem:[%s2055 + $0x10a] sm:$0xff]
      %v7856 = vld [vmem:[%s2055 + $0x112] sm:$0xff]
      %v7857 = vld [vmem:[%s2055 + $0x122] sm:$0xff]
      %v7858 = vld [vmem:[%s2055 + $0x12a] sm:$0xff]
      %v7859 = vld [vmem:[%s2055 + $0x13a] sm:$0xff]
      %v7860 = vld [vmem:[%s2055 + $0x142] sm:$0xff]
      %v7861 = vld [vmem:[%s2055 + $0x152] sm:$0xff]
      %v7862 = vld [vmem:[%s2055 + $0x15a] sm:$0xff]
      %v7863 = vld [vmem:[%s2055 + $0x16a] sm:$0xff]
      %v7864 = vld [vmem:[%s2055 + $0x172] sm:$0xff]
      %v7865 = vpack.c.bf16 %v7834, %v7833
      %v7866 = vpack.c.bf16 %v7836, %v7835
      %v7867 = vpack.c.bf16 %v7838, %v7837
      %v7868 = vpack.c.bf16 %v7840, %v7839
      %v7869 = vpack.c.bf16 %v7842, %v7841
      %v7870 = vpack.c.bf16 %v7844, %v7843
      %v7871 = vpack.c.bf16 %v7846, %v7845
      %v7872 = vpack.c.bf16 %v7848, %v7847
      %v7873 = vpack.c.bf16 %v7850, %v7849
      %v7874 = vpack.c.bf16 %v7852, %v7851
      %v7875 = vpack.c.bf16 %v7854, %v7853
      %v7876 = vpack.c.bf16 %v7856, %v7855
      %v7877 = vpack.c.bf16 %v7858, %v7857
      %v7878 = vpack.c.bf16 %v7860, %v7859
      %v7879 = vpack.c.bf16 %v7862, %v7861
      %v7880 = vpack.c.bf16 %v7864, %v7863
      %s7881 = scalar_lea.vmem %s2, 1664
      %v7882 = vld [vmem:[%s7881] sm:$0xf]
      %v7883 = vld [vmem:[%s7881 + $0x4] sm:$0xf]
      %v7884 = vld [vmem:[%s7881 + $0x8] sm:$0xf]
      %v7885 = vld [vmem:[%s7881 + $0xc] sm:$0xf]
      %v7886 = vld [vmem:[%s7881 + $0x10] sm:$0xf]
      %v7887 = vld [vmem:[%s7881 + $0x14] sm:$0xf]
      %v7888 = vld [vmem:[%s7881 + $0x18] sm:$0xf]
      %v7889 = vld [vmem:[%s7881 + $0x1c] sm:$0xf]
      %v7890 = vld [vmem:[%s7881 + $0x20] sm:$0xf]
      %v7891 = vld [vmem:[%s7881 + $0x24] sm:$0xf]
      %v7892 = vld [vmem:[%s7881 + $0x28] sm:$0xf]
      %v7893 = vld [vmem:[%s7881 + $0x2c] sm:$0xf]
      %v7894 = vld [vmem:[%s7881 + $0x30] sm:$0xf]
      %v7895 = vld [vmem:[%s7881 + $0x34] sm:$0xf]
      %v7896 = vld [vmem:[%s7881 + $0x38] sm:$0xf]
      %v7897 = vld [vmem:[%s7881 + $0x3c] sm:$0xf]
      %v7914 = vunpack.c.l.b16 %v7882
      %v7915 = vunpack.c.l.b16 %v7883
      %v7916 = vunpack.c.l.b16 %v7884
      %v7917 = vunpack.c.l.b16 %v7885
      %v7918 = vunpack.c.l.b16 %v7886
      %v7919 = vunpack.c.l.b16 %v7887
      %v7920 = vunpack.c.l.b16 %v7888
      %v7921 = vunpack.c.l.b16 %v7889
      %v7922 = vunpack.c.l.b16 %v7890
      %v7923 = vunpack.c.l.b16 %v7891
      %v7924 = vunpack.c.l.b16 %v7892
      %v7925 = vunpack.c.l.b16 %v7893
      %v7926 = vunpack.c.l.b16 %v7894
      %v7927 = vunpack.c.l.b16 %v7895
      %v7928 = vunpack.c.l.b16 %v7896
      %v7929 = vunpack.c.l.b16 %v7897
      %v7930 = vpack.c.b16 %v7915, %v7914
      %v7931 = vpack.c.b16 %v7917, %v7916
      %v7932 = vpack.c.b16 %v7919, %v7918
      %v7933 = vpack.c.b16 %v7921, %v7920
      %v7934 = vpack.c.b16 %v7923, %v7922
      %v7935 = vpack.c.b16 %v7925, %v7924
      %v7936 = vpack.c.b16 %v7927, %v7926
      %v7937 = vpack.c.b16 %v7929, %v7928
      %7946 = vmatpush.bf16.msra.mxu0 %v7937
      %7947 = vmatpush.bf16.msra.mxu0 %v7936
      %7948 = vmatpush.bf16.msra.mxu0 %v7935
      %7949 = vmatpush.bf16.msra.mxu0 %v7934
      %7950 = vmatpush.bf16.msra.mxu0 %v7933
      %7951 = vmatpush.bf16.msra.mxu0 %v7932
      %7952 = vmatpush.bf16.msra.mxu0 %v7931
      %7953 = vmatpush.bf16.msra.mxu0 %v7930
      %7954 = vmatmul.bf16.gmra.mxu0 %v7865
      %v7955 = vpop.f32.mrf.mxu0
      %v7956 = vadd.f32 0.0, %v7955
      %v7957 = vpop.f32.mrf.mxu0
      %v7958 = vadd.f32 0.0, %v7957
      %7959 = vmatmul.bf16.gmra.mxu0 %v7866
      %v7960 = vpop.f32.mrf.mxu0
      %v7961 = vadd.f32 0.0, %v7960
      %v7962 = vpop.f32.mrf.mxu0
      %v7963 = vadd.f32 0.0, %v7962
      %7964 = vmatmul.bf16.gmra.mxu0 %v7867
      %v7965 = vpop.f32.mrf.mxu0
      %v7966 = vadd.f32 0.0, %v7965
      %v7967 = vpop.f32.mrf.mxu0
      %v7968 = vadd.f32 0.0, %v7967
      %7969 = vmatmul.bf16.gmra.mxu0 %v7868
      %v7970 = vpop.f32.mrf.mxu0
      %v7971 = vadd.f32 0.0, %v7970
      %v7972 = vpop.f32.mrf.mxu0
      %v7973 = vadd.f32 0.0, %v7972
      %7974 = vmatmul.bf16.gmra.mxu0 %v7869
      %v7975 = vpop.f32.mrf.mxu0
      %v7976 = vadd.f32 0.0, %v7975
      %v7977 = vpop.f32.mrf.mxu0
      %v7978 = vadd.f32 0.0, %v7977
      %7979 = vmatmul.bf16.gmra.mxu0 %v7870
      %v7980 = vpop.f32.mrf.mxu0
      %v7981 = vadd.f32 0.0, %v7980
      %v7982 = vpop.f32.mrf.mxu0
      %v7983 = vadd.f32 0.0, %v7982
      %7984 = vmatmul.bf16.gmra.mxu0 %v7871
      %v7985 = vpop.f32.mrf.mxu0
      %v7986 = vadd.f32 0.0, %v7985
      %v7987 = vpop.f32.mrf.mxu0
      %v7988 = vadd.f32 0.0, %v7987
      %7989 = vmatmul.bf16.gmra.mxu0 %v7872
      %v7990 = vpop.f32.mrf.mxu0
      %v7991 = vadd.f32 0.0, %v7990
      %v7992 = vpop.f32.mrf.mxu0
      %v7993 = vadd.f32 0.0, %v7992
      %7994 = vmatmul.bf16.gmra.mxu0 %v7873
      %v7995 = vpop.f32.mrf.mxu0
      %v7996 = vadd.f32 0.0, %v7995
      %v7997 = vpop.f32.mrf.mxu0
      %v7998 = vadd.f32 0.0, %v7997
      %7999 = vmatmul.bf16.gmra.mxu0 %v7874
      %v8000 = vpop.f32.mrf.mxu0
      %v8001 = vadd.f32 0.0, %v8000
      %v8002 = vpop.f32.mrf.mxu0
      %v8003 = vadd.f32 0.0, %v8002
      %8004 = vmatmul.bf16.gmra.mxu0 %v7875
      %v8005 = vpop.f32.mrf.mxu0
      %v8006 = vadd.f32 0.0, %v8005
      %v8007 = vpop.f32.mrf.mxu0
      %v8008 = vadd.f32 0.0, %v8007
      %8009 = vmatmul.bf16.gmra.mxu0 %v7876
      %v8010 = vpop.f32.mrf.mxu0
      %v8011 = vadd.f32 0.0, %v8010
      %v8012 = vpop.f32.mrf.mxu0
      %v8013 = vadd.f32 0.0, %v8012
      %8014 = vmatmul.bf16.gmra.mxu0 %v7877
      %v8015 = vpop.f32.mrf.mxu0
      %v8016 = vadd.f32 0.0, %v8015
      %v8017 = vpop.f32.mrf.mxu0
      %v8018 = vadd.f32 0.0, %v8017
      %8019 = vmatmul.bf16.gmra.mxu0 %v7878
      %v8020 = vpop.f32.mrf.mxu0
      %v8021 = vadd.f32 0.0, %v8020
      %v8022 = vpop.f32.mrf.mxu0
      %v8023 = vadd.f32 0.0, %v8022
      %8024 = vmatmul.bf16.gmra.mxu0 %v7879
      %v8025 = vpop.f32.mrf.mxu0
      %v8026 = vadd.f32 0.0, %v8025
      %v8027 = vpop.f32.mrf.mxu0
      %v8028 = vadd.f32 0.0, %v8027
      %8029 = vmatmul.bf16.gmra.mxu0 %v7880
      %v8030 = vpop.f32.mrf.mxu0
      %v8031 = vadd.f32 0.0, %v8030
      %v8032 = vpop.f32.mrf.mxu0
      %v8033 = vadd.f32 0.0, %v8032
      %8034 = vdwg.mxu0
      %v8035 = vadd.f32 %v7801, %v7956
      %v8036 = vadd.f32 %v7802, %v7958
      %v8037 = vadd.f32 %v7803, %v7961
      %v8038 = vadd.f32 %v7804, %v7963
      %v8039 = vadd.f32 %v7805, %v7966
      %v8040 = vadd.f32 %v7806, %v7968
      %v8041 = vadd.f32 %v7807, %v7971
      %v8042 = vadd.f32 %v7808, %v7973
      %v8043 = vadd.f32 %v7809, %v7976
      %v8044 = vadd.f32 %v7810, %v7978
      %v8045 = vadd.f32 %v7811, %v7981
      %v8046 = vadd.f32 %v7812, %v7983
      %v8047 = vadd.f32 %v7813, %v7986
      %v8048 = vadd.f32 %v7814, %v7988
      %v8049 = vadd.f32 %v7815, %v7991
      %v8050 = vadd.f32 %v7816, %v7993
      %v8051 = vadd.f32 %v7817, %v7996
      %v8052 = vadd.f32 %v7818, %v7998
      %v8053 = vadd.f32 %v7819, %v8001
      %v8054 = vadd.f32 %v7820, %v8003
      %v8055 = vadd.f32 %v7821, %v8006
      %v8056 = vadd.f32 %v7822, %v8008
      %v8057 = vadd.f32 %v7823, %v8011
      %v8058 = vadd.f32 %v7824, %v8013
      %v8059 = vadd.f32 %v7825, %v8016
      %v8060 = vadd.f32 %v7826, %v8018
      %v8061 = vadd.f32 %v7827, %v8021
      %v8062 = vadd.f32 %v7828, %v8023
      %v8063 = vadd.f32 %v7829, %v8026
      %v8064 = vadd.f32 %v7830, %v8028
      %v8065 = vadd.f32 %v7831, %v8031
      %v8066 = vadd.f32 %v7832, %v8033
      %s8067 = scalar_lea.vmem %s4, 2
      %v8068 = vld [vmem:[%s8067] sm:$0x1]
      %v8070 = vperm.slane %v8068, 0
      %v8072 = vadd.f32 %v8035, %v8070
      %v8073 = vadd.f32 %v8036, %v8070
      %v8074 = vadd.f32 %v8037, %v8070
      %v8075 = vadd.f32 %v8038, %v8070
      %v8076 = vadd.f32 %v8039, %v8070
      %v8077 = vadd.f32 %v8040, %v8070
      %v8078 = vadd.f32 %v8041, %v8070
      %v8079 = vadd.f32 %v8042, %v8070
      %v8080 = vadd.f32 %v8043, %v8070
      %v8081 = vadd.f32 %v8044, %v8070
      %v8082 = vadd.f32 %v8045, %v8070
      %v8083 = vadd.f32 %v8046, %v8070
      %v8084 = vadd.f32 %v8047, %v8070
      %v8085 = vadd.f32 %v8048, %v8070
      %v8086 = vadd.f32 %v8049, %v8070
      %v8087 = vadd.f32 %v8050, %v8070
      %v8088 = vadd.f32 %v8051, %v8070
      %v8089 = vadd.f32 %v8052, %v8070
      %v8090 = vadd.f32 %v8053, %v8070
      %v8091 = vadd.f32 %v8054, %v8070
      %v8092 = vadd.f32 %v8055, %v8070
      %v8093 = vadd.f32 %v8056, %v8070
      %v8094 = vadd.f32 %v8057, %v8070
      %v8095 = vadd.f32 %v8058, %v8070
      %v8096 = vadd.f32 %v8059, %v8070
      %v8097 = vadd.f32 %v8060, %v8070
      %v8098 = vadd.f32 %v8061, %v8070
      %v8099 = vadd.f32 %v8062, %v8070
      %v8100 = vadd.f32 %v8063, %v8070
      %v8101 = vadd.f32 %v8064, %v8070
      %v8102 = vadd.f32 %v8065, %v8070
      %v8103 = vadd.f32 %v8066, %v8070
      %v8104 = vmax.f32 %v8072, 0.0
      %v8105 = vmax.f32 %v8073, 0.0
      %v8106 = vmax.f32 %v8074, 0.0
      %v8107 = vmax.f32 %v8075, 0.0
      %v8108 = vmax.f32 %v8076, 0.0
      %v8109 = vmax.f32 %v8077, 0.0
      %v8110 = vmax.f32 %v8078, 0.0
      %v8111 = vmax.f32 %v8079, 0.0
      %v8112 = vmax.f32 %v8080, 0.0
      %v8113 = vmax.f32 %v8081, 0.0
      %v8114 = vmax.f32 %v8082, 0.0
      %v8115 = vmax.f32 %v8083, 0.0
      %v8116 = vmax.f32 %v8084, 0.0
      %v8117 = vmax.f32 %v8085, 0.0
      %v8118 = vmax.f32 %v8086, 0.0
      %v8119 = vmax.f32 %v8087, 0.0
      %v8120 = vmax.f32 %v8088, 0.0
      %v8121 = vmax.f32 %v8089, 0.0
      %v8122 = vmax.f32 %v8090, 0.0
      %v8123 = vmax.f32 %v8091, 0.0
      %v8124 = vmax.f32 %v8092, 0.0
      %v8125 = vmax.f32 %v8093, 0.0
      %v8126 = vmax.f32 %v8094, 0.0
      %v8127 = vmax.f32 %v8095, 0.0
      %v8128 = vmax.f32 %v8096, 0.0
      %v8129 = vmax.f32 %v8097, 0.0
      %v8130 = vmax.f32 %v8098, 0.0
      %v8131 = vmax.f32 %v8099, 0.0
      %v8132 = vmax.f32 %v8100, 0.0
      %v8133 = vmax.f32 %v8101, 0.0
      %v8134 = vmax.f32 %v8102, 0.0
      %v8135 = vmax.f32 %v8103, 0.0
      %v8136 = vpack.c.bf16 %v8104, %v8104
      %v8137 = vpack.c.bf16 %v8105, %v8105
      %v8138 = vpack.c.bf16 %v8106, %v8106
      %v8139 = vpack.c.bf16 %v8107, %v8107
      %v8140 = vpack.c.bf16 %v8108, %v8108
      %v8141 = vpack.c.bf16 %v8109, %v8109
      %v8142 = vpack.c.bf16 %v8110, %v8110
      %v8143 = vpack.c.bf16 %v8111, %v8111
      %v8144 = vpack.c.bf16 %v8112, %v8112
      %v8145 = vpack.c.bf16 %v8113, %v8113
      %v8146 = vpack.c.bf16 %v8114, %v8114
      %v8147 = vpack.c.bf16 %v8115, %v8115
      %v8148 = vpack.c.bf16 %v8116, %v8116
      %v8149 = vpack.c.bf16 %v8117, %v8117
      %v8150 = vpack.c.bf16 %v8118, %v8118
      %v8151 = vpack.c.bf16 %v8119, %v8119
      %v8152 = vpack.c.bf16 %v8120, %v8120
      %v8153 = vpack.c.bf16 %v8121, %v8121
      %v8154 = vpack.c.bf16 %v8122, %v8122
      %v8155 = vpack.c.bf16 %v8123, %v8123
      %v8156 = vpack.c.bf16 %v8124, %v8124
      %v8157 = vpack.c.bf16 %v8125, %v8125
      %v8158 = vpack.c.bf16 %v8126, %v8126
      %v8159 = vpack.c.bf16 %v8127, %v8127
      %v8160 = vpack.c.bf16 %v8128, %v8128
      %v8161 = vpack.c.bf16 %v8129, %v8129
      %v8162 = vpack.c.bf16 %v8130, %v8130
      %v8163 = vpack.c.bf16 %v8131, %v8131
      %v8164 = vpack.c.bf16 %v8132, %v8132
      %v8165 = vpack.c.bf16 %v8133, %v8133
      %v8166 = vpack.c.bf16 %v8134, %v8134
      %v8167 = vpack.c.bf16 %v8135, %v8135
      %8168 = vst [vmem:[%s224] sm:$0xf] %v8136
      %8169 = vst [vmem:[%s224 + $0x4] sm:$0xf] %v8137
      %8170 = vst [vmem:[%s224 + $0x8] sm:$0xf] %v8138
      %8171 = vst [vmem:[%s224 + $0xc] sm:$0xf] %v8139
      %8172 = vst [vmem:[%s224 + $0x10] sm:$0xf] %v8140
      %8173 = vst [vmem:[%s224 + $0x14] sm:$0xf] %v8141
      %8174 = vst [vmem:[%s224 + $0x18] sm:$0xf] %v8142
      %8175 = vst [vmem:[%s224 + $0x1c] sm:$0xf] %v8143
      %8176 = vst [vmem:[%s224 + $0x20] sm:$0xf] %v8144
      %8177 = vst [vmem:[%s224 + $0x24] sm:$0xf] %v8145
      %8178 = vst [vmem:[%s224 + $0x28] sm:$0xf] %v8146
      %8179 = vst [vmem:[%s224 + $0x2c] sm:$0xf] %v8147
      %8180 = vst [vmem:[%s224 + $0x30] sm:$0xf] %v8148
      %8181 = vst [vmem:[%s224 + $0x34] sm:$0xf] %v8149
      %8182 = vst [vmem:[%s224 + $0x38] sm:$0xf] %v8150
      %8183 = vst [vmem:[%s224 + $0x3c] sm:$0xf] %v8151
      %8184 = vst [vmem:[%s224 + $0x40] sm:$0xf] %v8152
      %8185 = vst [vmem:[%s224 + $0x44] sm:$0xf] %v8153
      %8186 = vst [vmem:[%s224 + $0x48] sm:$0xf] %v8154
      %8187 = vst [vmem:[%s224 + $0x4c] sm:$0xf] %v8155
      %8188 = vst [vmem:[%s224 + $0x50] sm:$0xf] %v8156
      %8189 = vst [vmem:[%s224 + $0x54] sm:$0xf] %v8157
      %8190 = vst [vmem:[%s224 + $0x58] sm:$0xf] %v8158
      %8191 = vst [vmem:[%s224 + $0x5c] sm:$0xf] %v8159
      %8192 = vst [vmem:[%s224 + $0x60] sm:$0xf] %v8160
      %8193 = vst [vmem:[%s224 + $0x64] sm:$0xf] %v8161
      %8194 = vst [vmem:[%s224 + $0x68] sm:$0xf] %v8162
      %8195 = vst [vmem:[%s224 + $0x6c] sm:$0xf] %v8163
      %8196 = vst [vmem:[%s224 + $0x70] sm:$0xf] %v8164
      %8197 = vst [vmem:[%s224 + $0x74] sm:$0xf] %v8165
      %8198 = vst [vmem:[%s224 + $0x78] sm:$0xf] %v8166
      %8199 = vst [vmem:[%s224 + $0x7c] sm:$0xf] %v8167
      %p8200 = scmp.lt.s32.totalorder %s16, 1
      %s8201 = scalar_select %p8200, %s16, 1
      %s8202 = smul.addr %s8201, 32
      %s8203 = smul.addr %s8202, 4
      %s8204 = scalar_lea.vmem %s5, %s8203
      // Predicated region
      $region41: #{dense_block_forward.1} parent=39 // pred_check
        %p8205 = pneg %p144
      $region42: #{dense_block_forward.1} parent=39 // pred_check_branch
        %8207 = sbr.rel (%p8205) target = $region44
      $region43: #{dense_block_forward.1} parent=39 // pred_region
        _
      $region44: #{dense_block_forward.1} parent=39 // pred_fallthru
        _
    $region40: #{dense_block_forward.1} parent=5 // pred_fallthru
      _
    %p8208 = scmp.le.s32.totalorder 2, %s11
    // Predicated region
    $region45: #{dense_block_forward.1} parent=5 // pred_check
      %p8209 = pneg %p8208
    $region46: #{dense_block_forward.1} parent=5 // pred_check_branch
      %8211 = sbr.rel (%p8209) target = $region48
    $region47: #{dense_block_forward.1} parent=5 // pred_region
      %s8212 = ssub.s32 %s11, 2
      // Predicated region
      $region49: #{dense_block_forward.1} parent=47 // pred_check
        %p8213 = pneg %p150
      $region50: #{dense_block_forward.1} parent=47 // pred_check_branch
        %8215 = sbr.rel (%p8213) target = $region52
      $region51: #{dense_block_forward.1} parent=47 // pred_region
        %p8216 = scmp.lt.s32.totalorder %s17, 1
        %s8217 = scalar_select %p8216, %s17, 1
        %s8218 = smul.addr %s8217, 32
        %s8219 = smul.addr %s8218, 4
        %s8220 = scalar_lea.vmem %s5, %s8219
      $region52: #{dense_block_forward.1} parent=47 // pred_fallthru
        _
    $region48: #{dense_block_forward.1} parent=5 // pred_fallthru
      _
  $region6: #{dense_block_forward.1} parent=0 // loop_footer
    %s15 = sadd.s32 1, %s11
  $region7: #{dense_block_forward.1} parent=0 // loop_footer_branch
    %10 = sbr.rel target = $region3
  $region8: #{dense_block_forward.1} parent=0 // loop_exit
    _

</llo_original>
